<compile_context>
chip_gen: v7x
topology: tpu7x:2x2x1
jax: 0.10.0
libtpu: 0.0.40
codegen_flags: <defaults>
</compile_context>

<pallas_src>
import jax
import jax.numpy as jnp
from jax.experimental import pallas as pl
from jax.experimental.pallas import tpu as pltpu


# --------------------------------------------------------------------------
# Pallas kernels
# --------------------------------------------------------------------------
def _mm_kernel(a_ref, w_ref, p_ref, o_ref):
    # p_ref rows: 0 = scale, 1 = shift, 2 = PReLU alpha.
    y = jnp.dot(a_ref[...], w_ref[...], preferred_element_type=jnp.float32)
    y = y * p_ref[0:1, :] + p_ref[1:2, :]
    o_ref[...] = jnp.where(y > 0, y, p_ref[2:3, :] * y).astype(o_ref.dtype)


def _mm_res_kernel(a_ref, w_ref, p_ref, res_ref, o_ref):
    # p_ref rows: 0 = scale, 1 = shift, 2 = alpha1, 3 = alpha2 (after residual).
    y = jnp.dot(a_ref[...], w_ref[...], preferred_element_type=jnp.float32)
    y = y * p_ref[0:1, :] + p_ref[1:2, :]
    y = jnp.where(y > 0, y, p_ref[2:3, :] * y)
    y = y + res_ref[...].astype(jnp.float32)
    o_ref[...] = jnp.where(y > 0, y, p_ref[3:4, :] * y).astype(o_ref.dtype)


def _head_kernel(x_ref, cx_ref, cy_ref, w_ref, b_ref, o_ref):
    # Fused final 1x1 conv (C -> 1) + soft-argmax.
    #   x_ref: (C, B, HW)  -- HW on the lane axis (lane-dense softmax / sums)
    #   cx/cy_ref: (1, HW) coordinate grids; w_ref: (C,) SMEM; b_ref: (1,) SMEM
    C = x_ref.shape[0]
    logit = jnp.zeros(x_ref.shape[1:], jnp.float32) + b_ref[0]      # (B, HW)
    for c in range(C):                       # static unrolled channel reduction
        logit = logit + x_ref[c].astype(jnp.float32) * w_ref[c]
    m = jnp.max(logit, axis=1, keepdims=True)
    e = jnp.exp(logit - m)
    p = e / jnp.sum(e, axis=1, keepdims=True)          # exact softmax weights
    px = jnp.sum(p * cx_ref[...], axis=1, keepdims=True)
    py = jnp.sum(p * cy_ref[...], axis=1, keepdims=True)
    o_ref[...] = jnp.concatenate([px, py], axis=1)     # one dense (B,2) store


# --------------------------------------------------------------------------
# Pallas wrappers
# --------------------------------------------------------------------------
_VMEM = pl.BlockSpec(memory_space=pltpu.MemorySpace.VMEM)
_SMEM = pl.BlockSpec(memory_space=pltpu.MemorySpace.SMEM)


def _round_up(v, m):
    return (v + m - 1) // m * m


def fused_matmul(a, w_p, prow, residual=None, out_dtype=jnp.bfloat16,
                 tm_max=512):
    """out = PReLU((a @ w_p) * scale + shift)  [optional residual + 2nd PReLU].

    w_p: (K, Np) bf16, Np a multiple of 128 (prepared once offline).
    prow: (8, Np) f32 packed epilogue rows [scale, shift, alpha1, alpha2, 0...].
    A (and residual) are NOT padded along M: grid = cdiv(M, TM); the edge tile
    reads garbage past M and its OOB output writes are dropped (rows are
    independent).  Returns (M, Np); caller slices the valid N columns.
    """
    M, K = a.shape
    Np = w_p.shape[1]
    TN = 256 if Np % 256 == 0 else 128        # fill the 256-wide MXU (v6e/v7x)
    grid_n = Np // TN
    TM = min(tm_max, _round_up(M, 8))
    if grid_n == 1 and M > 256:               # >=2 parallel steps for v7x 2-TC
        TM = min(TM, _round_up((M + 1) // 2, 8))
    grid_m = pl.cdiv(M, TM)

    a_bf = a.astype(jnp.bfloat16)
    a_spec = pl.BlockSpec((TM, K), lambda i, j: (i, 0))
    w_spec = pl.BlockSpec((K, TN), lambda i, j: (0, j))
    p_spec = pl.BlockSpec((8, TN), lambda i, j: (0, j))
    o_spec = pl.BlockSpec((TM, TN), lambda i, j: (i, j))
    cparams = pltpu.CompilerParams(
        dimension_semantics=("parallel", "parallel"),
        vmem_limit_bytes=32 * 1024 * 1024)     # safe on v5e/v6e/v7x

    if residual is None:
        return pl.pallas_call(
            _mm_kernel,
            out_shape=jax.ShapeDtypeStruct((M, Np), out_dtype),
            grid=(grid_m, grid_n),
            in_specs=[a_spec, w_spec, p_spec],
            out_specs=o_spec,
            compiler_params=cparams,
        )(a_bf, w_p, prow)

    n_res = residual.shape[1]
    res = residual if n_res == Np else jnp.pad(residual,
                                               ((0, 0), (0, Np - n_res)))
    res = res.astype(jnp.bfloat16)
    return pl.pallas_call(
        _mm_res_kernel,
        out_shape=jax.ShapeDtypeStruct((M, Np), out_dtype),
        grid=(grid_m, grid_n),
        in_specs=[a_spec, w_spec, p_spec, o_spec],
        out_specs=o_spec,
        compiler_params=cparams,
    )(a_bf, w_p, prow, res)


def head_spatial_argmax(x, w, b):
    """Fused final 1x1 conv (C -> 1) + soft-argmax. x: (B,H,W,C) -> (B,2)."""
    B, H, W, C = x.shape
    xt = jnp.transpose(x.reshape(B, H * W, C), (2, 0, 1))    # (C, B, HW)
    lin_w = jnp.linspace(-1.0, 1.0, W, dtype=jnp.float32)
    lin_h = jnp.linspace(-1.0, 1.0, H, dtype=jnp.float32)
    cx = jnp.tile(lin_w, H).reshape(1, H * W)    # column (x) coord per flat idx
    cy = jnp.repeat(lin_h, W).reshape(1, H * W)  # row (y) coord per flat idx
    return pl.pallas_call(
        _head_kernel,
        out_shape=jax.ShapeDtypeStruct((B, 2), jnp.float32),
        in_specs=[_VMEM, _VMEM, _VMEM, _SMEM, _SMEM],
        out_specs=_VMEM,
    )(xt, cx, cy, w, b)


# --------------------------------------------------------------------------
# Convolution glue (im2col / tap slabs); all math runs in the Pallas matmul
# --------------------------------------------------------------------------
def im2col(x, kh, kw, stride, pad, pad_value=0.0):
    B, H, W, C = x.shape
    if pad:
        xp = jnp.pad(x, ((0, 0), (pad, pad), (pad, pad), (0, 0)),
                     constant_values=pad_value)
    else:
        xp = x
    Hp, Wp = H + 2 * pad, W + 2 * pad
    Ho = (Hp - kh) // stride + 1
    Wo = (Wp - kw) // stride + 1
    patches = []
    for i in range(kh):
        for j in range(kw):
            patches.append(
                xp[:, i:i + stride * (Ho - 1) + 1:stride,
                      j:j + stride * (Wo - 1) + 1:stride, :])
    cols = jnp.concatenate(patches, axis=-1)             # (B, Ho, Wo, kh*kw*C)
    return cols.reshape(B * Ho * Wo, kh * kw * C), (B, Ho, Wo)


def down_conv(x, p):
    """DownConv with C1+DownSample fused into one matmul and the residual add
    + final PReLU fused into C3's epilogue."""
    cout = p["cout"]
    cols, (B, Ho, Wo) = im2col(x, 3, 3, stride=2, pad=1,
                               pad_value=p["pad_val"])
    y = fused_matmul(cols, p["c1ds_w"], p["c1ds_p"])         # (M, Np)
    i1 = y[:, :cout].reshape(B, Ho, Wo, cout)                # BN1+PReLU1(C1)
    ds = y[:, cout:2 * cout]                                 # DownSample branch

    cols2, _ = im2col(i1, 3, 3, 1, 1)
    i2 = fused_matmul(cols2, p["c2_w"], p["c2_p"])[:, :cout]
    i2 = i2.reshape(B, Ho, Wo, cout)

    cols3, _ = im2col(i2, 3, 3, 1, 1)
    out = fused_matmul(cols3, p["c3_w"], p["c3_p"], residual=ds)[:, :cout]
    return out.reshape(B, Ho, Wo, cout)


def up_conv(x, p):
    """ConvTranspose2d(k=3,s=2,p=1,op=1)+bias+PReLU: all 4 output stride-phases
    in ONE matmul (K = 4*Cin tap slabs, block-sparse W, N = 4*Cout)."""
    B, H, W, Cin = x.shape
    cout = p["cout"]
    xp = jnp.pad(x, ((0, 0), (0, 1), (0, 1), (0, 0)))        # bottom/right halo
    a = jnp.concatenate(
        [xp[:, dy:dy + H, dx:dx + W, :] for dy in (0, 1) for dx in (0, 1)],
        axis=-1).reshape(B * H * W, 4 * Cin)
    y = fused_matmul(a, p["ct_w"], p["ct_p"])[:, :4 * cout]
    y = y.reshape(B, H, W, 2, 2, cout)                       # (.., py, px, C)
    return jnp.transpose(y, (0, 1, 3, 2, 4, 5)).reshape(B, 2 * H, 2 * W, cout)


def planner_forward(x_nchw, plan):
    # NCHW -> NHWC; raw pixels kept - x/255*2-1 is folded into D1's matmul.
    x = jnp.transpose(x_nchw, (0, 2, 3, 1)).astype(jnp.bfloat16)
    x = down_conv(x, plan["D1"])
    x = down_conv(x, plan["D2"])
    x = down_conv(x, plan["D3"])
    x = up_conv(x, plan["U1"])
    x = up_conv(x, plan["U2"])
    x = up_conv(x, plan["U3"])
    return head_spatial_argmax(x, plan["head_w"], plan["head_b"])   # (B, 2)


# --------------------------------------------------------------------------
# One-time parameter preparation (outside the per-call path)
# --------------------------------------------------------------------------
def bn_fold(bn, eps=1e-5):
    scale = bn["gamma"] / jnp.sqrt(bn["var"] + eps)
    shift = bn["beta"] - bn["mean"] * scale
    return scale, shift


def _row(v, n, n_pad):
    v = jnp.broadcast_to(jnp.asarray(v, jnp.float32).reshape(-1), (n,))
    return jnp.pad(v, (0, n_pad - n))


def pack_epilogue(n, n_pad, scale, shift, alpha1, alpha2=None):
    rows = [_row(scale, n, n_pad), _row(shift, n, n_pad), _row(alpha1, n, n_pad)]
    if alpha2 is not None:
        rows.append(_row(alpha2, n, n_pad))
    rows += [jnp.zeros((n_pad,), jnp.float32)] * (8 - len(rows))
    return jnp.stack(rows)                                   # (8, n_pad)


def _pad_w(w, n):
    n_pad = _round_up(n, 128)
    return jnp.pad(w, ((0, 0), (0, n_pad - n))).astype(jnp.bfloat16), n_pad


def prep_down(p, in_a=1.0, in_b=0.0):
    """Fold BN, fuse C1+DownSample weights/epilogues, fold optional input
    affine (in_a*x + in_b) into the first matmul + custom im2col pad value."""
    cout, cin = int(p["C1_w"].shape[0]), int(p["C1_w"].shape[1])
    s1, b1 = bn_fold(p["BN1"])
    s2, b2 = bn_fold(p["BN2"])
    s3, b3 = bn_fold(p["BN3"])

    ds_scale = jnp.ones((cout,), jnp.float32)
    ds_shift = jnp.asarray(p["DS_b"], jnp.float32).reshape(-1)
    pad_val = 0.0
    if in_a != 1.0 or in_b != 0.0:
        # conv(in_a*x + in_b) == in_a*conv(x padded with -in_b/in_a) + in_b*sum(W)
        pad_val = -in_b / in_a
        b1 = b1 + s1 * in_b * jnp.sum(p["C1_w"], axis=(1, 2, 3))
        s1 = s1 * in_a
        ds_shift = ds_shift + in_b * jnp.sum(p["DS_w"], axis=(1, 2, 3))
        ds_scale = ds_scale * in_a

    # ---- fused C1 (3x3 s2, BN1+PReLU1) + DownSample (1x1 s2, bias only) ----
    w1 = jnp.transpose(jnp.asarray(p["C1_w"], jnp.float32),
                       (2, 3, 1, 0)).reshape(9 * cin, cout)
    wds = jnp.zeros((9 * cin, cout), jnp.float32)
    wds = wds.at[4 * cin:5 * cin, :].set(           # centre tap never sees pad
        jnp.asarray(p["DS_w"], jnp.float32).reshape(cout, cin).T)
    n1 = 2 * cout
    c1ds_w, np1 = _pad_w(jnp.concatenate([w1, wds], axis=1), n1)
    a1 = jnp.broadcast_to(jnp.asarray(p["a1"], jnp.float32).reshape(-1), (cout,))
    c1ds_p = pack_epilogue(
        n1, np1,
        jnp.concatenate([s1, ds_scale]),
        jnp.concatenate([b1, ds_shift]),
        jnp.concatenate([a1, jnp.ones((cout,), jnp.float32)]))

    def prep3x3(w_oihw, scale, shift, alpha, alpha2=None):
        co, ci = int(w_oihw.shape[0]), int(w_oihw.shape[1])
        wm = jnp.transpose(jnp.asarray(w_oihw, jnp.float32),
                           (2, 3, 1, 0)).reshape(9 * ci, co)
        wp, npad = _pad_w(wm, co)
        return wp, pack_epilogue(co, npad, scale, shift, alpha, alpha2)

    c2_w, c2_p = prep3x3(p["C2_w"], s2, b2, p["a2"])
    c3_w, c3_p = prep3x3(p["C3_w"], s3, b3, p["a3"], p["a4"])
    return dict(cout=cout, pad_val=pad_val, c1ds_w=c1ds_w, c1ds_p=c1ds_p,
                c2_w=c2_w, c2_p=c2_p, c3_w=c3_w, c3_p=c3_p)


def prep_up(p):
    """Block-sparse (4*Cin, 4*Cout) weight fusing the 4 stride-phases of
    ConvTranspose2d(k=3, s=2, p=1, output_padding=1)."""
    w = jnp.asarray(p["CT_w"], jnp.float32)                 # (Cin, Cout, 3, 3)
    cin, cout = int(w.shape[0]), int(w.shape[1])
    # output phase 0 (even): input offset 0, kernel idx 1
    # output phase 1 (odd):  (offset 0, kernel 2) and (offset 1, kernel 0)
    taps = {0: ((0, 1),), 1: ((0, 2), (1, 0))}
    wf = jnp.zeros((4 * cin, 4 * cout), jnp.float32)
    for py in (0, 1):
        for px in (0, 1):
            col = (py * 2 + px) * cout
            for dy, ky in taps[py]:
                for dx, kx in taps[px]:
                    t = (dy * 2 + dx) * cin
                    wf = wf.at[t:t + cin, col:col + cout].set(w[:, :, ky, kx])
    n = 4 * cout
    ct_w, npad = _pad_w(wf, n)
    bias4 = jnp.tile(jnp.asarray(p["CT_b"], jnp.float32).reshape(-1), 4)
    ct_p = pack_epilogue(n, npad, 1.0, bias4, p["a"])
    return dict(cout=cout, ct_w=ct_w, ct_p=ct_p)


def prepare_params(params):
    return dict(
        D1=prep_down(params["D1"], in_a=2.0 / 255.0, in_b=-1.0),
        D2=prep_down(params["D2"]),
        D3=prep_down(params["D3"]),
        U1=prep_up(params["U1"]),
        U2=prep_up(params["U2"]),
        U3=prep_up(params["U3"]),
        head_w=jnp.asarray(params["Lin"]["w"], jnp.float32).reshape(-1),
        head_b=jnp.asarray(params["Lin"]["b"], jnp.float32).reshape(-1),
    )


# --------------------------------------------------------------------------
# Deterministic parameter initialization (PyTorch layout)
# --------------------------------------------------------------------------
def _nrm(key, shape, s=0.1):
    return s * jax.random.normal(key, shape, jnp.float32)


def init_down(key, cin, cout):
    ks = jax.random.split(key, 8)
    p = {
        "C1_w": _nrm(ks[0], (cout, cin, 3, 3)),
        "C2_w": _nrm(ks[1], (cout, cout, 3, 3)),
        "C3_w": _nrm(ks[2], (cout, cout, 3, 3)),
        "DS_w": _nrm(ks[3], (cout, cin, 1, 1)),
        "DS_b": _nrm(ks[4], (cout,)),
        "a1": jnp.array([0.25], jnp.float32),   # PReLU default init
        "a2": jnp.array([0.25], jnp.float32),
        "a3": jnp.array([0.25], jnp.float32),
        "a4": jnp.array([0.25], jnp.float32),
    }
    for idx, name in enumerate(["BN1", "BN2", "BN3"]):
        kk = jax.random.split(ks[5 + idx], 4)
        p[name] = dict(
            gamma=1.0 + _nrm(kk[0], (cout,)),
            beta=_nrm(kk[1], (cout,)),
            mean=_nrm(kk[2], (cout,)),
            var=1.0 + 0.1 * jnp.abs(jax.random.normal(kk[3], (cout,),
                                                      jnp.float32)),
        )
    return p


def init_up(key, cin, cout):
    k1, k2 = jax.random.split(key)
    return dict(CT_w=_nrm(k1, (cin, cout, 3, 3)),
                CT_b=_nrm(k2, (cout,)),
                a=jnp.array([0.25], jnp.float32))


def init_params(key):
    ks = jax.random.split(key, 8)
    return {
        "D1": init_down(ks[0], 3, 32),
        "D2": init_down(ks[1], 32, 64),
        "D3": init_down(ks[2], 64, 128),
        "U1": init_up(ks[3], 128, 64),
        "U2": init_up(ks[4], 64, 32),
        "U3": init_up(ks[5], 32, 16),
        "Lin": dict(w=_nrm(ks[6], (1, 16, 1, 1)), b=_nrm(ks[7], (1,))),
    }


# --------------------------------------------------------------------------
if __name__ == "__main__":
    key = jax.random.PRNGKey(0)
    kx, kp = jax.random.split(key)
    # Small image consistent with the module (divisible by 8 for 3x down/up).
    x = jax.random.uniform(kx, (2, 3, 16, 16), jnp.float32, 0.0, 255.0)
    params = init_params(kp)
    plan = prepare_params(params)        # one-time weight/epilogue prep

    # plan is closed over (static ints/floats stay static; weights are baked
    # into the compiled program -> no per-call weight reshapes/casts).
    fwd = jax.jit(lambda img: planner_forward(img, plan))
    out = jax.block_until_ready(fwd(x))

    assert out.shape == (2, 2), out.shape
    assert out.dtype == jnp.float32
    assert bool(jnp.all(jnp.isfinite(out)))
    print("KERNEL_OK")
</pallas_src>

<mosaic_0001>
module attributes {stable_mosaic.version = 11 : i64} {
  func.func @_mm_kernel(%arg0: i32, %arg1: i32, %arg2: memref<128x27xbf16, #tpu.memory_space<vmem>>, %arg3: memref<27x128xbf16, #tpu.memory_space<vmem>>, %arg4: memref<8x128xf32, #tpu.memory_space<vmem>>, %arg5: memref<128x128xbf16, #tpu.memory_space<vmem>>) attributes {dimension_semantics = [#tpu.dimension_semantics<parallel>, #tpu.dimension_semantics<parallel>], iteration_bounds = array<i64: 1, 1>, scalar_prefetch = 0 : i64, scratch_operands = 0 : i64, tpu.core_type = #tpu.core_type<tc>, window_params = [{transform_indices = @transform_0, window_bounds = array<i64: 128, 27>}, {transform_indices = @transform_1, window_bounds = array<i64: 27, 128>}, {transform_indices = @transform_2, window_bounds = array<i64: 8, 128>}, {transform_indices = @transform_3, window_bounds = array<i64: 128, 128>}]} {
    %c0 = arith.constant 0 : index
    %c0_0 = arith.constant 0 : index
    %0 = vector.load %arg2[%c0, %c0_0] : memref<128x27xbf16, #tpu.memory_space<vmem>>, vector<128x27xbf16>
    %c0_1 = arith.constant 0 : index
    %c0_2 = arith.constant 0 : index
    %1 = vector.load %arg3[%c0_1, %c0_2] : memref<27x128xbf16, #tpu.memory_space<vmem>>, vector<27x128xbf16>
    %cst = arith.constant dense<0.000000e+00> : vector<128x128xf32>
    %2 = tpu.matmul %0, %1, %cst {dimension_numbers = #tpu.dot_dimension_numbers<[1], [0], [0], [1], [0, 0, 1, 1], [], []>} : vector<128x27xbf16>, vector<27x128xbf16>, vector<128x128xf32> -> vector<128x128xf32>
    %c0_3 = arith.constant 0 : index
    %c0_4 = arith.constant 0 : index
    %3 = vector.load %arg4[%c0_3, %c0_4] : memref<8x128xf32, #tpu.memory_space<vmem>>, vector<1x128xf32>
    %4 = vector.broadcast %3 : vector<1x128xf32> to vector<128x128xf32>
    %5 = arith.mulf %2, %4 : vector<128x128xf32>
    %c1 = arith.constant 1 : index
    %c0_5 = arith.constant 0 : index
    %6 = vector.load %arg4[%c1, %c0_5] : memref<8x128xf32, #tpu.memory_space<vmem>>, vector<1x128xf32>
    %7 = vector.broadcast %6 : vector<1x128xf32> to vector<128x128xf32>
    %8 = arith.addf %5, %7 : vector<128x128xf32>
    %cst_6 = arith.constant 0.000000e+00 : f32
    %9 = vector.broadcast %cst_6 : f32 to vector<128x128xf32>
    %10 = arith.cmpf ogt, %8, %9 : vector<128x128xf32>
    %c2 = arith.constant 2 : index
    %c0_7 = arith.constant 0 : index
    %11 = vector.load %arg4[%c2, %c0_7] : memref<8x128xf32, #tpu.memory_space<vmem>>, vector<1x128xf32>
    %12 = vector.broadcast %11 : vector<1x128xf32> to vector<128x128xf32>
    %13 = arith.mulf %12, %8 : vector<128x128xf32>
    %14 = arith.select %10, %8, %13 : vector<128x128xi1>, vector<128x128xf32>
    %15 = arith.truncf %14 : vector<128x128xf32> to vector<128x128xbf16>
    %c0_8 = arith.constant 0 : index
    %c0_9 = arith.constant 0 : index
    %16 = vector.load %arg5[%c0_8, %c0_9] : memref<128x128xbf16, #tpu.memory_space<vmem>>, vector<128x128xbf16>
    tpu.vector_store %arg5[%c0_8, %c0_9], %15 {strides = array<i32>} : memref<128x128xbf16, #tpu.memory_space<vmem>>, vector<128x128xbf16>,
    return
  }
  func.func @transform_0(%arg0: i32, %arg1: i32) -> (i32, i32) {
    %c0_i32 = arith.constant 0 : i32
    %c0_i32_0 = arith.constant 0 : i32
    return %arg0, %c0_i32 : i32, i32
  }
  func.func @transform_1(%arg0: i32, %arg1: i32) -> (i32, i32) {
    %c0_i32 = arith.constant 0 : i32
    %c0_i32_0 = arith.constant 0 : i32
    return %c0_i32, %arg1 : i32, i32
  }
  func.func @transform_2(%arg0: i32, %arg1: i32) -> (i32, i32) {
    %c0_i32 = arith.constant 0 : i32
    %c0_i32_0 = arith.constant 0 : i32
    return %c0_i32, %arg1 : i32, i32
  }
  func.func @transform_3(%arg0: i32, %arg1: i32) -> (i32, i32) {
    %c0_i32 = arith.constant 0 : i32
    return %arg0, %arg1 : i32, i32
  }
}

module attributes {stable_mosaic.version = 11 : i64} {
  func.func @_mm_kernel(%arg0: i32, %arg1: i32, %arg2: memref<128x288xbf16, #tpu.memory_space<vmem>>, %arg3: memref<288x128xbf16, #tpu.memory_space<vmem>>, %arg4: memref<8x128xf32, #tpu.memory_space<vmem>>, %arg5: memref<128x128xbf16, #tpu.memory_space<vmem>>) attributes {dimension_semantics = [#tpu.dimension_semantics<parallel>, #tpu.dimension_semantics<parallel>], iteration_bounds = array<i64: 1, 1>, scalar_prefetch = 0 : i64, scratch_operands = 0 : i64, tpu.core_type = #tpu.core_type<tc>, window_params = [{transform_indices = @transform_0, window_bounds = array<i64: 128, 288>}, {transform_indices = @transform_1, window_bounds = array<i64: 288, 128>}, {transform_indices = @transform_2, window_bounds = array<i64: 8, 128>}, {transform_indices = @transform_3, window_bounds = array<i64: 128, 128>}]} {
    %c0 = arith.constant 0 : index
    %c0_0 = arith.constant 0 : index
    %0 = vector.load %arg2[%c0, %c0_0] : memref<128x288xbf16, #tpu.memory_space<vmem>>, vector<128x288xbf16>
    %c0_1 = arith.constant 0 : index
    %c0_2 = arith.constant 0 : index
    %1 = vector.load %arg3[%c0_1, %c0_2] : memref<288x128xbf16, #tpu.memory_space<vmem>>, vector<288x128xbf16>
    %cst = arith.constant dense<0.000000e+00> : vector<128x128xf32>
    %2 = tpu.matmul %0, %1, %cst {dimension_numbers = #tpu.dot_dimension_numbers<[1], [0], [0], [1], [0, 0, 1, 1], [], []>} : vector<128x288xbf16>, vector<288x128xbf16>, vector<128x128xf32> -> vector<128x128xf32>
    %c0_3 = arith.constant 0 : index
    %c0_4 = arith.constant 0 : index
    %3 = vector.load %arg4[%c0_3, %c0_4] : memref<8x128xf32, #tpu.memory_space<vmem>>, vector<1x128xf32>
    %4 = vector.broadcast %3 : vector<1x128xf32> to vector<128x128xf32>
    %5 = arith.mulf %2, %4 : vector<128x128xf32>
    %c1 = arith.constant 1 : index
    %c0_5 = arith.constant 0 : index
    %6 = vector.load %arg4[%c1, %c0_5] : memref<8x128xf32, #tpu.memory_space<vmem>>, vector<1x128xf32>
    %7 = vector.broadcast %6 : vector<1x128xf32> to vector<128x128xf32>
    %8 = arith.addf %5, %7 : vector<128x128xf32>
    %cst_6 = arith.constant 0.000000e+00 : f32
    %9 = vector.broadcast %cst_6 : f32 to vector<128x128xf32>
    %10 = arith.cmpf ogt, %8, %9 : vector<128x128xf32>
    %c2 = arith.constant 2 : index
    %c0_7 = arith.constant 0 : index
    %11 = vector.load %arg4[%c2, %c0_7] : memref<8x128xf32, #tpu.memory_space<vmem>>, vector<1x128xf32>
    %12 = vector.broadcast %11 : vector<1x128xf32> to vector<128x128xf32>
    %13 = arith.mulf %12, %8 : vector<128x128xf32>
    %14 = arith.select %10, %8, %13 : vector<128x128xi1>, vector<128x128xf32>
    %15 = arith.truncf %14 : vector<128x128xf32> to vector<128x128xbf16>
    %c0_8 = arith.constant 0 : index
    %c0_9 = arith.constant 0 : index
    %16 = vector.load %arg5[%c0_8, %c0_9] : memref<128x128xbf16, #tpu.memory_space<vmem>>, vector<128x128xbf16>
    tpu.vector_store %arg5[%c0_8, %c0_9], %15 {strides = array<i32>} : memref<128x128xbf16, #tpu.memory_space<vmem>>, vector<128x128xbf16>,
    return
  }
  func.func @transform_0(%arg0: i32, %arg1: i32) -> (i32, i32) {
    %c0_i32 = arith.constant 0 : i32
    %c0_i32_0 = arith.constant 0 : i32
    return %arg0, %c0_i32 : i32, i32
  }
  func.func @transform_1(%arg0: i32, %arg1: i32) -> (i32, i32) {
    %c0_i32 = arith.constant 0 : i32
    %c0_i32_0 = arith.constant 0 : i32
    return %c0_i32, %arg1 : i32, i32
  }
  func.func @transform_2(%arg0: i32, %arg1: i32) -> (i32, i32) {
    %c0_i32 = arith.constant 0 : i32
    %c0_i32_0 = arith.constant 0 : i32
    return %c0_i32, %arg1 : i32, i32
  }
  func.func @transform_3(%arg0: i32, %arg1: i32) -> (i32, i32) {
    %c0_i32 = arith.constant 0 : i32
    return %arg0, %arg1 : i32, i32
  }
}

module attributes {stable_mosaic.version = 11 : i64} {
  func.func @_mm_res_kernel(%arg0: i32, %arg1: i32, %arg2: memref<128x288xbf16, #tpu.memory_space<vmem>>, %arg3: memref<288x128xbf16, #tpu.memory_space<vmem>>, %arg4: memref<8x128xf32, #tpu.memory_space<vmem>>, %arg5: memref<128x128xbf16, #tpu.memory_space<vmem>>, %arg6: memref<128x128xbf16, #tpu.memory_space<vmem>>) attributes {dimension_semantics = [#tpu.dimension_semantics<parallel>, #tpu.dimension_semantics<parallel>], iteration_bounds = array<i64: 1, 1>, scalar_prefetch = 0 : i64, scratch_operands = 0 : i64, tpu.core_type = #tpu.core_type<tc>, window_params = [{transform_indices = @transform_0, window_bounds = array<i64: 128, 288>}, {transform_indices = @transform_1, window_bounds = array<i64: 288, 128>}, {transform_indices = @transform_2, window_bounds = array<i64: 8, 128>}, {transform_indices = @transform_3, window_bounds = array<i64: 128, 128>}, {transform_indices = @transform_4, window_bounds = array<i64: 128, 128>}]} {
    %c0 = arith.constant 0 : index
    %c0_0 = arith.constant 0 : index
    %0 = vector.load %arg2[%c0, %c0_0] : memref<128x288xbf16, #tpu.memory_space<vmem>>, vector<128x288xbf16>
    %c0_1 = arith.constant 0 : index
    %c0_2 = arith.constant 0 : index
    %1 = vector.load %arg3[%c0_1, %c0_2] : memref<288x128xbf16, #tpu.memory_space<vmem>>, vector<288x128xbf16>
    %cst = arith.constant dense<0.000000e+00> : vector<128x128xf32>
    %2 = tpu.matmul %0, %1, %cst {dimension_numbers = #tpu.dot_dimension_numbers<[1], [0], [0], [1], [0, 0, 1, 1], [], []>} : vector<128x288xbf16>, vector<288x128xbf16>, vector<128x128xf32> -> vector<128x128xf32>
    %c0_3 = arith.constant 0 : index
    %c0_4 = arith.constant 0 : index
    %3 = vector.load %arg4[%c0_3, %c0_4] : memref<8x128xf32, #tpu.memory_space<vmem>>, vector<1x128xf32>
    %4 = vector.broadcast %3 : vector<1x128xf32> to vector<128x128xf32>
    %5 = arith.mulf %2, %4 : vector<128x128xf32>
    %c1 = arith.constant 1 : index
    %c0_5 = arith.constant 0 : index
    %6 = vector.load %arg4[%c1, %c0_5] : memref<8x128xf32, #tpu.memory_space<vmem>>, vector<1x128xf32>
    %7 = vector.broadcast %6 : vector<1x128xf32> to vector<128x128xf32>
    %8 = arith.addf %5, %7 : vector<128x128xf32>
    %cst_6 = arith.constant 0.000000e+00 : f32
    %9 = vector.broadcast %cst_6 : f32 to vector<128x128xf32>
    %10 = arith.cmpf ogt, %8, %9 : vector<128x128xf32>
    %c2 = arith.constant 2 : index
    %c0_7 = arith.constant 0 : index
    %11 = vector.load %arg4[%c2, %c0_7] : memref<8x128xf32, #tpu.memory_space<vmem>>, vector<1x128xf32>
    %12 = vector.broadcast %11 : vector<1x128xf32> to vector<128x128xf32>
    %13 = arith.mulf %12, %8 : vector<128x128xf32>
    %14 = arith.select %10, %8, %13 : vector<128x128xi1>, vector<128x128xf32>
    %c0_8 = arith.constant 0 : index
    %c0_9 = arith.constant 0 : index
    %15 = vector.load %arg5[%c0_8, %c0_9] : memref<128x128xbf16, #tpu.memory_space<vmem>>, vector<128x128xbf16>
    %16 = arith.extf %15 : vector<128x128xbf16> to vector<128x128xf32>
    %17 = arith.addf %14, %16 : vector<128x128xf32>
    %cst_10 = arith.constant 0.000000e+00 : f32
    %18 = vector.broadcast %cst_10 : f32 to vector<128x128xf32>
    %19 = arith.cmpf ogt, %17, %18 : vector<128x128xf32>
    %c3 = arith.constant 3 : index
    %c0_11 = arith.constant 0 : index
    %20 = vector.load %arg4[%c3, %c0_11] : memref<8x128xf32, #tpu.memory_space<vmem>>, vector<1x128xf32>
    %21 = vector.broadcast %20 : vector<1x128xf32> to vector<128x128xf32>
    %22 = arith.mulf %21, %17 : vector<128x128xf32>
    %23 = arith.select %19, %17, %22 : vector<128x128xi1>, vector<128x128xf32>
    %24 = arith.truncf %23 : vector<128x128xf32> to vector<128x128xbf16>
    %c0_12 = arith.constant 0 : index
    %c0_13 = arith.constant 0 : index
    %25 = vector.load %arg6[%c0_12, %c0_13] : memref<128x128xbf16, #tpu.memory_space<vmem>>, vector<128x128xbf16>
    tpu.vector_store %arg6[%c0_12, %c0_13], %24 {strides = array<i32>} : memref<128x128xbf16, #tpu.memory_space<vmem>>, vector<128x128xbf16>,
    return
  }
  func.func @transform_0(%arg0: i32, %arg1: i32) -> (i32, i32) {
    %c0_i32 = arith.constant 0 : i32
    %c0_i32_0 = arith.constant 0 : i32
    return %arg0, %c0_i32 : i32, i32
  }
  func.func @transform_1(%arg0: i32, %arg1: i32) -> (i32, i32) {
    %c0_i32 = arith.constant 0 : i32
    %c0_i32_0 = arith.constant 0 : i32
    return %c0_i32, %arg1 : i32, i32
  }
  func.func @transform_2(%arg0: i32, %arg1: i32) -> (i32, i32) {
    %c0_i32 = arith.constant 0 : i32
    %c0_i32_0 = arith.constant 0 : i32
    return %c0_i32, %arg1 : i32, i32
  }
  func.func @transform_3(%arg0: i32, %arg1: i32) -> (i32, i32) {
    %c0_i32 = arith.constant 0 : i32
    return %arg0, %arg1 : i32, i32
  }
  func.func @transform_4(%arg0: i32, %arg1: i32) -> (i32, i32) {
    %c0_i32 = arith.constant 0 : i32
    return %arg0, %arg1 : i32, i32
  }
}

module attributes {stable_mosaic.version = 11 : i64} {
  func.func @_mm_kernel(%arg0: i32, %arg1: i32, %arg2: memref<32x576xbf16, #tpu.memory_space<vmem>>, %arg3: memref<576x128xbf16, #tpu.memory_space<vmem>>, %arg4: memref<8x128xf32, #tpu.memory_space<vmem>>, %arg5: memref<32x128xbf16, #tpu.memory_space<vmem>>) attributes {dimension_semantics = [#tpu.dimension_semantics<parallel>, #tpu.dimension_semantics<parallel>], iteration_bounds = array<i64: 1, 1>, scalar_prefetch = 0 : i64, scratch_operands = 0 : i64, tpu.core_type = #tpu.core_type<tc>, window_params = [{transform_indices = @transform_0, window_bounds = array<i64: 32, 576>}, {transform_indices = @transform_1, window_bounds = array<i64: 576, 128>}, {transform_indices = @transform_2, window_bounds = array<i64: 8, 128>}, {transform_indices = @transform_3, window_bounds = array<i64: 32, 128>}]} {
    %c0 = arith.constant 0 : index
    %c0_0 = arith.constant 0 : index
    %0 = vector.load %arg2[%c0, %c0_0] : memref<32x576xbf16, #tpu.memory_space<vmem>>, vector<32x576xbf16>
    %c0_1 = arith.constant 0 : index
    %c0_2 = arith.constant 0 : index
    %1 = vector.load %arg3[%c0_1, %c0_2] : memref<576x128xbf16, #tpu.memory_space<vmem>>, vector<576x128xbf16>
    %cst = arith.constant dense<0.000000e+00> : vector<32x128xf32>
    %2 = tpu.matmul %0, %1, %cst {dimension_numbers = #tpu.dot_dimension_numbers<[1], [0], [0], [1], [0, 0, 1, 1], [], []>} : vector<32x576xbf16>, vector<576x128xbf16>, vector<32x128xf32> -> vector<32x128xf32>
    %c0_3 = arith.constant 0 : index
    %c0_4 = arith.constant 0 : index
    %3 = vector.load %arg4[%c0_3, %c0_4] : memref<8x128xf32, #tpu.memory_space<vmem>>, vector<1x128xf32>
    %4 = vector.broadcast %3 : vector<1x128xf32> to vector<32x128xf32>
    %5 = arith.mulf %2, %4 : vector<32x128xf32>
    %c1 = arith.constant 1 : index
    %c0_5 = arith.constant 0 : index
    %6 = vector.load %arg4[%c1, %c0_5] : memref<8x128xf32, #tpu.memory_space<vmem>>, vector<1x128xf32>
    %7 = vector.broadcast %6 : vector<1x128xf32> to vector<32x128xf32>
    %8 = arith.addf %5, %7 : vector<32x128xf32>
    %cst_6 = arith.constant 0.000000e+00 : f32
    %9 = vector.broadcast %cst_6 : f32 to vector<32x128xf32>
    %10 = arith.cmpf ogt, %8, %9 : vector<32x128xf32>
    %c2 = arith.constant 2 : index
    %c0_7 = arith.constant 0 : index
    %11 = vector.load %arg4[%c2, %c0_7] : memref<8x128xf32, #tpu.memory_space<vmem>>, vector<1x128xf32>
    %12 = vector.broadcast %11 : vector<1x128xf32> to vector<32x128xf32>
    %13 = arith.mulf %12, %8 : vector<32x128xf32>
    %14 = arith.select %10, %8, %13 : vector<32x128xi1>, vector<32x128xf32>
    %15 = arith.truncf %14 : vector<32x128xf32> to vector<32x128xbf16>
    %c0_8 = arith.constant 0 : index
    %c0_9 = arith.constant 0 : index
    %16 = vector.load %arg5[%c0_8, %c0_9] : memref<32x128xbf16, #tpu.memory_space<vmem>>, vector<32x128xbf16>
    tpu.vector_store %arg5[%c0_8, %c0_9], %15 {strides = array<i32>} : memref<32x128xbf16, #tpu.memory_space<vmem>>, vector<32x128xbf16>,
    return
  }
  func.func @transform_0(%arg0: i32, %arg1: i32) -> (i32, i32) {
    %c0_i32 = arith.constant 0 : i32
    %c0_i32_0 = arith.constant 0 : i32
    return %arg0, %c0_i32 : i32, i32
  }
  func.func @transform_1(%arg0: i32, %arg1: i32) -> (i32, i32) {
    %c0_i32 = arith.constant 0 : i32
    %c0_i32_0 = arith.constant 0 : i32
    return %c0_i32, %arg1 : i32, i32
  }
  func.func @transform_2(%arg0: i32, %arg1: i32) -> (i32, i32) {
    %c0_i32 = arith.constant 0 : i32
    %c0_i32_0 = arith.constant 0 : i32
    return %c0_i32, %arg1 : i32, i32
  }
  func.func @transform_3(%arg0: i32, %arg1: i32) -> (i32, i32) {
    %c0_i32 = arith.constant 0 : i32
    return %arg0, %arg1 : i32, i32
  }
}

module attributes {stable_mosaic.version = 11 : i64} {
  func.func @_mm_kernel(%arg0: i32, %arg1: i32, %arg2: memref<32x288xbf16, #tpu.memory_space<vmem>>, %arg3: memref<288x128xbf16, #tpu.memory_space<vmem>>, %arg4: memref<8x128xf32, #tpu.memory_space<vmem>>, %arg5: memref<32x128xbf16, #tpu.memory_space<vmem>>) attributes {dimension_semantics = [#tpu.dimension_semantics<parallel>, #tpu.dimension_semantics<parallel>], iteration_bounds = array<i64: 1, 1>, scalar_prefetch = 0 : i64, scratch_operands = 0 : i64, tpu.core_type = #tpu.core_type<tc>, window_params = [{transform_indices = @transform_0, window_bounds = array<i64: 32, 288>}, {transform_indices = @transform_1, window_bounds = array<i64: 288, 128>}, {transform_indices = @transform_2, window_bounds = array<i64: 8, 128>}, {transform_indices = @transform_3, window_bounds = array<i64: 32, 128>}]} {
    %c0 = arith.constant 0 : index
    %c0_0 = arith.constant 0 : index
    %0 = vector.load %arg2[%c0, %c0_0] : memref<32x288xbf16, #tpu.memory_space<vmem>>, vector<32x288xbf16>
    %c0_1 = arith.constant 0 : index
    %c0_2 = arith.constant 0 : index
    %1 = vector.load %arg3[%c0_1, %c0_2] : memref<288x128xbf16, #tpu.memory_space<vmem>>, vector<288x128xbf16>
    %cst = arith.constant dense<0.000000e+00> : vector<32x128xf32>
    %2 = tpu.matmul %0, %1, %cst {dimension_numbers = #tpu.dot_dimension_numbers<[1], [0], [0], [1], [0, 0, 1, 1], [], []>} : vector<32x288xbf16>, vector<288x128xbf16>, vector<32x128xf32> -> vector<32x128xf32>
    %c0_3 = arith.constant 0 : index
    %c0_4 = arith.constant 0 : index
    %3 = vector.load %arg4[%c0_3, %c0_4] : memref<8x128xf32, #tpu.memory_space<vmem>>, vector<1x128xf32>
    %4 = vector.broadcast %3 : vector<1x128xf32> to vector<32x128xf32>
    %5 = arith.mulf %2, %4 : vector<32x128xf32>
    %c1 = arith.constant 1 : index
    %c0_5 = arith.constant 0 : index
    %6 = vector.load %arg4[%c1, %c0_5] : memref<8x128xf32, #tpu.memory_space<vmem>>, vector<1x128xf32>
    %7 = vector.broadcast %6 : vector<1x128xf32> to vector<32x128xf32>
    %8 = arith.addf %5, %7 : vector<32x128xf32>
    %cst_6 = arith.constant 0.000000e+00 : f32
    %9 = vector.broadcast %cst_6 : f32 to vector<32x128xf32>
    %10 = arith.cmpf ogt, %8, %9 : vector<32x128xf32>
    %c2 = arith.constant 2 : index
    %c0_7 = arith.constant 0 : index
    %11 = vector.load %arg4[%c2, %c0_7] : memref<8x128xf32, #tpu.memory_space<vmem>>, vector<1x128xf32>
    %12 = vector.broadcast %11 : vector<1x128xf32> to vector<32x128xf32>
    %13 = arith.mulf %12, %8 : vector<32x128xf32>
    %14 = arith.select %10, %8, %13 : vector<32x128xi1>, vector<32x128xf32>
    %15 = arith.truncf %14 : vector<32x128xf32> to vector<32x128xbf16>
    %c0_8 = arith.constant 0 : index
    %c0_9 = arith.constant 0 : index
    %16 = vector.load %arg5[%c0_8, %c0_9] : memref<32x128xbf16, #tpu.memory_space<vmem>>, vector<32x128xbf16>
    tpu.vector_store %arg5[%c0_8, %c0_9], %15 {strides = array<i32>} : memref<32x128xbf16, #tpu.memory_space<vmem>>, vector<32x128xbf16>,
    return
  }
  func.func @transform_0(%arg0: i32, %arg1: i32) -> (i32, i32) {
    %c0_i32 = arith.constant 0 : i32
    %c0_i32_0 = arith.constant 0 : i32
    return %arg0, %c0_i32 : i32, i32
  }
  func.func @transform_1(%arg0: i32, %arg1: i32) -> (i32, i32) {
    %c0_i32 = arith.constant 0 : i32
    %c0_i32_0 = arith.constant 0 : i32
    return %c0_i32, %arg1 : i32, i32
  }
  func.func @transform_2(%arg0: i32, %arg1: i32) -> (i32, i32) {
    %c0_i32 = arith.constant 0 : i32
    %c0_i32_0 = arith.constant 0 : i32
    return %c0_i32, %arg1 : i32, i32
  }
  func.func @transform_3(%arg0: i32, %arg1: i32) -> (i32, i32) {
    %c0_i32 = arith.constant 0 : i32
    return %arg0, %arg1 : i32, i32
  }
}

module attributes {stable_mosaic.version = 11 : i64} {
  func.func @_mm_res_kernel(%arg0: i32, %arg1: i32, %arg2: memref<32x576xbf16, #tpu.memory_space<vmem>>, %arg3: memref<576x128xbf16, #tpu.memory_space<vmem>>, %arg4: memref<8x128xf32, #tpu.memory_space<vmem>>, %arg5: memref<32x128xbf16, #tpu.memory_space<vmem>>, %arg6: memref<32x128xbf16, #tpu.memory_space<vmem>>) attributes {dimension_semantics = [#tpu.dimension_semantics<parallel>, #tpu.dimension_semantics<parallel>], iteration_bounds = array<i64: 1, 1>, scalar_prefetch = 0 : i64, scratch_operands = 0 : i64, tpu.core_type = #tpu.core_type<tc>, window_params = [{transform_indices = @transform_0, window_bounds = array<i64: 32, 576>}, {transform_indices = @transform_1, window_bounds = array<i64: 576, 128>}, {transform_indices = @transform_2, window_bounds = array<i64: 8, 128>}, {transform_indices = @transform_3, window_bounds = array<i64: 32, 128>}, {transform_indices = @transform_4, window_bounds = array<i64: 32, 128>}]} {
    %c0 = arith.constant 0 : index
    %c0_0 = arith.constant 0 : index
    %0 = vector.load %arg2[%c0, %c0_0] : memref<32x576xbf16, #tpu.memory_space<vmem>>, vector<32x576xbf16>
    %c0_1 = arith.constant 0 : index
    %c0_2 = arith.constant 0 : index
    %1 = vector.load %arg3[%c0_1, %c0_2] : memref<576x128xbf16, #tpu.memory_space<vmem>>, vector<576x128xbf16>
    %cst = arith.constant dense<0.000000e+00> : vector<32x128xf32>
    %2 = tpu.matmul %0, %1, %cst {dimension_numbers = #tpu.dot_dimension_numbers<[1], [0], [0], [1], [0, 0, 1, 1], [], []>} : vector<32x576xbf16>, vector<576x128xbf16>, vector<32x128xf32> -> vector<32x128xf32>
    %c0_3 = arith.constant 0 : index
    %c0_4 = arith.constant 0 : index
    %3 = vector.load %arg4[%c0_3, %c0_4] : memref<8x128xf32, #tpu.memory_space<vmem>>, vector<1x128xf32>
    %4 = vector.broadcast %3 : vector<1x128xf32> to vector<32x128xf32>
    %5 = arith.mulf %2, %4 : vector<32x128xf32>
    %c1 = arith.constant 1 : index
    %c0_5 = arith.constant 0 : index
    %6 = vector.load %arg4[%c1, %c0_5] : memref<8x128xf32, #tpu.memory_space<vmem>>, vector<1x128xf32>
    %7 = vector.broadcast %6 : vector<1x128xf32> to vector<32x128xf32>
    %8 = arith.addf %5, %7 : vector<32x128xf32>
    %cst_6 = arith.constant 0.000000e+00 : f32
    %9 = vector.broadcast %cst_6 : f32 to vector<32x128xf32>
    %10 = arith.cmpf ogt, %8, %9 : vector<32x128xf32>
    %c2 = arith.constant 2 : index
    %c0_7 = arith.constant 0 : index
    %11 = vector.load %arg4[%c2, %c0_7] : memref<8x128xf32, #tpu.memory_space<vmem>>, vector<1x128xf32>
    %12 = vector.broadcast %11 : vector<1x128xf32> to vector<32x128xf32>
    %13 = arith.mulf %12, %8 : vector<32x128xf32>
    %14 = arith.select %10, %8, %13 : vector<32x128xi1>, vector<32x128xf32>
    %c0_8 = arith.constant 0 : index
    %c0_9 = arith.constant 0 : index
    %15 = vector.load %arg5[%c0_8, %c0_9] : memref<32x128xbf16, #tpu.memory_space<vmem>>, vector<32x128xbf16>
    %16 = arith.extf %15 : vector<32x128xbf16> to vector<32x128xf32>
    %17 = arith.addf %14, %16 : vector<32x128xf32>
    %cst_10 = arith.constant 0.000000e+00 : f32
    %18 = vector.broadcast %cst_10 : f32 to vector<32x128xf32>
    %19 = arith.cmpf ogt, %17, %18 : vector<32x128xf32>
    %c3 = arith.constant 3 : index
    %c0_11 = arith.constant 0 : index
    %20 = vector.load %arg4[%c3, %c0_11] : memref<8x128xf32, #tpu.memory_space<vmem>>, vector<1x128xf32>
    %21 = vector.broadcast %20 : vector<1x128xf32> to vector<32x128xf32>
    %22 = arith.mulf %21, %17 : vector<32x128xf32>
    %23 = arith.select %19, %17, %22 : vector<32x128xi1>, vector<32x128xf32>
    %24 = arith.truncf %23 : vector<32x128xf32> to vector<32x128xbf16>
    %c0_12 = arith.constant 0 : index
    %c0_13 = arith.constant 0 : index
    %25 = vector.load %arg6[%c0_12, %c0_13] : memref<32x128xbf16, #tpu.memory_space<vmem>>, vector<32x128xbf16>
    tpu.vector_store %arg6[%c0_12, %c0_13], %24 {strides = array<i32>} : memref<32x128xbf16, #tpu.memory_space<vmem>>, vector<32x128xbf16>,
    return
  }
  func.func @transform_0(%arg0: i32, %arg1: i32) -> (i32, i32) {
    %c0_i32 = arith.constant 0 : i32
    %c0_i32_0 = arith.constant 0 : i32
    return %arg0, %c0_i32 : i32, i32
  }
  func.func @transform_1(%arg0: i32, %arg1: i32) -> (i32, i32) {
    %c0_i32 = arith.constant 0 : i32
    %c0_i32_0 = arith.constant 0 : i32
    return %c0_i32, %arg1 : i32, i32
  }
  func.func @transform_2(%arg0: i32, %arg1: i32) -> (i32, i32) {
    %c0_i32 = arith.constant 0 : i32
    %c0_i32_0 = arith.constant 0 : i32
    return %c0_i32, %arg1 : i32, i32
  }
  func.func @transform_3(%arg0: i32, %arg1: i32) -> (i32, i32) {
    %c0_i32 = arith.constant 0 : i32
    return %arg0, %arg1 : i32, i32
  }
  func.func @transform_4(%arg0: i32, %arg1: i32) -> (i32, i32) {
    %c0_i32 = arith.constant 0 : i32
    return %arg0, %arg1 : i32, i32
  }
}

module attributes {stable_mosaic.version = 11 : i64} {
  func.func @_mm_kernel(%arg0: i32, %arg1: i32, %arg2: memref<8x576xbf16, #tpu.memory_space<vmem>>, %arg3: memref<576x256xbf16, #tpu.memory_space<vmem>>, %arg4: memref<8x256xf32, #tpu.memory_space<vmem>>, %arg5: memref<8x256xbf16, #tpu.memory_space<vmem>>) attributes {dimension_semantics = [#tpu.dimension_semantics<parallel>, #tpu.dimension_semantics<parallel>], iteration_bounds = array<i64: 1, 1>, scalar_prefetch = 0 : i64, scratch_operands = 0 : i64, tpu.core_type = #tpu.core_type<tc>, window_params = [{transform_indices = @transform_0, window_bounds = array<i64: 8, 576>}, {transform_indices = @transform_1, window_bounds = array<i64: 576, 256>}, {transform_indices = @transform_2, window_bounds = array<i64: 8, 256>}, {transform_indices = @transform_3, window_bounds = array<i64: 8, 256>}]} {
    %c0 = arith.constant 0 : index
    %c0_0 = arith.constant 0 : index
    %0 = vector.load %arg2[%c0, %c0_0] : memref<8x576xbf16, #tpu.memory_space<vmem>>, vector<8x576xbf16>
    %c0_1 = arith.constant 0 : index
    %c0_2 = arith.constant 0 : index
    %1 = vector.load %arg3[%c0_1, %c0_2] : memref<576x256xbf16, #tpu.memory_space<vmem>>, vector<576x256xbf16>
    %cst = arith.constant dense<0.000000e+00> : vector<8x256xf32>
    %2 = tpu.matmul %0, %1, %cst {dimension_numbers = #tpu.dot_dimension_numbers<[1], [0], [0], [1], [0, 0, 1, 1], [], []>} : vector<8x576xbf16>, vector<576x256xbf16>, vector<8x256xf32> -> vector<8x256xf32>
    %c0_3 = arith.constant 0 : index
    %c0_4 = arith.constant 0 : index
    %3 = vector.load %arg4[%c0_3, %c0_4] : memref<8x256xf32, #tpu.memory_space<vmem>>, vector<1x256xf32>
    %4 = vector.broadcast %3 : vector<1x256xf32> to vector<8x256xf32>
    %5 = arith.mulf %2, %4 : vector<8x256xf32>
    %c1 = arith.constant 1 : index
    %c0_5 = arith.constant 0 : index
    %6 = vector.load %arg4[%c1, %c0_5] : memref<8x256xf32, #tpu.memory_space<vmem>>, vector<1x256xf32>
    %7 = vector.broadcast %6 : vector<1x256xf32> to vector<8x256xf32>
    %8 = arith.addf %5, %7 : vector<8x256xf32>
    %cst_6 = arith.constant 0.000000e+00 : f32
    %9 = vector.broadcast %cst_6 : f32 to vector<8x256xf32>
    %10 = arith.cmpf ogt, %8, %9 : vector<8x256xf32>
    %c2 = arith.constant 2 : index
    %c0_7 = arith.constant 0 : index
    %11 = vector.load %arg4[%c2, %c0_7] : memref<8x256xf32, #tpu.memory_space<vmem>>, vector<1x256xf32>
    %12 = vector.broadcast %11 : vector<1x256xf32> to vector<8x256xf32>
    %13 = arith.mulf %12, %8 : vector<8x256xf32>
    %14 = arith.select %10, %8, %13 : vector<8x256xi1>, vector<8x256xf32>
    %15 = arith.truncf %14 : vector<8x256xf32> to vector<8x256xbf16>
    %c0_8 = arith.constant 0 : index
    %c0_9 = arith.constant 0 : index
    %16 = vector.load %arg5[%c0_8, %c0_9] : memref<8x256xbf16, #tpu.memory_space<vmem>>, vector<8x256xbf16>
    tpu.vector_store %arg5[%c0_8, %c0_9], %15 {strides = array<i32>} : memref<8x256xbf16, #tpu.memory_space<vmem>>, vector<8x256xbf16>,
    return
  }
  func.func @transform_0(%arg0: i32, %arg1: i32) -> (i32, i32) {
    %c0_i32 = arith.constant 0 : i32
    %c0_i32_0 = arith.constant 0 : i32
    return %arg0, %c0_i32 : i32, i32
  }
  func.func @transform_1(%arg0: i32, %arg1: i32) -> (i32, i32) {
    %c0_i32 = arith.constant 0 : i32
    %c0_i32_0 = arith.constant 0 : i32
    return %c0_i32, %arg1 : i32, i32
  }
  func.func @transform_2(%arg0: i32, %arg1: i32) -> (i32, i32) {
    %c0_i32 = arith.constant 0 : i32
    %c0_i32_0 = arith.constant 0 : i32
    return %c0_i32, %arg1 : i32, i32
  }
  func.func @transform_3(%arg0: i32, %arg1: i32) -> (i32, i32) {
    %c0_i32 = arith.constant 0 : i32
    return %arg0, %arg1 : i32, i32
  }
}

module attributes {stable_mosaic.version = 11 : i64} {
  func.func @_mm_kernel(%arg0: i32, %arg1: i32, %arg2: memref<8x1152xbf16, #tpu.memory_space<vmem>>, %arg3: memref<1152x128xbf16, #tpu.memory_space<vmem>>, %arg4: memref<8x128xf32, #tpu.memory_space<vmem>>, %arg5: memref<8x128xbf16, #tpu.memory_space<vmem>>) attributes {dimension_semantics = [#tpu.dimension_semantics<parallel>, #tpu.dimension_semantics<parallel>], iteration_bounds = array<i64: 1, 1>, scalar_prefetch = 0 : i64, scratch_operands = 0 : i64, tpu.core_type = #tpu.core_type<tc>, window_params = [{transform_indices = @transform_0, window_bounds = array<i64: 8, 1152>}, {transform_indices = @transform_1, window_bounds = array<i64: 1152, 128>}, {transform_indices = @transform_2, window_bounds = array<i64: 8, 128>}, {transform_indices = @transform_3, window_bounds = array<i64: 8, 128>}]} {
    %c0 = arith.constant 0 : index
    %c0_0 = arith.constant 0 : index
    %0 = vector.load %arg2[%c0, %c0_0] : memref<8x1152xbf16, #tpu.memory_space<vmem>>, vector<8x1152xbf16>
    %c0_1 = arith.constant 0 : index
    %c0_2 = arith.constant 0 : index
    %1 = vector.load %arg3[%c0_1, %c0_2] : memref<1152x128xbf16, #tpu.memory_space<vmem>>, vector<1152x128xbf16>
    %cst = arith.constant dense<0.000000e+00> : vector<8x128xf32>
    %2 = tpu.matmul %0, %1, %cst {dimension_numbers = #tpu.dot_dimension_numbers<[1], [0], [0], [1], [0, 0, 1, 1], [], []>} : vector<8x1152xbf16>, vector<1152x128xbf16>, vector<8x128xf32> -> vector<8x128xf32>
    %c0_3 = arith.constant 0 : index
    %c0_4 = arith.constant 0 : index
    %3 = vector.load %arg4[%c0_3, %c0_4] : memref<8x128xf32, #tpu.memory_space<vmem>>, vector<1x128xf32>
    %4 = vector.broadcast %3 : vector<1x128xf32> to vector<8x128xf32>
    %5 = arith.mulf %2, %4 : vector<8x128xf32>
    %c1 = arith.constant 1 : index
    %c0_5 = arith.constant 0 : index
    %6 = vector.load %arg4[%c1, %c0_5] : memref<8x128xf32, #tpu.memory_space<vmem>>, vector<1x128xf32>
    %7 = vector.broadcast %6 : vector<1x128xf32> to vector<8x128xf32>
    %8 = arith.addf %5, %7 : vector<8x128xf32>
    %cst_6 = arith.constant 0.000000e+00 : f32
    %9 = vector.broadcast %cst_6 : f32 to vector<8x128xf32>
    %10 = arith.cmpf ogt, %8, %9 : vector<8x128xf32>
    %c2 = arith.constant 2 : index
    %c0_7 = arith.constant 0 : index
    %11 = vector.load %arg4[%c2, %c0_7] : memref<8x128xf32, #tpu.memory_space<vmem>>, vector<1x128xf32>
    %12 = vector.broadcast %11 : vector<1x128xf32> to vector<8x128xf32>
    %13 = arith.mulf %12, %8 : vector<8x128xf32>
    %14 = arith.select %10, %8, %13 : vector<8x128xi1>, vector<8x128xf32>
    %15 = arith.truncf %14 : vector<8x128xf32> to vector<8x128xbf16>
    %c0_8 = arith.constant 0 : index
    %c0_9 = arith.constant 0 : index
    %16 = vector.load %arg5[%c0_8, %c0_9] : memref<8x128xbf16, #tpu.memory_space<vmem>>, vector<8x128xbf16>
    tpu.vector_store %arg5[%c0_8, %c0_9], %15 {strides = array<i32>} : memref<8x128xbf16, #tpu.memory_space<vmem>>, vector<8x128xbf16>,
    return
  }
  func.func @transform_0(%arg0: i32, %arg1: i32) -> (i32, i32) {
    %c0_i32 = arith.constant 0 : i32
    %c0_i32_0 = arith.constant 0 : i32
    return %arg0, %c0_i32 : i32, i32
  }
  func.func @transform_1(%arg0: i32, %arg1: i32) -> (i32, i32) {
    %c0_i32 = arith.constant 0 : i32
    %c0_i32_0 = arith.constant 0 : i32
    return %c0_i32, %arg1 : i32, i32
  }
  func.func @transform_2(%arg0: i32, %arg1: i32) -> (i32, i32) {
    %c0_i32 = arith.constant 0 : i32
    %c0_i32_0 = arith.constant 0 : i32
    return %c0_i32, %arg1 : i32, i32
  }
  func.func @transform_3(%arg0: i32, %arg1: i32) -> (i32, i32) {
    %c0_i32 = arith.constant 0 : i32
    return %arg0, %arg1 : i32, i32
  }
}

module attributes {stable_mosaic.version = 11 : i64} {
  func.func @_mm_res_kernel(%arg0: i32, %arg1: i32, %arg2: memref<8x1152xbf16, #tpu.memory_space<vmem>>, %arg3: memref<1152x128xbf16, #tpu.memory_space<vmem>>, %arg4: memref<8x128xf32, #tpu.memory_space<vmem>>, %arg5: memref<8x128xbf16, #tpu.memory_space<vmem>>, %arg6: memref<8x128xbf16, #tpu.memory_space<vmem>>) attributes {dimension_semantics = [#tpu.dimension_semantics<parallel>, #tpu.dimension_semantics<parallel>], iteration_bounds = array<i64: 1, 1>, scalar_prefetch = 0 : i64, scratch_operands = 0 : i64, tpu.core_type = #tpu.core_type<tc>, window_params = [{transform_indices = @transform_0, window_bounds = array<i64: 8, 1152>}, {transform_indices = @transform_1, window_bounds = array<i64: 1152, 128>}, {transform_indices = @transform_2, window_bounds = array<i64: 8, 128>}, {transform_indices = @transform_3, window_bounds = array<i64: 8, 128>}, {transform_indices = @transform_4, window_bounds = array<i64: 8, 128>}]} {
    %c0 = arith.constant 0 : index
    %c0_0 = arith.constant 0 : index
    %0 = vector.load %arg2[%c0, %c0_0] : memref<8x1152xbf16, #tpu.memory_space<vmem>>, vector<8x1152xbf16>
    %c0_1 = arith.constant 0 : index
    %c0_2 = arith.constant 0 : index
    %1 = vector.load %arg3[%c0_1, %c0_2] : memref<1152x128xbf16, #tpu.memory_space<vmem>>, vector<1152x128xbf16>
    %cst = arith.constant dense<0.000000e+00> : vector<8x128xf32>
    %2 = tpu.matmul %0, %1, %cst {dimension_numbers = #tpu.dot_dimension_numbers<[1], [0], [0], [1], [0, 0, 1, 1], [], []>} : vector<8x1152xbf16>, vector<1152x128xbf16>, vector<8x128xf32> -> vector<8x128xf32>
    %c0_3 = arith.constant 0 : index
    %c0_4 = arith.constant 0 : index
    %3 = vector.load %arg4[%c0_3, %c0_4] : memref<8x128xf32, #tpu.memory_space<vmem>>, vector<1x128xf32>
    %4 = vector.broadcast %3 : vector<1x128xf32> to vector<8x128xf32>
    %5 = arith.mulf %2, %4 : vector<8x128xf32>
    %c1 = arith.constant 1 : index
    %c0_5 = arith.constant 0 : index
    %6 = vector.load %arg4[%c1, %c0_5] : memref<8x128xf32, #tpu.memory_space<vmem>>, vector<1x128xf32>
    %7 = vector.broadcast %6 : vector<1x128xf32> to vector<8x128xf32>
    %8 = arith.addf %5, %7 : vector<8x128xf32>
    %cst_6 = arith.constant 0.000000e+00 : f32
    %9 = vector.broadcast %cst_6 : f32 to vector<8x128xf32>
    %10 = arith.cmpf ogt, %8, %9 : vector<8x128xf32>
    %c2 = arith.constant 2 : index
    %c0_7 = arith.constant 0 : index
    %11 = vector.load %arg4[%c2, %c0_7] : memref<8x128xf32, #tpu.memory_space<vmem>>, vector<1x128xf32>
    %12 = vector.broadcast %11 : vector<1x128xf32> to vector<8x128xf32>
    %13 = arith.mulf %12, %8 : vector<8x128xf32>
    %14 = arith.select %10, %8, %13 : vector<8x128xi1>, vector<8x128xf32>
    %c0_8 = arith.constant 0 : index
    %c0_9 = arith.constant 0 : index
    %15 = vector.load %arg5[%c0_8, %c0_9] : memref<8x128xbf16, #tpu.memory_space<vmem>>, vector<8x128xbf16>
    %16 = arith.extf %15 : vector<8x128xbf16> to vector<8x128xf32>
    %17 = arith.addf %14, %16 : vector<8x128xf32>
    %cst_10 = arith.constant 0.000000e+00 : f32
    %18 = vector.broadcast %cst_10 : f32 to vector<8x128xf32>
    %19 = arith.cmpf ogt, %17, %18 : vector<8x128xf32>
    %c3 = arith.constant 3 : index
    %c0_11 = arith.constant 0 : index
    %20 = vector.load %arg4[%c3, %c0_11] : memref<8x128xf32, #tpu.memory_space<vmem>>, vector<1x128xf32>
    %21 = vector.broadcast %20 : vector<1x128xf32> to vector<8x128xf32>
    %22 = arith.mulf %21, %17 : vector<8x128xf32>
    %23 = arith.select %19, %17, %22 : vector<8x128xi1>, vector<8x128xf32>
    %24 = arith.truncf %23 : vector<8x128xf32> to vector<8x128xbf16>
    %c0_12 = arith.constant 0 : index
    %c0_13 = arith.constant 0 : index
    %25 = vector.load %arg6[%c0_12, %c0_13] : memref<8x128xbf16, #tpu.memory_space<vmem>>, vector<8x128xbf16>
    tpu.vector_store %arg6[%c0_12, %c0_13], %24 {strides = array<i32>} : memref<8x128xbf16, #tpu.memory_space<vmem>>, vector<8x128xbf16>,
    return
  }
  func.func @transform_0(%arg0: i32, %arg1: i32) -> (i32, i32) {
    %c0_i32 = arith.constant 0 : i32
    %c0_i32_0 = arith.constant 0 : i32
    return %arg0, %c0_i32 : i32, i32
  }
  func.func @transform_1(%arg0: i32, %arg1: i32) -> (i32, i32) {
    %c0_i32 = arith.constant 0 : i32
    %c0_i32_0 = arith.constant 0 : i32
    return %c0_i32, %arg1 : i32, i32
  }
  func.func @transform_2(%arg0: i32, %arg1: i32) -> (i32, i32) {
    %c0_i32 = arith.constant 0 : i32
    %c0_i32_0 = arith.constant 0 : i32
    return %c0_i32, %arg1 : i32, i32
  }
  func.func @transform_3(%arg0: i32, %arg1: i32) -> (i32, i32) {
    %c0_i32 = arith.constant 0 : i32
    return %arg0, %arg1 : i32, i32
  }
  func.func @transform_4(%arg0: i32, %arg1: i32) -> (i32, i32) {
    %c0_i32 = arith.constant 0 : i32
    return %arg0, %arg1 : i32, i32
  }
}

module attributes {stable_mosaic.version = 11 : i64} {
  func.func @_mm_kernel(%arg0: i32, %arg1: i32, %arg2: memref<8x512xbf16, #tpu.memory_space<vmem>>, %arg3: memref<512x256xbf16, #tpu.memory_space<vmem>>, %arg4: memref<8x256xf32, #tpu.memory_space<vmem>>, %arg5: memref<8x256xbf16, #tpu.memory_space<vmem>>) attributes {dimension_semantics = [#tpu.dimension_semantics<parallel>, #tpu.dimension_semantics<parallel>], iteration_bounds = array<i64: 1, 1>, scalar_prefetch = 0 : i64, scratch_operands = 0 : i64, tpu.core_type = #tpu.core_type<tc>, window_params = [{transform_indices = @transform_0, window_bounds = array<i64: 8, 512>}, {transform_indices = @transform_1, window_bounds = array<i64: 512, 256>}, {transform_indices = @transform_2, window_bounds = array<i64: 8, 256>}, {transform_indices = @transform_3, window_bounds = array<i64: 8, 256>}]} {
    %c0 = arith.constant 0 : index
    %c0_0 = arith.constant 0 : index
    %0 = vector.load %arg2[%c0, %c0_0] : memref<8x512xbf16, #tpu.memory_space<vmem>>, vector<8x512xbf16>
    %c0_1 = arith.constant 0 : index
    %c0_2 = arith.constant 0 : index
    %1 = vector.load %arg3[%c0_1, %c0_2] : memref<512x256xbf16, #tpu.memory_space<vmem>>, vector<512x256xbf16>
    %cst = arith.constant dense<0.000000e+00> : vector<8x256xf32>
    %2 = tpu.matmul %0, %1, %cst {dimension_numbers = #tpu.dot_dimension_numbers<[1], [0], [0], [1], [0, 0, 1, 1], [], []>} : vector<8x512xbf16>, vector<512x256xbf16>, vector<8x256xf32> -> vector<8x256xf32>
    %c0_3 = arith.constant 0 : index
    %c0_4 = arith.constant 0 : index
    %3 = vector.load %arg4[%c0_3, %c0_4] : memref<8x256xf32, #tpu.memory_space<vmem>>, vector<1x256xf32>
    %4 = vector.broadcast %3 : vector<1x256xf32> to vector<8x256xf32>
    %5 = arith.mulf %2, %4 : vector<8x256xf32>
    %c1 = arith.constant 1 : index
    %c0_5 = arith.constant 0 : index
    %6 = vector.load %arg4[%c1, %c0_5] : memref<8x256xf32, #tpu.memory_space<vmem>>, vector<1x256xf32>
    %7 = vector.broadcast %6 : vector<1x256xf32> to vector<8x256xf32>
    %8 = arith.addf %5, %7 : vector<8x256xf32>
    %cst_6 = arith.constant 0.000000e+00 : f32
    %9 = vector.broadcast %cst_6 : f32 to vector<8x256xf32>
    %10 = arith.cmpf ogt, %8, %9 : vector<8x256xf32>
    %c2 = arith.constant 2 : index
    %c0_7 = arith.constant 0 : index
    %11 = vector.load %arg4[%c2, %c0_7] : memref<8x256xf32, #tpu.memory_space<vmem>>, vector<1x256xf32>
    %12 = vector.broadcast %11 : vector<1x256xf32> to vector<8x256xf32>
    %13 = arith.mulf %12, %8 : vector<8x256xf32>
    %14 = arith.select %10, %8, %13 : vector<8x256xi1>, vector<8x256xf32>
    %15 = arith.truncf %14 : vector<8x256xf32> to vector<8x256xbf16>
    %c0_8 = arith.constant 0 : index
    %c0_9 = arith.constant 0 : index
    %16 = vector.load %arg5[%c0_8, %c0_9] : memref<8x256xbf16, #tpu.memory_space<vmem>>, vector<8x256xbf16>
    tpu.vector_store %arg5[%c0_8, %c0_9], %15 {strides = array<i32>} : memref<8x256xbf16, #tpu.memory_space<vmem>>, vector<8x256xbf16>,
    return
  }
  func.func @transform_0(%arg0: i32, %arg1: i32) -> (i32, i32) {
    %c0_i32 = arith.constant 0 : i32
    %c0_i32_0 = arith.constant 0 : i32
    return %arg0, %c0_i32 : i32, i32
  }
  func.func @transform_1(%arg0: i32, %arg1: i32) -> (i32, i32) {
    %c0_i32 = arith.constant 0 : i32
    %c0_i32_0 = arith.constant 0 : i32
    return %c0_i32, %arg1 : i32, i32
  }
  func.func @transform_2(%arg0: i32, %arg1: i32) -> (i32, i32) {
    %c0_i32 = arith.constant 0 : i32
    %c0_i32_0 = arith.constant 0 : i32
    return %c0_i32, %arg1 : i32, i32
  }
  func.func @transform_3(%arg0: i32, %arg1: i32) -> (i32, i32) {
    %c0_i32 = arith.constant 0 : i32
    return %arg0, %arg1 : i32, i32
  }
}

module attributes {stable_mosaic.version = 11 : i64} {
  func.func @_mm_kernel(%arg0: i32, %arg1: i32, %arg2: memref<32x256xbf16, #tpu.memory_space<vmem>>, %arg3: memref<256x128xbf16, #tpu.memory_space<vmem>>, %arg4: memref<8x128xf32, #tpu.memory_space<vmem>>, %arg5: memref<32x128xbf16, #tpu.memory_space<vmem>>) attributes {dimension_semantics = [#tpu.dimension_semantics<parallel>, #tpu.dimension_semantics<parallel>], iteration_bounds = array<i64: 1, 1>, scalar_prefetch = 0 : i64, scratch_operands = 0 : i64, tpu.core_type = #tpu.core_type<tc>, window_params = [{transform_indices = @transform_0, window_bounds = array<i64: 32, 256>}, {transform_indices = @transform_1, window_bounds = array<i64: 256, 128>}, {transform_indices = @transform_2, window_bounds = array<i64: 8, 128>}, {transform_indices = @transform_3, window_bounds = array<i64: 32, 128>}]} {
    %c0 = arith.constant 0 : index
    %c0_0 = arith.constant 0 : index
    %0 = vector.load %arg2[%c0, %c0_0] : memref<32x256xbf16, #tpu.memory_space<vmem>>, vector<32x256xbf16>
    %c0_1 = arith.constant 0 : index
    %c0_2 = arith.constant 0 : index
    %1 = vector.load %arg3[%c0_1, %c0_2] : memref<256x128xbf16, #tpu.memory_space<vmem>>, vector<256x128xbf16>
    %cst = arith.constant dense<0.000000e+00> : vector<32x128xf32>
    %2 = tpu.matmul %0, %1, %cst {dimension_numbers = #tpu.dot_dimension_numbers<[1], [0], [0], [1], [0, 0, 1, 1], [], []>} : vector<32x256xbf16>, vector<256x128xbf16>, vector<32x128xf32> -> vector<32x128xf32>
    %c0_3 = arith.constant 0 : index
    %c0_4 = arith.constant 0 : index
    %3 = vector.load %arg4[%c0_3, %c0_4] : memref<8x128xf32, #tpu.memory_space<vmem>>, vector<1x128xf32>
    %4 = vector.broadcast %3 : vector<1x128xf32> to vector<32x128xf32>
    %5 = arith.mulf %2, %4 : vector<32x128xf32>
    %c1 = arith.constant 1 : index
    %c0_5 = arith.constant 0 : index
    %6 = vector.load %arg4[%c1, %c0_5] : memref<8x128xf32, #tpu.memory_space<vmem>>, vector<1x128xf32>
    %7 = vector.broadcast %6 : vector<1x128xf32> to vector<32x128xf32>
    %8 = arith.addf %5, %7 : vector<32x128xf32>
    %cst_6 = arith.constant 0.000000e+00 : f32
    %9 = vector.broadcast %cst_6 : f32 to vector<32x128xf32>
    %10 = arith.cmpf ogt, %8, %9 : vector<32x128xf32>
    %c2 = arith.constant 2 : index
    %c0_7 = arith.constant 0 : index
    %11 = vector.load %arg4[%c2, %c0_7] : memref<8x128xf32, #tpu.memory_space<vmem>>, vector<1x128xf32>
    %12 = vector.broadcast %11 : vector<1x128xf32> to vector<32x128xf32>
    %13 = arith.mulf %12, %8 : vector<32x128xf32>
    %14 = arith.select %10, %8, %13 : vector<32x128xi1>, vector<32x128xf32>
    %15 = arith.truncf %14 : vector<32x128xf32> to vector<32x128xbf16>
    %c0_8 = arith.constant 0 : index
    %c0_9 = arith.constant 0 : index
    %16 = vector.load %arg5[%c0_8, %c0_9] : memref<32x128xbf16, #tpu.memory_space<vmem>>, vector<32x128xbf16>
    tpu.vector_store %arg5[%c0_8, %c0_9], %15 {strides = array<i32>} : memref<32x128xbf16, #tpu.memory_space<vmem>>, vector<32x128xbf16>,
    return
  }
  func.func @transform_0(%arg0: i32, %arg1: i32) -> (i32, i32) {
    %c0_i32 = arith.constant 0 : i32
    %c0_i32_0 = arith.constant 0 : i32
    return %arg0, %c0_i32 : i32, i32
  }
  func.func @transform_1(%arg0: i32, %arg1: i32) -> (i32, i32) {
    %c0_i32 = arith.constant 0 : i32
    %c0_i32_0 = arith.constant 0 : i32
    return %c0_i32, %arg1 : i32, i32
  }
  func.func @transform_2(%arg0: i32, %arg1: i32) -> (i32, i32) {
    %c0_i32 = arith.constant 0 : i32
    %c0_i32_0 = arith.constant 0 : i32
    return %c0_i32, %arg1 : i32, i32
  }
  func.func @transform_3(%arg0: i32, %arg1: i32) -> (i32, i32) {
    %c0_i32 = arith.constant 0 : i32
    return %arg0, %arg1 : i32, i32
  }
}

module attributes {stable_mosaic.version = 11 : i64} {
  func.func @_mm_kernel(%arg0: i32, %arg1: i32, %arg2: memref<128x128xbf16, #tpu.memory_space<vmem>>, %arg3: memref<128x128xbf16, #tpu.memory_space<vmem>>, %arg4: memref<8x128xf32, #tpu.memory_space<vmem>>, %arg5: memref<128x128xbf16, #tpu.memory_space<vmem>>) attributes {dimension_semantics = [#tpu.dimension_semantics<parallel>, #tpu.dimension_semantics<parallel>], iteration_bounds = array<i64: 1, 1>, scalar_prefetch = 0 : i64, scratch_operands = 0 : i64, tpu.core_type = #tpu.core_type<tc>, window_params = [{transform_indices = @transform_0, window_bounds = array<i64: 128, 128>}, {transform_indices = @transform_1, window_bounds = array<i64: 128, 128>}, {transform_indices = @transform_2, window_bounds = array<i64: 8, 128>}, {transform_indices = @transform_3, window_bounds = array<i64: 128, 128>}]} {
    %c0 = arith.constant 0 : index
    %c0_0 = arith.constant 0 : index
    %0 = vector.load %arg2[%c0, %c0_0] : memref<128x128xbf16, #tpu.memory_space<vmem>>, vector<128x128xbf16>
    %c0_1 = arith.constant 0 : index
    %c0_2 = arith.constant 0 : index
    %1 = vector.load %arg3[%c0_1, %c0_2] : memref<128x128xbf16, #tpu.memory_space<vmem>>, vector<128x128xbf16>
    %cst = arith.constant dense<0.000000e+00> : vector<128x128xf32>
    %2 = tpu.matmul %0, %1, %cst {dimension_numbers = #tpu.dot_dimension_numbers<[1], [0], [0], [1], [0, 0, 1, 1], [], []>} : vector<128x128xbf16>, vector<128x128xbf16>, vector<128x128xf32> -> vector<128x128xf32>
    %c0_3 = arith.constant 0 : index
    %c0_4 = arith.constant 0 : index
    %3 = vector.load %arg4[%c0_3, %c0_4] : memref<8x128xf32, #tpu.memory_space<vmem>>, vector<1x128xf32>
    %4 = vector.broadcast %3 : vector<1x128xf32> to vector<128x128xf32>
    %5 = arith.mulf %2, %4 : vector<128x128xf32>
    %c1 = arith.constant 1 : index
    %c0_5 = arith.constant 0 : index
    %6 = vector.load %arg4[%c1, %c0_5] : memref<8x128xf32, #tpu.memory_space<vmem>>, vector<1x128xf32>
    %7 = vector.broadcast %6 : vector<1x128xf32> to vector<128x128xf32>
    %8 = arith.addf %5, %7 : vector<128x128xf32>
    %cst_6 = arith.constant 0.000000e+00 : f32
    %9 = vector.broadcast %cst_6 : f32 to vector<128x128xf32>
    %10 = arith.cmpf ogt, %8, %9 : vector<128x128xf32>
    %c2 = arith.constant 2 : index
    %c0_7 = arith.constant 0 : index
    %11 = vector.load %arg4[%c2, %c0_7] : memref<8x128xf32, #tpu.memory_space<vmem>>, vector<1x128xf32>
    %12 = vector.broadcast %11 : vector<1x128xf32> to vector<128x128xf32>
    %13 = arith.mulf %12, %8 : vector<128x128xf32>
    %14 = arith.select %10, %8, %13 : vector<128x128xi1>, vector<128x128xf32>
    %15 = arith.truncf %14 : vector<128x128xf32> to vector<128x128xbf16>
    %c0_8 = arith.constant 0 : index
    %c0_9 = arith.constant 0 : index
    %16 = vector.load %arg5[%c0_8, %c0_9] : memref<128x128xbf16, #tpu.memory_space<vmem>>, vector<128x128xbf16>
    tpu.vector_store %arg5[%c0_8, %c0_9], %15 {strides = array<i32>} : memref<128x128xbf16, #tpu.memory_space<vmem>>, vector<128x128xbf16>,
    return
  }
  func.func @transform_0(%arg0: i32, %arg1: i32) -> (i32, i32) {
    %c0_i32 = arith.constant 0 : i32
    %c0_i32_0 = arith.constant 0 : i32
    return %arg0, %c0_i32 : i32, i32
  }
  func.func @transform_1(%arg0: i32, %arg1: i32) -> (i32, i32) {
    %c0_i32 = arith.constant 0 : i32
    %c0_i32_0 = arith.constant 0 : i32
    return %c0_i32, %arg1 : i32, i32
  }
  func.func @transform_2(%arg0: i32, %arg1: i32) -> (i32, i32) {
    %c0_i32 = arith.constant 0 : i32
    %c0_i32_0 = arith.constant 0 : i32
    return %c0_i32, %arg1 : i32, i32
  }
  func.func @transform_3(%arg0: i32, %arg1: i32) -> (i32, i32) {
    %c0_i32 = arith.constant 0 : i32
    return %arg0, %arg1 : i32, i32
  }
}

module attributes {stable_mosaic.version = 11 : i64} {
  func.func @_head_kernel(%arg0: memref<16x2x256xbf16, #tpu.memory_space<vmem>>, %arg1: memref<1x256xf32, #tpu.memory_space<vmem>>, %arg2: memref<1x256xf32, #tpu.memory_space<vmem>>, %arg3: memref<16xf32, #tpu.memory_space<smem>>, %arg4: memref<1xf32, #tpu.memory_space<smem>>, %arg5: memref<2x2xf32, #tpu.memory_space<vmem>>) attributes {dimension_semantics = [], scalar_prefetch = 0 : i64, scratch_operands = 0 : i64, tpu.core_type = #tpu.core_type<tc>} {
    %cst = arith.constant 0.000000e+00 : f32
    %0 = vector.broadcast %cst : f32 to vector<2x256xf32>
    %c0 = arith.constant 0 : index
    %1 = memref.load %arg4[%c0] : memref<1xf32, #tpu.memory_space<smem>>
    %2 = vector.broadcast %1 : f32 to vector<2x256xf32>
    %3 = arith.addf %0, %2 : vector<2x256xf32>
    %c0_0 = arith.constant 0 : index
    %c0_1 = arith.constant 0 : index
    %c0_2 = arith.constant 0 : index
    %4 = vector.load %arg0[%c0_0, %c0_1, %c0_2] : memref<16x2x256xbf16, #tpu.memory_space<vmem>>, vector<1x2x256xbf16>
    %5 = vector.shape_cast %4 : vector<1x2x256xbf16> to vector<2x256xbf16>
    %6 = arith.extf %5 : vector<2x256xbf16> to vector<2x256xf32>
    %c0_3 = arith.constant 0 : index
    %7 = memref.load %arg3[%c0_3] : memref<16xf32, #tpu.memory_space<smem>>
    %8 = vector.broadcast %7 : f32 to vector<2x256xf32>
    %9 = arith.mulf %6, %8 : vector<2x256xf32>
    %10 = arith.addf %3, %9 : vector<2x256xf32>
    %c1 = arith.constant 1 : index
    %c0_4 = arith.constant 0 : index
    %c0_5 = arith.constant 0 : index
    %11 = vector.load %arg0[%c1, %c0_4, %c0_5] : memref<16x2x256xbf16, #tpu.memory_space<vmem>>, vector<1x2x256xbf16>
    %12 = vector.shape_cast %11 : vector<1x2x256xbf16> to vector<2x256xbf16>
    %13 = arith.extf %12 : vector<2x256xbf16> to vector<2x256xf32>
    %c1_6 = arith.constant 1 : index
    %14 = memref.load %arg3[%c1_6] : memref<16xf32, #tpu.memory_space<smem>>
    %15 = vector.broadcast %14 : f32 to vector<2x256xf32>
    %16 = arith.mulf %13, %15 : vector<2x256xf32>
    %17 = arith.addf %10, %16 : vector<2x256xf32>
    %c2 = arith.constant 2 : index
    %c0_7 = arith.constant 0 : index
    %c0_8 = arith.constant 0 : index
    %18 = vector.load %arg0[%c2, %c0_7, %c0_8] : memref<16x2x256xbf16, #tpu.memory_space<vmem>>, vector<1x2x256xbf16>
    %19 = vector.shape_cast %18 : vector<1x2x256xbf16> to vector<2x256xbf16>
    %20 = arith.extf %19 : vector<2x256xbf16> to vector<2x256xf32>
    %c2_9 = arith.constant 2 : index
    %21 = memref.load %arg3[%c2_9] : memref<16xf32, #tpu.memory_space<smem>>
    %22 = vector.broadcast %21 : f32 to vector<2x256xf32>
    %23 = arith.mulf %20, %22 : vector<2x256xf32>
    %24 = arith.addf %17, %23 : vector<2x256xf32>
    %c3 = arith.constant 3 : index
    %c0_10 = arith.constant 0 : index
    %c0_11 = arith.constant 0 : index
    %25 = vector.load %arg0[%c3, %c0_10, %c0_11] : memref<16x2x256xbf16, #tpu.memory_space<vmem>>, vector<1x2x256xbf16>
    %26 = vector.shape_cast %25 : vector<1x2x256xbf16> to vector<2x256xbf16>
    %27 = arith.extf %26 : vector<2x256xbf16> to vector<2x256xf32>
    %c3_12 = arith.constant 3 : index
    %28 = memref.load %arg3[%c3_12] : memref<16xf32, #tpu.memory_space<smem>>
    %29 = vector.broadcast %28 : f32 to vector<2x256xf32>
    %30 = arith.mulf %27, %29 : vector<2x256xf32>
    %31 = arith.addf %24, %30 : vector<2x256xf32>
    %c4 = arith.constant 4 : index
    %c0_13 = arith.constant 0 : index
    %c0_14 = arith.constant 0 : index
    %32 = vector.load %arg0[%c4, %c0_13, %c0_14] : memref<16x2x256xbf16, #tpu.memory_space<vmem>>, vector<1x2x256xbf16>
    %33 = vector.shape_cast %32 : vector<1x2x256xbf16> to vector<2x256xbf16>
    %34 = arith.extf %33 : vector<2x256xbf16> to vector<2x256xf32>
    %c4_15 = arith.constant 4 : index
    %35 = memref.load %arg3[%c4_15] : memref<16xf32, #tpu.memory_space<smem>>
    %36 = vector.broadcast %35 : f32 to vector<2x256xf32>
    %37 = arith.mulf %34, %36 : vector<2x256xf32>
    %38 = arith.addf %31, %37 : vector<2x256xf32>
    %c5 = arith.constant 5 : index
    %c0_16 = arith.constant 0 : index
    %c0_17 = arith.constant 0 : index
    %39 = vector.load %arg0[%c5, %c0_16, %c0_17] : memref<16x2x256xbf16, #tpu.memory_space<vmem>>, vector<1x2x256xbf16>
    %40 = vector.shape_cast %39 : vector<1x2x256xbf16> to vector<2x256xbf16>
    %41 = arith.extf %40 : vector<2x256xbf16> to vector<2x256xf32>
    %c5_18 = arith.constant 5 : index
    %42 = memref.load %arg3[%c5_18] : memref<16xf32, #tpu.memory_space<smem>>
    %43 = vector.broadcast %42 : f32 to vector<2x256xf32>
    %44 = arith.mulf %41, %43 : vector<2x256xf32>
    %45 = arith.addf %38, %44 : vector<2x256xf32>
    %c6 = arith.constant 6 : index
    %c0_19 = arith.constant 0 : index
    %c0_20 = arith.constant 0 : index
    %46 = vector.load %arg0[%c6, %c0_19, %c0_20] : memref<16x2x256xbf16, #tpu.memory_space<vmem>>, vector<1x2x256xbf16>
    %47 = vector.shape_cast %46 : vector<1x2x256xbf16> to vector<2x256xbf16>
    %48 = arith.extf %47 : vector<2x256xbf16> to vector<2x256xf32>
    %c6_21 = arith.constant 6 : index
    %49 = memref.load %arg3[%c6_21] : memref<16xf32, #tpu.memory_space<smem>>
    %50 = vector.broadcast %49 : f32 to vector<2x256xf32>
    %51 = arith.mulf %48, %50 : vector<2x256xf32>
    %52 = arith.addf %45, %51 : vector<2x256xf32>
    %c7 = arith.constant 7 : index
    %c0_22 = arith.constant 0 : index
    %c0_23 = arith.constant 0 : index
    %53 = vector.load %arg0[%c7, %c0_22, %c0_23] : memref<16x2x256xbf16, #tpu.memory_space<vmem>>, vector<1x2x256xbf16>
    %54 = vector.shape_cast %53 : vector<1x2x256xbf16> to vector<2x256xbf16>
    %55 = arith.extf %54 : vector<2x256xbf16> to vector<2x256xf32>
    %c7_24 = arith.constant 7 : index
    %56 = memref.load %arg3[%c7_24] : memref<16xf32, #tpu.memory_space<smem>>
    %57 = vector.broadcast %56 : f32 to vector<2x256xf32>
    %58 = arith.mulf %55, %57 : vector<2x256xf32>
    %59 = arith.addf %52, %58 : vector<2x256xf32>
    %c8 = arith.constant 8 : index
    %c0_25 = arith.constant 0 : index
    %c0_26 = arith.constant 0 : index
    %60 = vector.load %arg0[%c8, %c0_25, %c0_26] : memref<16x2x256xbf16, #tpu.memory_space<vmem>>, vector<1x2x256xbf16>
    %61 = vector.shape_cast %60 : vector<1x2x256xbf16> to vector<2x256xbf16>
    %62 = arith.extf %61 : vector<2x256xbf16> to vector<2x256xf32>
    %c8_27 = arith.constant 8 : index
    %63 = memref.load %arg3[%c8_27] : memref<16xf32, #tpu.memory_space<smem>>
    %64 = vector.broadcast %63 : f32 to vector<2x256xf32>
    %65 = arith.mulf %62, %64 : vector<2x256xf32>
    %66 = arith.addf %59, %65 : vector<2x256xf32>
    %c9 = arith.constant 9 : index
    %c0_28 = arith.constant 0 : index
    %c0_29 = arith.constant 0 : index
    %67 = vector.load %arg0[%c9, %c0_28, %c0_29] : memref<16x2x256xbf16, #tpu.memory_space<vmem>>, vector<1x2x256xbf16>
    %68 = vector.shape_cast %67 : vector<1x2x256xbf16> to vector<2x256xbf16>
    %69 = arith.extf %68 : vector<2x256xbf16> to vector<2x256xf32>
    %c9_30 = arith.constant 9 : index
    %70 = memref.load %arg3[%c9_30] : memref<16xf32, #tpu.memory_space<smem>>
    %71 = vector.broadcast %70 : f32 to vector<2x256xf32>
    %72 = arith.mulf %69, %71 : vector<2x256xf32>
    %73 = arith.addf %66, %72 : vector<2x256xf32>
    %c10 = arith.constant 10 : index
    %c0_31 = arith.constant 0 : index
    %c0_32 = arith.constant 0 : index
    %74 = vector.load %arg0[%c10, %c0_31, %c0_32] : memref<16x2x256xbf16, #tpu.memory_space<vmem>>, vector<1x2x256xbf16>
    %75 = vector.shape_cast %74 : vector<1x2x256xbf16> to vector<2x256xbf16>
    %76 = arith.extf %75 : vector<2x256xbf16> to vector<2x256xf32>
    %c10_33 = arith.constant 10 : index
    %77 = memref.load %arg3[%c10_33] : memref<16xf32, #tpu.memory_space<smem>>
    %78 = vector.broadcast %77 : f32 to vector<2x256xf32>
    %79 = arith.mulf %76, %78 : vector<2x256xf32>
    %80 = arith.addf %73, %79 : vector<2x256xf32>
    %c11 = arith.constant 11 : index
    %c0_34 = arith.constant 0 : index
    %c0_35 = arith.constant 0 : index
    %81 = vector.load %arg0[%c11, %c0_34, %c0_35] : memref<16x2x256xbf16, #tpu.memory_space<vmem>>, vector<1x2x256xbf16>
    %82 = vector.shape_cast %81 : vector<1x2x256xbf16> to vector<2x256xbf16>
    %83 = arith.extf %82 : vector<2x256xbf16> to vector<2x256xf32>
    %c11_36 = arith.constant 11 : index
    %84 = memref.load %arg3[%c11_36] : memref<16xf32, #tpu.memory_space<smem>>
    %85 = vector.broadcast %84 : f32 to vector<2x256xf32>
    %86 = arith.mulf %83, %85 : vector<2x256xf32>
    %87 = arith.addf %80, %86 : vector<2x256xf32>
    %c12 = arith.constant 12 : index
    %c0_37 = arith.constant 0 : index
    %c0_38 = arith.constant 0 : index
    %88 = vector.load %arg0[%c12, %c0_37, %c0_38] : memref<16x2x256xbf16, #tpu.memory_space<vmem>>, vector<1x2x256xbf16>
    %89 = vector.shape_cast %88 : vector<1x2x256xbf16> to vector<2x256xbf16>
    %90 = arith.extf %89 : vector<2x256xbf16> to vector<2x256xf32>
    %c12_39 = arith.constant 12 : index
    %91 = memref.load %arg3[%c12_39] : memref<16xf32, #tpu.memory_space<smem>>
    %92 = vector.broadcast %91 : f32 to vector<2x256xf32>
    %93 = arith.mulf %90, %92 : vector<2x256xf32>
    %94 = arith.addf %87, %93 : vector<2x256xf32>
    %c13 = arith.constant 13 : index
    %c0_40 = arith.constant 0 : index
    %c0_41 = arith.constant 0 : index
    %95 = vector.load %arg0[%c13, %c0_40, %c0_41] : memref<16x2x256xbf16, #tpu.memory_space<vmem>>, vector<1x2x256xbf16>
    %96 = vector.shape_cast %95 : vector<1x2x256xbf16> to vector<2x256xbf16>
    %97 = arith.extf %96 : vector<2x256xbf16> to vector<2x256xf32>
    %c13_42 = arith.constant 13 : index
    %98 = memref.load %arg3[%c13_42] : memref<16xf32, #tpu.memory_space<smem>>
    %99 = vector.broadcast %98 : f32 to vector<2x256xf32>
    %100 = arith.mulf %97, %99 : vector<2x256xf32>
    %101 = arith.addf %94, %100 : vector<2x256xf32>
    %c14 = arith.constant 14 : index
    %c0_43 = arith.constant 0 : index
    %c0_44 = arith.constant 0 : index
    %102 = vector.load %arg0[%c14, %c0_43, %c0_44] : memref<16x2x256xbf16, #tpu.memory_space<vmem>>, vector<1x2x256xbf16>
    %103 = vector.shape_cast %102 : vector<1x2x256xbf16> to vector<2x256xbf16>
    %104 = arith.extf %103 : vector<2x256xbf16> to vector<2x256xf32>
    %c14_45 = arith.constant 14 : index
    %105 = memref.load %arg3[%c14_45] : memref<16xf32, #tpu.memory_space<smem>>
    %106 = vector.broadcast %105 : f32 to vector<2x256xf32>
    %107 = arith.mulf %104, %106 : vector<2x256xf32>
    %108 = arith.addf %101, %107 : vector<2x256xf32>
    %c15 = arith.constant 15 : index
    %c0_46 = arith.constant 0 : index
    %c0_47 = arith.constant 0 : index
    %109 = vector.load %arg0[%c15, %c0_46, %c0_47] : memref<16x2x256xbf16, #tpu.memory_space<vmem>>, vector<1x2x256xbf16>
    %110 = vector.shape_cast %109 : vector<1x2x256xbf16> to vector<2x256xbf16>
    %111 = arith.extf %110 : vector<2x256xbf16> to vector<2x256xf32>
    %c15_48 = arith.constant 15 : index
    %112 = memref.load %arg3[%c15_48] : memref<16xf32, #tpu.memory_space<smem>>
    %113 = vector.broadcast %112 : f32 to vector<2x256xf32>
    %114 = arith.mulf %111, %113 : vector<2x256xf32>
    %115 = arith.addf %108, %114 : vector<2x256xf32>
    %cst_49 = arith.constant dense<0xFF800000> : vector<2xf32>
    %116 = vector.multi_reduction <maximumf>, %115, %cst_49 [1] : vector<2x256xf32> to vector<2xf32>
    %117 = vector.shape_cast %116 : vector<2xf32> to vector<2x1xf32>
    %118 = vector.broadcast %117 : vector<2x1xf32> to vector<2x256xf32>
    %119 = arith.subf %115, %118 : vector<2x256xf32>
    %120 = math.exp %119 : vector<2x256xf32>
    %cst_50 = arith.constant dense<0.000000e+00> : vector<2xf32>
    %121 = vector.multi_reduction <add>, %120, %cst_50 [1] : vector<2x256xf32> to vector<2xf32>
    %122 = vector.shape_cast %121 : vector<2xf32> to vector<2x1xf32>
    %123 = vector.broadcast %122 : vector<2x1xf32> to vector<2x256xf32>
    %124 = arith.divf %120, %123 : vector<2x256xf32>
    %c0_51 = arith.constant 0 : index
    %c0_52 = arith.constant 0 : index
    %125 = vector.load %arg1[%c0_51, %c0_52] : memref<1x256xf32, #tpu.memory_space<vmem>>, vector<1x256xf32>
    %126 = vector.broadcast %125 : vector<1x256xf32> to vector<2x256xf32>
    %127 = arith.mulf %124, %126 : vector<2x256xf32>
    %cst_53 = arith.constant dense<0.000000e+00> : vector<2xf32>
    %128 = vector.multi_reduction <add>, %127, %cst_53 [1] : vector<2x256xf32> to vector<2xf32>
    %129 = vector.shape_cast %128 : vector<2xf32> to vector<2x1xf32>
    %c0_54 = arith.constant 0 : index
    %c0_55 = arith.constant 0 : index
    %130 = vector.load %arg2[%c0_54, %c0_55] : memref<1x256xf32, #tpu.memory_space<vmem>>, vector<1x256xf32>
    %131 = vector.broadcast %130 : vector<1x256xf32> to vector<2x256xf32>
    %132 = arith.mulf %124, %131 : vector<2x256xf32>
    %cst_56 = arith.constant dense<0.000000e+00> : vector<2xf32>
    %133 = vector.multi_reduction <add>, %132, %cst_56 [1] : vector<2x256xf32> to vector<2xf32>
    %134 = vector.shape_cast %133 : vector<2xf32> to vector<2x1xf32>
    %135 = tpu.concatenate %129, %134 in 1 : vector<2x1xf32>, vector<2x1xf32> -> vector<2x2xf32>
    %c0_57 = arith.constant 0 : index
    %c0_58 = arith.constant 0 : index
    %136 = vector.load %arg5[%c0_57, %c0_58] : memref<2x2xf32, #tpu.memory_space<vmem>>, vector<2x2xf32>
    tpu.vector_store %arg5[%c0_57, %c0_58], %135 {strides = array<i32>} : memref<2x2xf32, #tpu.memory_space<vmem>>, vector<2x2xf32>,
    return
  }
}

</mosaic_0001>

<llo_original>
// kernel: _lambda_.13
$region0: #{_lambda_.13}
  #allocation0 [shape = 'u32[]', space=smem, size = 0x4, offset = 0x4, fixed_abs, tag = 'smem constant byte address 0x4 - core index']
  #allocation1 [shape = 'u32[144,128]{1,0:T(1,128)}', space=vmem, size = 0x12000, scoped, tag = 'internal scratch']
  %s0 = inlined_call_operand.vmem [shape: bf16[128,27], index: 0, kind: input, shape index: {}]
  %s1 = inlined_call_operand.vmem [shape: bf16[27,128], index: 1, kind: input, shape index: {}]
  %s2 = inlined_call_operand.vmem [shape: f32[8,128], index: 2, kind: input, shape index: {}]
  %s3 = inlined_call_operand.vmem [shape: bf16[128,128], index: 3, kind: output, shape index: {}]
  %s4 = sld [smem:[#allocation0]]
  $region22: #{_lambda_.13} parent=0
    _
  %s6 = ssub.s32 1, %s4
  %s7 = scalar_select 0, %s6, %s4
  // Predicated region
  $region2: #{_lambda_.13} parent=0 // pred_check
    _
  $region3: #{_lambda_.13} parent=0 // pred_check_branch
    %9 = sbr.rel (0) target = $region5
  $region4: #{_lambda_.13} parent=0 // pred_region
    _
  $region5: #{_lambda_.13} parent=0 // pred_fallthru
    _
  // Predicated region
  $region6: #{_lambda_.13} parent=0 // pred_check
    _
  $region7: #{_lambda_.13} parent=0 // pred_check_branch
    %11 = sbr.rel (0) target = $region9
  $region8: #{_lambda_.13} parent=0 // pred_region
    _
  $region9: #{_lambda_.13} parent=0 // pred_fallthru
    _
  // Predicated region
  $region10: #{_lambda_.13} parent=0 // pred_check
    _
  $region11: #{_lambda_.13} parent=0 // pred_check_branch
    %13 = sbr.rel (0) target = $region13
  $region12: #{_lambda_.13} parent=0 // pred_region
    _
  $region13: #{_lambda_.13} parent=0 // pred_fallthru
    _
  %v15 = vld [vmem:[%s0] sm:$0xf]
  %v16 = vld [vmem:[%s0 + $0x4] sm:$0xf]
  %v17 = vld [vmem:[%s0 + $0x8] sm:$0xf]
  %v18 = vld [vmem:[%s0 + $0xc] sm:$0xf]
  %v19 = vld [vmem:[%s0 + $0x10] sm:$0xf]
  %v20 = vld [vmem:[%s0 + $0x14] sm:$0xf]
  %v21 = vld [vmem:[%s0 + $0x18] sm:$0xf]
  %v22 = vld [vmem:[%s0 + $0x1c] sm:$0xf]
  %v23 = vld [vmem:[%s0 + $0x20] sm:$0xf]
  %v24 = vld [vmem:[%s0 + $0x24] sm:$0xf]
  %v25 = vld [vmem:[%s0 + $0x28] sm:$0xf]
  %v26 = vld [vmem:[%s0 + $0x2c] sm:$0xf]
  %v27 = vld [vmem:[%s0 + $0x30] sm:$0xf]
  %v28 = vld [vmem:[%s0 + $0x34] sm:$0xf]
  %v29 = vld [vmem:[%s0 + $0x38] sm:$0xf]
  %v30 = vld [vmem:[%s0 + $0x3c] sm:$0xf]
  %v31 = vld [vmem:[%s1] sm:$0xf]
  %v32 = vld [vmem:[%s1 + $0x4] sm:$0xf]
  %v33 = vld [vmem:[%s1 + $0x8] sm:$0xf]
  %v34 = vld [vmem:[%s1 + $0xc] sm:$0x3]
  %v51 = vunpack.c.l.b16 %v15
  %v52 = vunpack.c.l.b16 %v16
  %v53 = vunpack.c.l.b16 %v17
  %v54 = vunpack.c.l.b16 %v18
  %v55 = vunpack.c.l.b16 %v19
  %v56 = vunpack.c.l.b16 %v20
  %v57 = vunpack.c.l.b16 %v21
  %v58 = vunpack.c.l.b16 %v22
  %v59 = vunpack.c.l.b16 %v23
  %v60 = vunpack.c.l.b16 %v24
  %v61 = vunpack.c.l.b16 %v25
  %v62 = vunpack.c.l.b16 %v26
  %v63 = vunpack.c.l.b16 %v27
  %v64 = vunpack.c.l.b16 %v28
  %v65 = vunpack.c.l.b16 %v29
  %v66 = vunpack.c.l.b16 %v30
  %v67 = vpack.c.b16 %v52, %v51
  %v68 = vpack.c.b16 %v54, %v53
  %v69 = vpack.c.b16 %v56, %v55
  %v70 = vpack.c.b16 %v58, %v57
  %v71 = vpack.c.b16 %v60, %v59
  %v72 = vpack.c.b16 %v62, %v61
  %v73 = vpack.c.b16 %v64, %v63
  %v74 = vpack.c.b16 %v66, %v65
  %v79 = vunpack.c.l.b16 %v31
  %v80 = vunpack.c.l.b16 %v32
  %v81 = vunpack.c.l.b16 %v33
  %v82 = vunpack.c.l.b16 %v34
  %v83 = vpack.c.b16 %v80, %v79
  %v84 = vpack.c.b16 %v82, %v81
  %vm86 = vcmask 220160
  %v88 = vsel %vm86, %v67, 0
  %v91 = vsel %vm86, %v68, 0
  %v94 = vsel %vm86, %v69, 0
  %v97 = vsel %vm86, %v70, 0
  %v100 = vsel %vm86, %v71, 0
  %v103 = vsel %vm86, %v72, 0
  %v106 = vsel %vm86, %v73, 0
  %v109 = vsel %vm86, %v74, 0
  %vm111 = vcmask 1044480
  %vm112 = vcmask 1045504
  %v113 = vsel %vm111, 4294967295, 65535
  %v114 = vsel %vm112, %v113, 0
  %v116 = vand.u32 %v84, %v114
  %118 = vmatprep.subr.bf16.mxu0 0
  %119 = vmatpush1.bf16.msra.mxu0 %v83
  %120 = vmatprep.subr.bf16.mxu0 0
  %121 = vmatpush1.bf16.msra.mxu0 %v116
  %122 = vmatprep.subr.bf16.mxu0 0
  %123 = vmatpush1.bf16.msra.mxu0 0
  %124 = vmatprep.subr.bf16.mxu0 0
  %125 = vmatpush1.bf16.msra.mxu0 0
  %126 = vmatprep.subr.bf16.mxu0 0
  %127 = vmatpush1.bf16.msra.mxu0 0
  %128 = vmatprep.subr.bf16.mxu0 0
  %129 = vmatpush1.bf16.msra.mxu0 0
  %130 = vmatprep.subr.bf16.mxu0 0
  %131 = vmatpush1.bf16.msra.mxu0 0
  %132 = vmatprep.subr.bf16.mxu0 0
  %133 = vmatpush1.bf16.msra.mxu0 0
  %134 = vmatprep.subr.bf16.mxu0 0
  %135 = vmatpush1.bf16.msra.mxu0 0
  %136 = vmatprep.subr.bf16.mxu0 0
  %137 = vmatpush1.bf16.msra.mxu0 0
  %138 = vmatprep.subr.bf16.mxu0 0
  %139 = vmatpush1.bf16.msra.mxu0 0
  %140 = vmatprep.subr.bf16.mxu0 0
  %141 = vmatpush1.bf16.msra.mxu0 0
  %142 = vmatprep.subr.bf16.mxu0 0
  %143 = vmatpush1.bf16.msra.mxu0 0
  %144 = vmatprep.subr.bf16.mxu0 0
  %145 = vmatpush1.bf16.msra.mxu0 0
  %146 = vmatprep.subr.bf16.mxu0 0
  %147 = vmatpush1.bf16.msra.mxu0 0
  %148 = vmatprep.subr.bf16.mxu0 0
  %149 = vmatpush1.bf16.msra.mxu0 0
  %150 = vmatprep.mubr.bf16.mxu0 0
  %151 = vmatmul.mubr.bf16.gmra.mrb[0].mxu0 %v88
  %v152 = vpop.f32.mrb[0].mxu0
  %v153 = vadd.f32 0.0, %v152
  %v154 = vpop.f32.mrb[0].mxu0
  %v155 = vpop.f32.mrb[0].mxu0
  %v156 = vadd.f32 0.0, %v155
  %v157 = vpop.f32.mrb[0].mxu0
  %158 = vmatprep.mubr.bf16.mxu0 0
  %159 = vmatmul.mubr.bf16.gmra.mrb[0].mxu0 %v91
  %v160 = vpop.f32.mrb[0].mxu0
  %v161 = vadd.f32 0.0, %v160
  %v162 = vpop.f32.mrb[0].mxu0
  %v163 = vpop.f32.mrb[0].mxu0
  %v164 = vadd.f32 0.0, %v163
  %v165 = vpop.f32.mrb[0].mxu0
  %166 = vmatprep.mubr.bf16.mxu0 0
  %167 = vmatmul.mubr.bf16.gmra.mrb[0].mxu0 %v94
  %v168 = vpop.f32.mrb[0].mxu0
  %v169 = vadd.f32 0.0, %v168
  %v170 = vpop.f32.mrb[0].mxu0
  %v171 = vpop.f32.mrb[0].mxu0
  %v172 = vadd.f32 0.0, %v171
  %v173 = vpop.f32.mrb[0].mxu0
  %174 = vmatprep.mubr.bf16.mxu0 0
  %175 = vmatmul.mubr.bf16.gmra.mrb[0].mxu0 %v97
  %v176 = vpop.f32.mrb[0].mxu0
  %v177 = vadd.f32 0.0, %v176
  %v178 = vpop.f32.mrb[0].mxu0
  %v179 = vpop.f32.mrb[0].mxu0
  %v180 = vadd.f32 0.0, %v179
  %v181 = vpop.f32.mrb[0].mxu0
  %182 = vmatprep.mubr.bf16.mxu0 0
  %183 = vmatmul.mubr.bf16.gmra.mrb[0].mxu0 %v100
  %v184 = vpop.f32.mrb[0].mxu0
  %v185 = vadd.f32 0.0, %v184
  %v186 = vpop.f32.mrb[0].mxu0
  %v187 = vpop.f32.mrb[0].mxu0
  %v188 = vadd.f32 0.0, %v187
  %v189 = vpop.f32.mrb[0].mxu0
  %190 = vmatprep.mubr.bf16.mxu0 0
  %191 = vmatmul.mubr.bf16.gmra.mrb[0].mxu0 %v103
  %v192 = vpop.f32.mrb[0].mxu0
  %v193 = vadd.f32 0.0, %v192
  %v194 = vpop.f32.mrb[0].mxu0
  %v195 = vpop.f32.mrb[0].mxu0
  %v196 = vadd.f32 0.0, %v195
  %v197 = vpop.f32.mrb[0].mxu0
  %198 = vmatprep.mubr.bf16.mxu0 0
  %199 = vmatmul.mubr.bf16.gmra.mrb[0].mxu0 %v106
  %v200 = vpop.f32.mrb[0].mxu0
  %v201 = vadd.f32 0.0, %v200
  %v202 = vpop.f32.mrb[0].mxu0
  %v203 = vpop.f32.mrb[0].mxu0
  %v204 = vadd.f32 0.0, %v203
  %v205 = vpop.f32.mrb[0].mxu0
  %206 = vmatprep.mubr.bf16.mxu0 0
  %207 = vmatmul.mubr.bf16.gmra.mrb[0].mxu0 %v109
  %v208 = vpop.f32.mrb[0].mxu0
  %v209 = vadd.f32 0.0, %v208
  %v210 = vpop.f32.mrb[0].mxu0
  %v211 = vpop.f32.mrb[0].mxu0
  %v212 = vadd.f32 0.0, %v211
  %v213 = vpop.f32.mrb[0].mxu0
  %214 = vdwg.mxu0
  %v215 = vld [vmem:[%s2] sm:$0x1]
  %v216 = vlaneseq
  %v217 = vshrl.u32 %v216, 7
  %v218 = vsub.s32 0, %v217
  %v219 = vrot.slane %v215, %v218
  %v220 = vmul.f32 %v153, %v219
  %v221 = vmul.f32 %v156, %v219
  %v222 = vmul.f32 %v161, %v219
  %v223 = vmul.f32 %v164, %v219
  %v224 = vmul.f32 %v169, %v219
  %v225 = vmul.f32 %v172, %v219
  %v226 = vmul.f32 %v177, %v219
  %v227 = vmul.f32 %v180, %v219
  %v228 = vmul.f32 %v185, %v219
  %v229 = vmul.f32 %v188, %v219
  %v230 = vmul.f32 %v193, %v219
  %v231 = vmul.f32 %v196, %v219
  %v232 = vmul.f32 %v201, %v219
  %v233 = vmul.f32 %v204, %v219
  %v234 = vmul.f32 %v209, %v219
  %v235 = vmul.f32 %v212, %v219
  %v236 = vld [vmem:[%s2 + $0x1] sm:$0x1]
  %v237 = vlaneseq
  %v238 = vshrl.u32 %v237, 7
  %v239 = vsub.s32 0, %v238
  %v240 = vrot.slane %v236, %v239
  %v241 = vadd.f32 %v220, %v240
  %v242 = vadd.f32 %v221, %v240
  %v243 = vadd.f32 %v222, %v240
  %v244 = vadd.f32 %v223, %v240
  %v245 = vadd.f32 %v224, %v240
  %v246 = vadd.f32 %v225, %v240
  %v247 = vadd.f32 %v226, %v240
  %v248 = vadd.f32 %v227, %v240
  %v249 = vadd.f32 %v228, %v240
  %v250 = vadd.f32 %v229, %v240
  %v251 = vadd.f32 %v230, %v240
  %v252 = vadd.f32 %v231, %v240
  %v253 = vadd.f32 %v232, %v240
  %v254 = vadd.f32 %v233, %v240
  %v255 = vadd.f32 %v234, %v240
  %v256 = vadd.f32 %v235, %v240
  %vm257 = vcmp.gt.f32.partialorder %v241, 0.0
  %vm258 = vcmp.gt.f32.partialorder %v242, 0.0
  %vm259 = vcmp.gt.f32.partialorder %v243, 0.0
  %vm260 = vcmp.gt.f32.partialorder %v244, 0.0
  %vm261 = vcmp.gt.f32.partialorder %v245, 0.0
  %vm262 = vcmp.gt.f32.partialorder %v246, 0.0
  %vm263 = vcmp.gt.f32.partialorder %v247, 0.0
  %vm264 = vcmp.gt.f32.partialorder %v248, 0.0
  %vm265 = vcmp.gt.f32.partialorder %v249, 0.0
  %vm266 = vcmp.gt.f32.partialorder %v250, 0.0
  %vm267 = vcmp.gt.f32.partialorder %v251, 0.0
  %vm268 = vcmp.gt.f32.partialorder %v252, 0.0
  %vm269 = vcmp.gt.f32.partialorder %v253, 0.0
  %vm270 = vcmp.gt.f32.partialorder %v254, 0.0
  %vm271 = vcmp.gt.f32.partialorder %v255, 0.0
  %vm272 = vcmp.gt.f32.partialorder %v256, 0.0
  %v273 = vld [vmem:[%s2 + $0x2] sm:$0x1]
  %v274 = vlaneseq
  %v275 = vshrl.u32 %v274, 7
  %v276 = vsub.s32 0, %v275
  %v277 = vrot.slane %v273, %v276
  %v278 = vmul.f32 %v277, %v241
  %v279 = vmul.f32 %v277, %v242
  %v280 = vmul.f32 %v277, %v243
  %v281 = vmul.f32 %v277, %v244
  %v282 = vmul.f32 %v277, %v245
  %v283 = vmul.f32 %v277, %v246
  %v284 = vmul.f32 %v277, %v247
  %v285 = vmul.f32 %v277, %v248
  %v286 = vmul.f32 %v277, %v249
  %v287 = vmul.f32 %v277, %v250
  %v288 = vmul.f32 %v277, %v251
  %v289 = vmul.f32 %v277, %v252
  %v290 = vmul.f32 %v277, %v253
  %v291 = vmul.f32 %v277, %v254
  %v292 = vmul.f32 %v277, %v255
  %v293 = vmul.f32 %v277, %v256
  %v294 = vsel %vm257, %v241, %v278
  %v295 = vsel %vm258, %v242, %v279
  %v296 = vsel %vm259, %v243, %v280
  %v297 = vsel %vm260, %v244, %v281
  %v298 = vsel %vm261, %v245, %v282
  %v299 = vsel %vm262, %v246, %v283
  %v300 = vsel %vm263, %v247, %v284
  %v301 = vsel %vm264, %v248, %v285
  %v302 = vsel %vm265, %v249, %v286
  %v303 = vsel %vm266, %v250, %v287
  %v304 = vsel %vm267, %v251, %v288
  %v305 = vsel %vm268, %v252, %v289
  %v306 = vsel %vm269, %v253, %v290
  %v307 = vsel %vm270, %v254, %v291
  %v308 = vsel %vm271, %v255, %v292
  %v309 = vsel %vm272, %v256, %v293
  %v310 = vpack.c.bf16 %v295, %v294
  %v311 = vpack.c.bf16 %v297, %v296
  %v312 = vpack.c.bf16 %v299, %v298
  %v313 = vpack.c.bf16 %v301, %v300
  %v314 = vpack.c.bf16 %v303, %v302
  %v315 = vpack.c.bf16 %v305, %v304
  %v316 = vpack.c.bf16 %v307, %v306
  %v317 = vpack.c.bf16 %v309, %v308
  %v326 = vunpack.c.l.b16 %v310
  %v327 = vunpack.c.h.b16 %v310
  %v328 = vunpack.c.l.b16 %v311
  %v329 = vunpack.c.h.b16 %v311
  %v330 = vunpack.c.l.b16 %v312
  %v331 = vunpack.c.h.b16 %v312
  %v332 = vunpack.c.l.b16 %v313
  %v333 = vunpack.c.h.b16 %v313
  %v334 = vunpack.c.l.b16 %v314
  %v335 = vunpack.c.h.b16 %v314
  %v336 = vunpack.c.l.b16 %v315
  %v337 = vunpack.c.h.b16 %v315
  %v338 = vunpack.c.l.b16 %v316
  %v339 = vunpack.c.h.b16 %v316
  %v340 = vunpack.c.l.b16 %v317
  %v341 = vunpack.c.h.b16 %v317
  %v342 = vpack.c.b16 %v326, %v326
  %v343 = vpack.c.b16 %v327, %v327
  %v344 = vpack.c.b16 %v328, %v328
  %v345 = vpack.c.b16 %v329, %v329
  %v346 = vpack.c.b16 %v330, %v330
  %v347 = vpack.c.b16 %v331, %v331
  %v348 = vpack.c.b16 %v332, %v332
  %v349 = vpack.c.b16 %v333, %v333
  %v350 = vpack.c.b16 %v334, %v334
  %v351 = vpack.c.b16 %v335, %v335
  %v352 = vpack.c.b16 %v336, %v336
  %v353 = vpack.c.b16 %v337, %v337
  %v354 = vpack.c.b16 %v338, %v338
  %v355 = vpack.c.b16 %v339, %v339
  %v356 = vpack.c.b16 %v340, %v340
  %v357 = vpack.c.b16 %v341, %v341
  %374 = vst [vmem:[%s3] sm:$0xf] %v342
  %375 = vst [vmem:[%s3 + $0x4] sm:$0xf] %v343
  %376 = vst [vmem:[%s3 + $0x8] sm:$0xf] %v344
  %377 = vst [vmem:[%s3 + $0xc] sm:$0xf] %v345
  %378 = vst [vmem:[%s3 + $0x10] sm:$0xf] %v346
  %379 = vst [vmem:[%s3 + $0x14] sm:$0xf] %v347
  %380 = vst [vmem:[%s3 + $0x18] sm:$0xf] %v348
  %381 = vst [vmem:[%s3 + $0x1c] sm:$0xf] %v349
  %382 = vst [vmem:[%s3 + $0x20] sm:$0xf] %v350
  %383 = vst [vmem:[%s3 + $0x24] sm:$0xf] %v351
  %384 = vst [vmem:[%s3 + $0x28] sm:$0xf] %v352
  %385 = vst [vmem:[%s3 + $0x2c] sm:$0xf] %v353
  %386 = vst [vmem:[%s3 + $0x30] sm:$0xf] %v354
  %387 = vst [vmem:[%s3 + $0x34] sm:$0xf] %v355
  %388 = vst [vmem:[%s3 + $0x38] sm:$0xf] %v356
  %389 = vst [vmem:[%s3 + $0x3c] sm:$0xf] %v357
  // Predicated region
  $region14: #{_lambda_.13} parent=0 // pred_check
    _
  $region15: #{_lambda_.13} parent=0 // pred_check_branch
    %391 = sbr.rel (0) target = $region17
  $region16: #{_lambda_.13} parent=0 // pred_region
    _
  $region17: #{_lambda_.13} parent=0 // pred_fallthru
    _
  // Predicated region
  $region18: #{_lambda_.13} parent=0 // pred_check
    _
  $region19: #{_lambda_.13} parent=0 // pred_check_branch
    %393 = sbr.rel (0) target = $region21
  $region20: #{_lambda_.13} parent=0 // pred_region
    _
  $region21: #{_lambda_.13} parent=0 // pred_fallthru
    _

// kernel: _lambda_.14
$region0: #{_lambda_.14}
  #allocation0 [shape = 'u32[]', space=smem, size = 0x4, offset = 0x4, fixed_abs, tag = 'smem constant byte address 0x4 - core index']
  #allocation1 [shape = 'u32[144,128]{1,0:T(1,128)}', space=vmem, size = 0x12000, scoped, tag = 'internal scratch']
  %s0 = inlined_call_operand.vmem [shape: bf16[128,288], index: 0, kind: input, shape index: {}]
  %s1 = inlined_call_operand.vmem [shape: bf16[288,128], index: 1, kind: input, shape index: {}]
  %s2 = inlined_call_operand.vmem [shape: f32[8,128], index: 2, kind: input, shape index: {}]
  %s3 = inlined_call_operand.vmem [shape: bf16[128,128], index: 3, kind: output, shape index: {}]
  %s4 = sld [smem:[#allocation0]]
  $region22: #{_lambda_.14} parent=0
    _
  %s6 = ssub.s32 1, %s4
  %s7 = scalar_select 0, %s6, %s4
  // Predicated region
  $region2: #{_lambda_.14} parent=0 // pred_check
    _
  $region3: #{_lambda_.14} parent=0 // pred_check_branch
    %9 = sbr.rel (0) target = $region5
  $region4: #{_lambda_.14} parent=0 // pred_region
    _
  $region5: #{_lambda_.14} parent=0 // pred_fallthru
    _
  // Predicated region
  $region6: #{_lambda_.14} parent=0 // pred_check
    _
  $region7: #{_lambda_.14} parent=0 // pred_check_branch
    %11 = sbr.rel (0) target = $region9
  $region8: #{_lambda_.14} parent=0 // pred_region
    _
  $region9: #{_lambda_.14} parent=0 // pred_fallthru
    _
  // Predicated region
  $region10: #{_lambda_.14} parent=0 // pred_check
    _
  $region11: #{_lambda_.14} parent=0 // pred_check_branch
    %13 = sbr.rel (0) target = $region13
  $region12: #{_lambda_.14} parent=0 // pred_region
    _
  $region13: #{_lambda_.14} parent=0 // pred_fallthru
    _
  %v15 = vld [vmem:[%s0] sm:$0xff]
  %v16 = vld [vmem:[%s0 + $0x8] sm:$0xf]
  %v17 = vld [vmem:[%s0 + $0xc] sm:$0xff]
  %v18 = vld [vmem:[%s0 + $0x14] sm:$0xf]
  %v19 = vld [vmem:[%s0 + $0x18] sm:$0xff]
  %v20 = vld [vmem:[%s0 + $0x20] sm:$0xf]
  %v21 = vld [vmem:[%s0 + $0x24] sm:$0xff]
  %v22 = vld [vmem:[%s0 + $0x2c] sm:$0xf]
  %v23 = vld [vmem:[%s0 + $0x30] sm:$0xff]
  %v24 = vld [vmem:[%s0 + $0x38] sm:$0xf]
  %v25 = vld [vmem:[%s0 + $0x3c] sm:$0xff]
  %v26 = vld [vmem:[%s0 + $0x44] sm:$0xf]
  %v27 = vld [vmem:[%s0 + $0x48] sm:$0xff]
  %v28 = vld [vmem:[%s0 + $0x50] sm:$0xf]
  %v29 = vld [vmem:[%s0 + $0x54] sm:$0xff]
  %v30 = vld [vmem:[%s0 + $0x5c] sm:$0xf]
  %v31 = vld [vmem:[%s0 + $0x60] sm:$0xff]
  %v32 = vld [vmem:[%s0 + $0x68] sm:$0xf]
  %v33 = vld [vmem:[%s0 + $0x6c] sm:$0xff]
  %v34 = vld [vmem:[%s0 + $0x74] sm:$0xf]
  %v35 = vld [vmem:[%s0 + $0x78] sm:$0xff]
  %v36 = vld [vmem:[%s0 + $0x80] sm:$0xf]
  %v37 = vld [vmem:[%s0 + $0x84] sm:$0xff]
  %v38 = vld [vmem:[%s0 + $0x8c] sm:$0xf]
  %v39 = vld [vmem:[%s0 + $0x90] sm:$0xff]
  %v40 = vld [vmem:[%s0 + $0x98] sm:$0xf]
  %v41 = vld [vmem:[%s0 + $0x9c] sm:$0xff]
  %v42 = vld [vmem:[%s0 + $0xa4] sm:$0xf]
  %v43 = vld [vmem:[%s0 + $0xa8] sm:$0xff]
  %v44 = vld [vmem:[%s0 + $0xb0] sm:$0xf]
  %v45 = vld [vmem:[%s0 + $0xb4] sm:$0xff]
  %v46 = vld [vmem:[%s0 + $0xbc] sm:$0xf]
  %v47 = vld [vmem:[%s1] sm:$0xf]
  %v48 = vld [vmem:[%s1 + $0x4] sm:$0xf]
  %v49 = vld [vmem:[%s1 + $0x8] sm:$0xf]
  %v50 = vld [vmem:[%s1 + $0xc] sm:$0xf]
  %v51 = vld [vmem:[%s1 + $0x10] sm:$0xf]
  %v52 = vld [vmem:[%s1 + $0x14] sm:$0xf]
  %v53 = vld [vmem:[%s1 + $0x18] sm:$0xf]
  %v54 = vld [vmem:[%s1 + $0x1c] sm:$0xf]
  %v55 = vld [vmem:[%s1 + $0x20] sm:$0xf]
  %v56 = vld [vmem:[%s1 + $0x24] sm:$0xf]
  %v57 = vld [vmem:[%s1 + $0x28] sm:$0xf]
  %v58 = vld [vmem:[%s1 + $0x2c] sm:$0xf]
  %v59 = vld [vmem:[%s1 + $0x30] sm:$0xf]
  %v60 = vld [vmem:[%s1 + $0x34] sm:$0xf]
  %v61 = vld [vmem:[%s1 + $0x38] sm:$0xf]
  %v62 = vld [vmem:[%s1 + $0x3c] sm:$0xf]
  %v63 = vld [vmem:[%s1 + $0x40] sm:$0xf]
  %v64 = vld [vmem:[%s1 + $0x44] sm:$0xf]
  %v65 = vld [vmem:[%s1 + $0x48] sm:$0xf]
  %v66 = vld [vmem:[%s1 + $0x4c] sm:$0xf]
  %v67 = vld [vmem:[%s1 + $0x50] sm:$0xf]
  %v68 = vld [vmem:[%s1 + $0x54] sm:$0xf]
  %v69 = vld [vmem:[%s1 + $0x58] sm:$0xf]
  %v70 = vld [vmem:[%s1 + $0x5c] sm:$0xf]
  %v71 = vld [vmem:[%s1 + $0x60] sm:$0xf]
  %v72 = vld [vmem:[%s1 + $0x64] sm:$0xf]
  %v73 = vld [vmem:[%s1 + $0x68] sm:$0xf]
  %v74 = vld [vmem:[%s1 + $0x6c] sm:$0xf]
  %v75 = vld [vmem:[%s1 + $0x70] sm:$0xf]
  %v76 = vld [vmem:[%s1 + $0x74] sm:$0xf]
  %v77 = vld [vmem:[%s1 + $0x78] sm:$0xf]
  %v78 = vld [vmem:[%s1 + $0x7c] sm:$0xf]
  %v79 = vld [vmem:[%s1 + $0x80] sm:$0xf]
  %v80 = vld [vmem:[%s1 + $0x84] sm:$0xf]
  %v81 = vld [vmem:[%s1 + $0x88] sm:$0xf]
  %v82 = vld [vmem:[%s1 + $0x8c] sm:$0xf]
  %v115 = vunpack.c.l.b16 %v15
  %v116 = vunpack.c.h.b16 %v15
  %v117 = vunpack.c.l.b16 %v16
  %v118 = vunpack.c.l.b16 %v17
  %v119 = vunpack.c.h.b16 %v17
  %v120 = vunpack.c.l.b16 %v18
  %v121 = vunpack.c.l.b16 %v19
  %v122 = vunpack.c.h.b16 %v19
  %v123 = vunpack.c.l.b16 %v20
  %v124 = vunpack.c.l.b16 %v21
  %v125 = vunpack.c.h.b16 %v21
  %v126 = vunpack.c.l.b16 %v22
  %v127 = vunpack.c.l.b16 %v23
  %v128 = vunpack.c.h.b16 %v23
  %v129 = vunpack.c.l.b16 %v24
  %v130 = vunpack.c.l.b16 %v25
  %v131 = vunpack.c.h.b16 %v25
  %v132 = vunpack.c.l.b16 %v26
  %v133 = vunpack.c.l.b16 %v27
  %v134 = vunpack.c.h.b16 %v27
  %v135 = vunpack.c.l.b16 %v28
  %v136 = vunpack.c.l.b16 %v29
  %v137 = vunpack.c.h.b16 %v29
  %v138 = vunpack.c.l.b16 %v30
  %v139 = vunpack.c.l.b16 %v31
  %v140 = vunpack.c.h.b16 %v31
  %v141 = vunpack.c.l.b16 %v32
  %v142 = vunpack.c.l.b16 %v33
  %v143 = vunpack.c.h.b16 %v33
  %v144 = vunpack.c.l.b16 %v34
  %v145 = vunpack.c.l.b16 %v35
  %v146 = vunpack.c.h.b16 %v35
  %v147 = vunpack.c.l.b16 %v36
  %v148 = vunpack.c.l.b16 %v37
  %v149 = vunpack.c.h.b16 %v37
  %v150 = vunpack.c.l.b16 %v38
  %v151 = vunpack.c.l.b16 %v39
  %v152 = vunpack.c.h.b16 %v39
  %v153 = vunpack.c.l.b16 %v40
  %v154 = vunpack.c.l.b16 %v41
  %v155 = vunpack.c.h.b16 %v41
  %v156 = vunpack.c.l.b16 %v42
  %v157 = vunpack.c.l.b16 %v43
  %v158 = vunpack.c.h.b16 %v43
  %v159 = vunpack.c.l.b16 %v44
  %v160 = vunpack.c.l.b16 %v45
  %v161 = vunpack.c.h.b16 %v45
  %v162 = vunpack.c.l.b16 %v46
  %v163 = vpack.c.b16 %v118, %v115
  %v164 = vpack.c.b16 %v119, %v116
  %v165 = vpack.c.b16 %v120, %v117
  %v166 = vpack.c.b16 %v124, %v121
  %v167 = vpack.c.b16 %v125, %v122
  %v168 = vpack.c.b16 %v126, %v123
  %v169 = vpack.c.b16 %v130, %v127
  %v170 = vpack.c.b16 %v131, %v128
  %v171 = vpack.c.b16 %v132, %v129
  %v172 = vpack.c.b16 %v136, %v133
  %v173 = vpack.c.b16 %v137, %v134
  %v174 = vpack.c.b16 %v138, %v135
  %v175 = vpack.c.b16 %v142, %v139
  %v176 = vpack.c.b16 %v143, %v140
  %v177 = vpack.c.b16 %v144, %v141
  %v178 = vpack.c.b16 %v148, %v145
  %v179 = vpack.c.b16 %v149, %v146
  %v180 = vpack.c.b16 %v150, %v147
  %v181 = vpack.c.b16 %v154, %v151
  %v182 = vpack.c.b16 %v155, %v152
  %v183 = vpack.c.b16 %v156, %v153
  %v184 = vpack.c.b16 %v160, %v157
  %v185 = vpack.c.b16 %v161, %v158
  %v186 = vpack.c.b16 %v162, %v159
  %v239 = vunpack.c.l.b16 %v47
  %v240 = vunpack.c.l.b16 %v48
  %v241 = vunpack.c.l.b16 %v49
  %v242 = vunpack.c.l.b16 %v50
  %v243 = vunpack.c.l.b16 %v51
  %v244 = vunpack.c.l.b16 %v52
  %v245 = vunpack.c.l.b16 %v53
  %v246 = vunpack.c.l.b16 %v54
  %v247 = vunpack.c.l.b16 %v55
  %v248 = vunpack.c.l.b16 %v56
  %v249 = vunpack.c.l.b16 %v57
  %v250 = vunpack.c.l.b16 %v58
  %v251 = vunpack.c.l.b16 %v59
  %v252 = vunpack.c.l.b16 %v60
  %v253 = vunpack.c.l.b16 %v61
  %v254 = vunpack.c.l.b16 %v62
  %v255 = vunpack.c.l.b16 %v63
  %v256 = vunpack.c.l.b16 %v64
  %v257 = vunpack.c.l.b16 %v65
  %v258 = vunpack.c.l.b16 %v66
  %v259 = vunpack.c.l.b16 %v67
  %v260 = vunpack.c.l.b16 %v68
  %v261 = vunpack.c.l.b16 %v69
  %v262 = vunpack.c.l.b16 %v70
  %v263 = vunpack.c.l.b16 %v71
  %v264 = vunpack.c.l.b16 %v72
  %v265 = vunpack.c.l.b16 %v73
  %v266 = vunpack.c.l.b16 %v74
  %v267 = vunpack.c.l.b16 %v75
  %v268 = vunpack.c.l.b16 %v76
  %v269 = vunpack.c.l.b16 %v77
  %v270 = vunpack.c.l.b16 %v78
  %v271 = vunpack.c.l.b16 %v79
  %v272 = vunpack.c.l.b16 %v80
  %v273 = vunpack.c.l.b16 %v81
  %v274 = vunpack.c.l.b16 %v82
  %v275 = vpack.c.b16 %v240, %v239
  %v276 = vpack.c.b16 %v242, %v241
  %v277 = vpack.c.b16 %v244, %v243
  %v278 = vpack.c.b16 %v246, %v245
  %v279 = vpack.c.b16 %v248, %v247
  %v280 = vpack.c.b16 %v250, %v249
  %v281 = vpack.c.b16 %v252, %v251
  %v282 = vpack.c.b16 %v254, %v253
  %v283 = vpack.c.b16 %v256, %v255
  %v284 = vpack.c.b16 %v258, %v257
  %v285 = vpack.c.b16 %v260, %v259
  %v286 = vpack.c.b16 %v262, %v261
  %v287 = vpack.c.b16 %v264, %v263
  %v288 = vpack.c.b16 %v266, %v265
  %v289 = vpack.c.b16 %v268, %v267
  %v290 = vpack.c.b16 %v270, %v269
  %v291 = vpack.c.b16 %v272, %v271
  %v292 = vpack.c.b16 %v274, %v273
  %vm311 = vcmask 261120
  %v313 = vsel %vm311, %v165, 0
  %v316 = vsel %vm311, %v168, 0
  %v319 = vsel %vm311, %v171, 0
  %v322 = vsel %vm311, %v174, 0
  %v325 = vsel %vm311, %v177, 0
  %v328 = vsel %vm311, %v180, 0
  %v331 = vsel %vm311, %v183, 0
  %v334 = vsel %vm311, %v186, 0
  %336 = vmatprep.subr.bf16.mxu0 0
  %337 = vmatpush1.bf16.msra.mxu0 %v275
  %338 = vmatprep.subr.bf16.mxu0 0
  %339 = vmatpush1.bf16.msra.mxu0 %v276
  %340 = vmatprep.subr.bf16.mxu0 0
  %341 = vmatpush1.bf16.msra.mxu0 %v277
  %342 = vmatprep.subr.bf16.mxu0 0
  %343 = vmatpush1.bf16.msra.mxu0 %v278
  %344 = vmatprep.subr.bf16.mxu0 0
  %345 = vmatpush1.bf16.msra.mxu0 %v279
  %346 = vmatprep.subr.bf16.mxu0 0
  %347 = vmatpush1.bf16.msra.mxu0 %v280
  %348 = vmatprep.subr.bf16.mxu0 0
  %349 = vmatpush1.bf16.msra.mxu0 %v281
  %350 = vmatprep.subr.bf16.mxu0 0
  %351 = vmatpush1.bf16.msra.mxu0 %v282
  %352 = vmatprep.subr.bf16.mxu0 0
  %353 = vmatpush1.bf16.msra.mxu0 %v283
  %354 = vmatprep.subr.bf16.mxu0 0
  %355 = vmatpush1.bf16.msra.mxu0 %v284
  %356 = vmatprep.subr.bf16.mxu0 0
  %357 = vmatpush1.bf16.msra.mxu0 %v285
  %358 = vmatprep.subr.bf16.mxu0 0
  %359 = vmatpush1.bf16.msra.mxu0 %v286
  %360 = vmatprep.subr.bf16.mxu0 0
  %361 = vmatpush1.bf16.msra.mxu0 %v287
  %362 = vmatprep.subr.bf16.mxu0 0
  %363 = vmatpush1.bf16.msra.mxu0 %v288
  %364 = vmatprep.subr.bf16.mxu0 0
  %365 = vmatpush1.bf16.msra.mxu0 %v289
  %366 = vmatprep.subr.bf16.mxu0 0
  %367 = vmatpush1.bf16.msra.mxu0 %v290
  %368 = vmatprep.mubr.bf16.mxu0 %v164
  %369 = vmatmul.mubr.bf16.gmra.mrb[0].mxu0 %v163
  %v370 = vpop.f32.mrb[0].mxu0
  %v371 = vadd.f32 0.0, %v370
  %v372 = vpop.f32.mrb[0].mxu0
  %v373 = vpop.f32.mrb[0].mxu0
  %v374 = vadd.f32 0.0, %v373
  %v375 = vpop.f32.mrb[0].mxu0
  %376 = vmatprep.mubr.bf16.mxu0 %v167
  %377 = vmatmul.mubr.bf16.gmra.mrb[0].mxu0 %v166
  %v378 = vpop.f32.mrb[0].mxu0
  %v379 = vadd.f32 0.0, %v378
  %v380 = vpop.f32.mrb[0].mxu0
  %v381 = vpop.f32.mrb[0].mxu0
  %v382 = vadd.f32 0.0, %v381
  %v383 = vpop.f32.mrb[0].mxu0
  %384 = vmatprep.mubr.bf16.mxu0 %v170
  %385 = vmatmul.mubr.bf16.gmra.mrb[0].mxu0 %v169
  %v386 = vpop.f32.mrb[0].mxu0
  %v387 = vadd.f32 0.0, %v386
  %v388 = vpop.f32.mrb[0].mxu0
  %v389 = vpop.f32.mrb[0].mxu0
  %v390 = vadd.f32 0.0, %v389
  %v391 = vpop.f32.mrb[0].mxu0
  %392 = vmatprep.mubr.bf16.mxu0 %v173
  %393 = vmatmul.mubr.bf16.gmra.mrb[0].mxu0 %v172
  %v394 = vpop.f32.mrb[0].mxu0
  %v395 = vadd.f32 0.0, %v394
  %v396 = vpop.f32.mrb[0].mxu0
  %v397 = vpop.f32.mrb[0].mxu0
  %v398 = vadd.f32 0.0, %v397
  %v399 = vpop.f32.mrb[0].mxu0
  %400 = vmatprep.mubr.bf16.mxu0 %v176
  %401 = vmatmul.mubr.bf16.gmra.mrb[0].mxu0 %v175
  %v402 = vpop.f32.mrb[0].mxu0
  %v403 = vadd.f32 0.0, %v402
  %v404 = vpop.f32.mrb[0].mxu0
  %v405 = vpop.f32.mrb[0].mxu0
  %v406 = vadd.f32 0.0, %v405
  %v407 = vpop.f32.mrb[0].mxu0
  %408 = vmatprep.mubr.bf16.mxu0 %v179
  %409 = vmatmul.mubr.bf16.gmra.mrb[0].mxu0 %v178
  %v410 = vpop.f32.mrb[0].mxu0
  %v411 = vadd.f32 0.0, %v410
  %v412 = vpop.f32.mrb[0].mxu0
  %v413 = vpop.f32.mrb[0].mxu0
  %v414 = vadd.f32 0.0, %v413
  %v415 = vpop.f32.mrb[0].mxu0
  %416 = vmatprep.mubr.bf16.mxu0 %v182
  %417 = vmatmul.mubr.bf16.gmra.mrb[0].mxu0 %v181
  %v418 = vpop.f32.mrb[0].mxu0
  %v419 = vadd.f32 0.0, %v418
  %v420 = vpop.f32.mrb[0].mxu0
  %v421 = vpop.f32.mrb[0].mxu0
  %v422 = vadd.f32 0.0, %v421
  %v423 = vpop.f32.mrb[0].mxu0
  %424 = vmatprep.mubr.bf16.mxu0 %v185
  %425 = vmatmul.mubr.bf16.gmra.mrb[0].mxu0 %v184
  %v426 = vpop.f32.mrb[0].mxu0
  %v427 = vadd.f32 0.0, %v426
  %v428 = vpop.f32.mrb[0].mxu0
  %v429 = vpop.f32.mrb[0].mxu0
  %v430 = vadd.f32 0.0, %v429
  %v431 = vpop.f32.mrb[0].mxu0
  %432 = vdwg.mxu0
  %433 = vmatprep.subr.bf16.mxu0 0
  %434 = vmatpush1.bf16.msra.mxu0 %v291
  %435 = vmatprep.subr.bf16.mxu0 0
  %436 = vmatpush1.bf16.msra.mxu0 %v292
  %437 = vmatprep.subr.bf16.mxu0 0
  %438 = vmatpush1.bf16.msra.mxu0 0
  %439 = vmatprep.subr.bf16.mxu0 0
  %440 = vmatpush1.bf16.msra.mxu0 0
  %441 = vmatprep.subr.bf16.mxu0 0
  %442 = vmatpush1.bf16.msra.mxu0 0
  %443 = vmatprep.subr.bf16.mxu0 0
  %444 = vmatpush1.bf16.msra.mxu0 0
  %445 = vmatprep.subr.bf16.mxu0 0
  %446 = vmatpush1.bf16.msra.mxu0 0
  %447 = vmatprep.subr.bf16.mxu0 0
  %448 = vmatpush1.bf16.msra.mxu0 0
  %449 = vmatprep.subr.bf16.mxu0 0
  %450 = vmatpush1.bf16.msra.mxu0 0
  %451 = vmatprep.subr.bf16.mxu0 0
  %452 = vmatpush1.bf16.msra.mxu0 0
  %453 = vmatprep.subr.bf16.mxu0 0
  %454 = vmatpush1.bf16.msra.mxu0 0
  %455 = vmatprep.subr.bf16.mxu0 0
  %456 = vmatpush1.bf16.msra.mxu0 0
  %457 = vmatprep.subr.bf16.mxu0 0
  %458 = vmatpush1.bf16.msra.mxu0 0
  %459 = vmatprep.subr.bf16.mxu0 0
  %460 = vmatpush1.bf16.msra.mxu0 0
  %461 = vmatprep.subr.bf16.mxu0 0
  %462 = vmatpush1.bf16.msra.mxu0 0
  %463 = vmatprep.subr.bf16.mxu0 0
  %464 = vmatpush1.bf16.msra.mxu0 0
  %465 = vmatprep.mubr.bf16.mxu0 0
  %466 = vmatmul.mubr.bf16.gmra.mrb[0].mxu0 %v313
  %v467 = vpop.f32.mrb[0].mxu0
  %v468 = vadd.f32 %v371, %v467
  %v469 = vpop.f32.mrb[0].mxu0
  %v470 = vpop.f32.mrb[0].mxu0
  %v471 = vadd.f32 %v374, %v470
  %v472 = vpop.f32.mrb[0].mxu0
  %473 = vmatprep.mubr.bf16.mxu0 0
  %474 = vmatmul.mubr.bf16.gmra.mrb[0].mxu0 %v316
  %v475 = vpop.f32.mrb[0].mxu0
  %v476 = vadd.f32 %v379, %v475
  %v477 = vpop.f32.mrb[0].mxu0
  %v478 = vpop.f32.mrb[0].mxu0
  %v479 = vadd.f32 %v382, %v478
  %v480 = vpop.f32.mrb[0].mxu0
  %481 = vmatprep.mubr.bf16.mxu0 0
  %482 = vmatmul.mubr.bf16.gmra.mrb[0].mxu0 %v319
  %v483 = vpop.f32.mrb[0].mxu0
  %v484 = vadd.f32 %v387, %v483
  %v485 = vpop.f32.mrb[0].mxu0
  %v486 = vpop.f32.mrb[0].mxu0
  %v487 = vadd.f32 %v390, %v486
  %v488 = vpop.f32.mrb[0].mxu0
  %489 = vmatprep.mubr.bf16.mxu0 0
  %490 = vmatmul.mubr.bf16.gmra.mrb[0].mxu0 %v322
  %v491 = vpop.f32.mrb[0].mxu0
  %v492 = vadd.f32 %v395, %v491
  %v493 = vpop.f32.mrb[0].mxu0
  %v494 = vpop.f32.mrb[0].mxu0
  %v495 = vadd.f32 %v398, %v494
  %v496 = vpop.f32.mrb[0].mxu0
  %497 = vmatprep.mubr.bf16.mxu0 0
  %498 = vmatmul.mubr.bf16.gmra.mrb[0].mxu0 %v325
  %v499 = vpop.f32.mrb[0].mxu0
  %v500 = vadd.f32 %v403, %v499
  %v501 = vpop.f32.mrb[0].mxu0
  %v502 = vpop.f32.mrb[0].mxu0
  %v503 = vadd.f32 %v406, %v502
  %v504 = vpop.f32.mrb[0].mxu0
  %505 = vmatprep.mubr.bf16.mxu0 0
  %506 = vmatmul.mubr.bf16.gmra.mrb[0].mxu0 %v328
  %v507 = vpop.f32.mrb[0].mxu0
  %v508 = vadd.f32 %v411, %v507
  %v509 = vpop.f32.mrb[0].mxu0
  %v510 = vpop.f32.mrb[0].mxu0
  %v511 = vadd.f32 %v414, %v510
  %v512 = vpop.f32.mrb[0].mxu0
  %513 = vmatprep.mubr.bf16.mxu0 0
  %514 = vmatmul.mubr.bf16.gmra.mrb[0].mxu0 %v331
  %v515 = vpop.f32.mrb[0].mxu0
  %v516 = vadd.f32 %v419, %v515
  %v517 = vpop.f32.mrb[0].mxu0
  %v518 = vpop.f32.mrb[0].mxu0
  %v519 = vadd.f32 %v422, %v518
  %v520 = vpop.f32.mrb[0].mxu0
  %521 = vmatprep.mubr.bf16.mxu0 0
  %522 = vmatmul.mubr.bf16.gmra.mrb[0].mxu0 %v334
  %v523 = vpop.f32.mrb[0].mxu0
  %v524 = vadd.f32 %v427, %v523
  %v525 = vpop.f32.mrb[0].mxu0
  %v526 = vpop.f32.mrb[0].mxu0
  %v527 = vadd.f32 %v430, %v526
  %v528 = vpop.f32.mrb[0].mxu0
  %529 = vdwg.mxu0
  %v530 = vld [vmem:[%s2] sm:$0x1]
  %v531 = vlaneseq
  %v532 = vshrl.u32 %v531, 7
  %v533 = vsub.s32 0, %v532
  %v534 = vrot.slane %v530, %v533
  %v535 = vmul.f32 %v468, %v534
  %v536 = vmul.f32 %v471, %v534
  %v537 = vmul.f32 %v476, %v534
  %v538 = vmul.f32 %v479, %v534
  %v539 = vmul.f32 %v484, %v534
  %v540 = vmul.f32 %v487, %v534
  %v541 = vmul.f32 %v492, %v534
  %v542 = vmul.f32 %v495, %v534
  %v543 = vmul.f32 %v500, %v534
  %v544 = vmul.f32 %v503, %v534
  %v545 = vmul.f32 %v508, %v534
  %v546 = vmul.f32 %v511, %v534
  %v547 = vmul.f32 %v516, %v534
  %v548 = vmul.f32 %v519, %v534
  %v549 = vmul.f32 %v524, %v534
  %v550 = vmul.f32 %v527, %v534
  %v551 = vld [vmem:[%s2 + $0x1] sm:$0x1]
  %v552 = vlaneseq
  %v553 = vshrl.u32 %v552, 7
  %v554 = vsub.s32 0, %v553
  %v555 = vrot.slane %v551, %v554
  %v556 = vadd.f32 %v535, %v555
  %v557 = vadd.f32 %v536, %v555
  %v558 = vadd.f32 %v537, %v555
  %v559 = vadd.f32 %v538, %v555
  %v560 = vadd.f32 %v539, %v555
  %v561 = vadd.f32 %v540, %v555
  %v562 = vadd.f32 %v541, %v555
  %v563 = vadd.f32 %v542, %v555
  %v564 = vadd.f32 %v543, %v555
  %v565 = vadd.f32 %v544, %v555
  %v566 = vadd.f32 %v545, %v555
  %v567 = vadd.f32 %v546, %v555
  %v568 = vadd.f32 %v547, %v555
  %v569 = vadd.f32 %v548, %v555
  %v570 = vadd.f32 %v549, %v555
  %v571 = vadd.f32 %v550, %v555
  %vm572 = vcmp.gt.f32.partialorder %v556, 0.0
  %vm573 = vcmp.gt.f32.partialorder %v557, 0.0
  %vm574 = vcmp.gt.f32.partialorder %v558, 0.0
  %vm575 = vcmp.gt.f32.partialorder %v559, 0.0
  %vm576 = vcmp.gt.f32.partialorder %v560, 0.0
  %vm577 = vcmp.gt.f32.partialorder %v561, 0.0
  %vm578 = vcmp.gt.f32.partialorder %v562, 0.0
  %vm579 = vcmp.gt.f32.partialorder %v563, 0.0
  %vm580 = vcmp.gt.f32.partialorder %v564, 0.0
  %vm581 = vcmp.gt.f32.partialorder %v565, 0.0
  %vm582 = vcmp.gt.f32.partialorder %v566, 0.0
  %vm583 = vcmp.gt.f32.partialorder %v567, 0.0
  %vm584 = vcmp.gt.f32.partialorder %v568, 0.0
  %vm585 = vcmp.gt.f32.partialorder %v569, 0.0
  %vm586 = vcmp.gt.f32.partialorder %v570, 0.0
  %vm587 = vcmp.gt.f32.partialorder %v571, 0.0
  %v588 = vld [vmem:[%s2 + $0x2] sm:$0x1]
  %v589 = vlaneseq
  %v590 = vshrl.u32 %v589, 7
  %v591 = vsub.s32 0, %v590
  %v592 = vrot.slane %v588, %v591
  %v593 = vmul.f32 %v592, %v556
  %v594 = vmul.f32 %v592, %v557
  %v595 = vmul.f32 %v592, %v558
  %v596 = vmul.f32 %v592, %v559
  %v597 = vmul.f32 %v592, %v560
  %v598 = vmul.f32 %v592, %v561
  %v599 = vmul.f32 %v592, %v562
  %v600 = vmul.f32 %v592, %v563
  %v601 = vmul.f32 %v592, %v564
  %v602 = vmul.f32 %v592, %v565
  %v603 = vmul.f32 %v592, %v566
  %v604 = vmul.f32 %v592, %v567
  %v605 = vmul.f32 %v592, %v568
  %v606 = vmul.f32 %v592, %v569
  %v607 = vmul.f32 %v592, %v570
  %v608 = vmul.f32 %v592, %v571
  %v609 = vsel %vm572, %v556, %v593
  %v610 = vsel %vm573, %v557, %v594
  %v611 = vsel %vm574, %v558, %v595
  %v612 = vsel %vm575, %v559, %v596
  %v613 = vsel %vm576, %v560, %v597
  %v614 = vsel %vm577, %v561, %v598
  %v615 = vsel %vm578, %v562, %v599
  %v616 = vsel %vm579, %v563, %v600
  %v617 = vsel %vm580, %v564, %v601
  %v618 = vsel %vm581, %v565, %v602
  %v619 = vsel %vm582, %v566, %v603
  %v620 = vsel %vm583, %v567, %v604
  %v621 = vsel %vm584, %v568, %v605
  %v622 = vsel %vm585, %v569, %v606
  %v623 = vsel %vm586, %v570, %v607
  %v624 = vsel %vm587, %v571, %v608
  %v625 = vpack.c.bf16 %v610, %v609
  %v626 = vpack.c.bf16 %v612, %v611
  %v627 = vpack.c.bf16 %v614, %v613
  %v628 = vpack.c.bf16 %v616, %v615
  %v629 = vpack.c.bf16 %v618, %v617
  %v630 = vpack.c.bf16 %v620, %v619
  %v631 = vpack.c.bf16 %v622, %v621
  %v632 = vpack.c.bf16 %v624, %v623
  %v641 = vunpack.c.l.b16 %v625
  %v642 = vunpack.c.h.b16 %v625
  %v643 = vunpack.c.l.b16 %v626
  %v644 = vunpack.c.h.b16 %v626
  %v645 = vunpack.c.l.b16 %v627
  %v646 = vunpack.c.h.b16 %v627
  %v647 = vunpack.c.l.b16 %v628
  %v648 = vunpack.c.h.b16 %v628
  %v649 = vunpack.c.l.b16 %v629
  %v650 = vunpack.c.h.b16 %v629
  %v651 = vunpack.c.l.b16 %v630
  %v652 = vunpack.c.h.b16 %v630
  %v653 = vunpack.c.l.b16 %v631
  %v654 = vunpack.c.h.b16 %v631
  %v655 = vunpack.c.l.b16 %v632
  %v656 = vunpack.c.h.b16 %v632
  %v657 = vpack.c.b16 %v641, %v641
  %v658 = vpack.c.b16 %v642, %v642
  %v659 = vpack.c.b16 %v643, %v643
  %v660 = vpack.c.b16 %v644, %v644
  %v661 = vpack.c.b16 %v645, %v645
  %v662 = vpack.c.b16 %v646, %v646
  %v663 = vpack.c.b16 %v647, %v647
  %v664 = vpack.c.b16 %v648, %v648
  %v665 = vpack.c.b16 %v649, %v649
  %v666 = vpack.c.b16 %v650, %v650
  %v667 = vpack.c.b16 %v651, %v651
  %v668 = vpack.c.b16 %v652, %v652
  %v669 = vpack.c.b16 %v653, %v653
  %v670 = vpack.c.b16 %v654, %v654
  %v671 = vpack.c.b16 %v655, %v655
  %v672 = vpack.c.b16 %v656, %v656
  %689 = vst [vmem:[%s3] sm:$0xf] %v657
  %690 = vst [vmem:[%s3 + $0x4] sm:$0xf] %v658
  %691 = vst [vmem:[%s3 + $0x8] sm:$0xf] %v659
  %692 = vst [vmem:[%s3 + $0xc] sm:$0xf] %v660
  %693 = vst [vmem:[%s3 + $0x10] sm:$0xf] %v661
  %694 = vst [vmem:[%s3 + $0x14] sm:$0xf] %v662
  %695 = vst [vmem:[%s3 + $0x18] sm:$0xf] %v663
  %696 = vst [vmem:[%s3 + $0x1c] sm:$0xf] %v664
  %697 = vst [vmem:[%s3 + $0x20] sm:$0xf] %v665
  %698 = vst [vmem:[%s3 + $0x24] sm:$0xf] %v666
  %699 = vst [vmem:[%s3 + $0x28] sm:$0xf] %v667
  %700 = vst [vmem:[%s3 + $0x2c] sm:$0xf] %v668
  %701 = vst [vmem:[%s3 + $0x30] sm:$0xf] %v669
  %702 = vst [vmem:[%s3 + $0x34] sm:$0xf] %v670
  %703 = vst [vmem:[%s3 + $0x38] sm:$0xf] %v671
  %704 = vst [vmem:[%s3 + $0x3c] sm:$0xf] %v672
  // Predicated region
  $region14: #{_lambda_.14} parent=0 // pred_check
    _
  $region15: #{_lambda_.14} parent=0 // pred_check_branch
    %706 = sbr.rel (0) target = $region17
  $region16: #{_lambda_.14} parent=0 // pred_region
    _
  $region17: #{_lambda_.14} parent=0 // pred_fallthru
    _
  // Predicated region
  $region18: #{_lambda_.14} parent=0 // pred_check
    _
  $region19: #{_lambda_.14} parent=0 // pred_check_branch
    %708 = sbr.rel (0) target = $region21
  $region20: #{_lambda_.14} parent=0 // pred_region
    _
  $region21: #{_lambda_.14} parent=0 // pred_fallthru
    _

// kernel: _lambda_.15
$region0: #{_lambda_.15}
  #allocation0 [shape = 'u32[]', space=smem, size = 0x4, offset = 0x4, fixed_abs, tag = 'smem constant byte address 0x4 - core index']
  #allocation1 [shape = 'u32[144,128]{1,0:T(1,128)}', space=vmem, size = 0x12000, scoped, tag = 'internal scratch']
  %s0 = inlined_call_operand.vmem [shape: bf16[128,288], index: 0, kind: input, shape index: {}]
  %s1 = inlined_call_operand.vmem [shape: bf16[288,128], index: 1, kind: input, shape index: {}]
  %s2 = inlined_call_operand.vmem [shape: f32[8,128], index: 2, kind: input, shape index: {}]
  %s3 = inlined_call_operand.vmem [shape: bf16[128,128], index: 3, kind: input, shape index: {}]
  %s4 = inlined_call_operand.vmem [shape: bf16[128,128], index: 4, kind: output, shape index: {}]
  %s5 = sld [smem:[#allocation0]]
  $region26: #{_lambda_.15} parent=0
    _
  %s7 = ssub.s32 1, %s5
  %s8 = scalar_select 0, %s7, %s5
  // Predicated region
  $region2: #{_lambda_.15} parent=0 // pred_check
    _
  $region3: #{_lambda_.15} parent=0 // pred_check_branch
    %10 = sbr.rel (0) target = $region5
  $region4: #{_lambda_.15} parent=0 // pred_region
    _
  $region5: #{_lambda_.15} parent=0 // pred_fallthru
    _
  // Predicated region
  $region6: #{_lambda_.15} parent=0 // pred_check
    _
  $region7: #{_lambda_.15} parent=0 // pred_check_branch
    %12 = sbr.rel (0) target = $region9
  $region8: #{_lambda_.15} parent=0 // pred_region
    _
  $region9: #{_lambda_.15} parent=0 // pred_fallthru
    _
  // Predicated region
  $region10: #{_lambda_.15} parent=0 // pred_check
    _
  $region11: #{_lambda_.15} parent=0 // pred_check_branch
    %14 = sbr.rel (0) target = $region13
  $region12: #{_lambda_.15} parent=0 // pred_region
    _
  $region13: #{_lambda_.15} parent=0 // pred_fallthru
    _
  // Predicated region
  $region14: #{_lambda_.15} parent=0 // pred_check
    _
  $region15: #{_lambda_.15} parent=0 // pred_check_branch
    %16 = sbr.rel (0) target = $region17
  $region16: #{_lambda_.15} parent=0 // pred_region
    _
  $region17: #{_lambda_.15} parent=0 // pred_fallthru
    _
  %v18 = vld [vmem:[%s0] sm:$0xff]
  %v19 = vld [vmem:[%s0 + $0x8] sm:$0xf]
  %v20 = vld [vmem:[%s0 + $0xc] sm:$0xff]
  %v21 = vld [vmem:[%s0 + $0x14] sm:$0xf]
  %v22 = vld [vmem:[%s0 + $0x18] sm:$0xff]
  %v23 = vld [vmem:[%s0 + $0x20] sm:$0xf]
  %v24 = vld [vmem:[%s0 + $0x24] sm:$0xff]
  %v25 = vld [vmem:[%s0 + $0x2c] sm:$0xf]
  %v26 = vld [vmem:[%s0 + $0x30] sm:$0xff]
  %v27 = vld [vmem:[%s0 + $0x38] sm:$0xf]
  %v28 = vld [vmem:[%s0 + $0x3c] sm:$0xff]
  %v29 = vld [vmem:[%s0 + $0x44] sm:$0xf]
  %v30 = vld [vmem:[%s0 + $0x48] sm:$0xff]
  %v31 = vld [vmem:[%s0 + $0x50] sm:$0xf]
  %v32 = vld [vmem:[%s0 + $0x54] sm:$0xff]
  %v33 = vld [vmem:[%s0 + $0x5c] sm:$0xf]
  %v34 = vld [vmem:[%s0 + $0x60] sm:$0xff]
  %v35 = vld [vmem:[%s0 + $0x68] sm:$0xf]
  %v36 = vld [vmem:[%s0 + $0x6c] sm:$0xff]
  %v37 = vld [vmem:[%s0 + $0x74] sm:$0xf]
  %v38 = vld [vmem:[%s0 + $0x78] sm:$0xff]
  %v39 = vld [vmem:[%s0 + $0x80] sm:$0xf]
  %v40 = vld [vmem:[%s0 + $0x84] sm:$0xff]
  %v41 = vld [vmem:[%s0 + $0x8c] sm:$0xf]
  %v42 = vld [vmem:[%s0 + $0x90] sm:$0xff]
  %v43 = vld [vmem:[%s0 + $0x98] sm:$0xf]
  %v44 = vld [vmem:[%s0 + $0x9c] sm:$0xff]
  %v45 = vld [vmem:[%s0 + $0xa4] sm:$0xf]
  %v46 = vld [vmem:[%s0 + $0xa8] sm:$0xff]
  %v47 = vld [vmem:[%s0 + $0xb0] sm:$0xf]
  %v48 = vld [vmem:[%s0 + $0xb4] sm:$0xff]
  %v49 = vld [vmem:[%s0 + $0xbc] sm:$0xf]
  %v50 = vld [vmem:[%s1] sm:$0xf]
  %v51 = vld [vmem:[%s1 + $0x4] sm:$0xf]
  %v52 = vld [vmem:[%s1 + $0x8] sm:$0xf]
  %v53 = vld [vmem:[%s1 + $0xc] sm:$0xf]
  %v54 = vld [vmem:[%s1 + $0x10] sm:$0xf]
  %v55 = vld [vmem:[%s1 + $0x14] sm:$0xf]
  %v56 = vld [vmem:[%s1 + $0x18] sm:$0xf]
  %v57 = vld [vmem:[%s1 + $0x1c] sm:$0xf]
  %v58 = vld [vmem:[%s1 + $0x20] sm:$0xf]
  %v59 = vld [vmem:[%s1 + $0x24] sm:$0xf]
  %v60 = vld [vmem:[%s1 + $0x28] sm:$0xf]
  %v61 = vld [vmem:[%s1 + $0x2c] sm:$0xf]
  %v62 = vld [vmem:[%s1 + $0x30] sm:$0xf]
  %v63 = vld [vmem:[%s1 + $0x34] sm:$0xf]
  %v64 = vld [vmem:[%s1 + $0x38] sm:$0xf]
  %v65 = vld [vmem:[%s1 + $0x3c] sm:$0xf]
  %v66 = vld [vmem:[%s1 + $0x40] sm:$0xf]
  %v67 = vld [vmem:[%s1 + $0x44] sm:$0xf]
  %v68 = vld [vmem:[%s1 + $0x48] sm:$0xf]
  %v69 = vld [vmem:[%s1 + $0x4c] sm:$0xf]
  %v70 = vld [vmem:[%s1 + $0x50] sm:$0xf]
  %v71 = vld [vmem:[%s1 + $0x54] sm:$0xf]
  %v72 = vld [vmem:[%s1 + $0x58] sm:$0xf]
  %v73 = vld [vmem:[%s1 + $0x5c] sm:$0xf]
  %v74 = vld [vmem:[%s1 + $0x60] sm:$0xf]
  %v75 = vld [vmem:[%s1 + $0x64] sm:$0xf]
  %v76 = vld [vmem:[%s1 + $0x68] sm:$0xf]
  %v77 = vld [vmem:[%s1 + $0x6c] sm:$0xf]
  %v78 = vld [vmem:[%s1 + $0x70] sm:$0xf]
  %v79 = vld [vmem:[%s1 + $0x74] sm:$0xf]
  %v80 = vld [vmem:[%s1 + $0x78] sm:$0xf]
  %v81 = vld [vmem:[%s1 + $0x7c] sm:$0xf]
  %v82 = vld [vmem:[%s1 + $0x80] sm:$0xf]
  %v83 = vld [vmem:[%s1 + $0x84] sm:$0xf]
  %v84 = vld [vmem:[%s1 + $0x88] sm:$0xf]
  %v85 = vld [vmem:[%s1 + $0x8c] sm:$0xf]
  %v118 = vunpack.c.l.b16 %v18
  %v119 = vunpack.c.h.b16 %v18
  %v120 = vunpack.c.l.b16 %v19
  %v121 = vunpack.c.l.b16 %v20
  %v122 = vunpack.c.h.b16 %v20
  %v123 = vunpack.c.l.b16 %v21
  %v124 = vunpack.c.l.b16 %v22
  %v125 = vunpack.c.h.b16 %v22
  %v126 = vunpack.c.l.b16 %v23
  %v127 = vunpack.c.l.b16 %v24
  %v128 = vunpack.c.h.b16 %v24
  %v129 = vunpack.c.l.b16 %v25
  %v130 = vunpack.c.l.b16 %v26
  %v131 = vunpack.c.h.b16 %v26
  %v132 = vunpack.c.l.b16 %v27
  %v133 = vunpack.c.l.b16 %v28
  %v134 = vunpack.c.h.b16 %v28
  %v135 = vunpack.c.l.b16 %v29
  %v136 = vunpack.c.l.b16 %v30
  %v137 = vunpack.c.h.b16 %v30
  %v138 = vunpack.c.l.b16 %v31
  %v139 = vunpack.c.l.b16 %v32
  %v140 = vunpack.c.h.b16 %v32
  %v141 = vunpack.c.l.b16 %v33
  %v142 = vunpack.c.l.b16 %v34
  %v143 = vunpack.c.h.b16 %v34
  %v144 = vunpack.c.l.b16 %v35
  %v145 = vunpack.c.l.b16 %v36
  %v146 = vunpack.c.h.b16 %v36
  %v147 = vunpack.c.l.b16 %v37
  %v148 = vunpack.c.l.b16 %v38
  %v149 = vunpack.c.h.b16 %v38
  %v150 = vunpack.c.l.b16 %v39
  %v151 = vunpack.c.l.b16 %v40
  %v152 = vunpack.c.h.b16 %v40
  %v153 = vunpack.c.l.b16 %v41
  %v154 = vunpack.c.l.b16 %v42
  %v155 = vunpack.c.h.b16 %v42
  %v156 = vunpack.c.l.b16 %v43
  %v157 = vunpack.c.l.b16 %v44
  %v158 = vunpack.c.h.b16 %v44
  %v159 = vunpack.c.l.b16 %v45
  %v160 = vunpack.c.l.b16 %v46
  %v161 = vunpack.c.h.b16 %v46
  %v162 = vunpack.c.l.b16 %v47
  %v163 = vunpack.c.l.b16 %v48
  %v164 = vunpack.c.h.b16 %v48
  %v165 = vunpack.c.l.b16 %v49
  %v166 = vpack.c.b16 %v121, %v118
  %v167 = vpack.c.b16 %v122, %v119
  %v168 = vpack.c.b16 %v123, %v120
  %v169 = vpack.c.b16 %v127, %v124
  %v170 = vpack.c.b16 %v128, %v125
  %v171 = vpack.c.b16 %v129, %v126
  %v172 = vpack.c.b16 %v133, %v130
  %v173 = vpack.c.b16 %v134, %v131
  %v174 = vpack.c.b16 %v135, %v132
  %v175 = vpack.c.b16 %v139, %v136
  %v176 = vpack.c.b16 %v140, %v137
  %v177 = vpack.c.b16 %v141, %v138
  %v178 = vpack.c.b16 %v145, %v142
  %v179 = vpack.c.b16 %v146, %v143
  %v180 = vpack.c.b16 %v147, %v144
  %v181 = vpack.c.b16 %v151, %v148
  %v182 = vpack.c.b16 %v152, %v149
  %v183 = vpack.c.b16 %v153, %v150
  %v184 = vpack.c.b16 %v157, %v154
  %v185 = vpack.c.b16 %v158, %v155
  %v186 = vpack.c.b16 %v159, %v156
  %v187 = vpack.c.b16 %v163, %v160
  %v188 = vpack.c.b16 %v164, %v161
  %v189 = vpack.c.b16 %v165, %v162
  %v242 = vunpack.c.l.b16 %v50
  %v243 = vunpack.c.l.b16 %v51
  %v244 = vunpack.c.l.b16 %v52
  %v245 = vunpack.c.l.b16 %v53
  %v246 = vunpack.c.l.b16 %v54
  %v247 = vunpack.c.l.b16 %v55
  %v248 = vunpack.c.l.b16 %v56
  %v249 = vunpack.c.l.b16 %v57
  %v250 = vunpack.c.l.b16 %v58
  %v251 = vunpack.c.l.b16 %v59
  %v252 = vunpack.c.l.b16 %v60
  %v253 = vunpack.c.l.b16 %v61
  %v254 = vunpack.c.l.b16 %v62
  %v255 = vunpack.c.l.b16 %v63
  %v256 = vunpack.c.l.b16 %v64
  %v257 = vunpack.c.l.b16 %v65
  %v258 = vunpack.c.l.b16 %v66
  %v259 = vunpack.c.l.b16 %v67
  %v260 = vunpack.c.l.b16 %v68
  %v261 = vunpack.c.l.b16 %v69
  %v262 = vunpack.c.l.b16 %v70
  %v263 = vunpack.c.l.b16 %v71
  %v264 = vunpack.c.l.b16 %v72
  %v265 = vunpack.c.l.b16 %v73
  %v266 = vunpack.c.l.b16 %v74
  %v267 = vunpack.c.l.b16 %v75
  %v268 = vunpack.c.l.b16 %v76
  %v269 = vunpack.c.l.b16 %v77
  %v270 = vunpack.c.l.b16 %v78
  %v271 = vunpack.c.l.b16 %v79
  %v272 = vunpack.c.l.b16 %v80
  %v273 = vunpack.c.l.b16 %v81
  %v274 = vunpack.c.l.b16 %v82
  %v275 = vunpack.c.l.b16 %v83
  %v276 = vunpack.c.l.b16 %v84
  %v277 = vunpack.c.l.b16 %v85
  %v278 = vpack.c.b16 %v243, %v242
  %v279 = vpack.c.b16 %v245, %v244
  %v280 = vpack.c.b16 %v247, %v246
  %v281 = vpack.c.b16 %v249, %v248
  %v282 = vpack.c.b16 %v251, %v250
  %v283 = vpack.c.b16 %v253, %v252
  %v284 = vpack.c.b16 %v255, %v254
  %v285 = vpack.c.b16 %v257, %v256
  %v286 = vpack.c.b16 %v259, %v258
  %v287 = vpack.c.b16 %v261, %v260
  %v288 = vpack.c.b16 %v263, %v262
  %v289 = vpack.c.b16 %v265, %v264
  %v290 = vpack.c.b16 %v267, %v266
  %v291 = vpack.c.b16 %v269, %v268
  %v292 = vpack.c.b16 %v271, %v270
  %v293 = vpack.c.b16 %v273, %v272
  %v294 = vpack.c.b16 %v275, %v274
  %v295 = vpack.c.b16 %v277, %v276
  %vm314 = vcmask 261120
  %v316 = vsel %vm314, %v168, 0
  %v319 = vsel %vm314, %v171, 0
  %v322 = vsel %vm314, %v174, 0
  %v325 = vsel %vm314, %v177, 0
  %v328 = vsel %vm314, %v180, 0
  %v331 = vsel %vm314, %v183, 0
  %v334 = vsel %vm314, %v186, 0
  %v337 = vsel %vm314, %v189, 0
  %339 = vmatprep.subr.bf16.mxu0 0
  %340 = vmatpush1.bf16.msra.mxu0 %v278
  %341 = vmatprep.subr.bf16.mxu0 0
  %342 = vmatpush1.bf16.msra.mxu0 %v279
  %343 = vmatprep.subr.bf16.mxu0 0
  %344 = vmatpush1.bf16.msra.mxu0 %v280
  %345 = vmatprep.subr.bf16.mxu0 0
  %346 = vmatpush1.bf16.msra.mxu0 %v281
  %347 = vmatprep.subr.bf16.mxu0 0
  %348 = vmatpush1.bf16.msra.mxu0 %v282
  %349 = vmatprep.subr.bf16.mxu0 0
  %350 = vmatpush1.bf16.msra.mxu0 %v283
  %351 = vmatprep.subr.bf16.mxu0 0
  %352 = vmatpush1.bf16.msra.mxu0 %v284
  %353 = vmatprep.subr.bf16.mxu0 0
  %354 = vmatpush1.bf16.msra.mxu0 %v285
  %355 = vmatprep.subr.bf16.mxu0 0
  %356 = vmatpush1.bf16.msra.mxu0 %v286
  %357 = vmatprep.subr.bf16.mxu0 0
  %358 = vmatpush1.bf16.msra.mxu0 %v287
  %359 = vmatprep.subr.bf16.mxu0 0
  %360 = vmatpush1.bf16.msra.mxu0 %v288
  %361 = vmatprep.subr.bf16.mxu0 0
  %362 = vmatpush1.bf16.msra.mxu0 %v289
  %363 = vmatprep.subr.bf16.mxu0 0
  %364 = vmatpush1.bf16.msra.mxu0 %v290
  %365 = vmatprep.subr.bf16.mxu0 0
  %366 = vmatpush1.bf16.msra.mxu0 %v291
  %367 = vmatprep.subr.bf16.mxu0 0
  %368 = vmatpush1.bf16.msra.mxu0 %v292
  %369 = vmatprep.subr.bf16.mxu0 0
  %370 = vmatpush1.bf16.msra.mxu0 %v293
  %371 = vmatprep.mubr.bf16.mxu0 %v167
  %372 = vmatmul.mubr.bf16.gmra.mrb[0].mxu0 %v166
  %v373 = vpop.f32.mrb[0].mxu0
  %v374 = vadd.f32 0.0, %v373
  %v375 = vpop.f32.mrb[0].mxu0
  %v376 = vpop.f32.mrb[0].mxu0
  %v377 = vadd.f32 0.0, %v376
  %v378 = vpop.f32.mrb[0].mxu0
  %379 = vmatprep.mubr.bf16.mxu0 %v170
  %380 = vmatmul.mubr.bf16.gmra.mrb[0].mxu0 %v169
  %v381 = vpop.f32.mrb[0].mxu0
  %v382 = vadd.f32 0.0, %v381
  %v383 = vpop.f32.mrb[0].mxu0
  %v384 = vpop.f32.mrb[0].mxu0
  %v385 = vadd.f32 0.0, %v384
  %v386 = vpop.f32.mrb[0].mxu0
  %387 = vmatprep.mubr.bf16.mxu0 %v173
  %388 = vmatmul.mubr.bf16.gmra.mrb[0].mxu0 %v172
  %v389 = vpop.f32.mrb[0].mxu0
  %v390 = vadd.f32 0.0, %v389
  %v391 = vpop.f32.mrb[0].mxu0
  %v392 = vpop.f32.mrb[0].mxu0
  %v393 = vadd.f32 0.0, %v392
  %v394 = vpop.f32.mrb[0].mxu0
  %395 = vmatprep.mubr.bf16.mxu0 %v176
  %396 = vmatmul.mubr.bf16.gmra.mrb[0].mxu0 %v175
  %v397 = vpop.f32.mrb[0].mxu0
  %v398 = vadd.f32 0.0, %v397
  %v399 = vpop.f32.mrb[0].mxu0
  %v400 = vpop.f32.mrb[0].mxu0
  %v401 = vadd.f32 0.0, %v400
  %v402 = vpop.f32.mrb[0].mxu0
  %403 = vmatprep.mubr.bf16.mxu0 %v179
  %404 = vmatmul.mubr.bf16.gmra.mrb[0].mxu0 %v178
  %v405 = vpop.f32.mrb[0].mxu0
  %v406 = vadd.f32 0.0, %v405
  %v407 = vpop.f32.mrb[0].mxu0
  %v408 = vpop.f32.mrb[0].mxu0
  %v409 = vadd.f32 0.0, %v408
  %v410 = vpop.f32.mrb[0].mxu0
  %411 = vmatprep.mubr.bf16.mxu0 %v182
  %412 = vmatmul.mubr.bf16.gmra.mrb[0].mxu0 %v181
  %v413 = vpop.f32.mrb[0].mxu0
  %v414 = vadd.f32 0.0, %v413
  %v415 = vpop.f32.mrb[0].mxu0
  %v416 = vpop.f32.mrb[0].mxu0
  %v417 = vadd.f32 0.0, %v416
  %v418 = vpop.f32.mrb[0].mxu0
  %419 = vmatprep.mubr.bf16.mxu0 %v185
  %420 = vmatmul.mubr.bf16.gmra.mrb[0].mxu0 %v184
  %v421 = vpop.f32.mrb[0].mxu0
  %v422 = vadd.f32 0.0, %v421
  %v423 = vpop.f32.mrb[0].mxu0
  %v424 = vpop.f32.mrb[0].mxu0
  %v425 = vadd.f32 0.0, %v424
  %v426 = vpop.f32.mrb[0].mxu0
  %427 = vmatprep.mubr.bf16.mxu0 %v188
  %428 = vmatmul.mubr.bf16.gmra.mrb[0].mxu0 %v187
  %v429 = vpop.f32.mrb[0].mxu0
  %v430 = vadd.f32 0.0, %v429
  %v431 = vpop.f32.mrb[0].mxu0
  %v432 = vpop.f32.mrb[0].mxu0
  %v433 = vadd.f32 0.0, %v432
  %v434 = vpop.f32.mrb[0].mxu0
  %435 = vdwg.mxu0
  %436 = vmatprep.subr.bf16.mxu0 0
  %437 = vmatpush1.bf16.msra.mxu0 %v294
  %438 = vmatprep.subr.bf16.mxu0 0
  %439 = vmatpush1.bf16.msra.mxu0 %v295
  %440 = vmatprep.subr.bf16.mxu0 0
  %441 = vmatpush1.bf16.msra.mxu0 0
  %442 = vmatprep.subr.bf16.mxu0 0
  %443 = vmatpush1.bf16.msra.mxu0 0
  %444 = vmatprep.subr.bf16.mxu0 0
  %445 = vmatpush1.bf16.msra.mxu0 0
  %446 = vmatprep.subr.bf16.mxu0 0
  %447 = vmatpush1.bf16.msra.mxu0 0
  %448 = vmatprep.subr.bf16.mxu0 0
  %449 = vmatpush1.bf16.msra.mxu0 0
  %450 = vmatprep.subr.bf16.mxu0 0
  %451 = vmatpush1.bf16.msra.mxu0 0
  %452 = vmatprep.subr.bf16.mxu0 0
  %453 = vmatpush1.bf16.msra.mxu0 0
  %454 = vmatprep.subr.bf16.mxu0 0
  %455 = vmatpush1.bf16.msra.mxu0 0
  %456 = vmatprep.subr.bf16.mxu0 0
  %457 = vmatpush1.bf16.msra.mxu0 0
  %458 = vmatprep.subr.bf16.mxu0 0
  %459 = vmatpush1.bf16.msra.mxu0 0
  %460 = vmatprep.subr.bf16.mxu0 0
  %461 = vmatpush1.bf16.msra.mxu0 0
  %462 = vmatprep.subr.bf16.mxu0 0
  %463 = vmatpush1.bf16.msra.mxu0 0
  %464 = vmatprep.subr.bf16.mxu0 0
  %465 = vmatpush1.bf16.msra.mxu0 0
  %466 = vmatprep.subr.bf16.mxu0 0
  %467 = vmatpush1.bf16.msra.mxu0 0
  %468 = vmatprep.mubr.bf16.mxu0 0
  %469 = vmatmul.mubr.bf16.gmra.mrb[0].mxu0 %v316
  %v470 = vpop.f32.mrb[0].mxu0
  %v471 = vadd.f32 %v374, %v470
  %v472 = vpop.f32.mrb[0].mxu0
  %v473 = vpop.f32.mrb[0].mxu0
  %v474 = vadd.f32 %v377, %v473
  %v475 = vpop.f32.mrb[0].mxu0
  %476 = vmatprep.mubr.bf16.mxu0 0
  %477 = vmatmul.mubr.bf16.gmra.mrb[0].mxu0 %v319
  %v478 = vpop.f32.mrb[0].mxu0
  %v479 = vadd.f32 %v382, %v478
  %v480 = vpop.f32.mrb[0].mxu0
  %v481 = vpop.f32.mrb[0].mxu0
  %v482 = vadd.f32 %v385, %v481
  %v483 = vpop.f32.mrb[0].mxu0
  %484 = vmatprep.mubr.bf16.mxu0 0
  %485 = vmatmul.mubr.bf16.gmra.mrb[0].mxu0 %v322
  %v486 = vpop.f32.mrb[0].mxu0
  %v487 = vadd.f32 %v390, %v486
  %v488 = vpop.f32.mrb[0].mxu0
  %v489 = vpop.f32.mrb[0].mxu0
  %v490 = vadd.f32 %v393, %v489
  %v491 = vpop.f32.mrb[0].mxu0
  %492 = vmatprep.mubr.bf16.mxu0 0
  %493 = vmatmul.mubr.bf16.gmra.mrb[0].mxu0 %v325
  %v494 = vpop.f32.mrb[0].mxu0
  %v495 = vadd.f32 %v398, %v494
  %v496 = vpop.f32.mrb[0].mxu0
  %v497 = vpop.f32.mrb[0].mxu0
  %v498 = vadd.f32 %v401, %v497
  %v499 = vpop.f32.mrb[0].mxu0
  %500 = vmatprep.mubr.bf16.mxu0 0
  %501 = vmatmul.mubr.bf16.gmra.mrb[0].mxu0 %v328
  %v502 = vpop.f32.mrb[0].mxu0
  %v503 = vadd.f32 %v406, %v502
  %v504 = vpop.f32.mrb[0].mxu0
  %v505 = vpop.f32.mrb[0].mxu0
  %v506 = vadd.f32 %v409, %v505
  %v507 = vpop.f32.mrb[0].mxu0
  %508 = vmatprep.mubr.bf16.mxu0 0
  %509 = vmatmul.mubr.bf16.gmra.mrb[0].mxu0 %v331
  %v510 = vpop.f32.mrb[0].mxu0
  %v511 = vadd.f32 %v414, %v510
  %v512 = vpop.f32.mrb[0].mxu0
  %v513 = vpop.f32.mrb[0].mxu0
  %v514 = vadd.f32 %v417, %v513
  %v515 = vpop.f32.mrb[0].mxu0
  %516 = vmatprep.mubr.bf16.mxu0 0
  %517 = vmatmul.mubr.bf16.gmra.mrb[0].mxu0 %v334
  %v518 = vpop.f32.mrb[0].mxu0
  %v519 = vadd.f32 %v422, %v518
  %v520 = vpop.f32.mrb[0].mxu0
  %v521 = vpop.f32.mrb[0].mxu0
  %v522 = vadd.f32 %v425, %v521
  %v523 = vpop.f32.mrb[0].mxu0
  %524 = vmatprep.mubr.bf16.mxu0 0
  %525 = vmatmul.mubr.bf16.gmra.mrb[0].mxu0 %v337
  %v526 = vpop.f32.mrb[0].mxu0
  %v527 = vadd.f32 %v430, %v526
  %v528 = vpop.f32.mrb[0].mxu0
  %v529 = vpop.f32.mrb[0].mxu0
  %v530 = vadd.f32 %v433, %v529
  %v531 = vpop.f32.mrb[0].mxu0
  %532 = vdwg.mxu0
  %v533 = vld [vmem:[%s2] sm:$0x1]
  %v534 = vlaneseq
  %v535 = vshrl.u32 %v534, 7
  %v536 = vsub.s32 0, %v535
  %v537 = vrot.slane %v533, %v536
  %v538 = vmul.f32 %v471, %v537
  %v539 = vmul.f32 %v474, %v537
  %v540 = vmul.f32 %v479, %v537
  %v541 = vmul.f32 %v482, %v537
  %v542 = vmul.f32 %v487, %v537
  %v543 = vmul.f32 %v490, %v537
  %v544 = vmul.f32 %v495, %v537
  %v545 = vmul.f32 %v498, %v537
  %v546 = vmul.f32 %v503, %v537
  %v547 = vmul.f32 %v506, %v537
  %v548 = vmul.f32 %v511, %v537
  %v549 = vmul.f32 %v514, %v537
  %v550 = vmul.f32 %v519, %v537
  %v551 = vmul.f32 %v522, %v537
  %v552 = vmul.f32 %v527, %v537
  %v553 = vmul.f32 %v530, %v537
  %v554 = vld [vmem:[%s2 + $0x1] sm:$0x1]
  %v555 = vlaneseq
  %v556 = vshrl.u32 %v555, 7
  %v557 = vsub.s32 0, %v556
  %v558 = vrot.slane %v554, %v557
  %v559 = vadd.f32 %v538, %v558
  %v560 = vadd.f32 %v539, %v558
  %v561 = vadd.f32 %v540, %v558
  %v562 = vadd.f32 %v541, %v558
  %v563 = vadd.f32 %v542, %v558
  %v564 = vadd.f32 %v543, %v558
  %v565 = vadd.f32 %v544, %v558
  %v566 = vadd.f32 %v545, %v558
  %v567 = vadd.f32 %v546, %v558
  %v568 = vadd.f32 %v547, %v558
  %v569 = vadd.f32 %v548, %v558
  %v570 = vadd.f32 %v549, %v558
  %v571 = vadd.f32 %v550, %v558
  %v572 = vadd.f32 %v551, %v558
  %v573 = vadd.f32 %v552, %v558
  %v574 = vadd.f32 %v553, %v558
  %vm575 = vcmp.gt.f32.partialorder %v559, 0.0
  %vm576 = vcmp.gt.f32.partialorder %v560, 0.0
  %vm577 = vcmp.gt.f32.partialorder %v561, 0.0
  %vm578 = vcmp.gt.f32.partialorder %v562, 0.0
  %vm579 = vcmp.gt.f32.partialorder %v563, 0.0
  %vm580 = vcmp.gt.f32.partialorder %v564, 0.0
  %vm581 = vcmp.gt.f32.partialorder %v565, 0.0
  %vm582 = vcmp.gt.f32.partialorder %v566, 0.0
  %vm583 = vcmp.gt.f32.partialorder %v567, 0.0
  %vm584 = vcmp.gt.f32.partialorder %v568, 0.0
  %vm585 = vcmp.gt.f32.partialorder %v569, 0.0
  %vm586 = vcmp.gt.f32.partialorder %v570, 0.0
  %vm587 = vcmp.gt.f32.partialorder %v571, 0.0
  %vm588 = vcmp.gt.f32.partialorder %v572, 0.0
  %vm589 = vcmp.gt.f32.partialorder %v573, 0.0
  %vm590 = vcmp.gt.f32.partialorder %v574, 0.0
  %v591 = vld [vmem:[%s2 + $0x2] sm:$0x1]
  %v592 = vlaneseq
  %v593 = vshrl.u32 %v592, 7
  %v594 = vsub.s32 0, %v593
  %v595 = vrot.slane %v591, %v594
  %v596 = vmul.f32 %v595, %v559
  %v597 = vmul.f32 %v595, %v560
  %v598 = vmul.f32 %v595, %v561
  %v599 = vmul.f32 %v595, %v562
  %v600 = vmul.f32 %v595, %v563
  %v601 = vmul.f32 %v595, %v564
  %v602 = vmul.f32 %v595, %v565
  %v603 = vmul.f32 %v595, %v566
  %v604 = vmul.f32 %v595, %v567
  %v605 = vmul.f32 %v595, %v568
  %v606 = vmul.f32 %v595, %v569
  %v607 = vmul.f32 %v595, %v570
  %v608 = vmul.f32 %v595, %v571
  %v609 = vmul.f32 %v595, %v572
  %v610 = vmul.f32 %v595, %v573
  %v611 = vmul.f32 %v595, %v574
  %v612 = vsel %vm575, %v559, %v596
  %v613 = vsel %vm576, %v560, %v597
  %v614 = vsel %vm577, %v561, %v598
  %v615 = vsel %vm578, %v562, %v599
  %v616 = vsel %vm579, %v563, %v600
  %v617 = vsel %vm580, %v564, %v601
  %v618 = vsel %vm581, %v565, %v602
  %v619 = vsel %vm582, %v566, %v603
  %v620 = vsel %vm583, %v567, %v604
  %v621 = vsel %vm584, %v568, %v605
  %v622 = vsel %vm585, %v569, %v606
  %v623 = vsel %vm586, %v570, %v607
  %v624 = vsel %vm587, %v571, %v608
  %v625 = vsel %vm588, %v572, %v609
  %v626 = vsel %vm589, %v573, %v610
  %v627 = vsel %vm590, %v574, %v611
  %v628 = vld [vmem:[%s3] sm:$0xf]
  %v629 = vld [vmem:[%s3 + $0x4] sm:$0xf]
  %v630 = vld [vmem:[%s3 + $0x8] sm:$0xf]
  %v631 = vld [vmem:[%s3 + $0xc] sm:$0xf]
  %v632 = vld [vmem:[%s3 + $0x10] sm:$0xf]
  %v633 = vld [vmem:[%s3 + $0x14] sm:$0xf]
  %v634 = vld [vmem:[%s3 + $0x18] sm:$0xf]
  %v635 = vld [vmem:[%s3 + $0x1c] sm:$0xf]
  %v636 = vld [vmem:[%s3 + $0x20] sm:$0xf]
  %v637 = vld [vmem:[%s3 + $0x24] sm:$0xf]
  %v638 = vld [vmem:[%s3 + $0x28] sm:$0xf]
  %v639 = vld [vmem:[%s3 + $0x2c] sm:$0xf]
  %v640 = vld [vmem:[%s3 + $0x30] sm:$0xf]
  %v641 = vld [vmem:[%s3 + $0x34] sm:$0xf]
  %v642 = vld [vmem:[%s3 + $0x38] sm:$0xf]
  %v643 = vld [vmem:[%s3 + $0x3c] sm:$0xf]
  %v644 = vunpack.c.l.bf16 %v628
  %v645 = vunpack.c.l.bf16 %v629
  %v646 = vunpack.c.l.bf16 %v630
  %v647 = vunpack.c.l.bf16 %v631
  %v648 = vunpack.c.l.bf16 %v632
  %v649 = vunpack.c.l.bf16 %v633
  %v650 = vunpack.c.l.bf16 %v634
  %v651 = vunpack.c.l.bf16 %v635
  %v652 = vunpack.c.l.bf16 %v636
  %v653 = vunpack.c.l.bf16 %v637
  %v654 = vunpack.c.l.bf16 %v638
  %v655 = vunpack.c.l.bf16 %v639
  %v656 = vunpack.c.l.bf16 %v640
  %v657 = vunpack.c.l.bf16 %v641
  %v658 = vunpack.c.l.bf16 %v642
  %v659 = vunpack.c.l.bf16 %v643
  %v660 = vadd.f32 %v612, %v644
  %v661 = vadd.f32 %v613, %v645
  %v662 = vadd.f32 %v614, %v646
  %v663 = vadd.f32 %v615, %v647
  %v664 = vadd.f32 %v616, %v648
  %v665 = vadd.f32 %v617, %v649
  %v666 = vadd.f32 %v618, %v650
  %v667 = vadd.f32 %v619, %v651
  %v668 = vadd.f32 %v620, %v652
  %v669 = vadd.f32 %v621, %v653
  %v670 = vadd.f32 %v622, %v654
  %v671 = vadd.f32 %v623, %v655
  %v672 = vadd.f32 %v624, %v656
  %v673 = vadd.f32 %v625, %v657
  %v674 = vadd.f32 %v626, %v658
  %v675 = vadd.f32 %v627, %v659
  %vm676 = vcmp.gt.f32.partialorder %v660, 0.0
  %vm677 = vcmp.gt.f32.partialorder %v661, 0.0
  %vm678 = vcmp.gt.f32.partialorder %v662, 0.0
  %vm679 = vcmp.gt.f32.partialorder %v663, 0.0
  %vm680 = vcmp.gt.f32.partialorder %v664, 0.0
  %vm681 = vcmp.gt.f32.partialorder %v665, 0.0
  %vm682 = vcmp.gt.f32.partialorder %v666, 0.0
  %vm683 = vcmp.gt.f32.partialorder %v667, 0.0
  %vm684 = vcmp.gt.f32.partialorder %v668, 0.0
  %vm685 = vcmp.gt.f32.partialorder %v669, 0.0
  %vm686 = vcmp.gt.f32.partialorder %v670, 0.0
  %vm687 = vcmp.gt.f32.partialorder %v671, 0.0
  %vm688 = vcmp.gt.f32.partialorder %v672, 0.0
  %vm689 = vcmp.gt.f32.partialorder %v673, 0.0
  %vm690 = vcmp.gt.f32.partialorder %v674, 0.0
  %vm691 = vcmp.gt.f32.partialorder %v675, 0.0
  %v692 = vld [vmem:[%s2 + $0x3] sm:$0x1]
  %v693 = vlaneseq
  %v694 = vshrl.u32 %v693, 7
  %v695 = vsub.s32 0, %v694
  %v696 = vrot.slane %v692, %v695
  %v697 = vmul.f32 %v696, %v660
  %v698 = vmul.f32 %v696, %v661
  %v699 = vmul.f32 %v696, %v662
  %v700 = vmul.f32 %v696, %v663
  %v701 = vmul.f32 %v696, %v664
  %v702 = vmul.f32 %v696, %v665
  %v703 = vmul.f32 %v696, %v666
  %v704 = vmul.f32 %v696, %v667
  %v705 = vmul.f32 %v696, %v668
  %v706 = vmul.f32 %v696, %v669
  %v707 = vmul.f32 %v696, %v670
  %v708 = vmul.f32 %v696, %v671
  %v709 = vmul.f32 %v696, %v672
  %v710 = vmul.f32 %v696, %v673
  %v711 = vmul.f32 %v696, %v674
  %v712 = vmul.f32 %v696, %v675
  %v713 = vsel %vm676, %v660, %v697
  %v714 = vsel %vm677, %v661, %v698
  %v715 = vsel %vm678, %v662, %v699
  %v716 = vsel %vm679, %v663, %v700
  %v717 = vsel %vm680, %v664, %v701
  %v718 = vsel %vm681, %v665, %v702
  %v719 = vsel %vm682, %v666, %v703
  %v720 = vsel %vm683, %v667, %v704
  %v721 = vsel %vm684, %v668, %v705
  %v722 = vsel %vm685, %v669, %v706
  %v723 = vsel %vm686, %v670, %v707
  %v724 = vsel %vm687, %v671, %v708
  %v725 = vsel %vm688, %v672, %v709
  %v726 = vsel %vm689, %v673, %v710
  %v727 = vsel %vm690, %v674, %v711
  %v728 = vsel %vm691, %v675, %v712
  %v729 = vpack.c.bf16 %v714, %v713
  %v730 = vpack.c.bf16 %v716, %v715
  %v731 = vpack.c.bf16 %v718, %v717
  %v732 = vpack.c.bf16 %v720, %v719
  %v733 = vpack.c.bf16 %v722, %v721
  %v734 = vpack.c.bf16 %v724, %v723
  %v735 = vpack.c.bf16 %v726, %v725
  %v736 = vpack.c.bf16 %v728, %v727
  %v745 = vunpack.c.l.b16 %v729
  %v746 = vunpack.c.h.b16 %v729
  %v747 = vunpack.c.l.b16 %v730
  %v748 = vunpack.c.h.b16 %v730
  %v749 = vunpack.c.l.b16 %v731
  %v750 = vunpack.c.h.b16 %v731
  %v751 = vunpack.c.l.b16 %v732
  %v752 = vunpack.c.h.b16 %v732
  %v753 = vunpack.c.l.b16 %v733
  %v754 = vunpack.c.h.b16 %v733
  %v755 = vunpack.c.l.b16 %v734
  %v756 = vunpack.c.h.b16 %v734
  %v757 = vunpack.c.l.b16 %v735
  %v758 = vunpack.c.h.b16 %v735
  %v759 = vunpack.c.l.b16 %v736
  %v760 = vunpack.c.h.b16 %v736
  %v761 = vpack.c.b16 %v745, %v745
  %v762 = vpack.c.b16 %v746, %v746
  %v763 = vpack.c.b16 %v747, %v747
  %v764 = vpack.c.b16 %v748, %v748
  %v765 = vpack.c.b16 %v749, %v749
  %v766 = vpack.c.b16 %v750, %v750
  %v767 = vpack.c.b16 %v751, %v751
  %v768 = vpack.c.b16 %v752, %v752
  %v769 = vpack.c.b16 %v753, %v753
  %v770 = vpack.c.b16 %v754, %v754
  %v771 = vpack.c.b16 %v755, %v755
  %v772 = vpack.c.b16 %v756, %v756
  %v773 = vpack.c.b16 %v757, %v757
  %v774 = vpack.c.b16 %v758, %v758
  %v775 = vpack.c.b16 %v759, %v759
  %v776 = vpack.c.b16 %v760, %v760
  %793 = vst [vmem:[%s4] sm:$0xf] %v761
  %794 = vst [vmem:[%s4 + $0x4] sm:$0xf] %v762
  %795 = vst [vmem:[%s4 + $0x8] sm:$0xf] %v763
  %796 = vst [vmem:[%s4 + $0xc] sm:$0xf] %v764
  %797 = vst [vmem:[%s4 + $0x10] sm:$0xf] %v765
  %798 = vst [vmem:[%s4 + $0x14] sm:$0xf] %v766
  %799 = vst [vmem:[%s4 + $0x18] sm:$0xf] %v767
  %800 = vst [vmem:[%s4 + $0x1c] sm:$0xf] %v768
  %801 = vst [vmem:[%s4 + $0x20] sm:$0xf] %v769
  %802 = vst [vmem:[%s4 + $0x24] sm:$0xf] %v770
  %803 = vst [vmem:[%s4 + $0x28] sm:$0xf] %v771
  %804 = vst [vmem:[%s4 + $0x2c] sm:$0xf] %v772
  %805 = vst [vmem:[%s4 + $0x30] sm:$0xf] %v773
  %806 = vst [vmem:[%s4 + $0x34] sm:$0xf] %v774
  %807 = vst [vmem:[%s4 + $0x38] sm:$0xf] %v775
  %808 = vst [vmem:[%s4 + $0x3c] sm:$0xf] %v776
  // Predicated region
  $region18: #{_lambda_.15} parent=0 // pred_check
    _
  $region19: #{_lambda_.15} parent=0 // pred_check_branch
    %810 = sbr.rel (0) target = $region21
  $region20: #{_lambda_.15} parent=0 // pred_region
    _
  $region21: #{_lambda_.15} parent=0 // pred_fallthru
    _
  // Predicated region
  $region22: #{_lambda_.15} parent=0 // pred_check
    _
  $region23: #{_lambda_.15} parent=0 // pred_check_branch
    %812 = sbr.rel (0) target = $region25
  $region24: #{_lambda_.15} parent=0 // pred_region
    _
  $region25: #{_lambda_.15} parent=0 // pred_fallthru
    _

// kernel: _lambda_.16
$region0: #{_lambda_.16}
  #allocation0 [shape = 'u32[]', space=smem, size = 0x4, offset = 0x4, fixed_abs, tag = 'smem constant byte address 0x4 - core index']
  #allocation1 [shape = 'u32[144,128]{1,0:T(1,128)}', space=vmem, size = 0x12000, scoped, tag = 'internal scratch']
  %s0 = inlined_call_operand.vmem [shape: bf16[32,288], index: 0, kind: input, shape index: {}]
  %s1 = inlined_call_operand.vmem [shape: bf16[288,128], index: 1, kind: input, shape index: {}]
  %s2 = inlined_call_operand.vmem [shape: f32[8,128], index: 2, kind: input, shape index: {}]
  %s3 = inlined_call_operand.vmem [shape: bf16[32,128], index: 3, kind: output, shape index: {}]
  %s4 = sld [smem:[#allocation0]]
  $region22: #{_lambda_.16} parent=0
    _
  %s6 = ssub.s32 1, %s4
  %s7 = scalar_select 0, %s6, %s4
  // Predicated region
  $region2: #{_lambda_.16} parent=0 // pred_check
    _
  $region3: #{_lambda_.16} parent=0 // pred_check_branch
    %9 = sbr.rel (0) target = $region5
  $region4: #{_lambda_.16} parent=0 // pred_region
    _
  $region5: #{_lambda_.16} parent=0 // pred_fallthru
    _
  // Predicated region
  $region6: #{_lambda_.16} parent=0 // pred_check
    _
  $region7: #{_lambda_.16} parent=0 // pred_check_branch
    %11 = sbr.rel (0) target = $region9
  $region8: #{_lambda_.16} parent=0 // pred_region
    _
  $region9: #{_lambda_.16} parent=0 // pred_fallthru
    _
  // Predicated region
  $region10: #{_lambda_.16} parent=0 // pred_check
    _
  $region11: #{_lambda_.16} parent=0 // pred_check_branch
    %13 = sbr.rel (0) target = $region13
  $region12: #{_lambda_.16} parent=0 // pred_region
    _
  $region13: #{_lambda_.16} parent=0 // pred_fallthru
    _
  %v15 = vld [vmem:[%s0] sm:$0xff]
  %v16 = vld [vmem:[%s0 + $0x8] sm:$0xf]
  %v17 = vld [vmem:[%s0 + $0xc] sm:$0xff]
  %v18 = vld [vmem:[%s0 + $0x14] sm:$0xf]
  %v19 = vld [vmem:[%s0 + $0x18] sm:$0xff]
  %v20 = vld [vmem:[%s0 + $0x20] sm:$0xf]
  %v21 = vld [vmem:[%s0 + $0x24] sm:$0xff]
  %v22 = vld [vmem:[%s0 + $0x2c] sm:$0xf]
  %v23 = vld [vmem:[%s1] sm:$0xf]
  %v24 = vld [vmem:[%s1 + $0x4] sm:$0xf]
  %v25 = vld [vmem:[%s1 + $0x8] sm:$0xf]
  %v26 = vld [vmem:[%s1 + $0xc] sm:$0xf]
  %v27 = vld [vmem:[%s1 + $0x10] sm:$0xf]
  %v28 = vld [vmem:[%s1 + $0x14] sm:$0xf]
  %v29 = vld [vmem:[%s1 + $0x18] sm:$0xf]
  %v30 = vld [vmem:[%s1 + $0x1c] sm:$0xf]
  %v31 = vld [vmem:[%s1 + $0x20] sm:$0xf]
  %v32 = vld [vmem:[%s1 + $0x24] sm:$0xf]
  %v33 = vld [vmem:[%s1 + $0x28] sm:$0xf]
  %v34 = vld [vmem:[%s1 + $0x2c] sm:$0xf]
  %v35 = vld [vmem:[%s1 + $0x30] sm:$0xf]
  %v36 = vld [vmem:[%s1 + $0x34] sm:$0xf]
  %v37 = vld [vmem:[%s1 + $0x38] sm:$0xf]
  %v38 = vld [vmem:[%s1 + $0x3c] sm:$0xf]
  %v39 = vld [vmem:[%s1 + $0x40] sm:$0xf]
  %v40 = vld [vmem:[%s1 + $0x44] sm:$0xf]
  %v41 = vld [vmem:[%s1 + $0x48] sm:$0xf]
  %v42 = vld [vmem:[%s1 + $0x4c] sm:$0xf]
  %v43 = vld [vmem:[%s1 + $0x50] sm:$0xf]
  %v44 = vld [vmem:[%s1 + $0x54] sm:$0xf]
  %v45 = vld [vmem:[%s1 + $0x58] sm:$0xf]
  %v46 = vld [vmem:[%s1 + $0x5c] sm:$0xf]
  %v47 = vld [vmem:[%s1 + $0x60] sm:$0xf]
  %v48 = vld [vmem:[%s1 + $0x64] sm:$0xf]
  %v49 = vld [vmem:[%s1 + $0x68] sm:$0xf]
  %v50 = vld [vmem:[%s1 + $0x6c] sm:$0xf]
  %v51 = vld [vmem:[%s1 + $0x70] sm:$0xf]
  %v52 = vld [vmem:[%s1 + $0x74] sm:$0xf]
  %v53 = vld [vmem:[%s1 + $0x78] sm:$0xf]
  %v54 = vld [vmem:[%s1 + $0x7c] sm:$0xf]
  %v55 = vld [vmem:[%s1 + $0x80] sm:$0xf]
  %v56 = vld [vmem:[%s1 + $0x84] sm:$0xf]
  %v57 = vld [vmem:[%s1 + $0x88] sm:$0xf]
  %v58 = vld [vmem:[%s1 + $0x8c] sm:$0xf]
  %v67 = vunpack.c.l.b16 %v15
  %v68 = vunpack.c.h.b16 %v15
  %v69 = vunpack.c.l.b16 %v16
  %v70 = vunpack.c.l.b16 %v17
  %v71 = vunpack.c.h.b16 %v17
  %v72 = vunpack.c.l.b16 %v18
  %v73 = vunpack.c.l.b16 %v19
  %v74 = vunpack.c.h.b16 %v19
  %v75 = vunpack.c.l.b16 %v20
  %v76 = vunpack.c.l.b16 %v21
  %v77 = vunpack.c.h.b16 %v21
  %v78 = vunpack.c.l.b16 %v22
  %v79 = vpack.c.b16 %v70, %v67
  %v80 = vpack.c.b16 %v71, %v68
  %v81 = vpack.c.b16 %v72, %v69
  %v82 = vpack.c.b16 %v76, %v73
  %v83 = vpack.c.b16 %v77, %v74
  %v84 = vpack.c.b16 %v78, %v75
  %v125 = vunpack.c.l.b16 %v23
  %v126 = vunpack.c.l.b16 %v24
  %v127 = vunpack.c.l.b16 %v25
  %v128 = vunpack.c.l.b16 %v26
  %v129 = vunpack.c.l.b16 %v27
  %v130 = vunpack.c.l.b16 %v28
  %v131 = vunpack.c.l.b16 %v29
  %v132 = vunpack.c.l.b16 %v30
  %v133 = vunpack.c.l.b16 %v31
  %v134 = vunpack.c.l.b16 %v32
  %v135 = vunpack.c.l.b16 %v33
  %v136 = vunpack.c.l.b16 %v34
  %v137 = vunpack.c.l.b16 %v35
  %v138 = vunpack.c.l.b16 %v36
  %v139 = vunpack.c.l.b16 %v37
  %v140 = vunpack.c.l.b16 %v38
  %v141 = vunpack.c.l.b16 %v39
  %v142 = vunpack.c.l.b16 %v40
  %v143 = vunpack.c.l.b16 %v41
  %v144 = vunpack.c.l.b16 %v42
  %v145 = vunpack.c.l.b16 %v43
  %v146 = vunpack.c.l.b16 %v44
  %v147 = vunpack.c.l.b16 %v45
  %v148 = vunpack.c.l.b16 %v46
  %v149 = vunpack.c.l.b16 %v47
  %v150 = vunpack.c.l.b16 %v48
  %v151 = vunpack.c.l.b16 %v49
  %v152 = vunpack.c.l.b16 %v50
  %v153 = vunpack.c.l.b16 %v51
  %v154 = vunpack.c.l.b16 %v52
  %v155 = vunpack.c.l.b16 %v53
  %v156 = vunpack.c.l.b16 %v54
  %v157 = vunpack.c.l.b16 %v55
  %v158 = vunpack.c.l.b16 %v56
  %v159 = vunpack.c.l.b16 %v57
  %v160 = vunpack.c.l.b16 %v58
  %v161 = vpack.c.b16 %v126, %v125
  %v162 = vpack.c.b16 %v128, %v127
  %v163 = vpack.c.b16 %v130, %v129
  %v164 = vpack.c.b16 %v132, %v131
  %v165 = vpack.c.b16 %v134, %v133
  %v166 = vpack.c.b16 %v136, %v135
  %v167 = vpack.c.b16 %v138, %v137
  %v168 = vpack.c.b16 %v140, %v139
  %v169 = vpack.c.b16 %v142, %v141
  %v170 = vpack.c.b16 %v144, %v143
  %v171 = vpack.c.b16 %v146, %v145
  %v172 = vpack.c.b16 %v148, %v147
  %v173 = vpack.c.b16 %v150, %v149
  %v174 = vpack.c.b16 %v152, %v151
  %v175 = vpack.c.b16 %v154, %v153
  %v176 = vpack.c.b16 %v156, %v155
  %v177 = vpack.c.b16 %v158, %v157
  %v178 = vpack.c.b16 %v160, %v159
  %vm197 = vcmask 261120
  %v199 = vsel %vm197, %v81, 0
  %v202 = vsel %vm197, %v84, 0
  %204 = vmatprep.subr.bf16.mxu0 0
  %205 = vmatpush1.bf16.msra.mxu0 %v161
  %206 = vmatprep.subr.bf16.mxu0 0
  %207 = vmatpush1.bf16.msra.mxu0 %v162
  %208 = vmatprep.subr.bf16.mxu0 0
  %209 = vmatpush1.bf16.msra.mxu0 %v163
  %210 = vmatprep.subr.bf16.mxu0 0
  %211 = vmatpush1.bf16.msra.mxu0 %v164
  %212 = vmatprep.subr.bf16.mxu0 0
  %213 = vmatpush1.bf16.msra.mxu0 %v165
  %214 = vmatprep.subr.bf16.mxu0 0
  %215 = vmatpush1.bf16.msra.mxu0 %v166
  %216 = vmatprep.subr.bf16.mxu0 0
  %217 = vmatpush1.bf16.msra.mxu0 %v167
  %218 = vmatprep.subr.bf16.mxu0 0
  %219 = vmatpush1.bf16.msra.mxu0 %v168
  %220 = vmatprep.subr.bf16.mxu0 0
  %221 = vmatpush1.bf16.msra.mxu0 %v169
  %222 = vmatprep.subr.bf16.mxu0 0
  %223 = vmatpush1.bf16.msra.mxu0 %v170
  %224 = vmatprep.subr.bf16.mxu0 0
  %225 = vmatpush1.bf16.msra.mxu0 %v171
  %226 = vmatprep.subr.bf16.mxu0 0
  %227 = vmatpush1.bf16.msra.mxu0 %v172
  %228 = vmatprep.subr.bf16.mxu0 0
  %229 = vmatpush1.bf16.msra.mxu0 %v173
  %230 = vmatprep.subr.bf16.mxu0 0
  %231 = vmatpush1.bf16.msra.mxu0 %v174
  %232 = vmatprep.subr.bf16.mxu0 0
  %233 = vmatpush1.bf16.msra.mxu0 %v175
  %234 = vmatprep.subr.bf16.mxu0 0
  %235 = vmatpush1.bf16.msra.mxu0 %v176
  %236 = vmatprep.mubr.bf16.mxu0 %v80
  %237 = vmatmul.mubr.bf16.gmra.mrb[0].mxu0 %v79
  %v238 = vpop.f32.mrb[0].mxu0
  %v239 = vadd.f32 0.0, %v238
  %v240 = vpop.f32.mrb[0].mxu0
  %v241 = vpop.f32.mrb[0].mxu0
  %v242 = vadd.f32 0.0, %v241
  %v243 = vpop.f32.mrb[0].mxu0
  %244 = vmatprep.mubr.bf16.mxu0 %v83
  %245 = vmatmul.mubr.bf16.gmra.mrb[0].mxu0 %v82
  %v246 = vpop.f32.mrb[0].mxu0
  %v247 = vadd.f32 0.0, %v246
  %v248 = vpop.f32.mrb[0].mxu0
  %v249 = vpop.f32.mrb[0].mxu0
  %v250 = vadd.f32 0.0, %v249
  %v251 = vpop.f32.mrb[0].mxu0
  %252 = vdwg.mxu0
  %253 = vmatprep.subr.bf16.mxu0 0
  %254 = vmatpush1.bf16.msra.mxu0 %v177
  %255 = vmatprep.subr.bf16.mxu0 0
  %256 = vmatpush1.bf16.msra.mxu0 %v178
  %257 = vmatprep.subr.bf16.mxu0 0
  %258 = vmatpush1.bf16.msra.mxu0 0
  %259 = vmatprep.subr.bf16.mxu0 0
  %260 = vmatpush1.bf16.msra.mxu0 0
  %261 = vmatprep.subr.bf16.mxu0 0
  %262 = vmatpush1.bf16.msra.mxu0 0
  %263 = vmatprep.subr.bf16.mxu0 0
  %264 = vmatpush1.bf16.msra.mxu0 0
  %265 = vmatprep.subr.bf16.mxu0 0
  %266 = vmatpush1.bf16.msra.mxu0 0
  %267 = vmatprep.subr.bf16.mxu0 0
  %268 = vmatpush1.bf16.msra.mxu0 0
  %269 = vmatprep.subr.bf16.mxu0 0
  %270 = vmatpush1.bf16.msra.mxu0 0
  %271 = vmatprep.subr.bf16.mxu0 0
  %272 = vmatpush1.bf16.msra.mxu0 0
  %273 = vmatprep.subr.bf16.mxu0 0
  %274 = vmatpush1.bf16.msra.mxu0 0
  %275 = vmatprep.subr.bf16.mxu0 0
  %276 = vmatpush1.bf16.msra.mxu0 0
  %277 = vmatprep.subr.bf16.mxu0 0
  %278 = vmatpush1.bf16.msra.mxu0 0
  %279 = vmatprep.subr.bf16.mxu0 0
  %280 = vmatpush1.bf16.msra.mxu0 0
  %281 = vmatprep.subr.bf16.mxu0 0
  %282 = vmatpush1.bf16.msra.mxu0 0
  %283 = vmatprep.subr.bf16.mxu0 0
  %284 = vmatpush1.bf16.msra.mxu0 0
  %285 = vmatprep.mubr.bf16.mxu0 0
  %286 = vmatmul.mubr.bf16.gmra.mrb[0].mxu0 %v199
  %v287 = vpop.f32.mrb[0].mxu0
  %v288 = vadd.f32 %v239, %v287
  %v289 = vpop.f32.mrb[0].mxu0
  %v290 = vpop.f32.mrb[0].mxu0
  %v291 = vadd.f32 %v242, %v290
  %v292 = vpop.f32.mrb[0].mxu0
  %293 = vmatprep.mubr.bf16.mxu0 0
  %294 = vmatmul.mubr.bf16.gmra.mrb[0].mxu0 %v202
  %v295 = vpop.f32.mrb[0].mxu0
  %v296 = vadd.f32 %v247, %v295
  %v297 = vpop.f32.mrb[0].mxu0
  %v298 = vpop.f32.mrb[0].mxu0
  %v299 = vadd.f32 %v250, %v298
  %v300 = vpop.f32.mrb[0].mxu0
  %301 = vdwg.mxu0
  %v302 = vld [vmem:[%s2] sm:$0x1]
  %v303 = vlaneseq
  %v304 = vshrl.u32 %v303, 7
  %v305 = vsub.s32 0, %v304
  %v306 = vrot.slane %v302, %v305
  %v307 = vmul.f32 %v288, %v306
  %v308 = vmul.f32 %v291, %v306
  %v309 = vmul.f32 %v296, %v306
  %v310 = vmul.f32 %v299, %v306
  %v311 = vld [vmem:[%s2 + $0x1] sm:$0x1]
  %v312 = vlaneseq
  %v313 = vshrl.u32 %v312, 7
  %v314 = vsub.s32 0, %v313
  %v315 = vrot.slane %v311, %v314
  %v316 = vadd.f32 %v307, %v315
  %v317 = vadd.f32 %v308, %v315
  %v318 = vadd.f32 %v309, %v315
  %v319 = vadd.f32 %v310, %v315
  %vm320 = vcmp.gt.f32.partialorder %v316, 0.0
  %vm321 = vcmp.gt.f32.partialorder %v317, 0.0
  %vm322 = vcmp.gt.f32.partialorder %v318, 0.0
  %vm323 = vcmp.gt.f32.partialorder %v319, 0.0
  %v324 = vld [vmem:[%s2 + $0x2] sm:$0x1]
  %v325 = vlaneseq
  %v326 = vshrl.u32 %v325, 7
  %v327 = vsub.s32 0, %v326
  %v328 = vrot.slane %v324, %v327
  %v329 = vmul.f32 %v328, %v316
  %v330 = vmul.f32 %v328, %v317
  %v331 = vmul.f32 %v328, %v318
  %v332 = vmul.f32 %v328, %v319
  %v333 = vsel %vm320, %v316, %v329
  %v334 = vsel %vm321, %v317, %v330
  %v335 = vsel %vm322, %v318, %v331
  %v336 = vsel %vm323, %v319, %v332
  %v337 = vpack.c.bf16 %v334, %v333
  %v338 = vpack.c.bf16 %v336, %v335
  %v341 = vunpack.c.l.b16 %v337
  %v342 = vunpack.c.h.b16 %v337
  %v343 = vunpack.c.l.b16 %v338
  %v344 = vunpack.c.h.b16 %v338
  %v345 = vpack.c.b16 %v341, %v341
  %v346 = vpack.c.b16 %v342, %v342
  %v347 = vpack.c.b16 %v343, %v343
  %v348 = vpack.c.b16 %v344, %v344
  %353 = vst [vmem:[%s3] sm:$0xf] %v345
  %354 = vst [vmem:[%s3 + $0x4] sm:$0xf] %v346
  %355 = vst [vmem:[%s3 + $0x8] sm:$0xf] %v347
  %356 = vst [vmem:[%s3 + $0xc] sm:$0xf] %v348
  // Predicated region
  $region14: #{_lambda_.16} parent=0 // pred_check
    _
  $region15: #{_lambda_.16} parent=0 // pred_check_branch
    %358 = sbr.rel (0) target = $region17
  $region16: #{_lambda_.16} parent=0 // pred_region
    _
  $region17: #{_lambda_.16} parent=0 // pred_fallthru
    _
  // Predicated region
  $region18: #{_lambda_.16} parent=0 // pred_check
    _
  $region19: #{_lambda_.16} parent=0 // pred_check_branch
    %360 = sbr.rel (0) target = $region21
  $region20: #{_lambda_.16} parent=0 // pred_region
    _
  $region21: #{_lambda_.16} parent=0 // pred_fallthru
    _

// kernel: _lambda_.17
$region0: #{_lambda_.17}
  #allocation0 [shape = 'u32[]', space=smem, size = 0x4, offset = 0x4, fixed_abs, tag = 'smem constant byte address 0x4 - core index']
  #allocation1 [shape = 'u32[144,128]{1,0:T(1,128)}', space=vmem, size = 0x12000, scoped, tag = 'internal scratch']
  %s0 = inlined_call_operand.vmem [shape: bf16[32,576], index: 0, kind: input, shape index: {}]
  %s1 = inlined_call_operand.vmem [shape: bf16[576,128], index: 1, kind: input, shape index: {}]
  %s2 = inlined_call_operand.vmem [shape: f32[8,128], index: 2, kind: input, shape index: {}]
  %s3 = inlined_call_operand.vmem [shape: bf16[32,128], index: 3, kind: output, shape index: {}]
  %s4 = sld [smem:[#allocation0]]
  $region22: #{_lambda_.17} parent=0
    _
  %s6 = ssub.s32 1, %s4
  %s7 = scalar_select 0, %s6, %s4
  // Predicated region
  $region2: #{_lambda_.17} parent=0 // pred_check
    _
  $region3: #{_lambda_.17} parent=0 // pred_check_branch
    %9 = sbr.rel (0) target = $region5
  $region4: #{_lambda_.17} parent=0 // pred_region
    _
  $region5: #{_lambda_.17} parent=0 // pred_fallthru
    _
  // Predicated region
  $region6: #{_lambda_.17} parent=0 // pred_check
    _
  $region7: #{_lambda_.17} parent=0 // pred_check_branch
    %11 = sbr.rel (0) target = $region9
  $region8: #{_lambda_.17} parent=0 // pred_region
    _
  $region9: #{_lambda_.17} parent=0 // pred_fallthru
    _
  // Predicated region
  $region10: #{_lambda_.17} parent=0 // pred_check
    _
  $region11: #{_lambda_.17} parent=0 // pred_check_branch
    %13 = sbr.rel (0) target = $region13
  $region12: #{_lambda_.17} parent=0 // pred_region
    _
  $region13: #{_lambda_.17} parent=0 // pred_fallthru
    _
  %v15 = vld [vmem:[%s0] sm:$0xff]
  %v16 = vld [vmem:[%s0 + $0x8] sm:$0xff]
  %v17 = vld [vmem:[%s0 + $0x10] sm:$0xf]
  %v18 = vld [vmem:[%s0 + $0x14] sm:$0xff]
  %v19 = vld [vmem:[%s0 + $0x1c] sm:$0xff]
  %v20 = vld [vmem:[%s0 + $0x24] sm:$0xf]
  %v21 = vld [vmem:[%s0 + $0x28] sm:$0xff]
  %v22 = vld [vmem:[%s0 + $0x30] sm:$0xff]
  %v23 = vld [vmem:[%s0 + $0x38] sm:$0xf]
  %v24 = vld [vmem:[%s0 + $0x3c] sm:$0xff]
  %v25 = vld [vmem:[%s0 + $0x44] sm:$0xff]
  %v26 = vld [vmem:[%s0 + $0x4c] sm:$0xf]
  %v27 = vld [vmem:[%s1] sm:$0xf]
  %v28 = vld [vmem:[%s1 + $0x4] sm:$0xf]
  %v29 = vld [vmem:[%s1 + $0x8] sm:$0xf]
  %v30 = vld [vmem:[%s1 + $0xc] sm:$0xf]
  %v31 = vld [vmem:[%s1 + $0x10] sm:$0xf]
  %v32 = vld [vmem:[%s1 + $0x14] sm:$0xf]
  %v33 = vld [vmem:[%s1 + $0x18] sm:$0xf]
  %v34 = vld [vmem:[%s1 + $0x1c] sm:$0xf]
  %v35 = vld [vmem:[%s1 + $0x20] sm:$0xf]
  %v36 = vld [vmem:[%s1 + $0x24] sm:$0xf]
  %v37 = vld [vmem:[%s1 + $0x28] sm:$0xf]
  %v38 = vld [vmem:[%s1 + $0x2c] sm:$0xf]
  %v39 = vld [vmem:[%s1 + $0x30] sm:$0xf]
  %v40 = vld [vmem:[%s1 + $0x34] sm:$0xf]
  %v41 = vld [vmem:[%s1 + $0x38] sm:$0xf]
  %v42 = vld [vmem:[%s1 + $0x3c] sm:$0xf]
  %v43 = vld [vmem:[%s1 + $0x40] sm:$0xf]
  %v44 = vld [vmem:[%s1 + $0x44] sm:$0xf]
  %v45 = vld [vmem:[%s1 + $0x48] sm:$0xf]
  %v46 = vld [vmem:[%s1 + $0x4c] sm:$0xf]
  %v47 = vld [vmem:[%s1 + $0x50] sm:$0xf]
  %v48 = vld [vmem:[%s1 + $0x54] sm:$0xf]
  %v49 = vld [vmem:[%s1 + $0x58] sm:$0xf]
  %v50 = vld [vmem:[%s1 + $0x5c] sm:$0xf]
  %v51 = vld [vmem:[%s1 + $0x60] sm:$0xf]
  %v52 = vld [vmem:[%s1 + $0x64] sm:$0xf]
  %v53 = vld [vmem:[%s1 + $0x68] sm:$0xf]
  %v54 = vld [vmem:[%s1 + $0x6c] sm:$0xf]
  %v55 = vld [vmem:[%s1 + $0x70] sm:$0xf]
  %v56 = vld [vmem:[%s1 + $0x74] sm:$0xf]
  %v57 = vld [vmem:[%s1 + $0x78] sm:$0xf]
  %v58 = vld [vmem:[%s1 + $0x7c] sm:$0xf]
  %v59 = vld [vmem:[%s1 + $0x80] sm:$0xf]
  %v60 = vld [vmem:[%s1 + $0x84] sm:$0xf]
  %v61 = vld [vmem:[%s1 + $0x88] sm:$0xf]
  %v62 = vld [vmem:[%s1 + $0x8c] sm:$0xf]
  %v63 = vld [vmem:[%s1 + $0x90] sm:$0xf]
  %v64 = vld [vmem:[%s1 + $0x94] sm:$0xf]
  %v65 = vld [vmem:[%s1 + $0x98] sm:$0xf]
  %v66 = vld [vmem:[%s1 + $0x9c] sm:$0xf]
  %v67 = vld [vmem:[%s1 + $0xa0] sm:$0xf]
  %v68 = vld [vmem:[%s1 + $0xa4] sm:$0xf]
  %v69 = vld [vmem:[%s1 + $0xa8] sm:$0xf]
  %v70 = vld [vmem:[%s1 + $0xac] sm:$0xf]
  %v71 = vld [vmem:[%s1 + $0xb0] sm:$0xf]
  %v72 = vld [vmem:[%s1 + $0xb4] sm:$0xf]
  %v73 = vld [vmem:[%s1 + $0xb8] sm:$0xf]
  %v74 = vld [vmem:[%s1 + $0xbc] sm:$0xf]
  %v75 = vld [vmem:[%s1 + $0xc0] sm:$0xf]
  %v76 = vld [vmem:[%s1 + $0xc4] sm:$0xf]
  %v77 = vld [vmem:[%s1 + $0xc8] sm:$0xf]
  %v78 = vld [vmem:[%s1 + $0xcc] sm:$0xf]
  %v79 = vld [vmem:[%s1 + $0xd0] sm:$0xf]
  %v80 = vld [vmem:[%s1 + $0xd4] sm:$0xf]
  %v81 = vld [vmem:[%s1 + $0xd8] sm:$0xf]
  %v82 = vld [vmem:[%s1 + $0xdc] sm:$0xf]
  %v83 = vld [vmem:[%s1 + $0xe0] sm:$0xf]
  %v84 = vld [vmem:[%s1 + $0xe4] sm:$0xf]
  %v85 = vld [vmem:[%s1 + $0xe8] sm:$0xf]
  %v86 = vld [vmem:[%s1 + $0xec] sm:$0xf]
  %v87 = vld [vmem:[%s1 + $0xf0] sm:$0xf]
  %v88 = vld [vmem:[%s1 + $0xf4] sm:$0xf]
  %v89 = vld [vmem:[%s1 + $0xf8] sm:$0xf]
  %v90 = vld [vmem:[%s1 + $0xfc] sm:$0xf]
  %v91 = vld [vmem:[%s1 + $0x100] sm:$0xf]
  %v92 = vld [vmem:[%s1 + $0x104] sm:$0xf]
  %v93 = vld [vmem:[%s1 + $0x108] sm:$0xf]
  %v94 = vld [vmem:[%s1 + $0x10c] sm:$0xf]
  %v95 = vld [vmem:[%s1 + $0x110] sm:$0xf]
  %v96 = vld [vmem:[%s1 + $0x114] sm:$0xf]
  %v97 = vld [vmem:[%s1 + $0x118] sm:$0xf]
  %v98 = vld [vmem:[%s1 + $0x11c] sm:$0xf]
  %v111 = vunpack.c.l.b16 %v15
  %v112 = vunpack.c.h.b16 %v15
  %v113 = vunpack.c.l.b16 %v16
  %v114 = vunpack.c.h.b16 %v16
  %v115 = vunpack.c.l.b16 %v17
  %v116 = vunpack.c.l.b16 %v18
  %v117 = vunpack.c.h.b16 %v18
  %v118 = vunpack.c.l.b16 %v19
  %v119 = vunpack.c.h.b16 %v19
  %v120 = vunpack.c.l.b16 %v20
  %v121 = vunpack.c.l.b16 %v21
  %v122 = vunpack.c.h.b16 %v21
  %v123 = vunpack.c.l.b16 %v22
  %v124 = vunpack.c.h.b16 %v22
  %v125 = vunpack.c.l.b16 %v23
  %v126 = vunpack.c.l.b16 %v24
  %v127 = vunpack.c.h.b16 %v24
  %v128 = vunpack.c.l.b16 %v25
  %v129 = vunpack.c.h.b16 %v25
  %v130 = vunpack.c.l.b16 %v26
  %v131 = vpack.c.b16 %v116, %v111
  %v132 = vpack.c.b16 %v117, %v112
  %v133 = vpack.c.b16 %v118, %v113
  %v134 = vpack.c.b16 %v119, %v114
  %v135 = vpack.c.b16 %v120, %v115
  %v136 = vpack.c.b16 %v126, %v121
  %v137 = vpack.c.b16 %v127, %v122
  %v138 = vpack.c.b16 %v128, %v123
  %v139 = vpack.c.b16 %v129, %v124
  %v140 = vpack.c.b16 %v130, %v125
  %v221 = vunpack.c.l.b16 %v27
  %v222 = vunpack.c.l.b16 %v28
  %v223 = vunpack.c.l.b16 %v29
  %v224 = vunpack.c.l.b16 %v30
  %v225 = vunpack.c.l.b16 %v31
  %v226 = vunpack.c.l.b16 %v32
  %v227 = vunpack.c.l.b16 %v33
  %v228 = vunpack.c.l.b16 %v34
  %v229 = vunpack.c.l.b16 %v35
  %v230 = vunpack.c.l.b16 %v36
  %v231 = vunpack.c.l.b16 %v37
  %v232 = vunpack.c.l.b16 %v38
  %v233 = vunpack.c.l.b16 %v39
  %v234 = vunpack.c.l.b16 %v40
  %v235 = vunpack.c.l.b16 %v41
  %v236 = vunpack.c.l.b16 %v42
  %v237 = vunpack.c.l.b16 %v43
  %v238 = vunpack.c.l.b16 %v44
  %v239 = vunpack.c.l.b16 %v45
  %v240 = vunpack.c.l.b16 %v46
  %v241 = vunpack.c.l.b16 %v47
  %v242 = vunpack.c.l.b16 %v48
  %v243 = vunpack.c.l.b16 %v49
  %v244 = vunpack.c.l.b16 %v50
  %v245 = vunpack.c.l.b16 %v51
  %v246 = vunpack.c.l.b16 %v52
  %v247 = vunpack.c.l.b16 %v53
  %v248 = vunpack.c.l.b16 %v54
  %v249 = vunpack.c.l.b16 %v55
  %v250 = vunpack.c.l.b16 %v56
  %v251 = vunpack.c.l.b16 %v57
  %v252 = vunpack.c.l.b16 %v58
  %v253 = vunpack.c.l.b16 %v59
  %v254 = vunpack.c.l.b16 %v60
  %v255 = vunpack.c.l.b16 %v61
  %v256 = vunpack.c.l.b16 %v62
  %v257 = vunpack.c.l.b16 %v63
  %v258 = vunpack.c.l.b16 %v64
  %v259 = vunpack.c.l.b16 %v65
  %v260 = vunpack.c.l.b16 %v66
  %v261 = vunpack.c.l.b16 %v67
  %v262 = vunpack.c.l.b16 %v68
  %v263 = vunpack.c.l.b16 %v69
  %v264 = vunpack.c.l.b16 %v70
  %v265 = vunpack.c.l.b16 %v71
  %v266 = vunpack.c.l.b16 %v72
  %v267 = vunpack.c.l.b16 %v73
  %v268 = vunpack.c.l.b16 %v74
  %v269 = vunpack.c.l.b16 %v75
  %v270 = vunpack.c.l.b16 %v76
  %v271 = vunpack.c.l.b16 %v77
  %v272 = vunpack.c.l.b16 %v78
  %v273 = vunpack.c.l.b16 %v79
  %v274 = vunpack.c.l.b16 %v80
  %v275 = vunpack.c.l.b16 %v81
  %v276 = vunpack.c.l.b16 %v82
  %v277 = vunpack.c.l.b16 %v83
  %v278 = vunpack.c.l.b16 %v84
  %v279 = vunpack.c.l.b16 %v85
  %v280 = vunpack.c.l.b16 %v86
  %v281 = vunpack.c.l.b16 %v87
  %v282 = vunpack.c.l.b16 %v88
  %v283 = vunpack.c.l.b16 %v89
  %v284 = vunpack.c.l.b16 %v90
  %v285 = vunpack.c.l.b16 %v91
  %v286 = vunpack.c.l.b16 %v92
  %v287 = vunpack.c.l.b16 %v93
  %v288 = vunpack.c.l.b16 %v94
  %v289 = vunpack.c.l.b16 %v95
  %v290 = vunpack.c.l.b16 %v96
  %v291 = vunpack.c.l.b16 %v97
  %v292 = vunpack.c.l.b16 %v98
  %v293 = vpack.c.b16 %v222, %v221
  %v294 = vpack.c.b16 %v224, %v223
  %v295 = vpack.c.b16 %v226, %v225
  %v296 = vpack.c.b16 %v228, %v227
  %v297 = vpack.c.b16 %v230, %v229
  %v298 = vpack.c.b16 %v232, %v231
  %v299 = vpack.c.b16 %v234, %v233
  %v300 = vpack.c.b16 %v236, %v235
  %v301 = vpack.c.b16 %v238, %v237
  %v302 = vpack.c.b16 %v240, %v239
  %v303 = vpack.c.b16 %v242, %v241
  %v304 = vpack.c.b16 %v244, %v243
  %v305 = vpack.c.b16 %v246, %v245
  %v306 = vpack.c.b16 %v248, %v247
  %v307 = vpack.c.b16 %v250, %v249
  %v308 = vpack.c.b16 %v252, %v251
  %v309 = vpack.c.b16 %v254, %v253
  %v310 = vpack.c.b16 %v256, %v255
  %v311 = vpack.c.b16 %v258, %v257
  %v312 = vpack.c.b16 %v260, %v259
  %v313 = vpack.c.b16 %v262, %v261
  %v314 = vpack.c.b16 %v264, %v263
  %v315 = vpack.c.b16 %v266, %v265
  %v316 = vpack.c.b16 %v268, %v267
  %v317 = vpack.c.b16 %v270, %v269
  %v318 = vpack.c.b16 %v272, %v271
  %v319 = vpack.c.b16 %v274, %v273
  %v320 = vpack.c.b16 %v276, %v275
  %v321 = vpack.c.b16 %v278, %v277
  %v322 = vpack.c.b16 %v280, %v279
  %v323 = vpack.c.b16 %v282, %v281
  %v324 = vpack.c.b16 %v284, %v283
  %v325 = vpack.c.b16 %v286, %v285
  %v326 = vpack.c.b16 %v288, %v287
  %v327 = vpack.c.b16 %v290, %v289
  %v328 = vpack.c.b16 %v292, %v291
  %vm365 = vcmask 523264
  %v367 = vsel %vm365, %v135, 0
  %v370 = vsel %vm365, %v140, 0
  %372 = vmatprep.subr.bf16.mxu0 0
  %373 = vmatpush1.bf16.msra.mxu0 %v293
  %374 = vmatprep.subr.bf16.mxu0 0
  %375 = vmatpush1.bf16.msra.mxu0 %v294
  %376 = vmatprep.subr.bf16.mxu0 0
  %377 = vmatpush1.bf16.msra.mxu0 %v295
  %378 = vmatprep.subr.bf16.mxu0 0
  %379 = vmatpush1.bf16.msra.mxu0 %v296
  %380 = vmatprep.subr.bf16.mxu0 0
  %381 = vmatpush1.bf16.msra.mxu0 %v297
  %382 = vmatprep.subr.bf16.mxu0 0
  %383 = vmatpush1.bf16.msra.mxu0 %v298
  %384 = vmatprep.subr.bf16.mxu0 0
  %385 = vmatpush1.bf16.msra.mxu0 %v299
  %386 = vmatprep.subr.bf16.mxu0 0
  %387 = vmatpush1.bf16.msra.mxu0 %v300
  %388 = vmatprep.subr.bf16.mxu0 0
  %389 = vmatpush1.bf16.msra.mxu0 %v301
  %390 = vmatprep.subr.bf16.mxu0 0
  %391 = vmatpush1.bf16.msra.mxu0 %v302
  %392 = vmatprep.subr.bf16.mxu0 0
  %393 = vmatpush1.bf16.msra.mxu0 %v303
  %394 = vmatprep.subr.bf16.mxu0 0
  %395 = vmatpush1.bf16.msra.mxu0 %v304
  %396 = vmatprep.subr.bf16.mxu0 0
  %397 = vmatpush1.bf16.msra.mxu0 %v305
  %398 = vmatprep.subr.bf16.mxu0 0
  %399 = vmatpush1.bf16.msra.mxu0 %v306
  %400 = vmatprep.subr.bf16.mxu0 0
  %401 = vmatpush1.bf16.msra.mxu0 %v307
  %402 = vmatprep.subr.bf16.mxu0 0
  %403 = vmatpush1.bf16.msra.mxu0 %v308
  %404 = vmatprep.mubr.bf16.mxu0 %v132
  %405 = vmatmul.mubr.bf16.gmra.mrb[0].mxu0 %v131
  %v406 = vpop.f32.mrb[0].mxu0
  %v407 = vadd.f32 0.0, %v406
  %v408 = vpop.f32.mrb[0].mxu0
  %v409 = vpop.f32.mrb[0].mxu0
  %v410 = vadd.f32 0.0, %v409
  %v411 = vpop.f32.mrb[0].mxu0
  %412 = vmatprep.mubr.bf16.mxu0 %v137
  %413 = vmatmul.mubr.bf16.gmra.mrb[0].mxu0 %v136
  %v414 = vpop.f32.mrb[0].mxu0
  %v415 = vadd.f32 0.0, %v414
  %v416 = vpop.f32.mrb[0].mxu0
  %v417 = vpop.f32.mrb[0].mxu0
  %v418 = vadd.f32 0.0, %v417
  %v419 = vpop.f32.mrb[0].mxu0
  %420 = vdwg.mxu0
  %421 = vmatprep.subr.bf16.mxu0 0
  %422 = vmatpush1.bf16.msra.mxu0 %v309
  %423 = vmatprep.subr.bf16.mxu0 0
  %424 = vmatpush1.bf16.msra.mxu0 %v310
  %425 = vmatprep.subr.bf16.mxu0 0
  %426 = vmatpush1.bf16.msra.mxu0 %v311
  %427 = vmatprep.subr.bf16.mxu0 0
  %428 = vmatpush1.bf16.msra.mxu0 %v312
  %429 = vmatprep.subr.bf16.mxu0 0
  %430 = vmatpush1.bf16.msra.mxu0 %v313
  %431 = vmatprep.subr.bf16.mxu0 0
  %432 = vmatpush1.bf16.msra.mxu0 %v314
  %433 = vmatprep.subr.bf16.mxu0 0
  %434 = vmatpush1.bf16.msra.mxu0 %v315
  %435 = vmatprep.subr.bf16.mxu0 0
  %436 = vmatpush1.bf16.msra.mxu0 %v316
  %437 = vmatprep.subr.bf16.mxu0 0
  %438 = vmatpush1.bf16.msra.mxu0 %v317
  %439 = vmatprep.subr.bf16.mxu0 0
  %440 = vmatpush1.bf16.msra.mxu0 %v318
  %441 = vmatprep.subr.bf16.mxu0 0
  %442 = vmatpush1.bf16.msra.mxu0 %v319
  %443 = vmatprep.subr.bf16.mxu0 0
  %444 = vmatpush1.bf16.msra.mxu0 %v320
  %445 = vmatprep.subr.bf16.mxu0 0
  %446 = vmatpush1.bf16.msra.mxu0 %v321
  %447 = vmatprep.subr.bf16.mxu0 0
  %448 = vmatpush1.bf16.msra.mxu0 %v322
  %449 = vmatprep.subr.bf16.mxu0 0
  %450 = vmatpush1.bf16.msra.mxu0 %v323
  %451 = vmatprep.subr.bf16.mxu0 0
  %452 = vmatpush1.bf16.msra.mxu0 %v324
  %453 = vmatprep.mubr.bf16.mxu0 %v134
  %454 = vmatmul.mubr.bf16.gmra.mrb[0].mxu0 %v133
  %v455 = vpop.f32.mrb[0].mxu0
  %v456 = vadd.f32 %v407, %v455
  %v457 = vpop.f32.mrb[0].mxu0
  %v458 = vpop.f32.mrb[0].mxu0
  %v459 = vadd.f32 %v410, %v458
  %v460 = vpop.f32.mrb[0].mxu0
  %461 = vmatprep.mubr.bf16.mxu0 %v139
  %462 = vmatmul.mubr.bf16.gmra.mrb[0].mxu0 %v138
  %v463 = vpop.f32.mrb[0].mxu0
  %v464 = vadd.f32 %v415, %v463
  %v465 = vpop.f32.mrb[0].mxu0
  %v466 = vpop.f32.mrb[0].mxu0
  %v467 = vadd.f32 %v418, %v466
  %v468 = vpop.f32.mrb[0].mxu0
  %469 = vdwg.mxu0
  %470 = vmatprep.subr.bf16.mxu0 0
  %471 = vmatpush1.bf16.msra.mxu0 %v325
  %472 = vmatprep.subr.bf16.mxu0 0
  %473 = vmatpush1.bf16.msra.mxu0 %v326
  %474 = vmatprep.subr.bf16.mxu0 0
  %475 = vmatpush1.bf16.msra.mxu0 %v327
  %476 = vmatprep.subr.bf16.mxu0 0
  %477 = vmatpush1.bf16.msra.mxu0 %v328
  %478 = vmatprep.subr.bf16.mxu0 0
  %479 = vmatpush1.bf16.msra.mxu0 0
  %480 = vmatprep.subr.bf16.mxu0 0
  %481 = vmatpush1.bf16.msra.mxu0 0
  %482 = vmatprep.subr.bf16.mxu0 0
  %483 = vmatpush1.bf16.msra.mxu0 0
  %484 = vmatprep.subr.bf16.mxu0 0
  %485 = vmatpush1.bf16.msra.mxu0 0
  %486 = vmatprep.subr.bf16.mxu0 0
  %487 = vmatpush1.bf16.msra.mxu0 0
  %488 = vmatprep.subr.bf16.mxu0 0
  %489 = vmatpush1.bf16.msra.mxu0 0
  %490 = vmatprep.subr.bf16.mxu0 0
  %491 = vmatpush1.bf16.msra.mxu0 0
  %492 = vmatprep.subr.bf16.mxu0 0
  %493 = vmatpush1.bf16.msra.mxu0 0
  %494 = vmatprep.subr.bf16.mxu0 0
  %495 = vmatpush1.bf16.msra.mxu0 0
  %496 = vmatprep.subr.bf16.mxu0 0
  %497 = vmatpush1.bf16.msra.mxu0 0
  %498 = vmatprep.subr.bf16.mxu0 0
  %499 = vmatpush1.bf16.msra.mxu0 0
  %500 = vmatprep.subr.bf16.mxu0 0
  %501 = vmatpush1.bf16.msra.mxu0 0
  %502 = vmatprep.mubr.bf16.mxu0 0
  %503 = vmatmul.mubr.bf16.gmra.mrb[0].mxu0 %v367
  %v504 = vpop.f32.mrb[0].mxu0
  %v505 = vadd.f32 %v456, %v504
  %v506 = vpop.f32.mrb[0].mxu0
  %v507 = vpop.f32.mrb[0].mxu0
  %v508 = vadd.f32 %v459, %v507
  %v509 = vpop.f32.mrb[0].mxu0
  %510 = vmatprep.mubr.bf16.mxu0 0
  %511 = vmatmul.mubr.bf16.gmra.mrb[0].mxu0 %v370
  %v512 = vpop.f32.mrb[0].mxu0
  %v513 = vadd.f32 %v464, %v512
  %v514 = vpop.f32.mrb[0].mxu0
  %v515 = vpop.f32.mrb[0].mxu0
  %v516 = vadd.f32 %v467, %v515
  %v517 = vpop.f32.mrb[0].mxu0
  %518 = vdwg.mxu0
  %v519 = vld [vmem:[%s2] sm:$0x1]
  %v520 = vlaneseq
  %v521 = vshrl.u32 %v520, 7
  %v522 = vsub.s32 0, %v521
  %v523 = vrot.slane %v519, %v522
  %v524 = vmul.f32 %v505, %v523
  %v525 = vmul.f32 %v508, %v523
  %v526 = vmul.f32 %v513, %v523
  %v527 = vmul.f32 %v516, %v523
  %v528 = vld [vmem:[%s2 + $0x1] sm:$0x1]
  %v529 = vlaneseq
  %v530 = vshrl.u32 %v529, 7
  %v531 = vsub.s32 0, %v530
  %v532 = vrot.slane %v528, %v531
  %v533 = vadd.f32 %v524, %v532
  %v534 = vadd.f32 %v525, %v532
  %v535 = vadd.f32 %v526, %v532
  %v536 = vadd.f32 %v527, %v532
  %vm537 = vcmp.gt.f32.partialorder %v533, 0.0
  %vm538 = vcmp.gt.f32.partialorder %v534, 0.0
  %vm539 = vcmp.gt.f32.partialorder %v535, 0.0
  %vm540 = vcmp.gt.f32.partialorder %v536, 0.0
  %v541 = vld [vmem:[%s2 + $0x2] sm:$0x1]
  %v542 = vlaneseq
  %v543 = vshrl.u32 %v542, 7
  %v544 = vsub.s32 0, %v543
  %v545 = vrot.slane %v541, %v544
  %v546 = vmul.f32 %v545, %v533
  %v547 = vmul.f32 %v545, %v534
  %v548 = vmul.f32 %v545, %v535
  %v549 = vmul.f32 %v545, %v536
  %v550 = vsel %vm537, %v533, %v546
  %v551 = vsel %vm538, %v534, %v547
  %v552 = vsel %vm539, %v535, %v548
  %v553 = vsel %vm540, %v536, %v549
  %v554 = vpack.c.bf16 %v551, %v550
  %v555 = vpack.c.bf16 %v553, %v552
  %v558 = vunpack.c.l.b16 %v554
  %v559 = vunpack.c.h.b16 %v554
  %v560 = vunpack.c.l.b16 %v555
  %v561 = vunpack.c.h.b16 %v555
  %v562 = vpack.c.b16 %v558, %v558
  %v563 = vpack.c.b16 %v559, %v559
  %v564 = vpack.c.b16 %v560, %v560
  %v565 = vpack.c.b16 %v561, %v561
  %570 = vst [vmem:[%s3] sm:$0xf] %v562
  %571 = vst [vmem:[%s3 + $0x4] sm:$0xf] %v563
  %572 = vst [vmem:[%s3 + $0x8] sm:$0xf] %v564
  %573 = vst [vmem:[%s3 + $0xc] sm:$0xf] %v565
  // Predicated region
  $region14: #{_lambda_.17} parent=0 // pred_check
    _
  $region15: #{_lambda_.17} parent=0 // pred_check_branch
    %575 = sbr.rel (0) target = $region17
  $region16: #{_lambda_.17} parent=0 // pred_region
    _
  $region17: #{_lambda_.17} parent=0 // pred_fallthru
    _
  // Predicated region
  $region18: #{_lambda_.17} parent=0 // pred_check
    _
  $region19: #{_lambda_.17} parent=0 // pred_check_branch
    %577 = sbr.rel (0) target = $region21
  $region20: #{_lambda_.17} parent=0 // pred_region
    _
  $region21: #{_lambda_.17} parent=0 // pred_fallthru
    _

// kernel: _lambda_.18
$region0: #{_lambda_.18}
  #allocation0 [shape = 'u32[]', space=smem, size = 0x4, offset = 0x4, fixed_abs, tag = 'smem constant byte address 0x4 - core index']
  #allocation1 [shape = 'u32[144,128]{1,0:T(1,128)}', space=vmem, size = 0x12000, scoped, tag = 'internal scratch']
  %s0 = inlined_call_operand.vmem [shape: bf16[32,576], index: 0, kind: input, shape index: {}]
  %s1 = inlined_call_operand.vmem [shape: bf16[576,128], index: 1, kind: input, shape index: {}]
  %s2 = inlined_call_operand.vmem [shape: f32[8,128], index: 2, kind: input, shape index: {}]
  %s3 = inlined_call_operand.vmem [shape: bf16[32,128], index: 3, kind: input, shape index: {}]
  %s4 = inlined_call_operand.vmem [shape: bf16[32,128], index: 4, kind: output, shape index: {}]
  %s5 = sld [smem:[#allocation0]]
  $region26: #{_lambda_.18} parent=0
    _
  %s7 = ssub.s32 1, %s5
  %s8 = scalar_select 0, %s7, %s5
  // Predicated region
  $region2: #{_lambda_.18} parent=0 // pred_check
    _
  $region3: #{_lambda_.18} parent=0 // pred_check_branch
    %10 = sbr.rel (0) target = $region5
  $region4: #{_lambda_.18} parent=0 // pred_region
    _
  $region5: #{_lambda_.18} parent=0 // pred_fallthru
    _
  // Predicated region
  $region6: #{_lambda_.18} parent=0 // pred_check
    _
  $region7: #{_lambda_.18} parent=0 // pred_check_branch
    %12 = sbr.rel (0) target = $region9
  $region8: #{_lambda_.18} parent=0 // pred_region
    _
  $region9: #{_lambda_.18} parent=0 // pred_fallthru
    _
  // Predicated region
  $region10: #{_lambda_.18} parent=0 // pred_check
    _
  $region11: #{_lambda_.18} parent=0 // pred_check_branch
    %14 = sbr.rel (0) target = $region13
  $region12: #{_lambda_.18} parent=0 // pred_region
    _
  $region13: #{_lambda_.18} parent=0 // pred_fallthru
    _
  // Predicated region
  $region14: #{_lambda_.18} parent=0 // pred_check
    _
  $region15: #{_lambda_.18} parent=0 // pred_check_branch
    %16 = sbr.rel (0) target = $region17
  $region16: #{_lambda_.18} parent=0 // pred_region
    _
  $region17: #{_lambda_.18} parent=0 // pred_fallthru
    _
  %v18 = vld [vmem:[%s0] sm:$0xff]
  %v19 = vld [vmem:[%s0 + $0x8] sm:$0xff]
  %v20 = vld [vmem:[%s0 + $0x10] sm:$0xf]
  %v21 = vld [vmem:[%s0 + $0x14] sm:$0xff]
  %v22 = vld [vmem:[%s0 + $0x1c] sm:$0xff]
  %v23 = vld [vmem:[%s0 + $0x24] sm:$0xf]
  %v24 = vld [vmem:[%s0 + $0x28] sm:$0xff]
  %v25 = vld [vmem:[%s0 + $0x30] sm:$0xff]
  %v26 = vld [vmem:[%s0 + $0x38] sm:$0xf]
  %v27 = vld [vmem:[%s0 + $0x3c] sm:$0xff]
  %v28 = vld [vmem:[%s0 + $0x44] sm:$0xff]
  %v29 = vld [vmem:[%s0 + $0x4c] sm:$0xf]
  %v30 = vld [vmem:[%s1] sm:$0xf]
  %v31 = vld [vmem:[%s1 + $0x4] sm:$0xf]
  %v32 = vld [vmem:[%s1 + $0x8] sm:$0xf]
  %v33 = vld [vmem:[%s1 + $0xc] sm:$0xf]
  %v34 = vld [vmem:[%s1 + $0x10] sm:$0xf]
  %v35 = vld [vmem:[%s1 + $0x14] sm:$0xf]
  %v36 = vld [vmem:[%s1 + $0x18] sm:$0xf]
  %v37 = vld [vmem:[%s1 + $0x1c] sm:$0xf]
  %v38 = vld [vmem:[%s1 + $0x20] sm:$0xf]
  %v39 = vld [vmem:[%s1 + $0x24] sm:$0xf]
  %v40 = vld [vmem:[%s1 + $0x28] sm:$0xf]
  %v41 = vld [vmem:[%s1 + $0x2c] sm:$0xf]
  %v42 = vld [vmem:[%s1 + $0x30] sm:$0xf]
  %v43 = vld [vmem:[%s1 + $0x34] sm:$0xf]
  %v44 = vld [vmem:[%s1 + $0x38] sm:$0xf]
  %v45 = vld [vmem:[%s1 + $0x3c] sm:$0xf]
  %v46 = vld [vmem:[%s1 + $0x40] sm:$0xf]
  %v47 = vld [vmem:[%s1 + $0x44] sm:$0xf]
  %v48 = vld [vmem:[%s1 + $0x48] sm:$0xf]
  %v49 = vld [vmem:[%s1 + $0x4c] sm:$0xf]
  %v50 = vld [vmem:[%s1 + $0x50] sm:$0xf]
  %v51 = vld [vmem:[%s1 + $0x54] sm:$0xf]
  %v52 = vld [vmem:[%s1 + $0x58] sm:$0xf]
  %v53 = vld [vmem:[%s1 + $0x5c] sm:$0xf]
  %v54 = vld [vmem:[%s1 + $0x60] sm:$0xf]
  %v55 = vld [vmem:[%s1 + $0x64] sm:$0xf]
  %v56 = vld [vmem:[%s1 + $0x68] sm:$0xf]
  %v57 = vld [vmem:[%s1 + $0x6c] sm:$0xf]
  %v58 = vld [vmem:[%s1 + $0x70] sm:$0xf]
  %v59 = vld [vmem:[%s1 + $0x74] sm:$0xf]
  %v60 = vld [vmem:[%s1 + $0x78] sm:$0xf]
  %v61 = vld [vmem:[%s1 + $0x7c] sm:$0xf]
  %v62 = vld [vmem:[%s1 + $0x80] sm:$0xf]
  %v63 = vld [vmem:[%s1 + $0x84] sm:$0xf]
  %v64 = vld [vmem:[%s1 + $0x88] sm:$0xf]
  %v65 = vld [vmem:[%s1 + $0x8c] sm:$0xf]
  %v66 = vld [vmem:[%s1 + $0x90] sm:$0xf]
  %v67 = vld [vmem:[%s1 + $0x94] sm:$0xf]
  %v68 = vld [vmem:[%s1 + $0x98] sm:$0xf]
  %v69 = vld [vmem:[%s1 + $0x9c] sm:$0xf]
  %v70 = vld [vmem:[%s1 + $0xa0] sm:$0xf]
  %v71 = vld [vmem:[%s1 + $0xa4] sm:$0xf]
  %v72 = vld [vmem:[%s1 + $0xa8] sm:$0xf]
  %v73 = vld [vmem:[%s1 + $0xac] sm:$0xf]
  %v74 = vld [vmem:[%s1 + $0xb0] sm:$0xf]
  %v75 = vld [vmem:[%s1 + $0xb4] sm:$0xf]
  %v76 = vld [vmem:[%s1 + $0xb8] sm:$0xf]
  %v77 = vld [vmem:[%s1 + $0xbc] sm:$0xf]
  %v78 = vld [vmem:[%s1 + $0xc0] sm:$0xf]
  %v79 = vld [vmem:[%s1 + $0xc4] sm:$0xf]
  %v80 = vld [vmem:[%s1 + $0xc8] sm:$0xf]
  %v81 = vld [vmem:[%s1 + $0xcc] sm:$0xf]
  %v82 = vld [vmem:[%s1 + $0xd0] sm:$0xf]
  %v83 = vld [vmem:[%s1 + $0xd4] sm:$0xf]
  %v84 = vld [vmem:[%s1 + $0xd8] sm:$0xf]
  %v85 = vld [vmem:[%s1 + $0xdc] sm:$0xf]
  %v86 = vld [vmem:[%s1 + $0xe0] sm:$0xf]
  %v87 = vld [vmem:[%s1 + $0xe4] sm:$0xf]
  %v88 = vld [vmem:[%s1 + $0xe8] sm:$0xf]
  %v89 = vld [vmem:[%s1 + $0xec] sm:$0xf]
  %v90 = vld [vmem:[%s1 + $0xf0] sm:$0xf]
  %v91 = vld [vmem:[%s1 + $0xf4] sm:$0xf]
  %v92 = vld [vmem:[%s1 + $0xf8] sm:$0xf]
  %v93 = vld [vmem:[%s1 + $0xfc] sm:$0xf]
  %v94 = vld [vmem:[%s1 + $0x100] sm:$0xf]
  %v95 = vld [vmem:[%s1 + $0x104] sm:$0xf]
  %v96 = vld [vmem:[%s1 + $0x108] sm:$0xf]
  %v97 = vld [vmem:[%s1 + $0x10c] sm:$0xf]
  %v98 = vld [vmem:[%s1 + $0x110] sm:$0xf]
  %v99 = vld [vmem:[%s1 + $0x114] sm:$0xf]
  %v100 = vld [vmem:[%s1 + $0x118] sm:$0xf]
  %v101 = vld [vmem:[%s1 + $0x11c] sm:$0xf]
  %v114 = vunpack.c.l.b16 %v18
  %v115 = vunpack.c.h.b16 %v18
  %v116 = vunpack.c.l.b16 %v19
  %v117 = vunpack.c.h.b16 %v19
  %v118 = vunpack.c.l.b16 %v20
  %v119 = vunpack.c.l.b16 %v21
  %v120 = vunpack.c.h.b16 %v21
  %v121 = vunpack.c.l.b16 %v22
  %v122 = vunpack.c.h.b16 %v22
  %v123 = vunpack.c.l.b16 %v23
  %v124 = vunpack.c.l.b16 %v24
  %v125 = vunpack.c.h.b16 %v24
  %v126 = vunpack.c.l.b16 %v25
  %v127 = vunpack.c.h.b16 %v25
  %v128 = vunpack.c.l.b16 %v26
  %v129 = vunpack.c.l.b16 %v27
  %v130 = vunpack.c.h.b16 %v27
  %v131 = vunpack.c.l.b16 %v28
  %v132 = vunpack.c.h.b16 %v28
  %v133 = vunpack.c.l.b16 %v29
  %v134 = vpack.c.b16 %v119, %v114
  %v135 = vpack.c.b16 %v120, %v115
  %v136 = vpack.c.b16 %v121, %v116
  %v137 = vpack.c.b16 %v122, %v117
  %v138 = vpack.c.b16 %v123, %v118
  %v139 = vpack.c.b16 %v129, %v124
  %v140 = vpack.c.b16 %v130, %v125
  %v141 = vpack.c.b16 %v131, %v126
  %v142 = vpack.c.b16 %v132, %v127
  %v143 = vpack.c.b16 %v133, %v128
  %v224 = vunpack.c.l.b16 %v30
  %v225 = vunpack.c.l.b16 %v31
  %v226 = vunpack.c.l.b16 %v32
  %v227 = vunpack.c.l.b16 %v33
  %v228 = vunpack.c.l.b16 %v34
  %v229 = vunpack.c.l.b16 %v35
  %v230 = vunpack.c.l.b16 %v36
  %v231 = vunpack.c.l.b16 %v37
  %v232 = vunpack.c.l.b16 %v38
  %v233 = vunpack.c.l.b16 %v39
  %v234 = vunpack.c.l.b16 %v40
  %v235 = vunpack.c.l.b16 %v41
  %v236 = vunpack.c.l.b16 %v42
  %v237 = vunpack.c.l.b16 %v43
  %v238 = vunpack.c.l.b16 %v44
  %v239 = vunpack.c.l.b16 %v45
  %v240 = vunpack.c.l.b16 %v46
  %v241 = vunpack.c.l.b16 %v47
  %v242 = vunpack.c.l.b16 %v48
  %v243 = vunpack.c.l.b16 %v49
  %v244 = vunpack.c.l.b16 %v50
  %v245 = vunpack.c.l.b16 %v51
  %v246 = vunpack.c.l.b16 %v52
  %v247 = vunpack.c.l.b16 %v53
  %v248 = vunpack.c.l.b16 %v54
  %v249 = vunpack.c.l.b16 %v55
  %v250 = vunpack.c.l.b16 %v56
  %v251 = vunpack.c.l.b16 %v57
  %v252 = vunpack.c.l.b16 %v58
  %v253 = vunpack.c.l.b16 %v59
  %v254 = vunpack.c.l.b16 %v60
  %v255 = vunpack.c.l.b16 %v61
  %v256 = vunpack.c.l.b16 %v62
  %v257 = vunpack.c.l.b16 %v63
  %v258 = vunpack.c.l.b16 %v64
  %v259 = vunpack.c.l.b16 %v65
  %v260 = vunpack.c.l.b16 %v66
  %v261 = vunpack.c.l.b16 %v67
  %v262 = vunpack.c.l.b16 %v68
  %v263 = vunpack.c.l.b16 %v69
  %v264 = vunpack.c.l.b16 %v70
  %v265 = vunpack.c.l.b16 %v71
  %v266 = vunpack.c.l.b16 %v72
  %v267 = vunpack.c.l.b16 %v73
  %v268 = vunpack.c.l.b16 %v74
  %v269 = vunpack.c.l.b16 %v75
  %v270 = vunpack.c.l.b16 %v76
  %v271 = vunpack.c.l.b16 %v77
  %v272 = vunpack.c.l.b16 %v78
  %v273 = vunpack.c.l.b16 %v79
  %v274 = vunpack.c.l.b16 %v80
  %v275 = vunpack.c.l.b16 %v81
  %v276 = vunpack.c.l.b16 %v82
  %v277 = vunpack.c.l.b16 %v83
  %v278 = vunpack.c.l.b16 %v84
  %v279 = vunpack.c.l.b16 %v85
  %v280 = vunpack.c.l.b16 %v86
  %v281 = vunpack.c.l.b16 %v87
  %v282 = vunpack.c.l.b16 %v88
  %v283 = vunpack.c.l.b16 %v89
  %v284 = vunpack.c.l.b16 %v90
  %v285 = vunpack.c.l.b16 %v91
  %v286 = vunpack.c.l.b16 %v92
  %v287 = vunpack.c.l.b16 %v93
  %v288 = vunpack.c.l.b16 %v94
  %v289 = vunpack.c.l.b16 %v95
  %v290 = vunpack.c.l.b16 %v96
  %v291 = vunpack.c.l.b16 %v97
  %v292 = vunpack.c.l.b16 %v98
  %v293 = vunpack.c.l.b16 %v99
  %v294 = vunpack.c.l.b16 %v100
  %v295 = vunpack.c.l.b16 %v101
  %v296 = vpack.c.b16 %v225, %v224
  %v297 = vpack.c.b16 %v227, %v226
  %v298 = vpack.c.b16 %v229, %v228
  %v299 = vpack.c.b16 %v231, %v230
  %v300 = vpack.c.b16 %v233, %v232
  %v301 = vpack.c.b16 %v235, %v234
  %v302 = vpack.c.b16 %v237, %v236
  %v303 = vpack.c.b16 %v239, %v238
  %v304 = vpack.c.b16 %v241, %v240
  %v305 = vpack.c.b16 %v243, %v242
  %v306 = vpack.c.b16 %v245, %v244
  %v307 = vpack.c.b16 %v247, %v246
  %v308 = vpack.c.b16 %v249, %v248
  %v309 = vpack.c.b16 %v251, %v250
  %v310 = vpack.c.b16 %v253, %v252
  %v311 = vpack.c.b16 %v255, %v254
  %v312 = vpack.c.b16 %v257, %v256
  %v313 = vpack.c.b16 %v259, %v258
  %v314 = vpack.c.b16 %v261, %v260
  %v315 = vpack.c.b16 %v263, %v262
  %v316 = vpack.c.b16 %v265, %v264
  %v317 = vpack.c.b16 %v267, %v266
  %v318 = vpack.c.b16 %v269, %v268
  %v319 = vpack.c.b16 %v271, %v270
  %v320 = vpack.c.b16 %v273, %v272
  %v321 = vpack.c.b16 %v275, %v274
  %v322 = vpack.c.b16 %v277, %v276
  %v323 = vpack.c.b16 %v279, %v278
  %v324 = vpack.c.b16 %v281, %v280
  %v325 = vpack.c.b16 %v283, %v282
  %v326 = vpack.c.b16 %v285, %v284
  %v327 = vpack.c.b16 %v287, %v286
  %v328 = vpack.c.b16 %v289, %v288
  %v329 = vpack.c.b16 %v291, %v290
  %v330 = vpack.c.b16 %v293, %v292
  %v331 = vpack.c.b16 %v295, %v294
  %vm368 = vcmask 523264
  %v370 = vsel %vm368, %v138, 0
  %v373 = vsel %vm368, %v143, 0
  %375 = vmatprep.subr.bf16.mxu0 0
  %376 = vmatpush1.bf16.msra.mxu0 %v296
  %377 = vmatprep.subr.bf16.mxu0 0
  %378 = vmatpush1.bf16.msra.mxu0 %v297
  %379 = vmatprep.subr.bf16.mxu0 0
  %380 = vmatpush1.bf16.msra.mxu0 %v298
  %381 = vmatprep.subr.bf16.mxu0 0
  %382 = vmatpush1.bf16.msra.mxu0 %v299
  %383 = vmatprep.subr.bf16.mxu0 0
  %384 = vmatpush1.bf16.msra.mxu0 %v300
  %385 = vmatprep.subr.bf16.mxu0 0
  %386 = vmatpush1.bf16.msra.mxu0 %v301
  %387 = vmatprep.subr.bf16.mxu0 0
  %388 = vmatpush1.bf16.msra.mxu0 %v302
  %389 = vmatprep.subr.bf16.mxu0 0
  %390 = vmatpush1.bf16.msra.mxu0 %v303
  %391 = vmatprep.subr.bf16.mxu0 0
  %392 = vmatpush1.bf16.msra.mxu0 %v304
  %393 = vmatprep.subr.bf16.mxu0 0
  %394 = vmatpush1.bf16.msra.mxu0 %v305
  %395 = vmatprep.subr.bf16.mxu0 0
  %396 = vmatpush1.bf16.msra.mxu0 %v306
  %397 = vmatprep.subr.bf16.mxu0 0
  %398 = vmatpush1.bf16.msra.mxu0 %v307
  %399 = vmatprep.subr.bf16.mxu0 0
  %400 = vmatpush1.bf16.msra.mxu0 %v308
  %401 = vmatprep.subr.bf16.mxu0 0
  %402 = vmatpush1.bf16.msra.mxu0 %v309
  %403 = vmatprep.subr.bf16.mxu0 0
  %404 = vmatpush1.bf16.msra.mxu0 %v310
  %405 = vmatprep.subr.bf16.mxu0 0
  %406 = vmatpush1.bf16.msra.mxu0 %v311
  %407 = vmatprep.mubr.bf16.mxu0 %v135
  %408 = vmatmul.mubr.bf16.gmra.mrb[0].mxu0 %v134
  %v409 = vpop.f32.mrb[0].mxu0
  %v410 = vadd.f32 0.0, %v409
  %v411 = vpop.f32.mrb[0].mxu0
  %v412 = vpop.f32.mrb[0].mxu0
  %v413 = vadd.f32 0.0, %v412
  %v414 = vpop.f32.mrb[0].mxu0
  %415 = vmatprep.mubr.bf16.mxu0 %v140
  %416 = vmatmul.mubr.bf16.gmra.mrb[0].mxu0 %v139
  %v417 = vpop.f32.mrb[0].mxu0
  %v418 = vadd.f32 0.0, %v417
  %v419 = vpop.f32.mrb[0].mxu0
  %v420 = vpop.f32.mrb[0].mxu0
  %v421 = vadd.f32 0.0, %v420
  %v422 = vpop.f32.mrb[0].mxu0
  %423 = vdwg.mxu0
  %424 = vmatprep.subr.bf16.mxu0 0
  %425 = vmatpush1.bf16.msra.mxu0 %v312
  %426 = vmatprep.subr.bf16.mxu0 0
  %427 = vmatpush1.bf16.msra.mxu0 %v313
  %428 = vmatprep.subr.bf16.mxu0 0
  %429 = vmatpush1.bf16.msra.mxu0 %v314
  %430 = vmatprep.subr.bf16.mxu0 0
  %431 = vmatpush1.bf16.msra.mxu0 %v315
  %432 = vmatprep.subr.bf16.mxu0 0
  %433 = vmatpush1.bf16.msra.mxu0 %v316
  %434 = vmatprep.subr.bf16.mxu0 0
  %435 = vmatpush1.bf16.msra.mxu0 %v317
  %436 = vmatprep.subr.bf16.mxu0 0
  %437 = vmatpush1.bf16.msra.mxu0 %v318
  %438 = vmatprep.subr.bf16.mxu0 0
  %439 = vmatpush1.bf16.msra.mxu0 %v319
  %440 = vmatprep.subr.bf16.mxu0 0
  %441 = vmatpush1.bf16.msra.mxu0 %v320
  %442 = vmatprep.subr.bf16.mxu0 0
  %443 = vmatpush1.bf16.msra.mxu0 %v321
  %444 = vmatprep.subr.bf16.mxu0 0
  %445 = vmatpush1.bf16.msra.mxu0 %v322
  %446 = vmatprep.subr.bf16.mxu0 0
  %447 = vmatpush1.bf16.msra.mxu0 %v323
  %448 = vmatprep.subr.bf16.mxu0 0
  %449 = vmatpush1.bf16.msra.mxu0 %v324
  %450 = vmatprep.subr.bf16.mxu0 0
  %451 = vmatpush1.bf16.msra.mxu0 %v325
  %452 = vmatprep.subr.bf16.mxu0 0
  %453 = vmatpush1.bf16.msra.mxu0 %v326
  %454 = vmatprep.subr.bf16.mxu0 0
  %455 = vmatpush1.bf16.msra.mxu0 %v327
  %456 = vmatprep.mubr.bf16.mxu0 %v137
  %457 = vmatmul.mubr.bf16.gmra.mrb[0].mxu0 %v136
  %v458 = vpop.f32.mrb[0].mxu0
  %v459 = vadd.f32 %v410, %v458
  %v460 = vpop.f32.mrb[0].mxu0
  %v461 = vpop.f32.mrb[0].mxu0
  %v462 = vadd.f32 %v413, %v461
  %v463 = vpop.f32.mrb[0].mxu0
  %464 = vmatprep.mubr.bf16.mxu0 %v142
  %465 = vmatmul.mubr.bf16.gmra.mrb[0].mxu0 %v141
  %v466 = vpop.f32.mrb[0].mxu0
  %v467 = vadd.f32 %v418, %v466
  %v468 = vpop.f32.mrb[0].mxu0
  %v469 = vpop.f32.mrb[0].mxu0
  %v470 = vadd.f32 %v421, %v469
  %v471 = vpop.f32.mrb[0].mxu0
  %472 = vdwg.mxu0
  %473 = vmatprep.subr.bf16.mxu0 0
  %474 = vmatpush1.bf16.msra.mxu0 %v328
  %475 = vmatprep.subr.bf16.mxu0 0
  %476 = vmatpush1.bf16.msra.mxu0 %v329
  %477 = vmatprep.subr.bf16.mxu0 0
  %478 = vmatpush1.bf16.msra.mxu0 %v330
  %479 = vmatprep.subr.bf16.mxu0 0
  %480 = vmatpush1.bf16.msra.mxu0 %v331
  %481 = vmatprep.subr.bf16.mxu0 0
  %482 = vmatpush1.bf16.msra.mxu0 0
  %483 = vmatprep.subr.bf16.mxu0 0
  %484 = vmatpush1.bf16.msra.mxu0 0
  %485 = vmatprep.subr.bf16.mxu0 0
  %486 = vmatpush1.bf16.msra.mxu0 0
  %487 = vmatprep.subr.bf16.mxu0 0
  %488 = vmatpush1.bf16.msra.mxu0 0
  %489 = vmatprep.subr.bf16.mxu0 0
  %490 = vmatpush1.bf16.msra.mxu0 0
  %491 = vmatprep.subr.bf16.mxu0 0
  %492 = vmatpush1.bf16.msra.mxu0 0
  %493 = vmatprep.subr.bf16.mxu0 0
  %494 = vmatpush1.bf16.msra.mxu0 0
  %495 = vmatprep.subr.bf16.mxu0 0
  %496 = vmatpush1.bf16.msra.mxu0 0
  %497 = vmatprep.subr.bf16.mxu0 0
  %498 = vmatpush1.bf16.msra.mxu0 0
  %499 = vmatprep.subr.bf16.mxu0 0
  %500 = vmatpush1.bf16.msra.mxu0 0
  %501 = vmatprep.subr.bf16.mxu0 0
  %502 = vmatpush1.bf16.msra.mxu0 0
  %503 = vmatprep.subr.bf16.mxu0 0
  %504 = vmatpush1.bf16.msra.mxu0 0
  %505 = vmatprep.mubr.bf16.mxu0 0
  %506 = vmatmul.mubr.bf16.gmra.mrb[0].mxu0 %v370
  %v507 = vpop.f32.mrb[0].mxu0
  %v508 = vadd.f32 %v459, %v507
  %v509 = vpop.f32.mrb[0].mxu0
  %v510 = vpop.f32.mrb[0].mxu0
  %v511 = vadd.f32 %v462, %v510
  %v512 = vpop.f32.mrb[0].mxu0
  %513 = vmatprep.mubr.bf16.mxu0 0
  %514 = vmatmul.mubr.bf16.gmra.mrb[0].mxu0 %v373
  %v515 = vpop.f32.mrb[0].mxu0
  %v516 = vadd.f32 %v467, %v515
  %v517 = vpop.f32.mrb[0].mxu0
  %v518 = vpop.f32.mrb[0].mxu0
  %v519 = vadd.f32 %v470, %v518
  %v520 = vpop.f32.mrb[0].mxu0
  %521 = vdwg.mxu0
  %v522 = vld [vmem:[%s2] sm:$0x1]
  %v523 = vlaneseq
  %v524 = vshrl.u32 %v523, 7
  %v525 = vsub.s32 0, %v524
  %v526 = vrot.slane %v522, %v525
  %v527 = vmul.f32 %v508, %v526
  %v528 = vmul.f32 %v511, %v526
  %v529 = vmul.f32 %v516, %v526
  %v530 = vmul.f32 %v519, %v526
  %v531 = vld [vmem:[%s2 + $0x1] sm:$0x1]
  %v532 = vlaneseq
  %v533 = vshrl.u32 %v532, 7
  %v534 = vsub.s32 0, %v533
  %v535 = vrot.slane %v531, %v534
  %v536 = vadd.f32 %v527, %v535
  %v537 = vadd.f32 %v528, %v535
  %v538 = vadd.f32 %v529, %v535
  %v539 = vadd.f32 %v530, %v535
  %vm540 = vcmp.gt.f32.partialorder %v536, 0.0
  %vm541 = vcmp.gt.f32.partialorder %v537, 0.0
  %vm542 = vcmp.gt.f32.partialorder %v538, 0.0
  %vm543 = vcmp.gt.f32.partialorder %v539, 0.0
  %v544 = vld [vmem:[%s2 + $0x2] sm:$0x1]
  %v545 = vlaneseq
  %v546 = vshrl.u32 %v545, 7
  %v547 = vsub.s32 0, %v546
  %v548 = vrot.slane %v544, %v547
  %v549 = vmul.f32 %v548, %v536
  %v550 = vmul.f32 %v548, %v537
  %v551 = vmul.f32 %v548, %v538
  %v552 = vmul.f32 %v548, %v539
  %v553 = vsel %vm540, %v536, %v549
  %v554 = vsel %vm541, %v537, %v550
  %v555 = vsel %vm542, %v538, %v551
  %v556 = vsel %vm543, %v539, %v552
  %v557 = vld [vmem:[%s3] sm:$0xf]
  %v558 = vld [vmem:[%s3 + $0x4] sm:$0xf]
  %v559 = vld [vmem:[%s3 + $0x8] sm:$0xf]
  %v560 = vld [vmem:[%s3 + $0xc] sm:$0xf]
  %v561 = vunpack.c.l.bf16 %v557
  %v562 = vunpack.c.l.bf16 %v558
  %v563 = vunpack.c.l.bf16 %v559
  %v564 = vunpack.c.l.bf16 %v560
  %v565 = vadd.f32 %v553, %v561
  %v566 = vadd.f32 %v554, %v562
  %v567 = vadd.f32 %v555, %v563
  %v568 = vadd.f32 %v556, %v564
  %vm569 = vcmp.gt.f32.partialorder %v565, 0.0
  %vm570 = vcmp.gt.f32.partialorder %v566, 0.0
  %vm571 = vcmp.gt.f32.partialorder %v567, 0.0
  %vm572 = vcmp.gt.f32.partialorder %v568, 0.0
  %v573 = vld [vmem:[%s2 + $0x3] sm:$0x1]
  %v574 = vlaneseq
  %v575 = vshrl.u32 %v574, 7
  %v576 = vsub.s32 0, %v575
  %v577 = vrot.slane %v573, %v576
  %v578 = vmul.f32 %v577, %v565
  %v579 = vmul.f32 %v577, %v566
  %v580 = vmul.f32 %v577, %v567
  %v581 = vmul.f32 %v577, %v568
  %v582 = vsel %vm569, %v565, %v578
  %v583 = vsel %vm570, %v566, %v579
  %v584 = vsel %vm571, %v567, %v580
  %v585 = vsel %vm572, %v568, %v581
  %v586 = vpack.c.bf16 %v583, %v582
  %v587 = vpack.c.bf16 %v585, %v584
  %v590 = vunpack.c.l.b16 %v586
  %v591 = vunpack.c.h.b16 %v586
  %v592 = vunpack.c.l.b16 %v587
  %v593 = vunpack.c.h.b16 %v587
  %v594 = vpack.c.b16 %v590, %v590
  %v595 = vpack.c.b16 %v591, %v591
  %v596 = vpack.c.b16 %v592, %v592
  %v597 = vpack.c.b16 %v593, %v593
  %602 = vst [vmem:[%s4] sm:$0xf] %v594
  %603 = vst [vmem:[%s4 + $0x4] sm:$0xf] %v595
  %604 = vst [vmem:[%s4 + $0x8] sm:$0xf] %v596
  %605 = vst [vmem:[%s4 + $0xc] sm:$0xf] %v597
  // Predicated region
  $region18: #{_lambda_.18} parent=0 // pred_check
    _
  $region19: #{_lambda_.18} parent=0 // pred_check_branch
    %607 = sbr.rel (0) target = $region21
  $region20: #{_lambda_.18} parent=0 // pred_region
    _
  $region21: #{_lambda_.18} parent=0 // pred_fallthru
    _
  // Predicated region
  $region22: #{_lambda_.18} parent=0 // pred_check
    _
  $region23: #{_lambda_.18} parent=0 // pred_check_branch
    %609 = sbr.rel (0) target = $region25
  $region24: #{_lambda_.18} parent=0 // pred_region
    _
  $region25: #{_lambda_.18} parent=0 // pred_fallthru
    _

// kernel: _lambda_.19
$region0: #{_lambda_.19}
  #allocation0 [shape = 'u32[]', space=smem, size = 0x4, offset = 0x4, fixed_abs, tag = 'smem constant byte address 0x4 - core index']
  #allocation1 [shape = 'u32[144,128]{1,0:T(1,128)}', space=vmem, size = 0x12000, scoped, tag = 'internal scratch']
  %s0 = inlined_call_operand.vmem [shape: bf16[8,576], index: 0, kind: input, shape index: {}]
  %s1 = inlined_call_operand.vmem [shape: bf16[576,256], index: 1, kind: input, shape index: {}]
  %s2 = inlined_call_operand.vmem [shape: f32[8,256], index: 2, kind: input, shape index: {}]
  %s3 = inlined_call_operand.vmem [shape: bf16[8,256], index: 3, kind: output, shape index: {}]
  %s4 = sld [smem:[#allocation0]]
  $region22: #{_lambda_.19} parent=0
    _
  %s6 = ssub.s32 1, %s4
  %s7 = scalar_select 0, %s6, %s4
  // Predicated region
  $region2: #{_lambda_.19} parent=0 // pred_check
    _
  $region3: #{_lambda_.19} parent=0 // pred_check_branch
    %9 = sbr.rel (0) target = $region5
  $region4: #{_lambda_.19} parent=0 // pred_region
    _
  $region5: #{_lambda_.19} parent=0 // pred_fallthru
    _
  // Predicated region
  $region6: #{_lambda_.19} parent=0 // pred_check
    _
  $region7: #{_lambda_.19} parent=0 // pred_check_branch
    %11 = sbr.rel (0) target = $region9
  $region8: #{_lambda_.19} parent=0 // pred_region
    _
  $region9: #{_lambda_.19} parent=0 // pred_fallthru
    _
  // Predicated region
  $region10: #{_lambda_.19} parent=0 // pred_check
    _
  $region11: #{_lambda_.19} parent=0 // pred_check_branch
    %13 = sbr.rel (0) target = $region13
  $region12: #{_lambda_.19} parent=0 // pred_region
    _
  $region13: #{_lambda_.19} parent=0 // pred_fallthru
    _
  %v15 = vld [vmem:[%s0] sm:$0xff]
  %v16 = vld [vmem:[%s0 + $0x8] sm:$0xff]
  %v17 = vld [vmem:[%s0 + $0x10] sm:$0xf]
  %v18 = vld [vmem:[%s1] sm:$0xff]
  %v19 = vld [vmem:[%s1 + $0x8] sm:$0xff]
  %v20 = vld [vmem:[%s1 + $0x10] sm:$0xff]
  %v21 = vld [vmem:[%s1 + $0x18] sm:$0xff]
  %v22 = vld [vmem:[%s1 + $0x20] sm:$0xff]
  %v23 = vld [vmem:[%s1 + $0x28] sm:$0xff]
  %v24 = vld [vmem:[%s1 + $0x30] sm:$0xff]
  %v25 = vld [vmem:[%s1 + $0x38] sm:$0xff]
  %v26 = vld [vmem:[%s1 + $0x40] sm:$0xff]
  %v27 = vld [vmem:[%s1 + $0x48] sm:$0xff]
  %v28 = vld [vmem:[%s1 + $0x50] sm:$0xff]
  %v29 = vld [vmem:[%s1 + $0x58] sm:$0xff]
  %v30 = vld [vmem:[%s1 + $0x60] sm:$0xff]
  %v31 = vld [vmem:[%s1 + $0x68] sm:$0xff]
  %v32 = vld [vmem:[%s1 + $0x70] sm:$0xff]
  %v33 = vld [vmem:[%s1 + $0x78] sm:$0xff]
  %v34 = vld [vmem:[%s1 + $0x80] sm:$0xff]
  %v35 = vld [vmem:[%s1 + $0x88] sm:$0xff]
  %v36 = vld [vmem:[%s1 + $0x90] sm:$0xff]
  %v37 = vld [vmem:[%s1 + $0x98] sm:$0xff]
  %v38 = vld [vmem:[%s1 + $0xa0] sm:$0xff]
  %v39 = vld [vmem:[%s1 + $0xa8] sm:$0xff]
  %v40 = vld [vmem:[%s1 + $0xb0] sm:$0xff]
  %v41 = vld [vmem:[%s1 + $0xb8] sm:$0xff]
  %v42 = vld [vmem:[%s1 + $0xc0] sm:$0xff]
  %v43 = vld [vmem:[%s1 + $0xc8] sm:$0xff]
  %v44 = vld [vmem:[%s1 + $0xd0] sm:$0xff]
  %v45 = vld [vmem:[%s1 + $0xd8] sm:$0xff]
  %v46 = vld [vmem:[%s1 + $0xe0] sm:$0xff]
  %v47 = vld [vmem:[%s1 + $0xe8] sm:$0xff]
  %v48 = vld [vmem:[%s1 + $0xf0] sm:$0xff]
  %v49 = vld [vmem:[%s1 + $0xf8] sm:$0xff]
  %v50 = vld [vmem:[%s1 + $0x100] sm:$0xff]
  %v51 = vld [vmem:[%s1 + $0x108] sm:$0xff]
  %v52 = vld [vmem:[%s1 + $0x110] sm:$0xff]
  %v53 = vld [vmem:[%s1 + $0x118] sm:$0xff]
  %v54 = vld [vmem:[%s1 + $0x120] sm:$0xff]
  %v55 = vld [vmem:[%s1 + $0x128] sm:$0xff]
  %v56 = vld [vmem:[%s1 + $0x130] sm:$0xff]
  %v57 = vld [vmem:[%s1 + $0x138] sm:$0xff]
  %v58 = vld [vmem:[%s1 + $0x140] sm:$0xff]
  %v59 = vld [vmem:[%s1 + $0x148] sm:$0xff]
  %v60 = vld [vmem:[%s1 + $0x150] sm:$0xff]
  %v61 = vld [vmem:[%s1 + $0x158] sm:$0xff]
  %v62 = vld [vmem:[%s1 + $0x160] sm:$0xff]
  %v63 = vld [vmem:[%s1 + $0x168] sm:$0xff]
  %v64 = vld [vmem:[%s1 + $0x170] sm:$0xff]
  %v65 = vld [vmem:[%s1 + $0x178] sm:$0xff]
  %v66 = vld [vmem:[%s1 + $0x180] sm:$0xff]
  %v67 = vld [vmem:[%s1 + $0x188] sm:$0xff]
  %v68 = vld [vmem:[%s1 + $0x190] sm:$0xff]
  %v69 = vld [vmem:[%s1 + $0x198] sm:$0xff]
  %v70 = vld [vmem:[%s1 + $0x1a0] sm:$0xff]
  %v71 = vld [vmem:[%s1 + $0x1a8] sm:$0xff]
  %v72 = vld [vmem:[%s1 + $0x1b0] sm:$0xff]
  %v73 = vld [vmem:[%s1 + $0x1b8] sm:$0xff]
  %v74 = vld [vmem:[%s1 + $0x1c0] sm:$0xff]
  %v75 = vld [vmem:[%s1 + $0x1c8] sm:$0xff]
  %v76 = vld [vmem:[%s1 + $0x1d0] sm:$0xff]
  %v77 = vld [vmem:[%s1 + $0x1d8] sm:$0xff]
  %v78 = vld [vmem:[%s1 + $0x1e0] sm:$0xff]
  %v79 = vld [vmem:[%s1 + $0x1e8] sm:$0xff]
  %v80 = vld [vmem:[%s1 + $0x1f0] sm:$0xff]
  %v81 = vld [vmem:[%s1 + $0x1f8] sm:$0xff]
  %v82 = vld [vmem:[%s1 + $0x200] sm:$0xff]
  %v83 = vld [vmem:[%s1 + $0x208] sm:$0xff]
  %v84 = vld [vmem:[%s1 + $0x210] sm:$0xff]
  %v85 = vld [vmem:[%s1 + $0x218] sm:$0xff]
  %v86 = vld [vmem:[%s1 + $0x220] sm:$0xff]
  %v87 = vld [vmem:[%s1 + $0x228] sm:$0xff]
  %v88 = vld [vmem:[%s1 + $0x230] sm:$0xff]
  %v89 = vld [vmem:[%s1 + $0x238] sm:$0xff]
  %v93 = vunpack.c.l.b16 %v15
  %v94 = vunpack.c.h.b16 %v15
  %v95 = vunpack.c.l.b16 %v16
  %v96 = vunpack.c.h.b16 %v16
  %v97 = vunpack.c.l.b16 %v17
  %v98 = vpack.c.b16 %v93, %v93
  %v99 = vpack.c.b16 %v94, %v94
  %v100 = vpack.c.b16 %v95, %v95
  %v101 = vpack.c.b16 %v96, %v96
  %v102 = vpack.c.b16 %v97, %v97
  %v179 = vunpack.c.l.b16 %v18
  %v180 = vunpack.c.h.b16 %v18
  %v181 = vunpack.c.l.b16 %v19
  %v182 = vunpack.c.h.b16 %v19
  %v183 = vunpack.c.l.b16 %v20
  %v184 = vunpack.c.h.b16 %v20
  %v185 = vunpack.c.l.b16 %v21
  %v186 = vunpack.c.h.b16 %v21
  %v187 = vunpack.c.l.b16 %v22
  %v188 = vunpack.c.h.b16 %v22
  %v189 = vunpack.c.l.b16 %v23
  %v190 = vunpack.c.h.b16 %v23
  %v191 = vunpack.c.l.b16 %v24
  %v192 = vunpack.c.h.b16 %v24
  %v193 = vunpack.c.l.b16 %v25
  %v194 = vunpack.c.h.b16 %v25
  %v195 = vunpack.c.l.b16 %v26
  %v196 = vunpack.c.h.b16 %v26
  %v197 = vunpack.c.l.b16 %v27
  %v198 = vunpack.c.h.b16 %v27
  %v199 = vunpack.c.l.b16 %v28
  %v200 = vunpack.c.h.b16 %v28
  %v201 = vunpack.c.l.b16 %v29
  %v202 = vunpack.c.h.b16 %v29
  %v203 = vunpack.c.l.b16 %v30
  %v204 = vunpack.c.h.b16 %v30
  %v205 = vunpack.c.l.b16 %v31
  %v206 = vunpack.c.h.b16 %v31
  %v207 = vunpack.c.l.b16 %v32
  %v208 = vunpack.c.h.b16 %v32
  %v209 = vunpack.c.l.b16 %v33
  %v210 = vunpack.c.h.b16 %v33
  %v211 = vunpack.c.l.b16 %v34
  %v212 = vunpack.c.h.b16 %v34
  %v213 = vunpack.c.l.b16 %v35
  %v214 = vunpack.c.h.b16 %v35
  %v215 = vunpack.c.l.b16 %v36
  %v216 = vunpack.c.h.b16 %v36
  %v217 = vunpack.c.l.b16 %v37
  %v218 = vunpack.c.h.b16 %v37
  %v219 = vunpack.c.l.b16 %v38
  %v220 = vunpack.c.h.b16 %v38
  %v221 = vunpack.c.l.b16 %v39
  %v222 = vunpack.c.h.b16 %v39
  %v223 = vunpack.c.l.b16 %v40
  %v224 = vunpack.c.h.b16 %v40
  %v225 = vunpack.c.l.b16 %v41
  %v226 = vunpack.c.h.b16 %v41
  %v227 = vunpack.c.l.b16 %v42
  %v228 = vunpack.c.h.b16 %v42
  %v229 = vunpack.c.l.b16 %v43
  %v230 = vunpack.c.h.b16 %v43
  %v231 = vunpack.c.l.b16 %v44
  %v232 = vunpack.c.h.b16 %v44
  %v233 = vunpack.c.l.b16 %v45
  %v234 = vunpack.c.h.b16 %v45
  %v235 = vunpack.c.l.b16 %v46
  %v236 = vunpack.c.h.b16 %v46
  %v237 = vunpack.c.l.b16 %v47
  %v238 = vunpack.c.h.b16 %v47
  %v239 = vunpack.c.l.b16 %v48
  %v240 = vunpack.c.h.b16 %v48
  %v241 = vunpack.c.l.b16 %v49
  %v242 = vunpack.c.h.b16 %v49
  %v243 = vunpack.c.l.b16 %v50
  %v244 = vunpack.c.h.b16 %v50
  %v245 = vunpack.c.l.b16 %v51
  %v246 = vunpack.c.h.b16 %v51
  %v247 = vunpack.c.l.b16 %v52
  %v248 = vunpack.c.h.b16 %v52
  %v249 = vunpack.c.l.b16 %v53
  %v250 = vunpack.c.h.b16 %v53
  %v251 = vunpack.c.l.b16 %v54
  %v252 = vunpack.c.h.b16 %v54
  %v253 = vunpack.c.l.b16 %v55
  %v254 = vunpack.c.h.b16 %v55
  %v255 = vunpack.c.l.b16 %v56
  %v256 = vunpack.c.h.b16 %v56
  %v257 = vunpack.c.l.b16 %v57
  %v258 = vunpack.c.h.b16 %v57
  %v259 = vunpack.c.l.b16 %v58
  %v260 = vunpack.c.h.b16 %v58
  %v261 = vunpack.c.l.b16 %v59
  %v262 = vunpack.c.h.b16 %v59
  %v263 = vunpack.c.l.b16 %v60
  %v264 = vunpack.c.h.b16 %v60
  %v265 = vunpack.c.l.b16 %v61
  %v266 = vunpack.c.h.b16 %v61
  %v267 = vunpack.c.l.b16 %v62
  %v268 = vunpack.c.h.b16 %v62
  %v269 = vunpack.c.l.b16 %v63
  %v270 = vunpack.c.h.b16 %v63
  %v271 = vunpack.c.l.b16 %v64
  %v272 = vunpack.c.h.b16 %v64
  %v273 = vunpack.c.l.b16 %v65
  %v274 = vunpack.c.h.b16 %v65
  %v275 = vunpack.c.l.b16 %v66
  %v276 = vunpack.c.h.b16 %v66
  %v277 = vunpack.c.l.b16 %v67
  %v278 = vunpack.c.h.b16 %v67
  %v279 = vunpack.c.l.b16 %v68
  %v280 = vunpack.c.h.b16 %v68
  %v281 = vunpack.c.l.b16 %v69
  %v282 = vunpack.c.h.b16 %v69
  %v283 = vunpack.c.l.b16 %v70
  %v284 = vunpack.c.h.b16 %v70
  %v285 = vunpack.c.l.b16 %v71
  %v286 = vunpack.c.h.b16 %v71
  %v287 = vunpack.c.l.b16 %v72
  %v288 = vunpack.c.h.b16 %v72
  %v289 = vunpack.c.l.b16 %v73
  %v290 = vunpack.c.h.b16 %v73
  %v291 = vunpack.c.l.b16 %v74
  %v292 = vunpack.c.h.b16 %v74
  %v293 = vunpack.c.l.b16 %v75
  %v294 = vunpack.c.h.b16 %v75
  %v295 = vunpack.c.l.b16 %v76
  %v296 = vunpack.c.h.b16 %v76
  %v297 = vunpack.c.l.b16 %v77
  %v298 = vunpack.c.h.b16 %v77
  %v299 = vunpack.c.l.b16 %v78
  %v300 = vunpack.c.h.b16 %v78
  %v301 = vunpack.c.l.b16 %v79
  %v302 = vunpack.c.h.b16 %v79
  %v303 = vunpack.c.l.b16 %v80
  %v304 = vunpack.c.h.b16 %v80
  %v305 = vunpack.c.l.b16 %v81
  %v306 = vunpack.c.h.b16 %v81
  %v307 = vunpack.c.l.b16 %v82
  %v308 = vunpack.c.h.b16 %v82
  %v309 = vunpack.c.l.b16 %v83
  %v310 = vunpack.c.h.b16 %v83
  %v311 = vunpack.c.l.b16 %v84
  %v312 = vunpack.c.h.b16 %v84
  %v313 = vunpack.c.l.b16 %v85
  %v314 = vunpack.c.h.b16 %v85
  %v315 = vunpack.c.l.b16 %v86
  %v316 = vunpack.c.h.b16 %v86
  %v317 = vunpack.c.l.b16 %v87
  %v318 = vunpack.c.h.b16 %v87
  %v319 = vunpack.c.l.b16 %v88
  %v320 = vunpack.c.h.b16 %v88
  %v321 = vunpack.c.l.b16 %v89
  %v322 = vunpack.c.h.b16 %v89
  %v323 = vpack.c.b16 %v181, %v179
  %v324 = vpack.c.b16 %v182, %v180
  %v325 = vpack.c.b16 %v185, %v183
  %v326 = vpack.c.b16 %v186, %v184
  %v327 = vpack.c.b16 %v189, %v187
  %v328 = vpack.c.b16 %v190, %v188
  %v329 = vpack.c.b16 %v193, %v191
  %v330 = vpack.c.b16 %v194, %v192
  %v331 = vpack.c.b16 %v197, %v195
  %v332 = vpack.c.b16 %v198, %v196
  %v333 = vpack.c.b16 %v201, %v199
  %v334 = vpack.c.b16 %v202, %v200
  %v335 = vpack.c.b16 %v205, %v203
  %v336 = vpack.c.b16 %v206, %v204
  %v337 = vpack.c.b16 %v209, %v207
  %v338 = vpack.c.b16 %v210, %v208
  %v339 = vpack.c.b16 %v213, %v211
  %v340 = vpack.c.b16 %v214, %v212
  %v341 = vpack.c.b16 %v217, %v215
  %v342 = vpack.c.b16 %v218, %v216
  %v343 = vpack.c.b16 %v221, %v219
  %v344 = vpack.c.b16 %v222, %v220
  %v345 = vpack.c.b16 %v225, %v223
  %v346 = vpack.c.b16 %v226, %v224
  %v347 = vpack.c.b16 %v229, %v227
  %v348 = vpack.c.b16 %v230, %v228
  %v349 = vpack.c.b16 %v233, %v231
  %v350 = vpack.c.b16 %v234, %v232
  %v351 = vpack.c.b16 %v237, %v235
  %v352 = vpack.c.b16 %v238, %v236
  %v353 = vpack.c.b16 %v241, %v239
  %v354 = vpack.c.b16 %v242, %v240
  %v355 = vpack.c.b16 %v245, %v243
  %v356 = vpack.c.b16 %v246, %v244
  %v357 = vpack.c.b16 %v249, %v247
  %v358 = vpack.c.b16 %v250, %v248
  %v359 = vpack.c.b16 %v253, %v251
  %v360 = vpack.c.b16 %v254, %v252
  %v361 = vpack.c.b16 %v257, %v255
  %v362 = vpack.c.b16 %v258, %v256
  %v363 = vpack.c.b16 %v261, %v259
  %v364 = vpack.c.b16 %v262, %v260
  %v365 = vpack.c.b16 %v265, %v263
  %v366 = vpack.c.b16 %v266, %v264
  %v367 = vpack.c.b16 %v269, %v267
  %v368 = vpack.c.b16 %v270, %v268
  %v369 = vpack.c.b16 %v273, %v271
  %v370 = vpack.c.b16 %v274, %v272
  %v371 = vpack.c.b16 %v277, %v275
  %v372 = vpack.c.b16 %v278, %v276
  %v373 = vpack.c.b16 %v281, %v279
  %v374 = vpack.c.b16 %v282, %v280
  %v375 = vpack.c.b16 %v285, %v283
  %v376 = vpack.c.b16 %v286, %v284
  %v377 = vpack.c.b16 %v289, %v287
  %v378 = vpack.c.b16 %v290, %v288
  %v379 = vpack.c.b16 %v293, %v291
  %v380 = vpack.c.b16 %v294, %v292
  %v381 = vpack.c.b16 %v297, %v295
  %v382 = vpack.c.b16 %v298, %v296
  %v383 = vpack.c.b16 %v301, %v299
  %v384 = vpack.c.b16 %v302, %v300
  %v385 = vpack.c.b16 %v305, %v303
  %v386 = vpack.c.b16 %v306, %v304
  %v387 = vpack.c.b16 %v309, %v307
  %v388 = vpack.c.b16 %v310, %v308
  %v389 = vpack.c.b16 %v313, %v311
  %v390 = vpack.c.b16 %v314, %v312
  %v391 = vpack.c.b16 %v317, %v315
  %v392 = vpack.c.b16 %v318, %v316
  %v393 = vpack.c.b16 %v321, %v319
  %v394 = vpack.c.b16 %v322, %v320
  %vm467 = vcmask 523264
  %v469 = vsel %vm467, %v102, 0
  %471 = vmatprep.subr.bf16.mxu0 %v324
  %472 = vmatpush1.bf16.msra.mxu0 %v323
  %473 = vmatprep.subr.bf16.mxu0 %v326
  %474 = vmatpush1.bf16.msra.mxu0 %v325
  %475 = vmatprep.subr.bf16.mxu0 %v328
  %476 = vmatpush1.bf16.msra.mxu0 %v327
  %477 = vmatprep.subr.bf16.mxu0 %v330
  %478 = vmatpush1.bf16.msra.mxu0 %v329
  %479 = vmatprep.subr.bf16.mxu0 %v332
  %480 = vmatpush1.bf16.msra.mxu0 %v331
  %481 = vmatprep.subr.bf16.mxu0 %v334
  %482 = vmatpush1.bf16.msra.mxu0 %v333
  %483 = vmatprep.subr.bf16.mxu0 %v336
  %484 = vmatpush1.bf16.msra.mxu0 %v335
  %485 = vmatprep.subr.bf16.mxu0 %v338
  %486 = vmatpush1.bf16.msra.mxu0 %v337
  %487 = vmatprep.subr.bf16.mxu0 %v340
  %488 = vmatpush1.bf16.msra.mxu0 %v339
  %489 = vmatprep.subr.bf16.mxu0 %v342
  %490 = vmatpush1.bf16.msra.mxu0 %v341
  %491 = vmatprep.subr.bf16.mxu0 %v344
  %492 = vmatpush1.bf16.msra.mxu0 %v343
  %493 = vmatprep.subr.bf16.mxu0 %v346
  %494 = vmatpush1.bf16.msra.mxu0 %v345
  %495 = vmatprep.subr.bf16.mxu0 %v348
  %496 = vmatpush1.bf16.msra.mxu0 %v347
  %497 = vmatprep.subr.bf16.mxu0 %v350
  %498 = vmatpush1.bf16.msra.mxu0 %v349
  %499 = vmatprep.subr.bf16.mxu0 %v352
  %500 = vmatpush1.bf16.msra.mxu0 %v351
  %501 = vmatprep.subr.bf16.mxu0 %v354
  %502 = vmatpush1.bf16.msra.mxu0 %v353
  %503 = vmatprep.mubr.bf16.mxu0 %v99
  %504 = vmatmul.mubr.bf16.gmra.mrb[0].mxu0 %v98
  %v505 = vpop.f32.mrb[0].mxu0
  %v506 = vadd.f32 0.0, %v505
  %v507 = vpop.f32.mrb[0].mxu0
  %v508 = vadd.f32 0.0, %v507
  %v509 = vpop.f32.mrb[0].mxu0
  %v510 = vpop.f32.mrb[0].mxu0
  %511 = vdwg.mxu0
  %512 = vmatprep.subr.bf16.mxu0 %v356
  %513 = vmatpush1.bf16.msra.mxu0 %v355
  %514 = vmatprep.subr.bf16.mxu0 %v358
  %515 = vmatpush1.bf16.msra.mxu0 %v357
  %516 = vmatprep.subr.bf16.mxu0 %v360
  %517 = vmatpush1.bf16.msra.mxu0 %v359
  %518 = vmatprep.subr.bf16.mxu0 %v362
  %519 = vmatpush1.bf16.msra.mxu0 %v361
  %520 = vmatprep.subr.bf16.mxu0 %v364
  %521 = vmatpush1.bf16.msra.mxu0 %v363
  %522 = vmatprep.subr.bf16.mxu0 %v366
  %523 = vmatpush1.bf16.msra.mxu0 %v365
  %524 = vmatprep.subr.bf16.mxu0 %v368
  %525 = vmatpush1.bf16.msra.mxu0 %v367
  %526 = vmatprep.subr.bf16.mxu0 %v370
  %527 = vmatpush1.bf16.msra.mxu0 %v369
  %528 = vmatprep.subr.bf16.mxu0 %v372
  %529 = vmatpush1.bf16.msra.mxu0 %v371
  %530 = vmatprep.subr.bf16.mxu0 %v374
  %531 = vmatpush1.bf16.msra.mxu0 %v373
  %532 = vmatprep.subr.bf16.mxu0 %v376
  %533 = vmatpush1.bf16.msra.mxu0 %v375
  %534 = vmatprep.subr.bf16.mxu0 %v378
  %535 = vmatpush1.bf16.msra.mxu0 %v377
  %536 = vmatprep.subr.bf16.mxu0 %v380
  %537 = vmatpush1.bf16.msra.mxu0 %v379
  %538 = vmatprep.subr.bf16.mxu0 %v382
  %539 = vmatpush1.bf16.msra.mxu0 %v381
  %540 = vmatprep.subr.bf16.mxu0 %v384
  %541 = vmatpush1.bf16.msra.mxu0 %v383
  %542 = vmatprep.subr.bf16.mxu0 %v386
  %543 = vmatpush1.bf16.msra.mxu0 %v385
  %544 = vmatprep.mubr.bf16.mxu0 %v101
  %545 = vmatmul.mubr.bf16.gmra.mrb[0].mxu0 %v100
  %v546 = vpop.f32.mrb[0].mxu0
  %v547 = vadd.f32 %v506, %v546
  %v548 = vpop.f32.mrb[0].mxu0
  %v549 = vadd.f32 %v508, %v548
  %v550 = vpop.f32.mrb[0].mxu0
  %v551 = vpop.f32.mrb[0].mxu0
  %552 = vdwg.mxu0
  %553 = vmatprep.subr.bf16.mxu0 %v388
  %554 = vmatpush1.bf16.msra.mxu0 %v387
  %555 = vmatprep.subr.bf16.mxu0 %v390
  %556 = vmatpush1.bf16.msra.mxu0 %v389
  %557 = vmatprep.subr.bf16.mxu0 %v392
  %558 = vmatpush1.bf16.msra.mxu0 %v391
  %559 = vmatprep.subr.bf16.mxu0 %v394
  %560 = vmatpush1.bf16.msra.mxu0 %v393
  %561 = vmatprep.subr.bf16.mxu0 0
  %562 = vmatpush1.bf16.msra.mxu0 0
  %563 = vmatprep.subr.bf16.mxu0 0
  %564 = vmatpush1.bf16.msra.mxu0 0
  %565 = vmatprep.subr.bf16.mxu0 0
  %566 = vmatpush1.bf16.msra.mxu0 0
  %567 = vmatprep.subr.bf16.mxu0 0
  %568 = vmatpush1.bf16.msra.mxu0 0
  %569 = vmatprep.subr.bf16.mxu0 0
  %570 = vmatpush1.bf16.msra.mxu0 0
  %571 = vmatprep.subr.bf16.mxu0 0
  %572 = vmatpush1.bf16.msra.mxu0 0
  %573 = vmatprep.subr.bf16.mxu0 0
  %574 = vmatpush1.bf16.msra.mxu0 0
  %575 = vmatprep.subr.bf16.mxu0 0
  %576 = vmatpush1.bf16.msra.mxu0 0
  %577 = vmatprep.subr.bf16.mxu0 0
  %578 = vmatpush1.bf16.msra.mxu0 0
  %579 = vmatprep.subr.bf16.mxu0 0
  %580 = vmatpush1.bf16.msra.mxu0 0
  %581 = vmatprep.subr.bf16.mxu0 0
  %582 = vmatpush1.bf16.msra.mxu0 0
  %583 = vmatprep.subr.bf16.mxu0 0
  %584 = vmatpush1.bf16.msra.mxu0 0
  %585 = vmatprep.mubr.bf16.mxu0 0
  %586 = vmatmul.mubr.bf16.gmra.mrb[0].mxu0 %v469
  %v587 = vpop.f32.mrb[0].mxu0
  %v588 = vadd.f32 %v547, %v587
  %v589 = vpop.f32.mrb[0].mxu0
  %v590 = vadd.f32 %v549, %v589
  %v591 = vpop.f32.mrb[0].mxu0
  %v592 = vpop.f32.mrb[0].mxu0
  %593 = vdwg.mxu0
  %v594 = vld [vmem:[%s2] ss:$8 sm:$0x3]
  %v596 = vlaneseq
  %v597 = vshrl.u32 %v596, 7
  %v598 = vsub.s32 0, %v597
  %v599 = vrot.slane %v594, %v598
  %v600 = vlaneseq
  %v601 = vshrl.u32 %v600, 7
  %v602 = vsub.s32 1, %v601
  %v603 = vrot.slane %v594, %v602
  %v606 = vmul.f32 %v588, %v599
  %v607 = vmul.f32 %v590, %v603
  %s608 = scalar_lea.vmem %s2, 1
  %v609 = vld [vmem:[%s608] ss:$8 sm:$0x3]
  %v611 = vlaneseq
  %v612 = vshrl.u32 %v611, 7
  %v613 = vsub.s32 0, %v612
  %v614 = vrot.slane %v609, %v613
  %v615 = vlaneseq
  %v616 = vshrl.u32 %v615, 7
  %v617 = vsub.s32 1, %v616
  %v618 = vrot.slane %v609, %v617
  %v621 = vadd.f32 %v606, %v614
  %v622 = vadd.f32 %v607, %v618
  %vm623 = vcmp.gt.f32.partialorder %v621, 0.0
  %vm624 = vcmp.gt.f32.partialorder %v622, 0.0
  %s625 = scalar_lea.vmem %s2, 2
  %v626 = vld [vmem:[%s625] ss:$8 sm:$0x3]
  %v628 = vlaneseq
  %v629 = vshrl.u32 %v628, 7
  %v630 = vsub.s32 0, %v629
  %v631 = vrot.slane %v626, %v630
  %v632 = vlaneseq
  %v633 = vshrl.u32 %v632, 7
  %v634 = vsub.s32 1, %v633
  %v635 = vrot.slane %v626, %v634
  %v638 = vmul.f32 %v631, %v621
  %v639 = vmul.f32 %v635, %v622
  %v640 = vsel %vm623, %v621, %v638
  %v641 = vsel %vm624, %v622, %v639
  %v642 = vpack.c.bf16 %v640, %v640
  %v643 = vpack.c.bf16 %v641, %v641
  %v646 = vunpack.c.l.b16 %v642
  %v647 = vunpack.c.l.b16 %v643
  %v648 = vpack.c.b16 %v647, %v646
  %650 = vst [vmem:[%s3] sm:$0xff] %v648
  // Predicated region
  $region14: #{_lambda_.19} parent=0 // pred_check
    _
  $region15: #{_lambda_.19} parent=0 // pred_check_branch
    %652 = sbr.rel (0) target = $region17
  $region16: #{_lambda_.19} parent=0 // pred_region
    _
  $region17: #{_lambda_.19} parent=0 // pred_fallthru
    _
  // Predicated region
  $region18: #{_lambda_.19} parent=0 // pred_check
    _
  $region19: #{_lambda_.19} parent=0 // pred_check_branch
    %654 = sbr.rel (0) target = $region21
  $region20: #{_lambda_.19} parent=0 // pred_region
    _
  $region21: #{_lambda_.19} parent=0 // pred_fallthru
    _

// kernel: _lambda_.20
$region0: #{_lambda_.20}
  #allocation0 [shape = 'u32[]', space=smem, size = 0x4, offset = 0x4, fixed_abs, tag = 'smem constant byte address 0x4 - core index']
  #allocation1 [shape = 'u32[144,128]{1,0:T(1,128)}', space=vmem, size = 0x12000, scoped, tag = 'internal scratch']
  %s0 = inlined_call_operand.vmem [shape: bf16[8,1152], index: 0, kind: input, shape index: {}]
  %s1 = inlined_call_operand.vmem [shape: bf16[1152,128], index: 1, kind: input, shape index: {}]
  %s2 = inlined_call_operand.vmem [shape: f32[8,128], index: 2, kind: input, shape index: {}]
  %s3 = inlined_call_operand.vmem [shape: bf16[8,128], index: 3, kind: output, shape index: {}]
  %s4 = sld [smem:[#allocation0]]
  $region22: #{_lambda_.20} parent=0
    _
  %s6 = ssub.s32 1, %s4
  %s7 = scalar_select 0, %s6, %s4
  // Predicated region
  $region2: #{_lambda_.20} parent=0 // pred_check
    _
  $region3: #{_lambda_.20} parent=0 // pred_check_branch
    %9 = sbr.rel (0) target = $region5
  $region4: #{_lambda_.20} parent=0 // pred_region
    _
  $region5: #{_lambda_.20} parent=0 // pred_fallthru
    _
  // Predicated region
  $region6: #{_lambda_.20} parent=0 // pred_check
    _
  $region7: #{_lambda_.20} parent=0 // pred_check_branch
    %11 = sbr.rel (0) target = $region9
  $region8: #{_lambda_.20} parent=0 // pred_region
    _
  $region9: #{_lambda_.20} parent=0 // pred_fallthru
    _
  // Predicated region
  $region10: #{_lambda_.20} parent=0 // pred_check
    _
  $region11: #{_lambda_.20} parent=0 // pred_check_branch
    %13 = sbr.rel (0) target = $region13
  $region12: #{_lambda_.20} parent=0 // pred_region
    _
  $region13: #{_lambda_.20} parent=0 // pred_fallthru
    _
  %v15 = vld [vmem:[%s0] sm:$0xff]
  %v16 = vld [vmem:[%s0 + $0x8] sm:$0xff]
  %v17 = vld [vmem:[%s0 + $0x10] sm:$0xff]
  %v18 = vld [vmem:[%s0 + $0x18] sm:$0xff]
  %v19 = vld [vmem:[%s0 + $0x20] sm:$0xf]
  %v20 = vld [vmem:[%s1] sm:$0xf]
  %v21 = vld [vmem:[%s1 + $0x4] sm:$0xf]
  %v22 = vld [vmem:[%s1 + $0x8] sm:$0xf]
  %v23 = vld [vmem:[%s1 + $0xc] sm:$0xf]
  %v24 = vld [vmem:[%s1 + $0x10] sm:$0xf]
  %v25 = vld [vmem:[%s1 + $0x14] sm:$0xf]
  %v26 = vld [vmem:[%s1 + $0x18] sm:$0xf]
  %v27 = vld [vmem:[%s1 + $0x1c] sm:$0xf]
  %v28 = vld [vmem:[%s1 + $0x20] sm:$0xf]
  %v29 = vld [vmem:[%s1 + $0x24] sm:$0xf]
  %v30 = vld [vmem:[%s1 + $0x28] sm:$0xf]
  %v31 = vld [vmem:[%s1 + $0x2c] sm:$0xf]
  %v32 = vld [vmem:[%s1 + $0x30] sm:$0xf]
  %v33 = vld [vmem:[%s1 + $0x34] sm:$0xf]
  %v34 = vld [vmem:[%s1 + $0x38] sm:$0xf]
  %v35 = vld [vmem:[%s1 + $0x3c] sm:$0xf]
  %v36 = vld [vmem:[%s1 + $0x40] sm:$0xf]
  %v37 = vld [vmem:[%s1 + $0x44] sm:$0xf]
  %v38 = vld [vmem:[%s1 + $0x48] sm:$0xf]
  %v39 = vld [vmem:[%s1 + $0x4c] sm:$0xf]
  %v40 = vld [vmem:[%s1 + $0x50] sm:$0xf]
  %v41 = vld [vmem:[%s1 + $0x54] sm:$0xf]
  %v42 = vld [vmem:[%s1 + $0x58] sm:$0xf]
  %v43 = vld [vmem:[%s1 + $0x5c] sm:$0xf]
  %v44 = vld [vmem:[%s1 + $0x60] sm:$0xf]
  %v45 = vld [vmem:[%s1 + $0x64] sm:$0xf]
  %v46 = vld [vmem:[%s1 + $0x68] sm:$0xf]
  %v47 = vld [vmem:[%s1 + $0x6c] sm:$0xf]
  %v48 = vld [vmem:[%s1 + $0x70] sm:$0xf]
  %v49 = vld [vmem:[%s1 + $0x74] sm:$0xf]
  %v50 = vld [vmem:[%s1 + $0x78] sm:$0xf]
  %v51 = vld [vmem:[%s1 + $0x7c] sm:$0xf]
  %v52 = vld [vmem:[%s1 + $0x80] sm:$0xf]
  %v53 = vld [vmem:[%s1 + $0x84] sm:$0xf]
  %v54 = vld [vmem:[%s1 + $0x88] sm:$0xf]
  %v55 = vld [vmem:[%s1 + $0x8c] sm:$0xf]
  %v56 = vld [vmem:[%s1 + $0x90] sm:$0xf]
  %v57 = vld [vmem:[%s1 + $0x94] sm:$0xf]
  %v58 = vld [vmem:[%s1 + $0x98] sm:$0xf]
  %v59 = vld [vmem:[%s1 + $0x9c] sm:$0xf]
  %v60 = vld [vmem:[%s1 + $0xa0] sm:$0xf]
  %v61 = vld [vmem:[%s1 + $0xa4] sm:$0xf]
  %v62 = vld [vmem:[%s1 + $0xa8] sm:$0xf]
  %v63 = vld [vmem:[%s1 + $0xac] sm:$0xf]
  %v64 = vld [vmem:[%s1 + $0xb0] sm:$0xf]
  %v65 = vld [vmem:[%s1 + $0xb4] sm:$0xf]
  %v66 = vld [vmem:[%s1 + $0xb8] sm:$0xf]
  %v67 = vld [vmem:[%s1 + $0xbc] sm:$0xf]
  %v68 = vld [vmem:[%s1 + $0xc0] sm:$0xf]
  %v69 = vld [vmem:[%s1 + $0xc4] sm:$0xf]
  %v70 = vld [vmem:[%s1 + $0xc8] sm:$0xf]
  %v71 = vld [vmem:[%s1 + $0xcc] sm:$0xf]
  %v72 = vld [vmem:[%s1 + $0xd0] sm:$0xf]
  %v73 = vld [vmem:[%s1 + $0xd4] sm:$0xf]
  %v74 = vld [vmem:[%s1 + $0xd8] sm:$0xf]
  %v75 = vld [vmem:[%s1 + $0xdc] sm:$0xf]
  %v76 = vld [vmem:[%s1 + $0xe0] sm:$0xf]
  %v77 = vld [vmem:[%s1 + $0xe4] sm:$0xf]
  %v78 = vld [vmem:[%s1 + $0xe8] sm:$0xf]
  %v79 = vld [vmem:[%s1 + $0xec] sm:$0xf]
  %v80 = vld [vmem:[%s1 + $0xf0] sm:$0xf]
  %v81 = vld [vmem:[%s1 + $0xf4] sm:$0xf]
  %v82 = vld [vmem:[%s1 + $0xf8] sm:$0xf]
  %v83 = vld [vmem:[%s1 + $0xfc] sm:$0xf]
  %v84 = vld [vmem:[%s1 + $0x100] sm:$0xf]
  %v85 = vld [vmem:[%s1 + $0x104] sm:$0xf]
  %v86 = vld [vmem:[%s1 + $0x108] sm:$0xf]
  %v87 = vld [vmem:[%s1 + $0x10c] sm:$0xf]
  %v88 = vld [vmem:[%s1 + $0x110] sm:$0xf]
  %v89 = vld [vmem:[%s1 + $0x114] sm:$0xf]
  %v90 = vld [vmem:[%s1 + $0x118] sm:$0xf]
  %v91 = vld [vmem:[%s1 + $0x11c] sm:$0xf]
  %v92 = vld [vmem:[%s1 + $0x120] sm:$0xf]
  %v93 = vld [vmem:[%s1 + $0x124] sm:$0xf]
  %v94 = vld [vmem:[%s1 + $0x128] sm:$0xf]
  %v95 = vld [vmem:[%s1 + $0x12c] sm:$0xf]
  %v96 = vld [vmem:[%s1 + $0x130] sm:$0xf]
  %v97 = vld [vmem:[%s1 + $0x134] sm:$0xf]
  %v98 = vld [vmem:[%s1 + $0x138] sm:$0xf]
  %v99 = vld [vmem:[%s1 + $0x13c] sm:$0xf]
  %v100 = vld [vmem:[%s1 + $0x140] sm:$0xf]
  %v101 = vld [vmem:[%s1 + $0x144] sm:$0xf]
  %v102 = vld [vmem:[%s1 + $0x148] sm:$0xf]
  %v103 = vld [vmem:[%s1 + $0x14c] sm:$0xf]
  %v104 = vld [vmem:[%s1 + $0x150] sm:$0xf]
  %v105 = vld [vmem:[%s1 + $0x154] sm:$0xf]
  %v106 = vld [vmem:[%s1 + $0x158] sm:$0xf]
  %v107 = vld [vmem:[%s1 + $0x15c] sm:$0xf]
  %v108 = vld [vmem:[%s1 + $0x160] sm:$0xf]
  %v109 = vld [vmem:[%s1 + $0x164] sm:$0xf]
  %v110 = vld [vmem:[%s1 + $0x168] sm:$0xf]
  %v111 = vld [vmem:[%s1 + $0x16c] sm:$0xf]
  %v112 = vld [vmem:[%s1 + $0x170] sm:$0xf]
  %v113 = vld [vmem:[%s1 + $0x174] sm:$0xf]
  %v114 = vld [vmem:[%s1 + $0x178] sm:$0xf]
  %v115 = vld [vmem:[%s1 + $0x17c] sm:$0xf]
  %v116 = vld [vmem:[%s1 + $0x180] sm:$0xf]
  %v117 = vld [vmem:[%s1 + $0x184] sm:$0xf]
  %v118 = vld [vmem:[%s1 + $0x188] sm:$0xf]
  %v119 = vld [vmem:[%s1 + $0x18c] sm:$0xf]
  %v120 = vld [vmem:[%s1 + $0x190] sm:$0xf]
  %v121 = vld [vmem:[%s1 + $0x194] sm:$0xf]
  %v122 = vld [vmem:[%s1 + $0x198] sm:$0xf]
  %v123 = vld [vmem:[%s1 + $0x19c] sm:$0xf]
  %v124 = vld [vmem:[%s1 + $0x1a0] sm:$0xf]
  %v125 = vld [vmem:[%s1 + $0x1a4] sm:$0xf]
  %v126 = vld [vmem:[%s1 + $0x1a8] sm:$0xf]
  %v127 = vld [vmem:[%s1 + $0x1ac] sm:$0xf]
  %v128 = vld [vmem:[%s1 + $0x1b0] sm:$0xf]
  %v129 = vld [vmem:[%s1 + $0x1b4] sm:$0xf]
  %v130 = vld [vmem:[%s1 + $0x1b8] sm:$0xf]
  %v131 = vld [vmem:[%s1 + $0x1bc] sm:$0xf]
  %v132 = vld [vmem:[%s1 + $0x1c0] sm:$0xf]
  %v133 = vld [vmem:[%s1 + $0x1c4] sm:$0xf]
  %v134 = vld [vmem:[%s1 + $0x1c8] sm:$0xf]
  %v135 = vld [vmem:[%s1 + $0x1cc] sm:$0xf]
  %v136 = vld [vmem:[%s1 + $0x1d0] sm:$0xf]
  %v137 = vld [vmem:[%s1 + $0x1d4] sm:$0xf]
  %v138 = vld [vmem:[%s1 + $0x1d8] sm:$0xf]
  %v139 = vld [vmem:[%s1 + $0x1dc] sm:$0xf]
  %v140 = vld [vmem:[%s1 + $0x1e0] sm:$0xf]
  %v141 = vld [vmem:[%s1 + $0x1e4] sm:$0xf]
  %v142 = vld [vmem:[%s1 + $0x1e8] sm:$0xf]
  %v143 = vld [vmem:[%s1 + $0x1ec] sm:$0xf]
  %v144 = vld [vmem:[%s1 + $0x1f0] sm:$0xf]
  %v145 = vld [vmem:[%s1 + $0x1f4] sm:$0xf]
  %v146 = vld [vmem:[%s1 + $0x1f8] sm:$0xf]
  %v147 = vld [vmem:[%s1 + $0x1fc] sm:$0xf]
  %v148 = vld [vmem:[%s1 + $0x200] sm:$0xf]
  %v149 = vld [vmem:[%s1 + $0x204] sm:$0xf]
  %v150 = vld [vmem:[%s1 + $0x208] sm:$0xf]
  %v151 = vld [vmem:[%s1 + $0x20c] sm:$0xf]
  %v152 = vld [vmem:[%s1 + $0x210] sm:$0xf]
  %v153 = vld [vmem:[%s1 + $0x214] sm:$0xf]
  %v154 = vld [vmem:[%s1 + $0x218] sm:$0xf]
  %v155 = vld [vmem:[%s1 + $0x21c] sm:$0xf]
  %v156 = vld [vmem:[%s1 + $0x220] sm:$0xf]
  %v157 = vld [vmem:[%s1 + $0x224] sm:$0xf]
  %v158 = vld [vmem:[%s1 + $0x228] sm:$0xf]
  %v159 = vld [vmem:[%s1 + $0x22c] sm:$0xf]
  %v160 = vld [vmem:[%s1 + $0x230] sm:$0xf]
  %v161 = vld [vmem:[%s1 + $0x234] sm:$0xf]
  %v162 = vld [vmem:[%s1 + $0x238] sm:$0xf]
  %v163 = vld [vmem:[%s1 + $0x23c] sm:$0xf]
  %v169 = vunpack.c.l.b16 %v15
  %v170 = vunpack.c.h.b16 %v15
  %v171 = vunpack.c.l.b16 %v16
  %v172 = vunpack.c.h.b16 %v16
  %v173 = vunpack.c.l.b16 %v17
  %v174 = vunpack.c.h.b16 %v17
  %v175 = vunpack.c.l.b16 %v18
  %v176 = vunpack.c.h.b16 %v18
  %v177 = vunpack.c.l.b16 %v19
  %v178 = vpack.c.b16 %v169, %v169
  %v179 = vpack.c.b16 %v170, %v170
  %v180 = vpack.c.b16 %v171, %v171
  %v181 = vpack.c.b16 %v172, %v172
  %v182 = vpack.c.b16 %v173, %v173
  %v183 = vpack.c.b16 %v174, %v174
  %v184 = vpack.c.b16 %v175, %v175
  %v185 = vpack.c.b16 %v176, %v176
  %v186 = vpack.c.b16 %v177, %v177
  %v340 = vunpack.c.l.b16 %v20
  %v341 = vunpack.c.l.b16 %v21
  %v342 = vunpack.c.l.b16 %v22
  %v343 = vunpack.c.l.b16 %v23
  %v344 = vunpack.c.l.b16 %v24
  %v345 = vunpack.c.l.b16 %v25
  %v346 = vunpack.c.l.b16 %v26
  %v347 = vunpack.c.l.b16 %v27
  %v348 = vunpack.c.l.b16 %v28
  %v349 = vunpack.c.l.b16 %v29
  %v350 = vunpack.c.l.b16 %v30
  %v351 = vunpack.c.l.b16 %v31
  %v352 = vunpack.c.l.b16 %v32
  %v353 = vunpack.c.l.b16 %v33
  %v354 = vunpack.c.l.b16 %v34
  %v355 = vunpack.c.l.b16 %v35
  %v356 = vunpack.c.l.b16 %v36
  %v357 = vunpack.c.l.b16 %v37
  %v358 = vunpack.c.l.b16 %v38
  %v359 = vunpack.c.l.b16 %v39
  %v360 = vunpack.c.l.b16 %v40
  %v361 = vunpack.c.l.b16 %v41
  %v362 = vunpack.c.l.b16 %v42
  %v363 = vunpack.c.l.b16 %v43
  %v364 = vunpack.c.l.b16 %v44
  %v365 = vunpack.c.l.b16 %v45
  %v366 = vunpack.c.l.b16 %v46
  %v367 = vunpack.c.l.b16 %v47
  %v368 = vunpack.c.l.b16 %v48
  %v369 = vunpack.c.l.b16 %v49
  %v370 = vunpack.c.l.b16 %v50
  %v371 = vunpack.c.l.b16 %v51
  %v372 = vunpack.c.l.b16 %v52
  %v373 = vunpack.c.l.b16 %v53
  %v374 = vunpack.c.l.b16 %v54
  %v375 = vunpack.c.l.b16 %v55
  %v376 = vunpack.c.l.b16 %v56
  %v377 = vunpack.c.l.b16 %v57
  %v378 = vunpack.c.l.b16 %v58
  %v379 = vunpack.c.l.b16 %v59
  %v380 = vunpack.c.l.b16 %v60
  %v381 = vunpack.c.l.b16 %v61
  %v382 = vunpack.c.l.b16 %v62
  %v383 = vunpack.c.l.b16 %v63
  %v384 = vunpack.c.l.b16 %v64
  %v385 = vunpack.c.l.b16 %v65
  %v386 = vunpack.c.l.b16 %v66
  %v387 = vunpack.c.l.b16 %v67
  %v388 = vunpack.c.l.b16 %v68
  %v389 = vunpack.c.l.b16 %v69
  %v390 = vunpack.c.l.b16 %v70
  %v391 = vunpack.c.l.b16 %v71
  %v392 = vunpack.c.l.b16 %v72
  %v393 = vunpack.c.l.b16 %v73
  %v394 = vunpack.c.l.b16 %v74
  %v395 = vunpack.c.l.b16 %v75
  %v396 = vunpack.c.l.b16 %v76
  %v397 = vunpack.c.l.b16 %v77
  %v398 = vunpack.c.l.b16 %v78
  %v399 = vunpack.c.l.b16 %v79
  %v400 = vunpack.c.l.b16 %v80
  %v401 = vunpack.c.l.b16 %v81
  %v402 = vunpack.c.l.b16 %v82
  %v403 = vunpack.c.l.b16 %v83
  %v404 = vunpack.c.l.b16 %v84
  %v405 = vunpack.c.l.b16 %v85
  %v406 = vunpack.c.l.b16 %v86
  %v407 = vunpack.c.l.b16 %v87
  %v408 = vunpack.c.l.b16 %v88
  %v409 = vunpack.c.l.b16 %v89
  %v410 = vunpack.c.l.b16 %v90
  %v411 = vunpack.c.l.b16 %v91
  %v412 = vunpack.c.l.b16 %v92
  %v413 = vunpack.c.l.b16 %v93
  %v414 = vunpack.c.l.b16 %v94
  %v415 = vunpack.c.l.b16 %v95
  %v416 = vunpack.c.l.b16 %v96
  %v417 = vunpack.c.l.b16 %v97
  %v418 = vunpack.c.l.b16 %v98
  %v419 = vunpack.c.l.b16 %v99
  %v420 = vunpack.c.l.b16 %v100
  %v421 = vunpack.c.l.b16 %v101
  %v422 = vunpack.c.l.b16 %v102
  %v423 = vunpack.c.l.b16 %v103
  %v424 = vunpack.c.l.b16 %v104
  %v425 = vunpack.c.l.b16 %v105
  %v426 = vunpack.c.l.b16 %v106
  %v427 = vunpack.c.l.b16 %v107
  %v428 = vunpack.c.l.b16 %v108
  %v429 = vunpack.c.l.b16 %v109
  %v430 = vunpack.c.l.b16 %v110
  %v431 = vunpack.c.l.b16 %v111
  %v432 = vunpack.c.l.b16 %v112
  %v433 = vunpack.c.l.b16 %v113
  %v434 = vunpack.c.l.b16 %v114
  %v435 = vunpack.c.l.b16 %v115
  %v436 = vunpack.c.l.b16 %v116
  %v437 = vunpack.c.l.b16 %v117
  %v438 = vunpack.c.l.b16 %v118
  %v439 = vunpack.c.l.b16 %v119
  %v440 = vunpack.c.l.b16 %v120
  %v441 = vunpack.c.l.b16 %v121
  %v442 = vunpack.c.l.b16 %v122
  %v443 = vunpack.c.l.b16 %v123
  %v444 = vunpack.c.l.b16 %v124
  %v445 = vunpack.c.l.b16 %v125
  %v446 = vunpack.c.l.b16 %v126
  %v447 = vunpack.c.l.b16 %v127
  %v448 = vunpack.c.l.b16 %v128
  %v449 = vunpack.c.l.b16 %v129
  %v450 = vunpack.c.l.b16 %v130
  %v451 = vunpack.c.l.b16 %v131
  %v452 = vunpack.c.l.b16 %v132
  %v453 = vunpack.c.l.b16 %v133
  %v454 = vunpack.c.l.b16 %v134
  %v455 = vunpack.c.l.b16 %v135
  %v456 = vunpack.c.l.b16 %v136
  %v457 = vunpack.c.l.b16 %v137
  %v458 = vunpack.c.l.b16 %v138
  %v459 = vunpack.c.l.b16 %v139
  %v460 = vunpack.c.l.b16 %v140
  %v461 = vunpack.c.l.b16 %v141
  %v462 = vunpack.c.l.b16 %v142
  %v463 = vunpack.c.l.b16 %v143
  %v464 = vunpack.c.l.b16 %v144
  %v465 = vunpack.c.l.b16 %v145
  %v466 = vunpack.c.l.b16 %v146
  %v467 = vunpack.c.l.b16 %v147
  %v468 = vunpack.c.l.b16 %v148
  %v469 = vunpack.c.l.b16 %v149
  %v470 = vunpack.c.l.b16 %v150
  %v471 = vunpack.c.l.b16 %v151
  %v472 = vunpack.c.l.b16 %v152
  %v473 = vunpack.c.l.b16 %v153
  %v474 = vunpack.c.l.b16 %v154
  %v475 = vunpack.c.l.b16 %v155
  %v476 = vunpack.c.l.b16 %v156
  %v477 = vunpack.c.l.b16 %v157
  %v478 = vunpack.c.l.b16 %v158
  %v479 = vunpack.c.l.b16 %v159
  %v480 = vunpack.c.l.b16 %v160
  %v481 = vunpack.c.l.b16 %v161
  %v482 = vunpack.c.l.b16 %v162
  %v483 = vunpack.c.l.b16 %v163
  %v484 = vpack.c.b16 %v341, %v340
  %v485 = vpack.c.b16 %v343, %v342
  %v486 = vpack.c.b16 %v345, %v344
  %v487 = vpack.c.b16 %v347, %v346
  %v488 = vpack.c.b16 %v349, %v348
  %v489 = vpack.c.b16 %v351, %v350
  %v490 = vpack.c.b16 %v353, %v352
  %v491 = vpack.c.b16 %v355, %v354
  %v492 = vpack.c.b16 %v357, %v356
  %v493 = vpack.c.b16 %v359, %v358
  %v494 = vpack.c.b16 %v361, %v360
  %v495 = vpack.c.b16 %v363, %v362
  %v496 = vpack.c.b16 %v365, %v364
  %v497 = vpack.c.b16 %v367, %v366
  %v498 = vpack.c.b16 %v369, %v368
  %v499 = vpack.c.b16 %v371, %v370
  %v500 = vpack.c.b16 %v373, %v372
  %v501 = vpack.c.b16 %v375, %v374
  %v502 = vpack.c.b16 %v377, %v376
  %v503 = vpack.c.b16 %v379, %v378
  %v504 = vpack.c.b16 %v381, %v380
  %v505 = vpack.c.b16 %v383, %v382
  %v506 = vpack.c.b16 %v385, %v384
  %v507 = vpack.c.b16 %v387, %v386
  %v508 = vpack.c.b16 %v389, %v388
  %v509 = vpack.c.b16 %v391, %v390
  %v510 = vpack.c.b16 %v393, %v392
  %v511 = vpack.c.b16 %v395, %v394
  %v512 = vpack.c.b16 %v397, %v396
  %v513 = vpack.c.b16 %v399, %v398
  %v514 = vpack.c.b16 %v401, %v400
  %v515 = vpack.c.b16 %v403, %v402
  %v516 = vpack.c.b16 %v405, %v404
  %v517 = vpack.c.b16 %v407, %v406
  %v518 = vpack.c.b16 %v409, %v408
  %v519 = vpack.c.b16 %v411, %v410
  %v520 = vpack.c.b16 %v413, %v412
  %v521 = vpack.c.b16 %v415, %v414
  %v522 = vpack.c.b16 %v417, %v416
  %v523 = vpack.c.b16 %v419, %v418
  %v524 = vpack.c.b16 %v421, %v420
  %v525 = vpack.c.b16 %v423, %v422
  %v526 = vpack.c.b16 %v425, %v424
  %v527 = vpack.c.b16 %v427, %v426
  %v528 = vpack.c.b16 %v429, %v428
  %v529 = vpack.c.b16 %v431, %v430
  %v530 = vpack.c.b16 %v433, %v432
  %v531 = vpack.c.b16 %v435, %v434
  %v532 = vpack.c.b16 %v437, %v436
  %v533 = vpack.c.b16 %v439, %v438
  %v534 = vpack.c.b16 %v441, %v440
  %v535 = vpack.c.b16 %v443, %v442
  %v536 = vpack.c.b16 %v445, %v444
  %v537 = vpack.c.b16 %v447, %v446
  %v538 = vpack.c.b16 %v449, %v448
  %v539 = vpack.c.b16 %v451, %v450
  %v540 = vpack.c.b16 %v453, %v452
  %v541 = vpack.c.b16 %v455, %v454
  %v542 = vpack.c.b16 %v457, %v456
  %v543 = vpack.c.b16 %v459, %v458
  %v544 = vpack.c.b16 %v461, %v460
  %v545 = vpack.c.b16 %v463, %v462
  %v546 = vpack.c.b16 %v465, %v464
  %v547 = vpack.c.b16 %v467, %v466
  %v548 = vpack.c.b16 %v469, %v468
  %v549 = vpack.c.b16 %v471, %v470
  %v550 = vpack.c.b16 %v473, %v472
  %v551 = vpack.c.b16 %v475, %v474
  %v552 = vpack.c.b16 %v477, %v476
  %v553 = vpack.c.b16 %v479, %v478
  %v554 = vpack.c.b16 %v481, %v480
  %v555 = vpack.c.b16 %v483, %v482
  %628 = vmatprep.subr.bf16.mxu0 0
  %629 = vmatpush1.bf16.msra.mxu0 %v484
  %630 = vmatprep.subr.bf16.mxu0 0
  %631 = vmatpush1.bf16.msra.mxu0 %v485
  %632 = vmatprep.subr.bf16.mxu0 0
  %633 = vmatpush1.bf16.msra.mxu0 %v486
  %634 = vmatprep.subr.bf16.mxu0 0
  %635 = vmatpush1.bf16.msra.mxu0 %v487
  %636 = vmatprep.subr.bf16.mxu0 0
  %637 = vmatpush1.bf16.msra.mxu0 %v488
  %638 = vmatprep.subr.bf16.mxu0 0
  %639 = vmatpush1.bf16.msra.mxu0 %v489
  %640 = vmatprep.subr.bf16.mxu0 0
  %641 = vmatpush1.bf16.msra.mxu0 %v490
  %642 = vmatprep.subr.bf16.mxu0 0
  %643 = vmatpush1.bf16.msra.mxu0 %v491
  %644 = vmatprep.subr.bf16.mxu0 0
  %645 = vmatpush1.bf16.msra.mxu0 %v492
  %646 = vmatprep.subr.bf16.mxu0 0
  %647 = vmatpush1.bf16.msra.mxu0 %v493
  %648 = vmatprep.subr.bf16.mxu0 0
  %649 = vmatpush1.bf16.msra.mxu0 %v494
  %650 = vmatprep.subr.bf16.mxu0 0
  %651 = vmatpush1.bf16.msra.mxu0 %v495
  %652 = vmatprep.subr.bf16.mxu0 0
  %653 = vmatpush1.bf16.msra.mxu0 %v496
  %654 = vmatprep.subr.bf16.mxu0 0
  %655 = vmatpush1.bf16.msra.mxu0 %v497
  %656 = vmatprep.subr.bf16.mxu0 0
  %657 = vmatpush1.bf16.msra.mxu0 %v498
  %658 = vmatprep.subr.bf16.mxu0 0
  %659 = vmatpush1.bf16.msra.mxu0 %v499
  %660 = vmatprep.mubr.bf16.mxu0 %v179
  %661 = vmatmul.mubr.bf16.gmra.mrb[0].mxu0 %v178
  %v662 = vpop.f32.mrb[0].mxu0
  %v663 = vadd.f32 0.0, %v662
  %v664 = vpop.f32.mrb[0].mxu0
  %v665 = vpop.f32.mrb[0].mxu0
  %v666 = vpop.f32.mrb[0].mxu0
  %667 = vdwg.mxu0
  %668 = vmatprep.subr.bf16.mxu0 0
  %669 = vmatpush1.bf16.msra.mxu0 %v500
  %670 = vmatprep.subr.bf16.mxu0 0
  %671 = vmatpush1.bf16.msra.mxu0 %v501
  %672 = vmatprep.subr.bf16.mxu0 0
  %673 = vmatpush1.bf16.msra.mxu0 %v502
  %674 = vmatprep.subr.bf16.mxu0 0
  %675 = vmatpush1.bf16.msra.mxu0 %v503
  %676 = vmatprep.subr.bf16.mxu0 0
  %677 = vmatpush1.bf16.msra.mxu0 %v504
  %678 = vmatprep.subr.bf16.mxu0 0
  %679 = vmatpush1.bf16.msra.mxu0 %v505
  %680 = vmatprep.subr.bf16.mxu0 0
  %681 = vmatpush1.bf16.msra.mxu0 %v506
  %682 = vmatprep.subr.bf16.mxu0 0
  %683 = vmatpush1.bf16.msra.mxu0 %v507
  %684 = vmatprep.subr.bf16.mxu0 0
  %685 = vmatpush1.bf16.msra.mxu0 %v508
  %686 = vmatprep.subr.bf16.mxu0 0
  %687 = vmatpush1.bf16.msra.mxu0 %v509
  %688 = vmatprep.subr.bf16.mxu0 0
  %689 = vmatpush1.bf16.msra.mxu0 %v510
  %690 = vmatprep.subr.bf16.mxu0 0
  %691 = vmatpush1.bf16.msra.mxu0 %v511
  %692 = vmatprep.subr.bf16.mxu0 0
  %693 = vmatpush1.bf16.msra.mxu0 %v512
  %694 = vmatprep.subr.bf16.mxu0 0
  %695 = vmatpush1.bf16.msra.mxu0 %v513
  %696 = vmatprep.subr.bf16.mxu0 0
  %697 = vmatpush1.bf16.msra.mxu0 %v514
  %698 = vmatprep.subr.bf16.mxu0 0
  %699 = vmatpush1.bf16.msra.mxu0 %v515
  %700 = vmatprep.mubr.bf16.mxu0 %v181
  %701 = vmatmul.mubr.bf16.gmra.mrb[0].mxu0 %v180
  %v702 = vpop.f32.mrb[0].mxu0
  %v703 = vadd.f32 %v663, %v702
  %v704 = vpop.f32.mrb[0].mxu0
  %v705 = vpop.f32.mrb[0].mxu0
  %v706 = vpop.f32.mrb[0].mxu0
  %707 = vdwg.mxu0
  %708 = vmatprep.subr.bf16.mxu0 0
  %709 = vmatpush1.bf16.msra.mxu0 %v516
  %710 = vmatprep.subr.bf16.mxu0 0
  %711 = vmatpush1.bf16.msra.mxu0 %v517
  %712 = vmatprep.subr.bf16.mxu0 0
  %713 = vmatpush1.bf16.msra.mxu0 %v518
  %714 = vmatprep.subr.bf16.mxu0 0
  %715 = vmatpush1.bf16.msra.mxu0 %v519
  %716 = vmatprep.subr.bf16.mxu0 0
  %717 = vmatpush1.bf16.msra.mxu0 %v520
  %718 = vmatprep.subr.bf16.mxu0 0
  %719 = vmatpush1.bf16.msra.mxu0 %v521
  %720 = vmatprep.subr.bf16.mxu0 0
  %721 = vmatpush1.bf16.msra.mxu0 %v522
  %722 = vmatprep.subr.bf16.mxu0 0
  %723 = vmatpush1.bf16.msra.mxu0 %v523
  %724 = vmatprep.subr.bf16.mxu0 0
  %725 = vmatpush1.bf16.msra.mxu0 %v524
  %726 = vmatprep.subr.bf16.mxu0 0
  %727 = vmatpush1.bf16.msra.mxu0 %v525
  %728 = vmatprep.subr.bf16.mxu0 0
  %729 = vmatpush1.bf16.msra.mxu0 %v526
  %730 = vmatprep.subr.bf16.mxu0 0
  %731 = vmatpush1.bf16.msra.mxu0 %v527
  %732 = vmatprep.subr.bf16.mxu0 0
  %733 = vmatpush1.bf16.msra.mxu0 %v528
  %734 = vmatprep.subr.bf16.mxu0 0
  %735 = vmatpush1.bf16.msra.mxu0 %v529
  %736 = vmatprep.subr.bf16.mxu0 0
  %737 = vmatpush1.bf16.msra.mxu0 %v530
  %738 = vmatprep.subr.bf16.mxu0 0
  %739 = vmatpush1.bf16.msra.mxu0 %v531
  %740 = vmatprep.mubr.bf16.mxu0 %v183
  %741 = vmatmul.mubr.bf16.gmra.mrb[0].mxu0 %v182
  %v742 = vpop.f32.mrb[0].mxu0
  %v743 = vadd.f32 %v703, %v742
  %v744 = vpop.f32.mrb[0].mxu0
  %v745 = vpop.f32.mrb[0].mxu0
  %v746 = vpop.f32.mrb[0].mxu0
  %747 = vdwg.mxu0
  %748 = vmatprep.subr.bf16.mxu0 0
  %749 = vmatpush1.bf16.msra.mxu0 %v532
  %750 = vmatprep.subr.bf16.mxu0 0
  %751 = vmatpush1.bf16.msra.mxu0 %v533
  %752 = vmatprep.subr.bf16.mxu0 0
  %753 = vmatpush1.bf16.msra.mxu0 %v534
  %754 = vmatprep.subr.bf16.mxu0 0
  %755 = vmatpush1.bf16.msra.mxu0 %v535
  %756 = vmatprep.subr.bf16.mxu0 0
  %757 = vmatpush1.bf16.msra.mxu0 %v536
  %758 = vmatprep.subr.bf16.mxu0 0
  %759 = vmatpush1.bf16.msra.mxu0 %v537
  %760 = vmatprep.subr.bf16.mxu0 0
  %761 = vmatpush1.bf16.msra.mxu0 %v538
  %762 = vmatprep.subr.bf16.mxu0 0
  %763 = vmatpush1.bf16.msra.mxu0 %v539
  %764 = vmatprep.subr.bf16.mxu0 0
  %765 = vmatpush1.bf16.msra.mxu0 %v540
  %766 = vmatprep.subr.bf16.mxu0 0
  %767 = vmatpush1.bf16.msra.mxu0 %v541
  %768 = vmatprep.subr.bf16.mxu0 0
  %769 = vmatpush1.bf16.msra.mxu0 %v542
  %770 = vmatprep.subr.bf16.mxu0 0
  %771 = vmatpush1.bf16.msra.mxu0 %v543
  %772 = vmatprep.subr.bf16.mxu0 0
  %773 = vmatpush1.bf16.msra.mxu0 %v544
  %774 = vmatprep.subr.bf16.mxu0 0
  %775 = vmatpush1.bf16.msra.mxu0 %v545
  %776 = vmatprep.subr.bf16.mxu0 0
  %777 = vmatpush1.bf16.msra.mxu0 %v546
  %778 = vmatprep.subr.bf16.mxu0 0
  %779 = vmatpush1.bf16.msra.mxu0 %v547
  %780 = vmatprep.mubr.bf16.mxu0 %v185
  %781 = vmatmul.mubr.bf16.gmra.mrb[0].mxu0 %v184
  %v782 = vpop.f32.mrb[0].mxu0
  %v783 = vadd.f32 %v743, %v782
  %v784 = vpop.f32.mrb[0].mxu0
  %v785 = vpop.f32.mrb[0].mxu0
  %v786 = vpop.f32.mrb[0].mxu0
  %787 = vdwg.mxu0
  %788 = vmatprep.subr.bf16.mxu0 0
  %789 = vmatpush1.bf16.msra.mxu0 %v548
  %790 = vmatprep.subr.bf16.mxu0 0
  %791 = vmatpush1.bf16.msra.mxu0 %v549
  %792 = vmatprep.subr.bf16.mxu0 0
  %793 = vmatpush1.bf16.msra.mxu0 %v550
  %794 = vmatprep.subr.bf16.mxu0 0
  %795 = vmatpush1.bf16.msra.mxu0 %v551
  %796 = vmatprep.subr.bf16.mxu0 0
  %797 = vmatpush1.bf16.msra.mxu0 %v552
  %798 = vmatprep.subr.bf16.mxu0 0
  %799 = vmatpush1.bf16.msra.mxu0 %v553
  %800 = vmatprep.subr.bf16.mxu0 0
  %801 = vmatpush1.bf16.msra.mxu0 %v554
  %802 = vmatprep.subr.bf16.mxu0 0
  %803 = vmatpush1.bf16.msra.mxu0 %v555
  %804 = vmatprep.subr.bf16.mxu0 0
  %805 = vmatpush1.bf16.msra.mxu0 0
  %806 = vmatprep.subr.bf16.mxu0 0
  %807 = vmatpush1.bf16.msra.mxu0 0
  %808 = vmatprep.subr.bf16.mxu0 0
  %809 = vmatpush1.bf16.msra.mxu0 0
  %810 = vmatprep.subr.bf16.mxu0 0
  %811 = vmatpush1.bf16.msra.mxu0 0
  %812 = vmatprep.subr.bf16.mxu0 0
  %813 = vmatpush1.bf16.msra.mxu0 0
  %814 = vmatprep.subr.bf16.mxu0 0
  %815 = vmatpush1.bf16.msra.mxu0 0
  %816 = vmatprep.subr.bf16.mxu0 0
  %817 = vmatpush1.bf16.msra.mxu0 0
  %818 = vmatprep.subr.bf16.mxu0 0
  %819 = vmatpush1.bf16.msra.mxu0 0
  %820 = vmatprep.mubr.bf16.mxu0 0
  %821 = vmatmul.mubr.bf16.gmra.mrb[0].mxu0 %v186
  %v822 = vpop.f32.mrb[0].mxu0
  %v823 = vadd.f32 %v783, %v822
  %v824 = vpop.f32.mrb[0].mxu0
  %v825 = vpop.f32.mrb[0].mxu0
  %v826 = vpop.f32.mrb[0].mxu0
  %827 = vdwg.mxu0
  %v828 = vld [vmem:[%s2] sm:$0x1]
  %v829 = vlaneseq
  %v830 = vshrl.u32 %v829, 7
  %v831 = vsub.s32 0, %v830
  %v832 = vrot.slane %v828, %v831
  %v833 = vmul.f32 %v823, %v832
  %v834 = vld [vmem:[%s2 + $0x1] sm:$0x1]
  %v835 = vlaneseq
  %v836 = vshrl.u32 %v835, 7
  %v837 = vsub.s32 0, %v836
  %v838 = vrot.slane %v834, %v837
  %v839 = vadd.f32 %v833, %v838
  %vm840 = vcmp.gt.f32.partialorder %v839, 0.0
  %v841 = vld [vmem:[%s2 + $0x2] sm:$0x1]
  %v842 = vlaneseq
  %v843 = vshrl.u32 %v842, 7
  %v844 = vsub.s32 0, %v843
  %v845 = vrot.slane %v841, %v844
  %v846 = vmul.f32 %v845, %v839
  %v847 = vsel %vm840, %v839, %v846
  %v848 = vpack.c.bf16 %v847, %v847
  %849 = vst [vmem:[%s3] sm:$0xf] %v848
  // Predicated region
  $region14: #{_lambda_.20} parent=0 // pred_check
    _
  $region15: #{_lambda_.20} parent=0 // pred_check_branch
    %851 = sbr.rel (0) target = $region17
  $region16: #{_lambda_.20} parent=0 // pred_region
    _
  $region17: #{_lambda_.20} parent=0 // pred_fallthru
    _
  // Predicated region
  $region18: #{_lambda_.20} parent=0 // pred_check
    _
  $region19: #{_lambda_.20} parent=0 // pred_check_branch
    %853 = sbr.rel (0) target = $region21
  $region20: #{_lambda_.20} parent=0 // pred_region
    _
  $region21: #{_lambda_.20} parent=0 // pred_fallthru
    _

// kernel: _lambda_.21
$region0: #{_lambda_.21}
  #allocation0 [shape = 'u32[]', space=smem, size = 0x4, offset = 0x4, fixed_abs, tag = 'smem constant byte address 0x4 - core index']
  #allocation1 [shape = 'u32[144,128]{1,0:T(1,128)}', space=vmem, size = 0x12000, scoped, tag = 'internal scratch']
  %s0 = inlined_call_operand.vmem [shape: bf16[8,1152], index: 0, kind: input, shape index: {}]
  %s1 = inlined_call_operand.vmem [shape: bf16[1152,128], index: 1, kind: input, shape index: {}]
  %s2 = inlined_call_operand.vmem [shape: f32[8,128], index: 2, kind: input, shape index: {}]
  %s3 = inlined_call_operand.vmem [shape: bf16[8,128], index: 3, kind: input, shape index: {}]
  %s4 = inlined_call_operand.vmem [shape: bf16[8,128], index: 4, kind: output, shape index: {}]
  %s5 = sld [smem:[#allocation0]]
  $region26: #{_lambda_.21} parent=0
    _
  %s7 = ssub.s32 1, %s5
  %s8 = scalar_select 0, %s7, %s5
  // Predicated region
  $region2: #{_lambda_.21} parent=0 // pred_check
    _
  $region3: #{_lambda_.21} parent=0 // pred_check_branch
    %10 = sbr.rel (0) target = $region5
  $region4: #{_lambda_.21} parent=0 // pred_region
    _
  $region5: #{_lambda_.21} parent=0 // pred_fallthru
    _
  // Predicated region
  $region6: #{_lambda_.21} parent=0 // pred_check
    _
  $region7: #{_lambda_.21} parent=0 // pred_check_branch
    %12 = sbr.rel (0) target = $region9
  $region8: #{_lambda_.21} parent=0 // pred_region
    _
  $region9: #{_lambda_.21} parent=0 // pred_fallthru
    _
  // Predicated region
  $region10: #{_lambda_.21} parent=0 // pred_check
    _
  $region11: #{_lambda_.21} parent=0 // pred_check_branch
    %14 = sbr.rel (0) target = $region13
  $region12: #{_lambda_.21} parent=0 // pred_region
    _
  $region13: #{_lambda_.21} parent=0 // pred_fallthru
    _
  // Predicated region
  $region14: #{_lambda_.21} parent=0 // pred_check
    _
  $region15: #{_lambda_.21} parent=0 // pred_check_branch
    %16 = sbr.rel (0) target = $region17
  $region16: #{_lambda_.21} parent=0 // pred_region
    _
  $region17: #{_lambda_.21} parent=0 // pred_fallthru
    _
  %v18 = vld [vmem:[%s0] sm:$0xff]
  %v19 = vld [vmem:[%s0 + $0x8] sm:$0xff]
  %v20 = vld [vmem:[%s0 + $0x10] sm:$0xff]
  %v21 = vld [vmem:[%s0 + $0x18] sm:$0xff]
  %v22 = vld [vmem:[%s0 + $0x20] sm:$0xf]
  %v23 = vld [vmem:[%s1] sm:$0xf]
  %v24 = vld [vmem:[%s1 + $0x4] sm:$0xf]
  %v25 = vld [vmem:[%s1 + $0x8] sm:$0xf]
  %v26 = vld [vmem:[%s1 + $0xc] sm:$0xf]
  %v27 = vld [vmem:[%s1 + $0x10] sm:$0xf]
  %v28 = vld [vmem:[%s1 + $0x14] sm:$0xf]
  %v29 = vld [vmem:[%s1 + $0x18] sm:$0xf]
  %v30 = vld [vmem:[%s1 + $0x1c] sm:$0xf]
  %v31 = vld [vmem:[%s1 + $0x20] sm:$0xf]
  %v32 = vld [vmem:[%s1 + $0x24] sm:$0xf]
  %v33 = vld [vmem:[%s1 + $0x28] sm:$0xf]
  %v34 = vld [vmem:[%s1 + $0x2c] sm:$0xf]
  %v35 = vld [vmem:[%s1 + $0x30] sm:$0xf]
  %v36 = vld [vmem:[%s1 + $0x34] sm:$0xf]
  %v37 = vld [vmem:[%s1 + $0x38] sm:$0xf]
  %v38 = vld [vmem:[%s1 + $0x3c] sm:$0xf]
  %v39 = vld [vmem:[%s1 + $0x40] sm:$0xf]
  %v40 = vld [vmem:[%s1 + $0x44] sm:$0xf]
  %v41 = vld [vmem:[%s1 + $0x48] sm:$0xf]
  %v42 = vld [vmem:[%s1 + $0x4c] sm:$0xf]
  %v43 = vld [vmem:[%s1 + $0x50] sm:$0xf]
  %v44 = vld [vmem:[%s1 + $0x54] sm:$0xf]
  %v45 = vld [vmem:[%s1 + $0x58] sm:$0xf]
  %v46 = vld [vmem:[%s1 + $0x5c] sm:$0xf]
  %v47 = vld [vmem:[%s1 + $0x60] sm:$0xf]
  %v48 = vld [vmem:[%s1 + $0x64] sm:$0xf]
  %v49 = vld [vmem:[%s1 + $0x68] sm:$0xf]
  %v50 = vld [vmem:[%s1 + $0x6c] sm:$0xf]
  %v51 = vld [vmem:[%s1 + $0x70] sm:$0xf]
  %v52 = vld [vmem:[%s1 + $0x74] sm:$0xf]
  %v53 = vld [vmem:[%s1 + $0x78] sm:$0xf]
  %v54 = vld [vmem:[%s1 + $0x7c] sm:$0xf]
  %v55 = vld [vmem:[%s1 + $0x80] sm:$0xf]
  %v56 = vld [vmem:[%s1 + $0x84] sm:$0xf]
  %v57 = vld [vmem:[%s1 + $0x88] sm:$0xf]
  %v58 = vld [vmem:[%s1 + $0x8c] sm:$0xf]
  %v59 = vld [vmem:[%s1 + $0x90] sm:$0xf]
  %v60 = vld [vmem:[%s1 + $0x94] sm:$0xf]
  %v61 = vld [vmem:[%s1 + $0x98] sm:$0xf]
  %v62 = vld [vmem:[%s1 + $0x9c] sm:$0xf]
  %v63 = vld [vmem:[%s1 + $0xa0] sm:$0xf]
  %v64 = vld [vmem:[%s1 + $0xa4] sm:$0xf]
  %v65 = vld [vmem:[%s1 + $0xa8] sm:$0xf]
  %v66 = vld [vmem:[%s1 + $0xac] sm:$0xf]
  %v67 = vld [vmem:[%s1 + $0xb0] sm:$0xf]
  %v68 = vld [vmem:[%s1 + $0xb4] sm:$0xf]
  %v69 = vld [vmem:[%s1 + $0xb8] sm:$0xf]
  %v70 = vld [vmem:[%s1 + $0xbc] sm:$0xf]
  %v71 = vld [vmem:[%s1 + $0xc0] sm:$0xf]
  %v72 = vld [vmem:[%s1 + $0xc4] sm:$0xf]
  %v73 = vld [vmem:[%s1 + $0xc8] sm:$0xf]
  %v74 = vld [vmem:[%s1 + $0xcc] sm:$0xf]
  %v75 = vld [vmem:[%s1 + $0xd0] sm:$0xf]
  %v76 = vld [vmem:[%s1 + $0xd4] sm:$0xf]
  %v77 = vld [vmem:[%s1 + $0xd8] sm:$0xf]
  %v78 = vld [vmem:[%s1 + $0xdc] sm:$0xf]
  %v79 = vld [vmem:[%s1 + $0xe0] sm:$0xf]
  %v80 = vld [vmem:[%s1 + $0xe4] sm:$0xf]
  %v81 = vld [vmem:[%s1 + $0xe8] sm:$0xf]
  %v82 = vld [vmem:[%s1 + $0xec] sm:$0xf]
  %v83 = vld [vmem:[%s1 + $0xf0] sm:$0xf]
  %v84 = vld [vmem:[%s1 + $0xf4] sm:$0xf]
  %v85 = vld [vmem:[%s1 + $0xf8] sm:$0xf]
  %v86 = vld [vmem:[%s1 + $0xfc] sm:$0xf]
  %v87 = vld [vmem:[%s1 + $0x100] sm:$0xf]
  %v88 = vld [vmem:[%s1 + $0x104] sm:$0xf]
  %v89 = vld [vmem:[%s1 + $0x108] sm:$0xf]
  %v90 = vld [vmem:[%s1 + $0x10c] sm:$0xf]
  %v91 = vld [vmem:[%s1 + $0x110] sm:$0xf]
  %v92 = vld [vmem:[%s1 + $0x114] sm:$0xf]
  %v93 = vld [vmem:[%s1 + $0x118] sm:$0xf]
  %v94 = vld [vmem:[%s1 + $0x11c] sm:$0xf]
  %v95 = vld [vmem:[%s1 + $0x120] sm:$0xf]
  %v96 = vld [vmem:[%s1 + $0x124] sm:$0xf]
  %v97 = vld [vmem:[%s1 + $0x128] sm:$0xf]
  %v98 = vld [vmem:[%s1 + $0x12c] sm:$0xf]
  %v99 = vld [vmem:[%s1 + $0x130] sm:$0xf]
  %v100 = vld [vmem:[%s1 + $0x134] sm:$0xf]
  %v101 = vld [vmem:[%s1 + $0x138] sm:$0xf]
  %v102 = vld [vmem:[%s1 + $0x13c] sm:$0xf]
  %v103 = vld [vmem:[%s1 + $0x140] sm:$0xf]
  %v104 = vld [vmem:[%s1 + $0x144] sm:$0xf]
  %v105 = vld [vmem:[%s1 + $0x148] sm:$0xf]
  %v106 = vld [vmem:[%s1 + $0x14c] sm:$0xf]
  %v107 = vld [vmem:[%s1 + $0x150] sm:$0xf]
  %v108 = vld [vmem:[%s1 + $0x154] sm:$0xf]
  %v109 = vld [vmem:[%s1 + $0x158] sm:$0xf]
  %v110 = vld [vmem:[%s1 + $0x15c] sm:$0xf]
  %v111 = vld [vmem:[%s1 + $0x160] sm:$0xf]
  %v112 = vld [vmem:[%s1 + $0x164] sm:$0xf]
  %v113 = vld [vmem:[%s1 + $0x168] sm:$0xf]
  %v114 = vld [vmem:[%s1 + $0x16c] sm:$0xf]
  %v115 = vld [vmem:[%s1 + $0x170] sm:$0xf]
  %v116 = vld [vmem:[%s1 + $0x174] sm:$0xf]
  %v117 = vld [vmem:[%s1 + $0x178] sm:$0xf]
  %v118 = vld [vmem:[%s1 + $0x17c] sm:$0xf]
  %v119 = vld [vmem:[%s1 + $0x180] sm:$0xf]
  %v120 = vld [vmem:[%s1 + $0x184] sm:$0xf]
  %v121 = vld [vmem:[%s1 + $0x188] sm:$0xf]
  %v122 = vld [vmem:[%s1 + $0x18c] sm:$0xf]
  %v123 = vld [vmem:[%s1 + $0x190] sm:$0xf]
  %v124 = vld [vmem:[%s1 + $0x194] sm:$0xf]
  %v125 = vld [vmem:[%s1 + $0x198] sm:$0xf]
  %v126 = vld [vmem:[%s1 + $0x19c] sm:$0xf]
  %v127 = vld [vmem:[%s1 + $0x1a0] sm:$0xf]
  %v128 = vld [vmem:[%s1 + $0x1a4] sm:$0xf]
  %v129 = vld [vmem:[%s1 + $0x1a8] sm:$0xf]
  %v130 = vld [vmem:[%s1 + $0x1ac] sm:$0xf]
  %v131 = vld [vmem:[%s1 + $0x1b0] sm:$0xf]
  %v132 = vld [vmem:[%s1 + $0x1b4] sm:$0xf]
  %v133 = vld [vmem:[%s1 + $0x1b8] sm:$0xf]
  %v134 = vld [vmem:[%s1 + $0x1bc] sm:$0xf]
  %v135 = vld [vmem:[%s1 + $0x1c0] sm:$0xf]
  %v136 = vld [vmem:[%s1 + $0x1c4] sm:$0xf]
  %v137 = vld [vmem:[%s1 + $0x1c8] sm:$0xf]
  %v138 = vld [vmem:[%s1 + $0x1cc] sm:$0xf]
  %v139 = vld [vmem:[%s1 + $0x1d0] sm:$0xf]
  %v140 = vld [vmem:[%s1 + $0x1d4] sm:$0xf]
  %v141 = vld [vmem:[%s1 + $0x1d8] sm:$0xf]
  %v142 = vld [vmem:[%s1 + $0x1dc] sm:$0xf]
  %v143 = vld [vmem:[%s1 + $0x1e0] sm:$0xf]
  %v144 = vld [vmem:[%s1 + $0x1e4] sm:$0xf]
  %v145 = vld [vmem:[%s1 + $0x1e8] sm:$0xf]
  %v146 = vld [vmem:[%s1 + $0x1ec] sm:$0xf]
  %v147 = vld [vmem:[%s1 + $0x1f0] sm:$0xf]
  %v148 = vld [vmem:[%s1 + $0x1f4] sm:$0xf]
  %v149 = vld [vmem:[%s1 + $0x1f8] sm:$0xf]
  %v150 = vld [vmem:[%s1 + $0x1fc] sm:$0xf]
  %v151 = vld [vmem:[%s1 + $0x200] sm:$0xf]
  %v152 = vld [vmem:[%s1 + $0x204] sm:$0xf]
  %v153 = vld [vmem:[%s1 + $0x208] sm:$0xf]
  %v154 = vld [vmem:[%s1 + $0x20c] sm:$0xf]
  %v155 = vld [vmem:[%s1 + $0x210] sm:$0xf]
  %v156 = vld [vmem:[%s1 + $0x214] sm:$0xf]
  %v157 = vld [vmem:[%s1 + $0x218] sm:$0xf]
  %v158 = vld [vmem:[%s1 + $0x21c] sm:$0xf]
  %v159 = vld [vmem:[%s1 + $0x220] sm:$0xf]
  %v160 = vld [vmem:[%s1 + $0x224] sm:$0xf]
  %v161 = vld [vmem:[%s1 + $0x228] sm:$0xf]
  %v162 = vld [vmem:[%s1 + $0x22c] sm:$0xf]
  %v163 = vld [vmem:[%s1 + $0x230] sm:$0xf]
  %v164 = vld [vmem:[%s1 + $0x234] sm:$0xf]
  %v165 = vld [vmem:[%s1 + $0x238] sm:$0xf]
  %v166 = vld [vmem:[%s1 + $0x23c] sm:$0xf]
  %v172 = vunpack.c.l.b16 %v18
  %v173 = vunpack.c.h.b16 %v18
  %v174 = vunpack.c.l.b16 %v19
  %v175 = vunpack.c.h.b16 %v19
  %v176 = vunpack.c.l.b16 %v20
  %v177 = vunpack.c.h.b16 %v20
  %v178 = vunpack.c.l.b16 %v21
  %v179 = vunpack.c.h.b16 %v21
  %v180 = vunpack.c.l.b16 %v22
  %v181 = vpack.c.b16 %v172, %v172
  %v182 = vpack.c.b16 %v173, %v173
  %v183 = vpack.c.b16 %v174, %v174
  %v184 = vpack.c.b16 %v175, %v175
  %v185 = vpack.c.b16 %v176, %v176
  %v186 = vpack.c.b16 %v177, %v177
  %v187 = vpack.c.b16 %v178, %v178
  %v188 = vpack.c.b16 %v179, %v179
  %v189 = vpack.c.b16 %v180, %v180
  %v343 = vunpack.c.l.b16 %v23
  %v344 = vunpack.c.l.b16 %v24
  %v345 = vunpack.c.l.b16 %v25
  %v346 = vunpack.c.l.b16 %v26
  %v347 = vunpack.c.l.b16 %v27
  %v348 = vunpack.c.l.b16 %v28
  %v349 = vunpack.c.l.b16 %v29
  %v350 = vunpack.c.l.b16 %v30
  %v351 = vunpack.c.l.b16 %v31
  %v352 = vunpack.c.l.b16 %v32
  %v353 = vunpack.c.l.b16 %v33
  %v354 = vunpack.c.l.b16 %v34
  %v355 = vunpack.c.l.b16 %v35
  %v356 = vunpack.c.l.b16 %v36
  %v357 = vunpack.c.l.b16 %v37
  %v358 = vunpack.c.l.b16 %v38
  %v359 = vunpack.c.l.b16 %v39
  %v360 = vunpack.c.l.b16 %v40
  %v361 = vunpack.c.l.b16 %v41
  %v362 = vunpack.c.l.b16 %v42
  %v363 = vunpack.c.l.b16 %v43
  %v364 = vunpack.c.l.b16 %v44
  %v365 = vunpack.c.l.b16 %v45
  %v366 = vunpack.c.l.b16 %v46
  %v367 = vunpack.c.l.b16 %v47
  %v368 = vunpack.c.l.b16 %v48
  %v369 = vunpack.c.l.b16 %v49
  %v370 = vunpack.c.l.b16 %v50
  %v371 = vunpack.c.l.b16 %v51
  %v372 = vunpack.c.l.b16 %v52
  %v373 = vunpack.c.l.b16 %v53
  %v374 = vunpack.c.l.b16 %v54
  %v375 = vunpack.c.l.b16 %v55
  %v376 = vunpack.c.l.b16 %v56
  %v377 = vunpack.c.l.b16 %v57
  %v378 = vunpack.c.l.b16 %v58
  %v379 = vunpack.c.l.b16 %v59
  %v380 = vunpack.c.l.b16 %v60
  %v381 = vunpack.c.l.b16 %v61
  %v382 = vunpack.c.l.b16 %v62
  %v383 = vunpack.c.l.b16 %v63
  %v384 = vunpack.c.l.b16 %v64
  %v385 = vunpack.c.l.b16 %v65
  %v386 = vunpack.c.l.b16 %v66
  %v387 = vunpack.c.l.b16 %v67
  %v388 = vunpack.c.l.b16 %v68
  %v389 = vunpack.c.l.b16 %v69
  %v390 = vunpack.c.l.b16 %v70
  %v391 = vunpack.c.l.b16 %v71
  %v392 = vunpack.c.l.b16 %v72
  %v393 = vunpack.c.l.b16 %v73
  %v394 = vunpack.c.l.b16 %v74
  %v395 = vunpack.c.l.b16 %v75
  %v396 = vunpack.c.l.b16 %v76
  %v397 = vunpack.c.l.b16 %v77
  %v398 = vunpack.c.l.b16 %v78
  %v399 = vunpack.c.l.b16 %v79
  %v400 = vunpack.c.l.b16 %v80
  %v401 = vunpack.c.l.b16 %v81
  %v402 = vunpack.c.l.b16 %v82
  %v403 = vunpack.c.l.b16 %v83
  %v404 = vunpack.c.l.b16 %v84
  %v405 = vunpack.c.l.b16 %v85
  %v406 = vunpack.c.l.b16 %v86
  %v407 = vunpack.c.l.b16 %v87
  %v408 = vunpack.c.l.b16 %v88
  %v409 = vunpack.c.l.b16 %v89
  %v410 = vunpack.c.l.b16 %v90
  %v411 = vunpack.c.l.b16 %v91
  %v412 = vunpack.c.l.b16 %v92
  %v413 = vunpack.c.l.b16 %v93
  %v414 = vunpack.c.l.b16 %v94
  %v415 = vunpack.c.l.b16 %v95
  %v416 = vunpack.c.l.b16 %v96
  %v417 = vunpack.c.l.b16 %v97
  %v418 = vunpack.c.l.b16 %v98
  %v419 = vunpack.c.l.b16 %v99
  %v420 = vunpack.c.l.b16 %v100
  %v421 = vunpack.c.l.b16 %v101
  %v422 = vunpack.c.l.b16 %v102
  %v423 = vunpack.c.l.b16 %v103
  %v424 = vunpack.c.l.b16 %v104
  %v425 = vunpack.c.l.b16 %v105
  %v426 = vunpack.c.l.b16 %v106
  %v427 = vunpack.c.l.b16 %v107
  %v428 = vunpack.c.l.b16 %v108
  %v429 = vunpack.c.l.b16 %v109
  %v430 = vunpack.c.l.b16 %v110
  %v431 = vunpack.c.l.b16 %v111
  %v432 = vunpack.c.l.b16 %v112
  %v433 = vunpack.c.l.b16 %v113
  %v434 = vunpack.c.l.b16 %v114
  %v435 = vunpack.c.l.b16 %v115
  %v436 = vunpack.c.l.b16 %v116
  %v437 = vunpack.c.l.b16 %v117
  %v438 = vunpack.c.l.b16 %v118
  %v439 = vunpack.c.l.b16 %v119
  %v440 = vunpack.c.l.b16 %v120
  %v441 = vunpack.c.l.b16 %v121
  %v442 = vunpack.c.l.b16 %v122
  %v443 = vunpack.c.l.b16 %v123
  %v444 = vunpack.c.l.b16 %v124
  %v445 = vunpack.c.l.b16 %v125
  %v446 = vunpack.c.l.b16 %v126
  %v447 = vunpack.c.l.b16 %v127
  %v448 = vunpack.c.l.b16 %v128
  %v449 = vunpack.c.l.b16 %v129
  %v450 = vunpack.c.l.b16 %v130
  %v451 = vunpack.c.l.b16 %v131
  %v452 = vunpack.c.l.b16 %v132
  %v453 = vunpack.c.l.b16 %v133
  %v454 = vunpack.c.l.b16 %v134
  %v455 = vunpack.c.l.b16 %v135
  %v456 = vunpack.c.l.b16 %v136
  %v457 = vunpack.c.l.b16 %v137
  %v458 = vunpack.c.l.b16 %v138
  %v459 = vunpack.c.l.b16 %v139
  %v460 = vunpack.c.l.b16 %v140
  %v461 = vunpack.c.l.b16 %v141
  %v462 = vunpack.c.l.b16 %v142
  %v463 = vunpack.c.l.b16 %v143
  %v464 = vunpack.c.l.b16 %v144
  %v465 = vunpack.c.l.b16 %v145
  %v466 = vunpack.c.l.b16 %v146
  %v467 = vunpack.c.l.b16 %v147
  %v468 = vunpack.c.l.b16 %v148
  %v469 = vunpack.c.l.b16 %v149
  %v470 = vunpack.c.l.b16 %v150
  %v471 = vunpack.c.l.b16 %v151
  %v472 = vunpack.c.l.b16 %v152
  %v473 = vunpack.c.l.b16 %v153
  %v474 = vunpack.c.l.b16 %v154
  %v475 = vunpack.c.l.b16 %v155
  %v476 = vunpack.c.l.b16 %v156
  %v477 = vunpack.c.l.b16 %v157
  %v478 = vunpack.c.l.b16 %v158
  %v479 = vunpack.c.l.b16 %v159
  %v480 = vunpack.c.l.b16 %v160
  %v481 = vunpack.c.l.b16 %v161
  %v482 = vunpack.c.l.b16 %v162
  %v483 = vunpack.c.l.b16 %v163
  %v484 = vunpack.c.l.b16 %v164
  %v485 = vunpack.c.l.b16 %v165
  %v486 = vunpack.c.l.b16 %v166
  %v487 = vpack.c.b16 %v344, %v343
  %v488 = vpack.c.b16 %v346, %v345
  %v489 = vpack.c.b16 %v348, %v347
  %v490 = vpack.c.b16 %v350, %v349
  %v491 = vpack.c.b16 %v352, %v351
  %v492 = vpack.c.b16 %v354, %v353
  %v493 = vpack.c.b16 %v356, %v355
  %v494 = vpack.c.b16 %v358, %v357
  %v495 = vpack.c.b16 %v360, %v359
  %v496 = vpack.c.b16 %v362, %v361
  %v497 = vpack.c.b16 %v364, %v363
  %v498 = vpack.c.b16 %v366, %v365
  %v499 = vpack.c.b16 %v368, %v367
  %v500 = vpack.c.b16 %v370, %v369
  %v501 = vpack.c.b16 %v372, %v371
  %v502 = vpack.c.b16 %v374, %v373
  %v503 = vpack.c.b16 %v376, %v375
  %v504 = vpack.c.b16 %v378, %v377
  %v505 = vpack.c.b16 %v380, %v379
  %v506 = vpack.c.b16 %v382, %v381
  %v507 = vpack.c.b16 %v384, %v383
  %v508 = vpack.c.b16 %v386, %v385
  %v509 = vpack.c.b16 %v388, %v387
  %v510 = vpack.c.b16 %v390, %v389
  %v511 = vpack.c.b16 %v392, %v391
  %v512 = vpack.c.b16 %v394, %v393
  %v513 = vpack.c.b16 %v396, %v395
  %v514 = vpack.c.b16 %v398, %v397
  %v515 = vpack.c.b16 %v400, %v399
  %v516 = vpack.c.b16 %v402, %v401
  %v517 = vpack.c.b16 %v404, %v403
  %v518 = vpack.c.b16 %v406, %v405
  %v519 = vpack.c.b16 %v408, %v407
  %v520 = vpack.c.b16 %v410, %v409
  %v521 = vpack.c.b16 %v412, %v411
  %v522 = vpack.c.b16 %v414, %v413
  %v523 = vpack.c.b16 %v416, %v415
  %v524 = vpack.c.b16 %v418, %v417
  %v525 = vpack.c.b16 %v420, %v419
  %v526 = vpack.c.b16 %v422, %v421
  %v527 = vpack.c.b16 %v424, %v423
  %v528 = vpack.c.b16 %v426, %v425
  %v529 = vpack.c.b16 %v428, %v427
  %v530 = vpack.c.b16 %v430, %v429
  %v531 = vpack.c.b16 %v432, %v431
  %v532 = vpack.c.b16 %v434, %v433
  %v533 = vpack.c.b16 %v436, %v435
  %v534 = vpack.c.b16 %v438, %v437
  %v535 = vpack.c.b16 %v440, %v439
  %v536 = vpack.c.b16 %v442, %v441
  %v537 = vpack.c.b16 %v444, %v443
  %v538 = vpack.c.b16 %v446, %v445
  %v539 = vpack.c.b16 %v448, %v447
  %v540 = vpack.c.b16 %v450, %v449
  %v541 = vpack.c.b16 %v452, %v451
  %v542 = vpack.c.b16 %v454, %v453
  %v543 = vpack.c.b16 %v456, %v455
  %v544 = vpack.c.b16 %v458, %v457
  %v545 = vpack.c.b16 %v460, %v459
  %v546 = vpack.c.b16 %v462, %v461
  %v547 = vpack.c.b16 %v464, %v463
  %v548 = vpack.c.b16 %v466, %v465
  %v549 = vpack.c.b16 %v468, %v467
  %v550 = vpack.c.b16 %v470, %v469
  %v551 = vpack.c.b16 %v472, %v471
  %v552 = vpack.c.b16 %v474, %v473
  %v553 = vpack.c.b16 %v476, %v475
  %v554 = vpack.c.b16 %v478, %v477
  %v555 = vpack.c.b16 %v480, %v479
  %v556 = vpack.c.b16 %v482, %v481
  %v557 = vpack.c.b16 %v484, %v483
  %v558 = vpack.c.b16 %v486, %v485
  %631 = vmatprep.subr.bf16.mxu0 0
  %632 = vmatpush1.bf16.msra.mxu0 %v487
  %633 = vmatprep.subr.bf16.mxu0 0
  %634 = vmatpush1.bf16.msra.mxu0 %v488
  %635 = vmatprep.subr.bf16.mxu0 0
  %636 = vmatpush1.bf16.msra.mxu0 %v489
  %637 = vmatprep.subr.bf16.mxu0 0
  %638 = vmatpush1.bf16.msra.mxu0 %v490
  %639 = vmatprep.subr.bf16.mxu0 0
  %640 = vmatpush1.bf16.msra.mxu0 %v491
  %641 = vmatprep.subr.bf16.mxu0 0
  %642 = vmatpush1.bf16.msra.mxu0 %v492
  %643 = vmatprep.subr.bf16.mxu0 0
  %644 = vmatpush1.bf16.msra.mxu0 %v493
  %645 = vmatprep.subr.bf16.mxu0 0
  %646 = vmatpush1.bf16.msra.mxu0 %v494
  %647 = vmatprep.subr.bf16.mxu0 0
  %648 = vmatpush1.bf16.msra.mxu0 %v495
  %649 = vmatprep.subr.bf16.mxu0 0
  %650 = vmatpush1.bf16.msra.mxu0 %v496
  %651 = vmatprep.subr.bf16.mxu0 0
  %652 = vmatpush1.bf16.msra.mxu0 %v497
  %653 = vmatprep.subr.bf16.mxu0 0
  %654 = vmatpush1.bf16.msra.mxu0 %v498
  %655 = vmatprep.subr.bf16.mxu0 0
  %656 = vmatpush1.bf16.msra.mxu0 %v499
  %657 = vmatprep.subr.bf16.mxu0 0
  %658 = vmatpush1.bf16.msra.mxu0 %v500
  %659 = vmatprep.subr.bf16.mxu0 0
  %660 = vmatpush1.bf16.msra.mxu0 %v501
  %661 = vmatprep.subr.bf16.mxu0 0
  %662 = vmatpush1.bf16.msra.mxu0 %v502
  %663 = vmatprep.mubr.bf16.mxu0 %v182
  %664 = vmatmul.mubr.bf16.gmra.mrb[0].mxu0 %v181
  %v665 = vpop.f32.mrb[0].mxu0
  %v666 = vadd.f32 0.0, %v665
  %v667 = vpop.f32.mrb[0].mxu0
  %v668 = vpop.f32.mrb[0].mxu0
  %v669 = vpop.f32.mrb[0].mxu0
  %670 = vdwg.mxu0
  %671 = vmatprep.subr.bf16.mxu0 0
  %672 = vmatpush1.bf16.msra.mxu0 %v503
  %673 = vmatprep.subr.bf16.mxu0 0
  %674 = vmatpush1.bf16.msra.mxu0 %v504
  %675 = vmatprep.subr.bf16.mxu0 0
  %676 = vmatpush1.bf16.msra.mxu0 %v505
  %677 = vmatprep.subr.bf16.mxu0 0
  %678 = vmatpush1.bf16.msra.mxu0 %v506
  %679 = vmatprep.subr.bf16.mxu0 0
  %680 = vmatpush1.bf16.msra.mxu0 %v507
  %681 = vmatprep.subr.bf16.mxu0 0
  %682 = vmatpush1.bf16.msra.mxu0 %v508
  %683 = vmatprep.subr.bf16.mxu0 0
  %684 = vmatpush1.bf16.msra.mxu0 %v509
  %685 = vmatprep.subr.bf16.mxu0 0
  %686 = vmatpush1.bf16.msra.mxu0 %v510
  %687 = vmatprep.subr.bf16.mxu0 0
  %688 = vmatpush1.bf16.msra.mxu0 %v511
  %689 = vmatprep.subr.bf16.mxu0 0
  %690 = vmatpush1.bf16.msra.mxu0 %v512
  %691 = vmatprep.subr.bf16.mxu0 0
  %692 = vmatpush1.bf16.msra.mxu0 %v513
  %693 = vmatprep.subr.bf16.mxu0 0
  %694 = vmatpush1.bf16.msra.mxu0 %v514
  %695 = vmatprep.subr.bf16.mxu0 0
  %696 = vmatpush1.bf16.msra.mxu0 %v515
  %697 = vmatprep.subr.bf16.mxu0 0
  %698 = vmatpush1.bf16.msra.mxu0 %v516
  %699 = vmatprep.subr.bf16.mxu0 0
  %700 = vmatpush1.bf16.msra.mxu0 %v517
  %701 = vmatprep.subr.bf16.mxu0 0
  %702 = vmatpush1.bf16.msra.mxu0 %v518
  %703 = vmatprep.mubr.bf16.mxu0 %v184
  %704 = vmatmul.mubr.bf16.gmra.mrb[0].mxu0 %v183
  %v705 = vpop.f32.mrb[0].mxu0
  %v706 = vadd.f32 %v666, %v705
  %v707 = vpop.f32.mrb[0].mxu0
  %v708 = vpop.f32.mrb[0].mxu0
  %v709 = vpop.f32.mrb[0].mxu0
  %710 = vdwg.mxu0
  %711 = vmatprep.subr.bf16.mxu0 0
  %712 = vmatpush1.bf16.msra.mxu0 %v519
  %713 = vmatprep.subr.bf16.mxu0 0
  %714 = vmatpush1.bf16.msra.mxu0 %v520
  %715 = vmatprep.subr.bf16.mxu0 0
  %716 = vmatpush1.bf16.msra.mxu0 %v521
  %717 = vmatprep.subr.bf16.mxu0 0
  %718 = vmatpush1.bf16.msra.mxu0 %v522
  %719 = vmatprep.subr.bf16.mxu0 0
  %720 = vmatpush1.bf16.msra.mxu0 %v523
  %721 = vmatprep.subr.bf16.mxu0 0
  %722 = vmatpush1.bf16.msra.mxu0 %v524
  %723 = vmatprep.subr.bf16.mxu0 0
  %724 = vmatpush1.bf16.msra.mxu0 %v525
  %725 = vmatprep.subr.bf16.mxu0 0
  %726 = vmatpush1.bf16.msra.mxu0 %v526
  %727 = vmatprep.subr.bf16.mxu0 0
  %728 = vmatpush1.bf16.msra.mxu0 %v527
  %729 = vmatprep.subr.bf16.mxu0 0
  %730 = vmatpush1.bf16.msra.mxu0 %v528
  %731 = vmatprep.subr.bf16.mxu0 0
  %732 = vmatpush1.bf16.msra.mxu0 %v529
  %733 = vmatprep.subr.bf16.mxu0 0
  %734 = vmatpush1.bf16.msra.mxu0 %v530
  %735 = vmatprep.subr.bf16.mxu0 0
  %736 = vmatpush1.bf16.msra.mxu0 %v531
  %737 = vmatprep.subr.bf16.mxu0 0
  %738 = vmatpush1.bf16.msra.mxu0 %v532
  %739 = vmatprep.subr.bf16.mxu0 0
  %740 = vmatpush1.bf16.msra.mxu0 %v533
  %741 = vmatprep.subr.bf16.mxu0 0
  %742 = vmatpush1.bf16.msra.mxu0 %v534
  %743 = vmatprep.mubr.bf16.mxu0 %v186
  %744 = vmatmul.mubr.bf16.gmra.mrb[0].mxu0 %v185
  %v745 = vpop.f32.mrb[0].mxu0
  %v746 = vadd.f32 %v706, %v745
  %v747 = vpop.f32.mrb[0].mxu0
  %v748 = vpop.f32.mrb[0].mxu0
  %v749 = vpop.f32.mrb[0].mxu0
  %750 = vdwg.mxu0
  %751 = vmatprep.subr.bf16.mxu0 0
  %752 = vmatpush1.bf16.msra.mxu0 %v535
  %753 = vmatprep.subr.bf16.mxu0 0
  %754 = vmatpush1.bf16.msra.mxu0 %v536
  %755 = vmatprep.subr.bf16.mxu0 0
  %756 = vmatpush1.bf16.msra.mxu0 %v537
  %757 = vmatprep.subr.bf16.mxu0 0
  %758 = vmatpush1.bf16.msra.mxu0 %v538
  %759 = vmatprep.subr.bf16.mxu0 0
  %760 = vmatpush1.bf16.msra.mxu0 %v539
  %761 = vmatprep.subr.bf16.mxu0 0
  %762 = vmatpush1.bf16.msra.mxu0 %v540
  %763 = vmatprep.subr.bf16.mxu0 0
  %764 = vmatpush1.bf16.msra.mxu0 %v541
  %765 = vmatprep.subr.bf16.mxu0 0
  %766 = vmatpush1.bf16.msra.mxu0 %v542
  %767 = vmatprep.subr.bf16.mxu0 0
  %768 = vmatpush1.bf16.msra.mxu0 %v543
  %769 = vmatprep.subr.bf16.mxu0 0
  %770 = vmatpush1.bf16.msra.mxu0 %v544
  %771 = vmatprep.subr.bf16.mxu0 0
  %772 = vmatpush1.bf16.msra.mxu0 %v545
  %773 = vmatprep.subr.bf16.mxu0 0
  %774 = vmatpush1.bf16.msra.mxu0 %v546
  %775 = vmatprep.subr.bf16.mxu0 0
  %776 = vmatpush1.bf16.msra.mxu0 %v547
  %777 = vmatprep.subr.bf16.mxu0 0
  %778 = vmatpush1.bf16.msra.mxu0 %v548
  %779 = vmatprep.subr.bf16.mxu0 0
  %780 = vmatpush1.bf16.msra.mxu0 %v549
  %781 = vmatprep.subr.bf16.mxu0 0
  %782 = vmatpush1.bf16.msra.mxu0 %v550
  %783 = vmatprep.mubr.bf16.mxu0 %v188
  %784 = vmatmul.mubr.bf16.gmra.mrb[0].mxu0 %v187
  %v785 = vpop.f32.mrb[0].mxu0
  %v786 = vadd.f32 %v746, %v785
  %v787 = vpop.f32.mrb[0].mxu0
  %v788 = vpop.f32.mrb[0].mxu0
  %v789 = vpop.f32.mrb[0].mxu0
  %790 = vdwg.mxu0
  %791 = vmatprep.subr.bf16.mxu0 0
  %792 = vmatpush1.bf16.msra.mxu0 %v551
  %793 = vmatprep.subr.bf16.mxu0 0
  %794 = vmatpush1.bf16.msra.mxu0 %v552
  %795 = vmatprep.subr.bf16.mxu0 0
  %796 = vmatpush1.bf16.msra.mxu0 %v553
  %797 = vmatprep.subr.bf16.mxu0 0
  %798 = vmatpush1.bf16.msra.mxu0 %v554
  %799 = vmatprep.subr.bf16.mxu0 0
  %800 = vmatpush1.bf16.msra.mxu0 %v555
  %801 = vmatprep.subr.bf16.mxu0 0
  %802 = vmatpush1.bf16.msra.mxu0 %v556
  %803 = vmatprep.subr.bf16.mxu0 0
  %804 = vmatpush1.bf16.msra.mxu0 %v557
  %805 = vmatprep.subr.bf16.mxu0 0
  %806 = vmatpush1.bf16.msra.mxu0 %v558
  %807 = vmatprep.subr.bf16.mxu0 0
  %808 = vmatpush1.bf16.msra.mxu0 0
  %809 = vmatprep.subr.bf16.mxu0 0
  %810 = vmatpush1.bf16.msra.mxu0 0
  %811 = vmatprep.subr.bf16.mxu0 0
  %812 = vmatpush1.bf16.msra.mxu0 0
  %813 = vmatprep.subr.bf16.mxu0 0
  %814 = vmatpush1.bf16.msra.mxu0 0
  %815 = vmatprep.subr.bf16.mxu0 0
  %816 = vmatpush1.bf16.msra.mxu0 0
  %817 = vmatprep.subr.bf16.mxu0 0
  %818 = vmatpush1.bf16.msra.mxu0 0
  %819 = vmatprep.subr.bf16.mxu0 0
  %820 = vmatpush1.bf16.msra.mxu0 0
  %821 = vmatprep.subr.bf16.mxu0 0
  %822 = vmatpush1.bf16.msra.mxu0 0
  %823 = vmatprep.mubr.bf16.mxu0 0
  %824 = vmatmul.mubr.bf16.gmra.mrb[0].mxu0 %v189
  %v825 = vpop.f32.mrb[0].mxu0
  %v826 = vadd.f32 %v786, %v825
  %v827 = vpop.f32.mrb[0].mxu0
  %v828 = vpop.f32.mrb[0].mxu0
  %v829 = vpop.f32.mrb[0].mxu0
  %830 = vdwg.mxu0
  %v831 = vld [vmem:[%s2] sm:$0x1]
  %v832 = vlaneseq
  %v833 = vshrl.u32 %v832, 7
  %v834 = vsub.s32 0, %v833
  %v835 = vrot.slane %v831, %v834
  %v836 = vmul.f32 %v826, %v835
  %v837 = vld [vmem:[%s2 + $0x1] sm:$0x1]
  %v838 = vlaneseq
  %v839 = vshrl.u32 %v838, 7
  %v840 = vsub.s32 0, %v839
  %v841 = vrot.slane %v837, %v840
  %v842 = vadd.f32 %v836, %v841
  %vm843 = vcmp.gt.f32.partialorder %v842, 0.0
  %v844 = vld [vmem:[%s2 + $0x2] sm:$0x1]
  %v845 = vlaneseq
  %v846 = vshrl.u32 %v845, 7
  %v847 = vsub.s32 0, %v846
  %v848 = vrot.slane %v844, %v847
  %v849 = vmul.f32 %v848, %v842
  %v850 = vsel %vm843, %v842, %v849
  %v851 = vld [vmem:[%s3] sm:$0xf]
  %v852 = vunpack.c.l.bf16 %v851
  %v853 = vadd.f32 %v850, %v852
  %vm854 = vcmp.gt.f32.partialorder %v853, 0.0
  %v855 = vld [vmem:[%s2 + $0x3] sm:$0x1]
  %v856 = vlaneseq
  %v857 = vshrl.u32 %v856, 7
  %v858 = vsub.s32 0, %v857
  %v859 = vrot.slane %v855, %v858
  %v860 = vmul.f32 %v859, %v853
  %v861 = vsel %vm854, %v853, %v860
  %v862 = vpack.c.bf16 %v861, %v861
  %863 = vst [vmem:[%s4] sm:$0xf] %v862
  // Predicated region
  $region18: #{_lambda_.21} parent=0 // pred_check
    _
  $region19: #{_lambda_.21} parent=0 // pred_check_branch
    %865 = sbr.rel (0) target = $region21
  $region20: #{_lambda_.21} parent=0 // pred_region
    _
  $region21: #{_lambda_.21} parent=0 // pred_fallthru
    _
  // Predicated region
  $region22: #{_lambda_.21} parent=0 // pred_check
    _
  $region23: #{_lambda_.21} parent=0 // pred_check_branch
    %867 = sbr.rel (0) target = $region25
  $region24: #{_lambda_.21} parent=0 // pred_region
    _
  $region25: #{_lambda_.21} parent=0 // pred_fallthru
    _

// kernel: _lambda_.22
$region0: #{_lambda_.22}
  #allocation0 [shape = 'u32[]', space=smem, size = 0x4, offset = 0x4, fixed_abs, tag = 'smem constant byte address 0x4 - core index']
  #allocation1 [shape = 'u32[144,128]{1,0:T(1,128)}', space=vmem, size = 0x12000, scoped, tag = 'internal scratch']
  %s0 = inlined_call_operand.vmem [shape: bf16[8,512], index: 0, kind: input, shape index: {}]
  %s1 = inlined_call_operand.vmem [shape: bf16[512,256], index: 1, kind: input, shape index: {}]
  %s2 = inlined_call_operand.vmem [shape: f32[8,256], index: 2, kind: input, shape index: {}]
  %s3 = inlined_call_operand.vmem [shape: bf16[8,256], index: 3, kind: output, shape index: {}]
  %s4 = sld [smem:[#allocation0]]
  $region22: #{_lambda_.22} parent=0
    _
  %s6 = ssub.s32 1, %s4
  %s7 = scalar_select 0, %s6, %s4
  // Predicated region
  $region2: #{_lambda_.22} parent=0 // pred_check
    _
  $region3: #{_lambda_.22} parent=0 // pred_check_branch
    %9 = sbr.rel (0) target = $region5
  $region4: #{_lambda_.22} parent=0 // pred_region
    _
  $region5: #{_lambda_.22} parent=0 // pred_fallthru
    _
  // Predicated region
  $region6: #{_lambda_.22} parent=0 // pred_check
    _
  $region7: #{_lambda_.22} parent=0 // pred_check_branch
    %11 = sbr.rel (0) target = $region9
  $region8: #{_lambda_.22} parent=0 // pred_region
    _
  $region9: #{_lambda_.22} parent=0 // pred_fallthru
    _
  // Predicated region
  $region10: #{_lambda_.22} parent=0 // pred_check
    _
  $region11: #{_lambda_.22} parent=0 // pred_check_branch
    %13 = sbr.rel (0) target = $region13
  $region12: #{_lambda_.22} parent=0 // pred_region
    _
  $region13: #{_lambda_.22} parent=0 // pred_fallthru
    _
  %v14 = vld [vmem:[%s0] sm:$0xff]
  %v15 = vld [vmem:[%s0 + $0x8] sm:$0xff]
  %v16 = vld [vmem:[%s1] sm:$0xff]
  %v17 = vld [vmem:[%s1 + $0x8] sm:$0xff]
  %v18 = vld [vmem:[%s1 + $0x10] sm:$0xff]
  %v19 = vld [vmem:[%s1 + $0x18] sm:$0xff]
  %v20 = vld [vmem:[%s1 + $0x20] sm:$0xff]
  %v21 = vld [vmem:[%s1 + $0x28] sm:$0xff]
  %v22 = vld [vmem:[%s1 + $0x30] sm:$0xff]
  %v23 = vld [vmem:[%s1 + $0x38] sm:$0xff]
  %v24 = vld [vmem:[%s1 + $0x40] sm:$0xff]
  %v25 = vld [vmem:[%s1 + $0x48] sm:$0xff]
  %v26 = vld [vmem:[%s1 + $0x50] sm:$0xff]
  %v27 = vld [vmem:[%s1 + $0x58] sm:$0xff]
  %v28 = vld [vmem:[%s1 + $0x60] sm:$0xff]
  %v29 = vld [vmem:[%s1 + $0x68] sm:$0xff]
  %v30 = vld [vmem:[%s1 + $0x70] sm:$0xff]
  %v31 = vld [vmem:[%s1 + $0x78] sm:$0xff]
  %v32 = vld [vmem:[%s1 + $0x80] sm:$0xff]
  %v33 = vld [vmem:[%s1 + $0x88] sm:$0xff]
  %v34 = vld [vmem:[%s1 + $0x90] sm:$0xff]
  %v35 = vld [vmem:[%s1 + $0x98] sm:$0xff]
  %v36 = vld [vmem:[%s1 + $0xa0] sm:$0xff]
  %v37 = vld [vmem:[%s1 + $0xa8] sm:$0xff]
  %v38 = vld [vmem:[%s1 + $0xb0] sm:$0xff]
  %v39 = vld [vmem:[%s1 + $0xb8] sm:$0xff]
  %v40 = vld [vmem:[%s1 + $0xc0] sm:$0xff]
  %v41 = vld [vmem:[%s1 + $0xc8] sm:$0xff]
  %v42 = vld [vmem:[%s1 + $0xd0] sm:$0xff]
  %v43 = vld [vmem:[%s1 + $0xd8] sm:$0xff]
  %v44 = vld [vmem:[%s1 + $0xe0] sm:$0xff]
  %v45 = vld [vmem:[%s1 + $0xe8] sm:$0xff]
  %v46 = vld [vmem:[%s1 + $0xf0] sm:$0xff]
  %v47 = vld [vmem:[%s1 + $0xf8] sm:$0xff]
  %v48 = vld [vmem:[%s1 + $0x100] sm:$0xff]
  %v49 = vld [vmem:[%s1 + $0x108] sm:$0xff]
  %v50 = vld [vmem:[%s1 + $0x110] sm:$0xff]
  %v51 = vld [vmem:[%s1 + $0x118] sm:$0xff]
  %v52 = vld [vmem:[%s1 + $0x120] sm:$0xff]
  %v53 = vld [vmem:[%s1 + $0x128] sm:$0xff]
  %v54 = vld [vmem:[%s1 + $0x130] sm:$0xff]
  %v55 = vld [vmem:[%s1 + $0x138] sm:$0xff]
  %v56 = vld [vmem:[%s1 + $0x140] sm:$0xff]
  %v57 = vld [vmem:[%s1 + $0x148] sm:$0xff]
  %v58 = vld [vmem:[%s1 + $0x150] sm:$0xff]
  %v59 = vld [vmem:[%s1 + $0x158] sm:$0xff]
  %v60 = vld [vmem:[%s1 + $0x160] sm:$0xff]
  %v61 = vld [vmem:[%s1 + $0x168] sm:$0xff]
  %v62 = vld [vmem:[%s1 + $0x170] sm:$0xff]
  %v63 = vld [vmem:[%s1 + $0x178] sm:$0xff]
  %v64 = vld [vmem:[%s1 + $0x180] sm:$0xff]
  %v65 = vld [vmem:[%s1 + $0x188] sm:$0xff]
  %v66 = vld [vmem:[%s1 + $0x190] sm:$0xff]
  %v67 = vld [vmem:[%s1 + $0x198] sm:$0xff]
  %v68 = vld [vmem:[%s1 + $0x1a0] sm:$0xff]
  %v69 = vld [vmem:[%s1 + $0x1a8] sm:$0xff]
  %v70 = vld [vmem:[%s1 + $0x1b0] sm:$0xff]
  %v71 = vld [vmem:[%s1 + $0x1b8] sm:$0xff]
  %v72 = vld [vmem:[%s1 + $0x1c0] sm:$0xff]
  %v73 = vld [vmem:[%s1 + $0x1c8] sm:$0xff]
  %v74 = vld [vmem:[%s1 + $0x1d0] sm:$0xff]
  %v75 = vld [vmem:[%s1 + $0x1d8] sm:$0xff]
  %v76 = vld [vmem:[%s1 + $0x1e0] sm:$0xff]
  %v77 = vld [vmem:[%s1 + $0x1e8] sm:$0xff]
  %v78 = vld [vmem:[%s1 + $0x1f0] sm:$0xff]
  %v79 = vld [vmem:[%s1 + $0x1f8] sm:$0xff]
  %v82 = vunpack.c.l.b16 %v14
  %v83 = vunpack.c.h.b16 %v14
  %v84 = vunpack.c.l.b16 %v15
  %v85 = vunpack.c.h.b16 %v15
  %v86 = vpack.c.b16 %v82, %v82
  %v87 = vpack.c.b16 %v83, %v83
  %v88 = vpack.c.b16 %v84, %v84
  %v89 = vpack.c.b16 %v85, %v85
  %v158 = vunpack.c.l.b16 %v16
  %v159 = vunpack.c.h.b16 %v16
  %v160 = vunpack.c.l.b16 %v17
  %v161 = vunpack.c.h.b16 %v17
  %v162 = vunpack.c.l.b16 %v18
  %v163 = vunpack.c.h.b16 %v18
  %v164 = vunpack.c.l.b16 %v19
  %v165 = vunpack.c.h.b16 %v19
  %v166 = vunpack.c.l.b16 %v20
  %v167 = vunpack.c.h.b16 %v20
  %v168 = vunpack.c.l.b16 %v21
  %v169 = vunpack.c.h.b16 %v21
  %v170 = vunpack.c.l.b16 %v22
  %v171 = vunpack.c.h.b16 %v22
  %v172 = vunpack.c.l.b16 %v23
  %v173 = vunpack.c.h.b16 %v23
  %v174 = vunpack.c.l.b16 %v24
  %v175 = vunpack.c.h.b16 %v24
  %v176 = vunpack.c.l.b16 %v25
  %v177 = vunpack.c.h.b16 %v25
  %v178 = vunpack.c.l.b16 %v26
  %v179 = vunpack.c.h.b16 %v26
  %v180 = vunpack.c.l.b16 %v27
  %v181 = vunpack.c.h.b16 %v27
  %v182 = vunpack.c.l.b16 %v28
  %v183 = vunpack.c.h.b16 %v28
  %v184 = vunpack.c.l.b16 %v29
  %v185 = vunpack.c.h.b16 %v29
  %v186 = vunpack.c.l.b16 %v30
  %v187 = vunpack.c.h.b16 %v30
  %v188 = vunpack.c.l.b16 %v31
  %v189 = vunpack.c.h.b16 %v31
  %v190 = vunpack.c.l.b16 %v32
  %v191 = vunpack.c.h.b16 %v32
  %v192 = vunpack.c.l.b16 %v33
  %v193 = vunpack.c.h.b16 %v33
  %v194 = vunpack.c.l.b16 %v34
  %v195 = vunpack.c.h.b16 %v34
  %v196 = vunpack.c.l.b16 %v35
  %v197 = vunpack.c.h.b16 %v35
  %v198 = vunpack.c.l.b16 %v36
  %v199 = vunpack.c.h.b16 %v36
  %v200 = vunpack.c.l.b16 %v37
  %v201 = vunpack.c.h.b16 %v37
  %v202 = vunpack.c.l.b16 %v38
  %v203 = vunpack.c.h.b16 %v38
  %v204 = vunpack.c.l.b16 %v39
  %v205 = vunpack.c.h.b16 %v39
  %v206 = vunpack.c.l.b16 %v40
  %v207 = vunpack.c.h.b16 %v40
  %v208 = vunpack.c.l.b16 %v41
  %v209 = vunpack.c.h.b16 %v41
  %v210 = vunpack.c.l.b16 %v42
  %v211 = vunpack.c.h.b16 %v42
  %v212 = vunpack.c.l.b16 %v43
  %v213 = vunpack.c.h.b16 %v43
  %v214 = vunpack.c.l.b16 %v44
  %v215 = vunpack.c.h.b16 %v44
  %v216 = vunpack.c.l.b16 %v45
  %v217 = vunpack.c.h.b16 %v45
  %v218 = vunpack.c.l.b16 %v46
  %v219 = vunpack.c.h.b16 %v46
  %v220 = vunpack.c.l.b16 %v47
  %v221 = vunpack.c.h.b16 %v47
  %v222 = vunpack.c.l.b16 %v48
  %v223 = vunpack.c.h.b16 %v48
  %v224 = vunpack.c.l.b16 %v49
  %v225 = vunpack.c.h.b16 %v49
  %v226 = vunpack.c.l.b16 %v50
  %v227 = vunpack.c.h.b16 %v50
  %v228 = vunpack.c.l.b16 %v51
  %v229 = vunpack.c.h.b16 %v51
  %v230 = vunpack.c.l.b16 %v52
  %v231 = vunpack.c.h.b16 %v52
  %v232 = vunpack.c.l.b16 %v53
  %v233 = vunpack.c.h.b16 %v53
  %v234 = vunpack.c.l.b16 %v54
  %v235 = vunpack.c.h.b16 %v54
  %v236 = vunpack.c.l.b16 %v55
  %v237 = vunpack.c.h.b16 %v55
  %v238 = vunpack.c.l.b16 %v56
  %v239 = vunpack.c.h.b16 %v56
  %v240 = vunpack.c.l.b16 %v57
  %v241 = vunpack.c.h.b16 %v57
  %v242 = vunpack.c.l.b16 %v58
  %v243 = vunpack.c.h.b16 %v58
  %v244 = vunpack.c.l.b16 %v59
  %v245 = vunpack.c.h.b16 %v59
  %v246 = vunpack.c.l.b16 %v60
  %v247 = vunpack.c.h.b16 %v60
  %v248 = vunpack.c.l.b16 %v61
  %v249 = vunpack.c.h.b16 %v61
  %v250 = vunpack.c.l.b16 %v62
  %v251 = vunpack.c.h.b16 %v62
  %v252 = vunpack.c.l.b16 %v63
  %v253 = vunpack.c.h.b16 %v63
  %v254 = vunpack.c.l.b16 %v64
  %v255 = vunpack.c.h.b16 %v64
  %v256 = vunpack.c.l.b16 %v65
  %v257 = vunpack.c.h.b16 %v65
  %v258 = vunpack.c.l.b16 %v66
  %v259 = vunpack.c.h.b16 %v66
  %v260 = vunpack.c.l.b16 %v67
  %v261 = vunpack.c.h.b16 %v67
  %v262 = vunpack.c.l.b16 %v68
  %v263 = vunpack.c.h.b16 %v68
  %v264 = vunpack.c.l.b16 %v69
  %v265 = vunpack.c.h.b16 %v69
  %v266 = vunpack.c.l.b16 %v70
  %v267 = vunpack.c.h.b16 %v70
  %v268 = vunpack.c.l.b16 %v71
  %v269 = vunpack.c.h.b16 %v71
  %v270 = vunpack.c.l.b16 %v72
  %v271 = vunpack.c.h.b16 %v72
  %v272 = vunpack.c.l.b16 %v73
  %v273 = vunpack.c.h.b16 %v73
  %v274 = vunpack.c.l.b16 %v74
  %v275 = vunpack.c.h.b16 %v74
  %v276 = vunpack.c.l.b16 %v75
  %v277 = vunpack.c.h.b16 %v75
  %v278 = vunpack.c.l.b16 %v76
  %v279 = vunpack.c.h.b16 %v76
  %v280 = vunpack.c.l.b16 %v77
  %v281 = vunpack.c.h.b16 %v77
  %v282 = vunpack.c.l.b16 %v78
  %v283 = vunpack.c.h.b16 %v78
  %v284 = vunpack.c.l.b16 %v79
  %v285 = vunpack.c.h.b16 %v79
  %v286 = vpack.c.b16 %v160, %v158
  %v287 = vpack.c.b16 %v161, %v159
  %v288 = vpack.c.b16 %v164, %v162
  %v289 = vpack.c.b16 %v165, %v163
  %v290 = vpack.c.b16 %v168, %v166
  %v291 = vpack.c.b16 %v169, %v167
  %v292 = vpack.c.b16 %v172, %v170
  %v293 = vpack.c.b16 %v173, %v171
  %v294 = vpack.c.b16 %v176, %v174
  %v295 = vpack.c.b16 %v177, %v175
  %v296 = vpack.c.b16 %v180, %v178
  %v297 = vpack.c.b16 %v181, %v179
  %v298 = vpack.c.b16 %v184, %v182
  %v299 = vpack.c.b16 %v185, %v183
  %v300 = vpack.c.b16 %v188, %v186
  %v301 = vpack.c.b16 %v189, %v187
  %v302 = vpack.c.b16 %v192, %v190
  %v303 = vpack.c.b16 %v193, %v191
  %v304 = vpack.c.b16 %v196, %v194
  %v305 = vpack.c.b16 %v197, %v195
  %v306 = vpack.c.b16 %v200, %v198
  %v307 = vpack.c.b16 %v201, %v199
  %v308 = vpack.c.b16 %v204, %v202
  %v309 = vpack.c.b16 %v205, %v203
  %v310 = vpack.c.b16 %v208, %v206
  %v311 = vpack.c.b16 %v209, %v207
  %v312 = vpack.c.b16 %v212, %v210
  %v313 = vpack.c.b16 %v213, %v211
  %v314 = vpack.c.b16 %v216, %v214
  %v315 = vpack.c.b16 %v217, %v215
  %v316 = vpack.c.b16 %v220, %v218
  %v317 = vpack.c.b16 %v221, %v219
  %v318 = vpack.c.b16 %v224, %v222
  %v319 = vpack.c.b16 %v225, %v223
  %v320 = vpack.c.b16 %v228, %v226
  %v321 = vpack.c.b16 %v229, %v227
  %v322 = vpack.c.b16 %v232, %v230
  %v323 = vpack.c.b16 %v233, %v231
  %v324 = vpack.c.b16 %v236, %v234
  %v325 = vpack.c.b16 %v237, %v235
  %v326 = vpack.c.b16 %v240, %v238
  %v327 = vpack.c.b16 %v241, %v239
  %v328 = vpack.c.b16 %v244, %v242
  %v329 = vpack.c.b16 %v245, %v243
  %v330 = vpack.c.b16 %v248, %v246
  %v331 = vpack.c.b16 %v249, %v247
  %v332 = vpack.c.b16 %v252, %v250
  %v333 = vpack.c.b16 %v253, %v251
  %v334 = vpack.c.b16 %v256, %v254
  %v335 = vpack.c.b16 %v257, %v255
  %v336 = vpack.c.b16 %v260, %v258
  %v337 = vpack.c.b16 %v261, %v259
  %v338 = vpack.c.b16 %v264, %v262
  %v339 = vpack.c.b16 %v265, %v263
  %v340 = vpack.c.b16 %v268, %v266
  %v341 = vpack.c.b16 %v269, %v267
  %v342 = vpack.c.b16 %v272, %v270
  %v343 = vpack.c.b16 %v273, %v271
  %v344 = vpack.c.b16 %v276, %v274
  %v345 = vpack.c.b16 %v277, %v275
  %v346 = vpack.c.b16 %v280, %v278
  %v347 = vpack.c.b16 %v281, %v279
  %v348 = vpack.c.b16 %v284, %v282
  %v349 = vpack.c.b16 %v285, %v283
  %414 = vmatprep.subr.bf16.mxu0 %v287
  %415 = vmatpush1.bf16.msra.mxu0 %v286
  %416 = vmatprep.subr.bf16.mxu0 %v289
  %417 = vmatpush1.bf16.msra.mxu0 %v288
  %418 = vmatprep.subr.bf16.mxu0 %v291
  %419 = vmatpush1.bf16.msra.mxu0 %v290
  %420 = vmatprep.subr.bf16.mxu0 %v293
  %421 = vmatpush1.bf16.msra.mxu0 %v292
  %422 = vmatprep.subr.bf16.mxu0 %v295
  %423 = vmatpush1.bf16.msra.mxu0 %v294
  %424 = vmatprep.subr.bf16.mxu0 %v297
  %425 = vmatpush1.bf16.msra.mxu0 %v296
  %426 = vmatprep.subr.bf16.mxu0 %v299
  %427 = vmatpush1.bf16.msra.mxu0 %v298
  %428 = vmatprep.subr.bf16.mxu0 %v301
  %429 = vmatpush1.bf16.msra.mxu0 %v300
  %430 = vmatprep.subr.bf16.mxu0 %v303
  %431 = vmatpush1.bf16.msra.mxu0 %v302
  %432 = vmatprep.subr.bf16.mxu0 %v305
  %433 = vmatpush1.bf16.msra.mxu0 %v304
  %434 = vmatprep.subr.bf16.mxu0 %v307
  %435 = vmatpush1.bf16.msra.mxu0 %v306
  %436 = vmatprep.subr.bf16.mxu0 %v309
  %437 = vmatpush1.bf16.msra.mxu0 %v308
  %438 = vmatprep.subr.bf16.mxu0 %v311
  %439 = vmatpush1.bf16.msra.mxu0 %v310
  %440 = vmatprep.subr.bf16.mxu0 %v313
  %441 = vmatpush1.bf16.msra.mxu0 %v312
  %442 = vmatprep.subr.bf16.mxu0 %v315
  %443 = vmatpush1.bf16.msra.mxu0 %v314
  %444 = vmatprep.subr.bf16.mxu0 %v317
  %445 = vmatpush1.bf16.msra.mxu0 %v316
  %446 = vmatprep.mubr.bf16.mxu0 %v87
  %447 = vmatmul.mubr.bf16.gmra.mrb[0].mxu0 %v86
  %v448 = vpop.f32.mrb[0].mxu0
  %v449 = vadd.f32 0.0, %v448
  %v450 = vpop.f32.mrb[0].mxu0
  %v451 = vadd.f32 0.0, %v450
  %v452 = vpop.f32.mrb[0].mxu0
  %v453 = vpop.f32.mrb[0].mxu0
  %454 = vdwg.mxu0
  %455 = vmatprep.subr.bf16.mxu0 %v319
  %456 = vmatpush1.bf16.msra.mxu0 %v318
  %457 = vmatprep.subr.bf16.mxu0 %v321
  %458 = vmatpush1.bf16.msra.mxu0 %v320
  %459 = vmatprep.subr.bf16.mxu0 %v323
  %460 = vmatpush1.bf16.msra.mxu0 %v322
  %461 = vmatprep.subr.bf16.mxu0 %v325
  %462 = vmatpush1.bf16.msra.mxu0 %v324
  %463 = vmatprep.subr.bf16.mxu0 %v327
  %464 = vmatpush1.bf16.msra.mxu0 %v326
  %465 = vmatprep.subr.bf16.mxu0 %v329
  %466 = vmatpush1.bf16.msra.mxu0 %v328
  %467 = vmatprep.subr.bf16.mxu0 %v331
  %468 = vmatpush1.bf16.msra.mxu0 %v330
  %469 = vmatprep.subr.bf16.mxu0 %v333
  %470 = vmatpush1.bf16.msra.mxu0 %v332
  %471 = vmatprep.subr.bf16.mxu0 %v335
  %472 = vmatpush1.bf16.msra.mxu0 %v334
  %473 = vmatprep.subr.bf16.mxu0 %v337
  %474 = vmatpush1.bf16.msra.mxu0 %v336
  %475 = vmatprep.subr.bf16.mxu0 %v339
  %476 = vmatpush1.bf16.msra.mxu0 %v338
  %477 = vmatprep.subr.bf16.mxu0 %v341
  %478 = vmatpush1.bf16.msra.mxu0 %v340
  %479 = vmatprep.subr.bf16.mxu0 %v343
  %480 = vmatpush1.bf16.msra.mxu0 %v342
  %481 = vmatprep.subr.bf16.mxu0 %v345
  %482 = vmatpush1.bf16.msra.mxu0 %v344
  %483 = vmatprep.subr.bf16.mxu0 %v347
  %484 = vmatpush1.bf16.msra.mxu0 %v346
  %485 = vmatprep.subr.bf16.mxu0 %v349
  %486 = vmatpush1.bf16.msra.mxu0 %v348
  %487 = vmatprep.mubr.bf16.mxu0 %v89
  %488 = vmatmul.mubr.bf16.gmra.mrb[0].mxu0 %v88
  %v489 = vpop.f32.mrb[0].mxu0
  %v490 = vadd.f32 %v449, %v489
  %v491 = vpop.f32.mrb[0].mxu0
  %v492 = vadd.f32 %v451, %v491
  %v493 = vpop.f32.mrb[0].mxu0
  %v494 = vpop.f32.mrb[0].mxu0
  %495 = vdwg.mxu0
  %v496 = vld [vmem:[%s2] ss:$8 sm:$0x3]
  %v498 = vlaneseq
  %v499 = vshrl.u32 %v498, 7
  %v500 = vsub.s32 0, %v499
  %v501 = vrot.slane %v496, %v500
  %v502 = vlaneseq
  %v503 = vshrl.u32 %v502, 7
  %v504 = vsub.s32 1, %v503
  %v505 = vrot.slane %v496, %v504
  %v508 = vmul.f32 %v490, %v501
  %v509 = vmul.f32 %v492, %v505
  %s510 = scalar_lea.vmem %s2, 1
  %v511 = vld [vmem:[%s510] ss:$8 sm:$0x3]
  %v513 = vlaneseq
  %v514 = vshrl.u32 %v513, 7
  %v515 = vsub.s32 0, %v514
  %v516 = vrot.slane %v511, %v515
  %v517 = vlaneseq
  %v518 = vshrl.u32 %v517, 7
  %v519 = vsub.s32 1, %v518
  %v520 = vrot.slane %v511, %v519
  %v523 = vadd.f32 %v508, %v516
  %v524 = vadd.f32 %v509, %v520
  %vm525 = vcmp.gt.f32.partialorder %v523, 0.0
  %vm526 = vcmp.gt.f32.partialorder %v524, 0.0
  %s527 = scalar_lea.vmem %s2, 2
  %v528 = vld [vmem:[%s527] ss:$8 sm:$0x3]
  %v530 = vlaneseq
  %v531 = vshrl.u32 %v530, 7
  %v532 = vsub.s32 0, %v531
  %v533 = vrot.slane %v528, %v532
  %v534 = vlaneseq
  %v535 = vshrl.u32 %v534, 7
  %v536 = vsub.s32 1, %v535
  %v537 = vrot.slane %v528, %v536
  %v540 = vmul.f32 %v533, %v523
  %v541 = vmul.f32 %v537, %v524
  %v542 = vsel %vm525, %v523, %v540
  %v543 = vsel %vm526, %v524, %v541
  %v544 = vpack.c.bf16 %v542, %v542
  %v545 = vpack.c.bf16 %v543, %v543
  %v548 = vunpack.c.l.b16 %v544
  %v549 = vunpack.c.l.b16 %v545
  %v550 = vpack.c.b16 %v549, %v548
  %552 = vst [vmem:[%s3] sm:$0xff] %v550
  // Predicated region
  $region14: #{_lambda_.22} parent=0 // pred_check
    _
  $region15: #{_lambda_.22} parent=0 // pred_check_branch
    %554 = sbr.rel (0) target = $region17
  $region16: #{_lambda_.22} parent=0 // pred_region
    _
  $region17: #{_lambda_.22} parent=0 // pred_fallthru
    _
  // Predicated region
  $region18: #{_lambda_.22} parent=0 // pred_check
    _
  $region19: #{_lambda_.22} parent=0 // pred_check_branch
    %556 = sbr.rel (0) target = $region21
  $region20: #{_lambda_.22} parent=0 // pred_region
    _
  $region21: #{_lambda_.22} parent=0 // pred_fallthru
    _

// kernel: tile.8
$region0: #{tile.8}
  #allocation0 [shape = 's32[1]{0}', space=sflag, size = 0x4, scoped, tag = 'scoped memory for tile.8']
  %s0 = inlined_call_operand.vmem [shape: f32[16], index: 0, kind: input, shape index: {}]
  %s1 = inlined_call_operand.vmem [shape: f32[16,16], index: 1, kind: output, shape index: {}]
  // Predicated region
  $region2: #{tile.8} parent=0 // pred_check
    _
  $region3: #{tile.8} parent=0 // pred_check_branch
    %3 = sbr.rel (0) target = $region5
  $region4: #{tile.8} parent=0 // pred_region
    _
  $region5: #{tile.8} parent=0 // pred_fallthru
    _
  %v4 = vld [vmem:[%s0] ss:$0 sm:$0xff]
  %5 = vst [vmem:[%s1] sm:$0xff] %v4
  %s6 = scalar_lea.vmem %s1, 8
  %7 = vst [vmem:[%s6] sm:$0xff] %v4

// kernel: _lambda_.23
$region0: #{_lambda_.23}
  #allocation0 [shape = 'u32[]', space=smem, size = 0x4, offset = 0x4, fixed_abs, tag = 'smem constant byte address 0x4 - core index']
  #allocation1 [shape = 'u32[144,128]{1,0:T(1,128)}', space=vmem, size = 0x12000, scoped, tag = 'internal scratch']
  %s0 = inlined_call_operand.vmem [shape: bf16[32,256], index: 0, kind: input, shape index: {}]
  %s1 = inlined_call_operand.vmem [shape: bf16[256,128], index: 1, kind: input, shape index: {}]
  %s2 = inlined_call_operand.vmem [shape: f32[8,128], index: 2, kind: input, shape index: {}]
  %s3 = inlined_call_operand.vmem [shape: bf16[32,128], index: 3, kind: output, shape index: {}]
  %s4 = sld [smem:[#allocation0]]
  $region22: #{_lambda_.23} parent=0
    _
  %s6 = ssub.s32 1, %s4
  %s7 = scalar_select 0, %s6, %s4
  // Predicated region
  $region2: #{_lambda_.23} parent=0 // pred_check
    _
  $region3: #{_lambda_.23} parent=0 // pred_check_branch
    %9 = sbr.rel (0) target = $region5
  $region4: #{_lambda_.23} parent=0 // pred_region
    _
  $region5: #{_lambda_.23} parent=0 // pred_fallthru
    _
  // Predicated region
  $region6: #{_lambda_.23} parent=0 // pred_check
    _
  $region7: #{_lambda_.23} parent=0 // pred_check_branch
    %11 = sbr.rel (0) target = $region9
  $region8: #{_lambda_.23} parent=0 // pred_region
    _
  $region9: #{_lambda_.23} parent=0 // pred_fallthru
    _
  // Predicated region
  $region10: #{_lambda_.23} parent=0 // pred_check
    _
  $region11: #{_lambda_.23} parent=0 // pred_check_branch
    %13 = sbr.rel (0) target = $region13
  $region12: #{_lambda_.23} parent=0 // pred_region
    _
  $region13: #{_lambda_.23} parent=0 // pred_fallthru
    _
  %v15 = vld [vmem:[%s0] sm:$0xff]
  %v16 = vld [vmem:[%s0 + $0x8] sm:$0xff]
  %v17 = vld [vmem:[%s0 + $0x10] sm:$0xff]
  %v18 = vld [vmem:[%s0 + $0x18] sm:$0xff]
  %v19 = vld [vmem:[%s1] sm:$0xf]
  %v20 = vld [vmem:[%s1 + $0x4] sm:$0xf]
  %v21 = vld [vmem:[%s1 + $0x8] sm:$0xf]
  %v22 = vld [vmem:[%s1 + $0xc] sm:$0xf]
  %v23 = vld [vmem:[%s1 + $0x10] sm:$0xf]
  %v24 = vld [vmem:[%s1 + $0x14] sm:$0xf]
  %v25 = vld [vmem:[%s1 + $0x18] sm:$0xf]
  %v26 = vld [vmem:[%s1 + $0x1c] sm:$0xf]
  %v27 = vld [vmem:[%s1 + $0x20] sm:$0xf]
  %v28 = vld [vmem:[%s1 + $0x24] sm:$0xf]
  %v29 = vld [vmem:[%s1 + $0x28] sm:$0xf]
  %v30 = vld [vmem:[%s1 + $0x2c] sm:$0xf]
  %v31 = vld [vmem:[%s1 + $0x30] sm:$0xf]
  %v32 = vld [vmem:[%s1 + $0x34] sm:$0xf]
  %v33 = vld [vmem:[%s1 + $0x38] sm:$0xf]
  %v34 = vld [vmem:[%s1 + $0x3c] sm:$0xf]
  %v35 = vld [vmem:[%s1 + $0x40] sm:$0xf]
  %v36 = vld [vmem:[%s1 + $0x44] sm:$0xf]
  %v37 = vld [vmem:[%s1 + $0x48] sm:$0xf]
  %v38 = vld [vmem:[%s1 + $0x4c] sm:$0xf]
  %v39 = vld [vmem:[%s1 + $0x50] sm:$0xf]
  %v40 = vld [vmem:[%s1 + $0x54] sm:$0xf]
  %v41 = vld [vmem:[%s1 + $0x58] sm:$0xf]
  %v42 = vld [vmem:[%s1 + $0x5c] sm:$0xf]
  %v43 = vld [vmem:[%s1 + $0x60] sm:$0xf]
  %v44 = vld [vmem:[%s1 + $0x64] sm:$0xf]
  %v45 = vld [vmem:[%s1 + $0x68] sm:$0xf]
  %v46 = vld [vmem:[%s1 + $0x6c] sm:$0xf]
  %v47 = vld [vmem:[%s1 + $0x70] sm:$0xf]
  %v48 = vld [vmem:[%s1 + $0x74] sm:$0xf]
  %v49 = vld [vmem:[%s1 + $0x78] sm:$0xf]
  %v50 = vld [vmem:[%s1 + $0x7c] sm:$0xf]
  %v55 = vunpack.c.l.b16 %v15
  %v56 = vunpack.c.h.b16 %v15
  %v57 = vunpack.c.l.b16 %v16
  %v58 = vunpack.c.h.b16 %v16
  %v59 = vunpack.c.l.b16 %v17
  %v60 = vunpack.c.h.b16 %v17
  %v61 = vunpack.c.l.b16 %v18
  %v62 = vunpack.c.h.b16 %v18
  %v63 = vpack.c.b16 %v57, %v55
  %v64 = vpack.c.b16 %v58, %v56
  %v65 = vpack.c.b16 %v61, %v59
  %v66 = vpack.c.b16 %v62, %v60
  %v103 = vunpack.c.l.b16 %v19
  %v104 = vunpack.c.l.b16 %v20
  %v105 = vunpack.c.l.b16 %v21
  %v106 = vunpack.c.l.b16 %v22
  %v107 = vunpack.c.l.b16 %v23
  %v108 = vunpack.c.l.b16 %v24
  %v109 = vunpack.c.l.b16 %v25
  %v110 = vunpack.c.l.b16 %v26
  %v111 = vunpack.c.l.b16 %v27
  %v112 = vunpack.c.l.b16 %v28
  %v113 = vunpack.c.l.b16 %v29
  %v114 = vunpack.c.l.b16 %v30
  %v115 = vunpack.c.l.b16 %v31
  %v116 = vunpack.c.l.b16 %v32
  %v117 = vunpack.c.l.b16 %v33
  %v118 = vunpack.c.l.b16 %v34
  %v119 = vunpack.c.l.b16 %v35
  %v120 = vunpack.c.l.b16 %v36
  %v121 = vunpack.c.l.b16 %v37
  %v122 = vunpack.c.l.b16 %v38
  %v123 = vunpack.c.l.b16 %v39
  %v124 = vunpack.c.l.b16 %v40
  %v125 = vunpack.c.l.b16 %v41
  %v126 = vunpack.c.l.b16 %v42
  %v127 = vunpack.c.l.b16 %v43
  %v128 = vunpack.c.l.b16 %v44
  %v129 = vunpack.c.l.b16 %v45
  %v130 = vunpack.c.l.b16 %v46
  %v131 = vunpack.c.l.b16 %v47
  %v132 = vunpack.c.l.b16 %v48
  %v133 = vunpack.c.l.b16 %v49
  %v134 = vunpack.c.l.b16 %v50
  %v135 = vpack.c.b16 %v104, %v103
  %v136 = vpack.c.b16 %v106, %v105
  %v137 = vpack.c.b16 %v108, %v107
  %v138 = vpack.c.b16 %v110, %v109
  %v139 = vpack.c.b16 %v112, %v111
  %v140 = vpack.c.b16 %v114, %v113
  %v141 = vpack.c.b16 %v116, %v115
  %v142 = vpack.c.b16 %v118, %v117
  %v143 = vpack.c.b16 %v120, %v119
  %v144 = vpack.c.b16 %v122, %v121
  %v145 = vpack.c.b16 %v124, %v123
  %v146 = vpack.c.b16 %v126, %v125
  %v147 = vpack.c.b16 %v128, %v127
  %v148 = vpack.c.b16 %v130, %v129
  %v149 = vpack.c.b16 %v132, %v131
  %v150 = vpack.c.b16 %v134, %v133
  %167 = vmatprep.subr.bf16.mxu0 0
  %168 = vmatpush1.bf16.msra.mxu0 %v135
  %169 = vmatprep.subr.bf16.mxu0 0
  %170 = vmatpush1.bf16.msra.mxu0 %v136
  %171 = vmatprep.subr.bf16.mxu0 0
  %172 = vmatpush1.bf16.msra.mxu0 %v137
  %173 = vmatprep.subr.bf16.mxu0 0
  %174 = vmatpush1.bf16.msra.mxu0 %v138
  %175 = vmatprep.subr.bf16.mxu0 0
  %176 = vmatpush1.bf16.msra.mxu0 %v139
  %177 = vmatprep.subr.bf16.mxu0 0
  %178 = vmatpush1.bf16.msra.mxu0 %v140
  %179 = vmatprep.subr.bf16.mxu0 0
  %180 = vmatpush1.bf16.msra.mxu0 %v141
  %181 = vmatprep.subr.bf16.mxu0 0
  %182 = vmatpush1.bf16.msra.mxu0 %v142
  %183 = vmatprep.subr.bf16.mxu0 0
  %184 = vmatpush1.bf16.msra.mxu0 %v143
  %185 = vmatprep.subr.bf16.mxu0 0
  %186 = vmatpush1.bf16.msra.mxu0 %v144
  %187 = vmatprep.subr.bf16.mxu0 0
  %188 = vmatpush1.bf16.msra.mxu0 %v145
  %189 = vmatprep.subr.bf16.mxu0 0
  %190 = vmatpush1.bf16.msra.mxu0 %v146
  %191 = vmatprep.subr.bf16.mxu0 0
  %192 = vmatpush1.bf16.msra.mxu0 %v147
  %193 = vmatprep.subr.bf16.mxu0 0
  %194 = vmatpush1.bf16.msra.mxu0 %v148
  %195 = vmatprep.subr.bf16.mxu0 0
  %196 = vmatpush1.bf16.msra.mxu0 %v149
  %197 = vmatprep.subr.bf16.mxu0 0
  %198 = vmatpush1.bf16.msra.mxu0 %v150
  %199 = vmatprep.mubr.bf16.mxu0 %v64
  %200 = vmatmul.mubr.bf16.gmra.mrb[0].mxu0 %v63
  %v201 = vpop.f32.mrb[0].mxu0
  %v202 = vadd.f32 0.0, %v201
  %v203 = vpop.f32.mrb[0].mxu0
  %v204 = vpop.f32.mrb[0].mxu0
  %v205 = vadd.f32 0.0, %v204
  %v206 = vpop.f32.mrb[0].mxu0
  %207 = vmatprep.mubr.bf16.mxu0 %v66
  %208 = vmatmul.mubr.bf16.gmra.mrb[0].mxu0 %v65
  %v209 = vpop.f32.mrb[0].mxu0
  %v210 = vadd.f32 0.0, %v209
  %v211 = vpop.f32.mrb[0].mxu0
  %v212 = vpop.f32.mrb[0].mxu0
  %v213 = vadd.f32 0.0, %v212
  %v214 = vpop.f32.mrb[0].mxu0
  %215 = vdwg.mxu0
  %v216 = vld [vmem:[%s2] sm:$0x1]
  %v217 = vlaneseq
  %v218 = vshrl.u32 %v217, 7
  %v219 = vsub.s32 0, %v218
  %v220 = vrot.slane %v216, %v219
  %v221 = vmul.f32 %v202, %v220
  %v222 = vmul.f32 %v205, %v220
  %v223 = vmul.f32 %v210, %v220
  %v224 = vmul.f32 %v213, %v220
  %v225 = vld [vmem:[%s2 + $0x1] sm:$0x1]
  %v226 = vlaneseq
  %v227 = vshrl.u32 %v226, 7
  %v228 = vsub.s32 0, %v227
  %v229 = vrot.slane %v225, %v228
  %v230 = vadd.f32 %v221, %v229
  %v231 = vadd.f32 %v222, %v229
  %v232 = vadd.f32 %v223, %v229
  %v233 = vadd.f32 %v224, %v229
  %vm234 = vcmp.gt.f32.partialorder %v230, 0.0
  %vm235 = vcmp.gt.f32.partialorder %v231, 0.0
  %vm236 = vcmp.gt.f32.partialorder %v232, 0.0
  %vm237 = vcmp.gt.f32.partialorder %v233, 0.0
  %v238 = vld [vmem:[%s2 + $0x2] sm:$0x1]
  %v239 = vlaneseq
  %v240 = vshrl.u32 %v239, 7
  %v241 = vsub.s32 0, %v240
  %v242 = vrot.slane %v238, %v241
  %v243 = vmul.f32 %v242, %v230
  %v244 = vmul.f32 %v242, %v231
  %v245 = vmul.f32 %v242, %v232
  %v246 = vmul.f32 %v242, %v233
  %v247 = vsel %vm234, %v230, %v243
  %v248 = vsel %vm235, %v231, %v244
  %v249 = vsel %vm236, %v232, %v245
  %v250 = vsel %vm237, %v233, %v246
  %v251 = vpack.c.bf16 %v248, %v247
  %v252 = vpack.c.bf16 %v250, %v249
  %v255 = vunpack.c.l.b16 %v251
  %v256 = vunpack.c.h.b16 %v251
  %v257 = vunpack.c.l.b16 %v252
  %v258 = vunpack.c.h.b16 %v252
  %v259 = vpack.c.b16 %v255, %v255
  %v260 = vpack.c.b16 %v256, %v256
  %v261 = vpack.c.b16 %v257, %v257
  %v262 = vpack.c.b16 %v258, %v258
  %267 = vst [vmem:[%s3] sm:$0xf] %v259
  %268 = vst [vmem:[%s3 + $0x4] sm:$0xf] %v260
  %269 = vst [vmem:[%s3 + $0x8] sm:$0xf] %v261
  %270 = vst [vmem:[%s3 + $0xc] sm:$0xf] %v262
  // Predicated region
  $region14: #{_lambda_.23} parent=0 // pred_check
    _
  $region15: #{_lambda_.23} parent=0 // pred_check_branch
    %272 = sbr.rel (0) target = $region17
  $region16: #{_lambda_.23} parent=0 // pred_region
    _
  $region17: #{_lambda_.23} parent=0 // pred_fallthru
    _
  // Predicated region
  $region18: #{_lambda_.23} parent=0 // pred_check
    _
  $region19: #{_lambda_.23} parent=0 // pred_check_branch
    %274 = sbr.rel (0) target = $region21
  $region20: #{_lambda_.23} parent=0 // pred_region
    _
  $region21: #{_lambda_.23} parent=0 // pred_fallthru
    _

// kernel: _lambda_.24
$region0: #{_lambda_.24}
  #allocation0 [shape = 'u32[]', space=smem, size = 0x4, offset = 0x4, fixed_abs, tag = 'smem constant byte address 0x4 - core index']
  #allocation1 [shape = 'u32[144,128]{1,0:T(1,128)}', space=vmem, size = 0x12000, scoped, tag = 'internal scratch']
  %s0 = inlined_call_operand.vmem [shape: bf16[128,128], index: 0, kind: input, shape index: {}]
  %s1 = inlined_call_operand.vmem [shape: bf16[128,128], index: 1, kind: input, shape index: {}]
  %s2 = inlined_call_operand.vmem [shape: f32[8,128], index: 2, kind: input, shape index: {}]
  %s3 = inlined_call_operand.vmem [shape: bf16[128,128], index: 3, kind: output, shape index: {}]
  %s4 = sld [smem:[#allocation0]]
  $region22: #{_lambda_.24} parent=0
    _
  %s6 = ssub.s32 1, %s4
  %s7 = scalar_select 0, %s6, %s4
  // Predicated region
  $region2: #{_lambda_.24} parent=0 // pred_check
    _
  $region3: #{_lambda_.24} parent=0 // pred_check_branch
    %9 = sbr.rel (0) target = $region5
  $region4: #{_lambda_.24} parent=0 // pred_region
    _
  $region5: #{_lambda_.24} parent=0 // pred_fallthru
    _
  // Predicated region
  $region6: #{_lambda_.24} parent=0 // pred_check
    _
  $region7: #{_lambda_.24} parent=0 // pred_check_branch
    %11 = sbr.rel (0) target = $region9
  $region8: #{_lambda_.24} parent=0 // pred_region
    _
  $region9: #{_lambda_.24} parent=0 // pred_fallthru
    _
  // Predicated region
  $region10: #{_lambda_.24} parent=0 // pred_check
    _
  $region11: #{_lambda_.24} parent=0 // pred_check_branch
    %13 = sbr.rel (0) target = $region13
  $region12: #{_lambda_.24} parent=0 // pred_region
    _
  $region13: #{_lambda_.24} parent=0 // pred_fallthru
    _
  %v15 = vld [vmem:[%s0] sm:$0xf]
  %v16 = vld [vmem:[%s0 + $0x4] sm:$0xf]
  %v17 = vld [vmem:[%s0 + $0x8] sm:$0xf]
  %v18 = vld [vmem:[%s0 + $0xc] sm:$0xf]
  %v19 = vld [vmem:[%s0 + $0x10] sm:$0xf]
  %v20 = vld [vmem:[%s0 + $0x14] sm:$0xf]
  %v21 = vld [vmem:[%s0 + $0x18] sm:$0xf]
  %v22 = vld [vmem:[%s0 + $0x1c] sm:$0xf]
  %v23 = vld [vmem:[%s0 + $0x20] sm:$0xf]
  %v24 = vld [vmem:[%s0 + $0x24] sm:$0xf]
  %v25 = vld [vmem:[%s0 + $0x28] sm:$0xf]
  %v26 = vld [vmem:[%s0 + $0x2c] sm:$0xf]
  %v27 = vld [vmem:[%s0 + $0x30] sm:$0xf]
  %v28 = vld [vmem:[%s0 + $0x34] sm:$0xf]
  %v29 = vld [vmem:[%s0 + $0x38] sm:$0xf]
  %v30 = vld [vmem:[%s0 + $0x3c] sm:$0xf]
  %v31 = vld [vmem:[%s1] sm:$0xf]
  %v32 = vld [vmem:[%s1 + $0x4] sm:$0xf]
  %v33 = vld [vmem:[%s1 + $0x8] sm:$0xf]
  %v34 = vld [vmem:[%s1 + $0xc] sm:$0xf]
  %v35 = vld [vmem:[%s1 + $0x10] sm:$0xf]
  %v36 = vld [vmem:[%s1 + $0x14] sm:$0xf]
  %v37 = vld [vmem:[%s1 + $0x18] sm:$0xf]
  %v38 = vld [vmem:[%s1 + $0x1c] sm:$0xf]
  %v39 = vld [vmem:[%s1 + $0x20] sm:$0xf]
  %v40 = vld [vmem:[%s1 + $0x24] sm:$0xf]
  %v41 = vld [vmem:[%s1 + $0x28] sm:$0xf]
  %v42 = vld [vmem:[%s1 + $0x2c] sm:$0xf]
  %v43 = vld [vmem:[%s1 + $0x30] sm:$0xf]
  %v44 = vld [vmem:[%s1 + $0x34] sm:$0xf]
  %v45 = vld [vmem:[%s1 + $0x38] sm:$0xf]
  %v46 = vld [vmem:[%s1 + $0x3c] sm:$0xf]
  %v63 = vunpack.c.l.b16 %v15
  %v64 = vunpack.c.l.b16 %v16
  %v65 = vunpack.c.l.b16 %v17
  %v66 = vunpack.c.l.b16 %v18
  %v67 = vunpack.c.l.b16 %v19
  %v68 = vunpack.c.l.b16 %v20
  %v69 = vunpack.c.l.b16 %v21
  %v70 = vunpack.c.l.b16 %v22
  %v71 = vunpack.c.l.b16 %v23
  %v72 = vunpack.c.l.b16 %v24
  %v73 = vunpack.c.l.b16 %v25
  %v74 = vunpack.c.l.b16 %v26
  %v75 = vunpack.c.l.b16 %v27
  %v76 = vunpack.c.l.b16 %v28
  %v77 = vunpack.c.l.b16 %v29
  %v78 = vunpack.c.l.b16 %v30
  %v79 = vpack.c.b16 %v64, %v63
  %v80 = vpack.c.b16 %v66, %v65
  %v81 = vpack.c.b16 %v68, %v67
  %v82 = vpack.c.b16 %v70, %v69
  %v83 = vpack.c.b16 %v72, %v71
  %v84 = vpack.c.b16 %v74, %v73
  %v85 = vpack.c.b16 %v76, %v75
  %v86 = vpack.c.b16 %v78, %v77
  %v111 = vunpack.c.l.b16 %v31
  %v112 = vunpack.c.l.b16 %v32
  %v113 = vunpack.c.l.b16 %v33
  %v114 = vunpack.c.l.b16 %v34
  %v115 = vunpack.c.l.b16 %v35
  %v116 = vunpack.c.l.b16 %v36
  %v117 = vunpack.c.l.b16 %v37
  %v118 = vunpack.c.l.b16 %v38
  %v119 = vunpack.c.l.b16 %v39
  %v120 = vunpack.c.l.b16 %v40
  %v121 = vunpack.c.l.b16 %v41
  %v122 = vunpack.c.l.b16 %v42
  %v123 = vunpack.c.l.b16 %v43
  %v124 = vunpack.c.l.b16 %v44
  %v125 = vunpack.c.l.b16 %v45
  %v126 = vunpack.c.l.b16 %v46
  %v127 = vpack.c.b16 %v112, %v111
  %v128 = vpack.c.b16 %v114, %v113
  %v129 = vpack.c.b16 %v116, %v115
  %v130 = vpack.c.b16 %v118, %v117
  %v131 = vpack.c.b16 %v120, %v119
  %v132 = vpack.c.b16 %v122, %v121
  %v133 = vpack.c.b16 %v124, %v123
  %v134 = vpack.c.b16 %v126, %v125
  %143 = vmatprep.subr.bf16.mxu0 0
  %144 = vmatpush1.bf16.msra.mxu0 %v127
  %145 = vmatprep.subr.bf16.mxu0 0
  %146 = vmatpush1.bf16.msra.mxu0 %v128
  %147 = vmatprep.subr.bf16.mxu0 0
  %148 = vmatpush1.bf16.msra.mxu0 %v129
  %149 = vmatprep.subr.bf16.mxu0 0
  %150 = vmatpush1.bf16.msra.mxu0 %v130
  %151 = vmatprep.subr.bf16.mxu0 0
  %152 = vmatpush1.bf16.msra.mxu0 %v131
  %153 = vmatprep.subr.bf16.mxu0 0
  %154 = vmatpush1.bf16.msra.mxu0 %v132
  %155 = vmatprep.subr.bf16.mxu0 0
  %156 = vmatpush1.bf16.msra.mxu0 %v133
  %157 = vmatprep.subr.bf16.mxu0 0
  %158 = vmatpush1.bf16.msra.mxu0 %v134
  %159 = vmatprep.subr.bf16.mxu0 0
  %160 = vmatpush1.bf16.msra.mxu0 0
  %161 = vmatprep.subr.bf16.mxu0 0
  %162 = vmatpush1.bf16.msra.mxu0 0
  %163 = vmatprep.subr.bf16.mxu0 0
  %164 = vmatpush1.bf16.msra.mxu0 0
  %165 = vmatprep.subr.bf16.mxu0 0
  %166 = vmatpush1.bf16.msra.mxu0 0
  %167 = vmatprep.subr.bf16.mxu0 0
  %168 = vmatpush1.bf16.msra.mxu0 0
  %169 = vmatprep.subr.bf16.mxu0 0
  %170 = vmatpush1.bf16.msra.mxu0 0
  %171 = vmatprep.subr.bf16.mxu0 0
  %172 = vmatpush1.bf16.msra.mxu0 0
  %173 = vmatprep.subr.bf16.mxu0 0
  %174 = vmatpush1.bf16.msra.mxu0 0
  %175 = vmatprep.mubr.bf16.mxu0 0
  %176 = vmatmul.mubr.bf16.gmra.mrb[0].mxu0 %v79
  %v177 = vpop.f32.mrb[0].mxu0
  %v178 = vadd.f32 0.0, %v177
  %v179 = vpop.f32.mrb[0].mxu0
  %v180 = vpop.f32.mrb[0].mxu0
  %v181 = vadd.f32 0.0, %v180
  %v182 = vpop.f32.mrb[0].mxu0
  %183 = vmatprep.mubr.bf16.mxu0 0
  %184 = vmatmul.mubr.bf16.gmra.mrb[0].mxu0 %v80
  %v185 = vpop.f32.mrb[0].mxu0
  %v186 = vadd.f32 0.0, %v185
  %v187 = vpop.f32.mrb[0].mxu0
  %v188 = vpop.f32.mrb[0].mxu0
  %v189 = vadd.f32 0.0, %v188
  %v190 = vpop.f32.mrb[0].mxu0
  %191 = vmatprep.mubr.bf16.mxu0 0
  %192 = vmatmul.mubr.bf16.gmra.mrb[0].mxu0 %v81
  %v193 = vpop.f32.mrb[0].mxu0
  %v194 = vadd.f32 0.0, %v193
  %v195 = vpop.f32.mrb[0].mxu0
  %v196 = vpop.f32.mrb[0].mxu0
  %v197 = vadd.f32 0.0, %v196
  %v198 = vpop.f32.mrb[0].mxu0
  %199 = vmatprep.mubr.bf16.mxu0 0
  %200 = vmatmul.mubr.bf16.gmra.mrb[0].mxu0 %v82
  %v201 = vpop.f32.mrb[0].mxu0
  %v202 = vadd.f32 0.0, %v201
  %v203 = vpop.f32.mrb[0].mxu0
  %v204 = vpop.f32.mrb[0].mxu0
  %v205 = vadd.f32 0.0, %v204
  %v206 = vpop.f32.mrb[0].mxu0
  %207 = vmatprep.mubr.bf16.mxu0 0
  %208 = vmatmul.mubr.bf16.gmra.mrb[0].mxu0 %v83
  %v209 = vpop.f32.mrb[0].mxu0
  %v210 = vadd.f32 0.0, %v209
  %v211 = vpop.f32.mrb[0].mxu0
  %v212 = vpop.f32.mrb[0].mxu0
  %v213 = vadd.f32 0.0, %v212
  %v214 = vpop.f32.mrb[0].mxu0
  %215 = vmatprep.mubr.bf16.mxu0 0
  %216 = vmatmul.mubr.bf16.gmra.mrb[0].mxu0 %v84
  %v217 = vpop.f32.mrb[0].mxu0
  %v218 = vadd.f32 0.0, %v217
  %v219 = vpop.f32.mrb[0].mxu0
  %v220 = vpop.f32.mrb[0].mxu0
  %v221 = vadd.f32 0.0, %v220
  %v222 = vpop.f32.mrb[0].mxu0
  %223 = vmatprep.mubr.bf16.mxu0 0
  %224 = vmatmul.mubr.bf16.gmra.mrb[0].mxu0 %v85
  %v225 = vpop.f32.mrb[0].mxu0
  %v226 = vadd.f32 0.0, %v225
  %v227 = vpop.f32.mrb[0].mxu0
  %v228 = vpop.f32.mrb[0].mxu0
  %v229 = vadd.f32 0.0, %v228
  %v230 = vpop.f32.mrb[0].mxu0
  %231 = vmatprep.mubr.bf16.mxu0 0
  %232 = vmatmul.mubr.bf16.gmra.mrb[0].mxu0 %v86
  %v233 = vpop.f32.mrb[0].mxu0
  %v234 = vadd.f32 0.0, %v233
  %v235 = vpop.f32.mrb[0].mxu0
  %v236 = vpop.f32.mrb[0].mxu0
  %v237 = vadd.f32 0.0, %v236
  %v238 = vpop.f32.mrb[0].mxu0
  %239 = vdwg.mxu0
  %v240 = vld [vmem:[%s2] sm:$0x1]
  %v241 = vlaneseq
  %v242 = vshrl.u32 %v241, 7
  %v243 = vsub.s32 0, %v242
  %v244 = vrot.slane %v240, %v243
  %v245 = vmul.f32 %v178, %v244
  %v246 = vmul.f32 %v181, %v244
  %v247 = vmul.f32 %v186, %v244
  %v248 = vmul.f32 %v189, %v244
  %v249 = vmul.f32 %v194, %v244
  %v250 = vmul.f32 %v197, %v244
  %v251 = vmul.f32 %v202, %v244
  %v252 = vmul.f32 %v205, %v244
  %v253 = vmul.f32 %v210, %v244
  %v254 = vmul.f32 %v213, %v244
  %v255 = vmul.f32 %v218, %v244
  %v256 = vmul.f32 %v221, %v244
  %v257 = vmul.f32 %v226, %v244
  %v258 = vmul.f32 %v229, %v244
  %v259 = vmul.f32 %v234, %v244
  %v260 = vmul.f32 %v237, %v244
  %v261 = vld [vmem:[%s2 + $0x1] sm:$0x1]
  %v262 = vlaneseq
  %v263 = vshrl.u32 %v262, 7
  %v264 = vsub.s32 0, %v263
  %v265 = vrot.slane %v261, %v264
  %v266 = vadd.f32 %v245, %v265
  %v267 = vadd.f32 %v246, %v265
  %v268 = vadd.f32 %v247, %v265
  %v269 = vadd.f32 %v248, %v265
  %v270 = vadd.f32 %v249, %v265
  %v271 = vadd.f32 %v250, %v265
  %v272 = vadd.f32 %v251, %v265
  %v273 = vadd.f32 %v252, %v265
  %v274 = vadd.f32 %v253, %v265
  %v275 = vadd.f32 %v254, %v265
  %v276 = vadd.f32 %v255, %v265
  %v277 = vadd.f32 %v256, %v265
  %v278 = vadd.f32 %v257, %v265
  %v279 = vadd.f32 %v258, %v265
  %v280 = vadd.f32 %v259, %v265
  %v281 = vadd.f32 %v260, %v265
  %vm282 = vcmp.gt.f32.partialorder %v266, 0.0
  %vm283 = vcmp.gt.f32.partialorder %v267, 0.0
  %vm284 = vcmp.gt.f32.partialorder %v268, 0.0
  %vm285 = vcmp.gt.f32.partialorder %v269, 0.0
  %vm286 = vcmp.gt.f32.partialorder %v270, 0.0
  %vm287 = vcmp.gt.f32.partialorder %v271, 0.0
  %vm288 = vcmp.gt.f32.partialorder %v272, 0.0
  %vm289 = vcmp.gt.f32.partialorder %v273, 0.0
  %vm290 = vcmp.gt.f32.partialorder %v274, 0.0
  %vm291 = vcmp.gt.f32.partialorder %v275, 0.0
  %vm292 = vcmp.gt.f32.partialorder %v276, 0.0
  %vm293 = vcmp.gt.f32.partialorder %v277, 0.0
  %vm294 = vcmp.gt.f32.partialorder %v278, 0.0
  %vm295 = vcmp.gt.f32.partialorder %v279, 0.0
  %vm296 = vcmp.gt.f32.partialorder %v280, 0.0
  %vm297 = vcmp.gt.f32.partialorder %v281, 0.0
  %v298 = vld [vmem:[%s2 + $0x2] sm:$0x1]
  %v299 = vlaneseq
  %v300 = vshrl.u32 %v299, 7
  %v301 = vsub.s32 0, %v300
  %v302 = vrot.slane %v298, %v301
  %v303 = vmul.f32 %v302, %v266
  %v304 = vmul.f32 %v302, %v267
  %v305 = vmul.f32 %v302, %v268
  %v306 = vmul.f32 %v302, %v269
  %v307 = vmul.f32 %v302, %v270
  %v308 = vmul.f32 %v302, %v271
  %v309 = vmul.f32 %v302, %v272
  %v310 = vmul.f32 %v302, %v273
  %v311 = vmul.f32 %v302, %v274
  %v312 = vmul.f32 %v302, %v275
  %v313 = vmul.f32 %v302, %v276
  %v314 = vmul.f32 %v302, %v277
  %v315 = vmul.f32 %v302, %v278
  %v316 = vmul.f32 %v302, %v279
  %v317 = vmul.f32 %v302, %v280
  %v318 = vmul.f32 %v302, %v281
  %v319 = vsel %vm282, %v266, %v303
  %v320 = vsel %vm283, %v267, %v304
  %v321 = vsel %vm284, %v268, %v305
  %v322 = vsel %vm285, %v269, %v306
  %v323 = vsel %vm286, %v270, %v307
  %v324 = vsel %vm287, %v271, %v308
  %v325 = vsel %vm288, %v272, %v309
  %v326 = vsel %vm289, %v273, %v310
  %v327 = vsel %vm290, %v274, %v311
  %v328 = vsel %vm291, %v275, %v312
  %v329 = vsel %vm292, %v276, %v313
  %v330 = vsel %vm293, %v277, %v314
  %v331 = vsel %vm294, %v278, %v315
  %v332 = vsel %vm295, %v279, %v316
  %v333 = vsel %vm296, %v280, %v317
  %v334 = vsel %vm297, %v281, %v318
  %v335 = vpack.c.bf16 %v320, %v319
  %v336 = vpack.c.bf16 %v322, %v321
  %v337 = vpack.c.bf16 %v324, %v323
  %v338 = vpack.c.bf16 %v326, %v325
  %v339 = vpack.c.bf16 %v328, %v327
  %v340 = vpack.c.bf16 %v330, %v329
  %v341 = vpack.c.bf16 %v332, %v331
  %v342 = vpack.c.bf16 %v334, %v333
  %v351 = vunpack.c.l.b16 %v335
  %v352 = vunpack.c.h.b16 %v335
  %v353 = vunpack.c.l.b16 %v336
  %v354 = vunpack.c.h.b16 %v336
  %v355 = vunpack.c.l.b16 %v337
  %v356 = vunpack.c.h.b16 %v337
  %v357 = vunpack.c.l.b16 %v338
  %v358 = vunpack.c.h.b16 %v338
  %v359 = vunpack.c.l.b16 %v339
  %v360 = vunpack.c.h.b16 %v339
  %v361 = vunpack.c.l.b16 %v340
  %v362 = vunpack.c.h.b16 %v340
  %v363 = vunpack.c.l.b16 %v341
  %v364 = vunpack.c.h.b16 %v341
  %v365 = vunpack.c.l.b16 %v342
  %v366 = vunpack.c.h.b16 %v342
  %v367 = vpack.c.b16 %v351, %v351
  %v368 = vpack.c.b16 %v352, %v352
  %v369 = vpack.c.b16 %v353, %v353
  %v370 = vpack.c.b16 %v354, %v354
  %v371 = vpack.c.b16 %v355, %v355
  %v372 = vpack.c.b16 %v356, %v356
  %v373 = vpack.c.b16 %v357, %v357
  %v374 = vpack.c.b16 %v358, %v358
  %v375 = vpack.c.b16 %v359, %v359
  %v376 = vpack.c.b16 %v360, %v360
  %v377 = vpack.c.b16 %v361, %v361
  %v378 = vpack.c.b16 %v362, %v362
  %v379 = vpack.c.b16 %v363, %v363
  %v380 = vpack.c.b16 %v364, %v364
  %v381 = vpack.c.b16 %v365, %v365
  %v382 = vpack.c.b16 %v366, %v366
  %399 = vst [vmem:[%s3] sm:$0xf] %v367
  %400 = vst [vmem:[%s3 + $0x4] sm:$0xf] %v368
  %401 = vst [vmem:[%s3 + $0x8] sm:$0xf] %v369
  %402 = vst [vmem:[%s3 + $0xc] sm:$0xf] %v370
  %403 = vst [vmem:[%s3 + $0x10] sm:$0xf] %v371
  %404 = vst [vmem:[%s3 + $0x14] sm:$0xf] %v372
  %405 = vst [vmem:[%s3 + $0x18] sm:$0xf] %v373
  %406 = vst [vmem:[%s3 + $0x1c] sm:$0xf] %v374
  %407 = vst [vmem:[%s3 + $0x20] sm:$0xf] %v375
  %408 = vst [vmem:[%s3 + $0x24] sm:$0xf] %v376
  %409 = vst [vmem:[%s3 + $0x28] sm:$0xf] %v377
  %410 = vst [vmem:[%s3 + $0x2c] sm:$0xf] %v378
  %411 = vst [vmem:[%s3 + $0x30] sm:$0xf] %v379
  %412 = vst [vmem:[%s3 + $0x34] sm:$0xf] %v380
  %413 = vst [vmem:[%s3 + $0x38] sm:$0xf] %v381
  %414 = vst [vmem:[%s3 + $0x3c] sm:$0xf] %v382
  // Predicated region
  $region14: #{_lambda_.24} parent=0 // pred_check
    _
  $region15: #{_lambda_.24} parent=0 // pred_check_branch
    %416 = sbr.rel (0) target = $region17
  $region16: #{_lambda_.24} parent=0 // pred_region
    _
  $region17: #{_lambda_.24} parent=0 // pred_fallthru
    _
  // Predicated region
  $region18: #{_lambda_.24} parent=0 // pred_check
    _
  $region19: #{_lambda_.24} parent=0 // pred_check_branch
    %418 = sbr.rel (0) target = $region21
  $region20: #{_lambda_.24} parent=0 // pred_region
    _
  $region21: #{_lambda_.24} parent=0 // pred_fallthru
    _

// kernel: _lambda_.25
$region0: #{_lambda_.25}
  #allocation0 [shape = 'u32[]', space=smem, size = 0x4, offset = 0x4, fixed_abs, tag = 'smem constant byte address 0x4 - core index']
  #allocation1 [shape = 'u32[144,128]{1,0:T(1,128)}', space=vmem, size = 0x12000, scoped, tag = 'internal scratch']
  #allocation2 [shape = 'f32[1]{0:T(128)S(6)}', space=smem, size = 0x200, scoped, tag = 'scoped memory for _lambda_.25']
  %s0 = inlined_call_operand.vmem [shape: bf16[16,2,256], index: 0, kind: input, shape index: {}]
  %s1 = inlined_call_operand.vmem [shape: f32[1,256], index: 1, kind: input, shape index: {}]
  %s2 = inlined_call_operand.vmem [shape: f32[1,256], index: 2, kind: input, shape index: {}]
  %s3 = inlined_call_operand.vmem [shape: f32[16], index: 3, kind: input, shape index: {}]
  %s4 = inlined_call_operand.<no memory space> [shape: f32[1], index: 4, kind: input, shape index: {}]
  %s5 = inlined_call_operand.hbm [shape: f32[2,2], index: 5, kind: output, shape index: {}]
  %s6 = sld [smem:[#allocation0]]
  $region34: #{_lambda_.25} parent=0
    _
  %s8 = ssub.s32 1, %s6
  %s9 = scalar_select 0, %s8, %s6
  %10 = sst [smem:[#allocation2]] %s4
  $region1: #{_lambda_.25} parent=0
    #allocation3 [shape = 'u8[512]{0}', space=smem, size = 0x200, scoped, tag = 'input window, operand 3, single buffered']
    #allocation4 [shape = 's32[1]{0}', space=sflag, size = 0x4, scoped, tag = 'scoped memory for _lambda_.25']
    #allocation5 [shape = 's32[1]{0}', space=sflag, size = 0x4, scoped, tag = 'scoped memory for _lambda_.25']
    #allocation6 [shape = 'u8[1024]{0}', space=vmem, size = 0x400, scoped, tag = 'output window, operand 0, single buffered']
    %11 = vsyncpa [#allocation5], 0
    %12 = vsyncpa [#allocation4], 0
    // Predicated region
    $region2: #{_lambda_.25} parent=1 // pred_check
      _
    $region3: #{_lambda_.25} parent=1 // pred_check_branch
      %14 = sbr.rel (0) target = $region5
    $region4: #{_lambda_.25} parent=1 // pred_region
      _
    $region5: #{_lambda_.25} parent=1 // pred_fallthru
      _
    // Predicated region
    $region6: #{_lambda_.25} parent=1 // pred_check
      _
    $region7: #{_lambda_.25} parent=1 // pred_check_branch
      %16 = sbr.rel (0) target = $region9
    $region8: #{_lambda_.25} parent=1 // pred_region
      _
    $region9: #{_lambda_.25} parent=1 // pred_fallthru
      _
    // Predicated region
    $region10: #{_lambda_.25} parent=1 // pred_check
      _
    $region11: #{_lambda_.25} parent=1 // pred_check_branch
      %18 = sbr.rel (0) target = $region13
    $region12: #{_lambda_.25} parent=1 // pred_region
      _
    $region13: #{_lambda_.25} parent=1 // pred_fallthru
      _
    // Predicated region
    $region14: #{_lambda_.25} parent=1 // pred_check
      _
    $region15: #{_lambda_.25} parent=1 // pred_check_branch
      %20 = sbr.rel (0) target = $region17
    $region16: #{_lambda_.25} parent=1 // pred_region
      %s22 = ssub.s32 16, 16
      %23 = vsyncadd [#allocation5], %s22
      %s25 = sshll.u32 %s3, 4
      %s26 = int_to_ptr.vmem [resolvable:$true] %s25
      %28 = dma.vmem_to_smem %s26, 16, [#allocation3], [#allocation5]
    $region17: #{_lambda_.25} parent=1 // pred_fallthru
      _
    // Predicated region
    $region18: #{_lambda_.25} parent=1 // pred_check
      _
    $region19: #{_lambda_.25} parent=1 // pred_check_branch
      %30 = sbr.rel (0) target = $region21
    $region20: #{_lambda_.25} parent=1 // pred_region
      _
    $region21: #{_lambda_.25} parent=1 // pred_fallthru
      _
    // Predicated region
    $region22: #{_lambda_.25} parent=1 // pred_check
      _
    $region23: #{_lambda_.25} parent=1 // pred_check_branch
      %32 = sbr.rel (0) target = $region25
    $region24: #{_lambda_.25} parent=1 // pred_region
      %33 = dma.done [#allocation5], 16
    $region25: #{_lambda_.25} parent=1 // pred_fallthru
      _
    %34 = sfence
    %s35 = sld [smem:[#allocation2]]
    %v36 = vstv %s35
    %v37 = vadd.f32 %v36, 0.0
    %v38 = vld [vmem:[%s0] sm:$0x3]
    %v39 = vunpack.c.l.bf16 %v38
    %s40 = sld [smem:[#allocation3]]
    %v41 = vstv %s40
    %v42 = vmul.f32 %v39, %v41
    %v43 = vadd.f32 %v37, %v42
    %s44 = scalar_lea.vmem %s0, 2
    %v45 = vld [vmem:[%s44] sm:$0x3]
    %v46 = vunpack.c.l.bf16 %v45
    %s47 = sld [smem:[#allocation3 + $0x1]]
    %v48 = vstv %s47
    %v49 = vmul.f32 %v46, %v48
    %v50 = vadd.f32 %v43, %v49
    %s51 = scalar_lea.vmem %s0, 4
    %v52 = vld [vmem:[%s51] sm:$0x3]
    %v53 = vunpack.c.l.bf16 %v52
    %s54 = sld [smem:[#allocation3 + $0x2]]
    %v55 = vstv %s54
    %v56 = vmul.f32 %v53, %v55
    %v57 = vadd.f32 %v50, %v56
    %s58 = scalar_lea.vmem %s0, 6
    %v59 = vld [vmem:[%s58] sm:$0x3]
    %v60 = vunpack.c.l.bf16 %v59
    %s61 = sld [smem:[#allocation3 + $0x3]]
    %v62 = vstv %s61
    %v63 = vmul.f32 %v60, %v62
    %v64 = vadd.f32 %v57, %v63
    %s65 = scalar_lea.vmem %s0, 8
    %v66 = vld [vmem:[%s65] sm:$0x3]
    %v67 = vunpack.c.l.bf16 %v66
    %s68 = sld [smem:[#allocation3 + $0x4]]
    %v69 = vstv %s68
    %v70 = vmul.f32 %v67, %v69
    %v71 = vadd.f32 %v64, %v70
    %s72 = scalar_lea.vmem %s0, 10
    %v73 = vld [vmem:[%s72] sm:$0x3]
    %v74 = vunpack.c.l.bf16 %v73
    %s75 = sld [smem:[#allocation3 + $0x5]]
    %v76 = vstv %s75
    %v77 = vmul.f32 %v74, %v76
    %v78 = vadd.f32 %v71, %v77
    %s79 = scalar_lea.vmem %s0, 12
    %v80 = vld [vmem:[%s79] sm:$0x3]
    %v81 = vunpack.c.l.bf16 %v80
    %s82 = sld [smem:[#allocation3 + $0x6]]
    %v83 = vstv %s82
    %v84 = vmul.f32 %v81, %v83
    %v85 = vadd.f32 %v78, %v84
    %s86 = scalar_lea.vmem %s0, 14
    %v87 = vld [vmem:[%s86] sm:$0x3]
    %v88 = vunpack.c.l.bf16 %v87
    %s89 = sld [smem:[#allocation3 + $0x7]]
    %v90 = vstv %s89
    %v91 = vmul.f32 %v88, %v90
    %v92 = vadd.f32 %v85, %v91
    %s93 = scalar_lea.vmem %s0, 16
    %v94 = vld [vmem:[%s93] sm:$0x3]
    %v95 = vunpack.c.l.bf16 %v94
    %s96 = sld [smem:[#allocation3 + $0x8]]
    %v97 = vstv %s96
    %v98 = vmul.f32 %v95, %v97
    %v99 = vadd.f32 %v92, %v98
    %s100 = scalar_lea.vmem %s0, 18
    %v101 = vld [vmem:[%s100] sm:$0x3]
    %v102 = vunpack.c.l.bf16 %v101
    %s103 = sld [smem:[#allocation3 + $0x9]]
    %v104 = vstv %s103
    %v105 = vmul.f32 %v102, %v104
    %v106 = vadd.f32 %v99, %v105
    %s107 = scalar_lea.vmem %s0, 20
    %v108 = vld [vmem:[%s107] sm:$0x3]
    %v109 = vunpack.c.l.bf16 %v108
    %s110 = sld [smem:[#allocation3 + $0xa]]
    %v111 = vstv %s110
    %v112 = vmul.f32 %v109, %v111
    %v113 = vadd.f32 %v106, %v112
    %s114 = scalar_lea.vmem %s0, 22
    %v115 = vld [vmem:[%s114] sm:$0x3]
    %v116 = vunpack.c.l.bf16 %v115
    %s117 = sld [smem:[#allocation3 + $0xb]]
    %v118 = vstv %s117
    %v119 = vmul.f32 %v116, %v118
    %v120 = vadd.f32 %v113, %v119
    %s121 = scalar_lea.vmem %s0, 24
    %v122 = vld [vmem:[%s121] sm:$0x3]
    %v123 = vunpack.c.l.bf16 %v122
    %s124 = sld [smem:[#allocation3 + $0xc]]
    %v125 = vstv %s124
    %v126 = vmul.f32 %v123, %v125
    %v127 = vadd.f32 %v120, %v126
    %s128 = scalar_lea.vmem %s0, 26
    %v129 = vld [vmem:[%s128] sm:$0x3]
    %v130 = vunpack.c.l.bf16 %v129
    %s131 = sld [smem:[#allocation3 + $0xd]]
    %v132 = vstv %s131
    %v133 = vmul.f32 %v130, %v132
    %v134 = vadd.f32 %v127, %v133
    %s135 = scalar_lea.vmem %s0, 28
    %v136 = vld [vmem:[%s135] sm:$0x3]
    %v137 = vunpack.c.l.bf16 %v136
    %s138 = sld [smem:[#allocation3 + $0xe]]
    %v139 = vstv %s138
    %v140 = vmul.f32 %v137, %v139
    %v141 = vadd.f32 %v134, %v140
    %s142 = scalar_lea.vmem %s0, 30
    %v143 = vld [vmem:[%s142] sm:$0x3]
    %v144 = vunpack.c.l.bf16 %v143
    %s145 = sld [smem:[#allocation3 + $0xf]]
    %v146 = vstv %s145
    %v147 = vmul.f32 %v144, %v146
    %v148 = vadd.f32 %v141, %v147
    %v151 = vunpack.c.l.s4 1983009808
    %v152 = vunpack.c.0.s8 %v151
    %v153 = vlaneseq
    %v154 = vshrl.u32 %v153, 7
    %v155 = vsub.s32 %v152, %v154
    %v156 = vrot.slane %v148, %v155
    %v157 = vcombine.high %v156, %v156
    %vm160 = vcmask 1041408
    %v161 = vsel %vm160, %v156, -inf
    %v162 = vsel %vm160, %v157, -inf
    %v163 = vmax.f32 %v161, %v162
    %164 = vmax.xlane.f32.xlu0 %v163
    %v165 = vpop.xlane.xlu0 %164
    %v168 = vunpack.c.l.s4 269488144
    %v169 = vunpack.c.0.s8 %v168
    %v170 = vlaneseq
    %v171 = vshrl.u32 %v170, 7
    %v172 = vsub.s32 %v169, %v171
    %v173 = vrot.slane %v165, %v172
    %v175 = vsub.f32 %v148, %v173
    %v176 = vmul.f32 %v175, 1.442695
    %v177 = vpow.pop %v176
    %v180 = vunpack.c.l.s4 1983009808
    %v181 = vunpack.c.0.s8 %v180
    %v182 = vlaneseq
    %v183 = vshrl.u32 %v182, 7
    %v184 = vsub.s32 %v181, %v183
    %v185 = vrot.slane %v177, %v184
    %v186 = vcombine.high %v185, %v185
    %v189 = vsel %vm160, %v185, 0.0
    %v190 = vsel %vm160, %v186, 0.0
    %v191 = vadd.f32 %v189, %v190
    %192 = vadd.xlane.f32.xlu0 %v191
    %v193 = vpop.xlane.xlu0 %192
    %v196 = vunpack.c.l.s4 269488144
    %v197 = vunpack.c.0.s8 %v196
    %v198 = vlaneseq
    %v199 = vshrl.u32 %v198, 7
    %v200 = vsub.s32 %v197, %v199
    %v201 = vrot.slane %v193, %v200
    %v203 = vrcp.pop %v201
    %v204 = vmul.f32 %v177, %v203
    %v205 = vld [vmem:[%s1] sm:$0x3]
    %v207 = vlaneseq
    %v208 = vshrl.u32 %v207, 7
    %v209 = vsub.s32 0, %v208
    %v210 = vrot.slane %v205, %v209
    %v211 = vlaneseq
    %v212 = vshrl.u32 %v211, 7
    %v213 = vsub.s32 1, %v212
    %v214 = vrot.slane %v205, %v213
    %v215 = vcombine.low %v210, %v214
    %v217 = vunpack.c.l.s4 1983009808
    %v218 = vunpack.c.0.s8 %v217
    %v219 = vlaneseq
    %v220 = vshrl.u32 %v219, 7
    %v221 = vsub.s32 %v218, %v220
    %v222 = vrot.slane %v215, %v221
    %v224 = vmul.f32 %v204, %v222
    %v227 = vunpack.c.l.s4 1983009808
    %v228 = vunpack.c.0.s8 %v227
    %v229 = vlaneseq
    %v230 = vshrl.u32 %v229, 7
    %v231 = vsub.s32 %v228, %v230
    %v232 = vrot.slane %v224, %v231
    %v233 = vcombine.high %v232, %v232
    %v236 = vsel %vm160, %v232, 0.0
    %v237 = vsel %vm160, %v233, 0.0
    %v238 = vadd.f32 %v236, %v237
    %239 = vadd.xlane.f32.xlu0 %v238
    %v240 = vpop.xlane.xlu0 %239
    %v241 = vld [vmem:[%s2] sm:$0x3]
    %v243 = vlaneseq
    %v244 = vshrl.u32 %v243, 7
    %v245 = vsub.s32 0, %v244
    %v246 = vrot.slane %v241, %v245
    %v247 = vlaneseq
    %v248 = vshrl.u32 %v247, 7
    %v249 = vsub.s32 1, %v248
    %v250 = vrot.slane %v241, %v249
    %v251 = vcombine.low %v246, %v250
    %v253 = vunpack.c.l.s4 1983009808
    %v254 = vunpack.c.0.s8 %v253
    %v255 = vlaneseq
    %v256 = vshrl.u32 %v255, 7
    %v257 = vsub.s32 %v254, %v256
    %v258 = vrot.slane %v251, %v257
    %v260 = vmul.f32 %v204, %v258
    %v263 = vunpack.c.l.s4 1983009808
    %v264 = vunpack.c.0.s8 %v263
    %v265 = vlaneseq
    %v266 = vshrl.u32 %v265, 7
    %v267 = vsub.s32 %v264, %v266
    %v268 = vrot.slane %v260, %v267
    %v269 = vcombine.high %v268, %v268
    %v272 = vsel %vm160, %v268, 0.0
    %v273 = vsel %vm160, %v269, 0.0
    %v274 = vadd.f32 %v272, %v273
    %275 = vadd.xlane.f32.xlu0 %v274
    %v276 = vpop.xlane.xlu0 %275
    %vm277 = vcmask 7168
    %v278 = vsel %vm277, %v240, %v276
    %vm279 = vcmask 9216
    %280 = vst.msk [vmem:[#allocation6] sm:$0x3] %vm279, %v278
    // Predicated region
    $region26: #{_lambda_.25} parent=1 // pred_check
      _
    $region27: #{_lambda_.25} parent=1 // pred_check_branch
      %282 = sbr.rel (0) target = $region29
    $region28: #{_lambda_.25} parent=1 // pred_region
      %s284 = ssub.s32 32, 32
      %285 = vsyncadd [#allocation4], %s284
      %s287 = sshll.u32 [#allocation6], 4
      %s288 = int_to_ptr.vmem [resolvable:$true] %s287
      %290 = dma.vmem_to_hbm [thread:$0]  %s288, 32, %s5, [#allocation4]
    $region29: #{_lambda_.25} parent=1 // pred_fallthru
      _
    // Predicated region
    $region30: #{_lambda_.25} parent=1 // pred_check
      _
    $region31: #{_lambda_.25} parent=1 // pred_check_branch
      %292 = sbr.rel (0) target = $region33
    $region32: #{_lambda_.25} parent=1 // pred_region
      %293 = dma.done [#allocation4], 32
    $region33: #{_lambda_.25} parent=1 // pred_fallthru
      _
    %294 = vsyncpa [#allocation4], 1
    %295 = vsyncpa [#allocation5], 1

</llo_original>
